<compile_context>
chip_gen: v7x
topology: tpu7x:2x2x1
jax: 0.10.0
libtpu: 0.0.40
codegen_flags: <defaults>
</compile_context>

<pallas_src>
import jax
import jax.numpy as jnp
from jax.experimental import pallas as pl
from jax.experimental.pallas import tpu as pltpu

B, C_IN, H, W = 2, 3, 64, 64          # 64x64 spatial is forced by nn.Linear(64*64*2, 200)
C_OUT = 2
K = 3
FLAT = C_OUT * H * W                  # 8192
HIDDEN = 200
HP = 256                              # lane-padded hidden (multiple of 128)
NUM_CLASSES = 10

ROWS = C_OUT * H                      # 128 rows of width W=64 in the channel-major flatten
RK = 32                               # flatten-rows of w1 streamed per grid step (2 MB f32 slab)
NK = ROWS // RK                       # 4 grid steps (reduction axis)


# ---------------- Fused Pallas kernel ----------------

def fused_kernel(cw_ref, cb_ref, x_ref, w1_ref, b1_ref, w2_ref, b2_ref,
                 o_ref, feat_ref, acc_ref):
    # cw_ref: SMEM (54,)  conv weights (c, ci, kh, kw) flattened
    # cb_ref: SMEM (2,)   conv bias
    # x_ref : VMEM (C_IN, B, H+2, W+2) zero-padded input (resident)
    # w1_ref: VMEM (RK, W, HP)   streamed K-slab of Linear1 weights
    # b1_ref: (1, HP)  w2_ref: (HP, NUM_CLASSES)  b2_ref: (1, NUM_CLASSES)
    # o_ref : (B, NUM_CLASSES)
    # feat_ref: VMEM scratch (B, ROWS, W) conv features, channel-major rows
    # acc_ref : VMEM scratch (B, HP) Linear1 accumulator
    k = pl.program_id(0)

    @pl.when(k == 0)
    def _init():
        acc_ref[...] = jnp.zeros_like(acc_ref)
        # 3x3 SAME conv + ReLU on the VPU: 27 shifted multiply-adds per output channel.
        for c in range(C_OUT):
            acc = jnp.zeros((B, H, W), jnp.float32)
            for ci in range(C_IN):
                xc = x_ref[ci]                                        # (B, H+2, W+2)
                for dh in range(K):
                    for dw in range(K):
                        wv = cw_ref[c * C_IN * K * K + ci * K * K + dh * K + dw]
                        acc = acc + wv * xc[:, dh:dh + H, dw:dw + W]
            # channel-major rows: row r = c*H + h  <=>  PyTorch flatten index c*H*W + h*W + w
            feat_ref[:, pl.ds(c * H, H), :] = jnp.maximum(acc + cb_ref[c], 0.0)

    # Stream this step's contraction slab of Linear1: flatten rows [k*RK, (k+1)*RK).
    r0 = pl.multiple_of(k * RK, RK)
    fblk = feat_ref[:, pl.ds(r0, RK), :]                              # (B, RK, W)
    acc = acc_ref[...]
    for j in range(RK):
        acc = acc + jnp.dot(fblk[:, j, :], w1_ref[j],
                            preferred_element_type=jnp.float32)
    acc_ref[...] = acc

    @pl.when(k == NK - 1)
    def _finalize():
        h = jnp.maximum(acc_ref[...] + b1_ref[...], 0.0)              # (B, HP); padded cols stay 0
        o_ref[...] = (jnp.dot(h, w2_ref[...], preferred_element_type=jnp.float32)
                      + b2_ref[...])


# ---------------- Wrappers ----------------

def prepare_params(params):
    """One-time re-layout of PyTorch-style params into kernel layout (kept OUT of the forward)."""
    conv_w, conv_b, w1, b1, w2, b2 = params
    cw_flat = conv_w.reshape(-1).astype(jnp.float32)                  # (54,), (c, ci, kh, kw) order
    cb = conv_b.astype(jnp.float32)                                   # (2,)
    w1p = jnp.pad(w1, ((0, 0), (0, HP - HIDDEN)))                     # (FLAT, 256), zero pad cols
    w1r = w1p.reshape(ROWS, W, HP)                                    # (128, 64, 256)
    b1p = jnp.pad(b1, (0, HP - HIDDEN)).reshape(1, HP)                # (1, 256)
    w2p = jnp.pad(w2, ((0, HP - HIDDEN), (0, 0)))                     # (256, 10), zero pad rows
    b2r = b2.reshape(1, NUM_CLASSES)                                  # (1, 10)
    return cw_flat, cb, w1r, b1p, w2p, b2r


@jax.jit
def cnn_two_forward(x, kparams):
    cw_flat, cb, w1r, b1p, w2p, b2r = kparams
    # zero-pad spatial by 1 and put channel first so the kernel can do x_ref[ci]  (~100 KB, cheap)
    xp = jnp.transpose(jnp.pad(x, ((0, 0), (0, 0), (1, 1), (1, 1))), (1, 0, 2, 3))

    cost = pl.CostEstimate(
        flops=2 * B * (C_OUT * H * W * C_IN * K * K + FLAT * HP + HP * NUM_CLASSES),
        transcendentals=0,
        bytes_accessed=4 * (w1r.size + xp.size + w2p.size + b1p.size + B * NUM_CLASSES),
    )

    return pl.pallas_call(
        fused_kernel,
        out_shape=jax.ShapeDtypeStruct((B, NUM_CLASSES), jnp.float32),
        grid_spec=pltpu.PrefetchScalarGridSpec(
            num_scalar_prefetch=0,
            grid=(NK,),
            in_specs=[
                pl.BlockSpec(memory_space=pltpu.MemorySpace.SMEM),            # conv weights (scalars)
                pl.BlockSpec(memory_space=pltpu.MemorySpace.SMEM),            # conv bias    (scalars)
                pl.BlockSpec((C_IN, B, H + 2, W + 2), lambda k: (0, 0, 0, 0)),  # padded x, resident
                pl.BlockSpec((RK, W, HP), lambda k: (k, 0, 0)),               # w1 slab, streamed
                pl.BlockSpec((1, HP), lambda k: (0, 0)),                      # b1
                pl.BlockSpec((HP, NUM_CLASSES), lambda k: (0, 0)),            # w2
                pl.BlockSpec((1, NUM_CLASSES), lambda k: (0, 0)),             # b2
            ],
            out_specs=pl.BlockSpec((B, NUM_CLASSES), lambda k: (0, 0)),
            scratch_shapes=[
                pltpu.VMEM((B, ROWS, W), jnp.float32),    # conv features (64 KB)
                pltpu.VMEM((B, HP), jnp.float32),         # Linear1 accumulator
            ],
        ),
        compiler_params=pltpu.CompilerParams(dimension_semantics=("arbitrary",)),
        cost_estimate=cost,
    )(cw_flat, cb, xp, w1r, b1p, w2p, b2r)


def reference_forward(x, params):
    conv_w, conv_b, w1, b1, w2, b2 = params
    y = jax.lax.conv_general_dilated(
        x, conv_w, window_strides=(1, 1), padding="SAME",
        dimension_numbers=("NCHW", "OIHW", "NCHW"))
    y = jnp.maximum(y + conv_b.reshape(1, C_OUT, 1, 1), 0.0)
    f = y.reshape(B, -1)
    h = jnp.maximum(f @ w1 + b1[None, :], 0.0)
    return h @ w2 + b2[None, :]


def init_params(key):
    ks = jax.random.split(key, 6)
    bnd_c = 1.0 / jnp.sqrt(C_IN * K * K)
    conv_w = jax.random.uniform(ks[0], (C_OUT, C_IN, K, K), jnp.float32, -bnd_c, bnd_c)
    conv_b = jax.random.uniform(ks[1], (C_OUT,), jnp.float32, -bnd_c, bnd_c)
    bnd1 = 1.0 / jnp.sqrt(FLAT)
    w1 = jax.random.uniform(ks[2], (FLAT, HIDDEN), jnp.float32, -bnd1, bnd1)  # pre-transposed (in, out)
    b1 = jax.random.uniform(ks[3], (HIDDEN,), jnp.float32, -bnd1, bnd1)
    bnd2 = 1.0 / jnp.sqrt(HIDDEN)
    w2 = jax.random.uniform(ks[4], (HIDDEN, NUM_CLASSES), jnp.float32, -bnd2, bnd2)
    b2 = jax.random.uniform(ks[5], (NUM_CLASSES,), jnp.float32, -bnd2, bnd2)
    return conv_w, conv_b, w1, b1, w2, b2


if __name__ == "__main__":
    key = jax.random.PRNGKey(0)
    kx, kp = jax.random.split(key)
    x = jax.random.normal(kx, (B, C_IN, H, W), jnp.float32)
    params = init_params(kp)
    kparams = prepare_params(params)                 # one-time weight re-layout (outside the forward)

    out = jax.block_until_ready(cnn_two_forward(x, kparams))
    assert out.shape == (B, NUM_CLASSES) and out.dtype == jnp.float32

    ref = reference_forward(x, params)
    assert jnp.allclose(out, ref, atol=1e-3, rtol=1e-3), "Pallas output mismatch vs JAX reference"

    print("KERNEL_OK")
</pallas_src>

<mosaic_0001>
module attributes {stable_mosaic.version = 11 : i64} {
  func.func @fused_kernel(%arg0: i32, %arg1: memref<54xf32, #tpu.memory_space<smem>>, %arg2: memref<2xf32, #tpu.memory_space<smem>>, %arg3: memref<3x2x66x66xf32, #tpu.memory_space<vmem>>, %arg4: memref<32x64x256xf32, #tpu.memory_space<vmem>>, %arg5: memref<1x256xf32, #tpu.memory_space<vmem>>, %arg6: memref<256x10xf32, #tpu.memory_space<vmem>>, %arg7: memref<1x10xf32, #tpu.memory_space<vmem>>, %arg8: memref<2x10xf32, #tpu.memory_space<vmem>>, %arg9: memref<2x128x64xf32, #tpu.memory_space<vmem>>, %arg10: memref<2x256xf32, #tpu.memory_space<vmem>>) attributes {dimension_semantics = [#tpu.dimension_semantics<arbitrary>], iteration_bounds = array<i64: 4>, scalar_prefetch = 0 : i64, scratch_operands = 2 : i64, tpu.core_type = #tpu.core_type<tc>, window_params = [{transform_indices = @transform_0, window_bounds = array<i64: 54>}, {transform_indices = @transform_1, window_bounds = array<i64: 2>}, {pipeline_mode = #tpu.pipeline_mode<synchronous>, transform_indices = @transform_2, window_bounds = array<i64: 3, 2, 66, 66>}, {transform_indices = @transform_3, window_bounds = array<i64: 32, 64, 256>}, {pipeline_mode = #tpu.pipeline_mode<synchronous>, transform_indices = @transform_4, window_bounds = array<i64: 1, 256>}, {pipeline_mode = #tpu.pipeline_mode<synchronous>, transform_indices = @transform_5, window_bounds = array<i64: 256, 10>}, {pipeline_mode = #tpu.pipeline_mode<synchronous>, transform_indices = @transform_6, window_bounds = array<i64: 1, 10>}, {pipeline_mode = #tpu.pipeline_mode<synchronous>, transform_indices = @transform_7, window_bounds = array<i64: 2, 10>}]} {
    %c0_i32 = arith.constant 0 : i32
    %0 = arith.cmpi eq, %arg0, %c0_i32 : i32
    %1 = arith.extui %0 : i1 to i32
    %c0_i32_0 = arith.constant 0 : i32
    %2 = arith.cmpi ne, %1, %c0_i32_0 : i32
    scf.if %2 {
      %cst_103 = arith.constant 0.000000e+00 : f32
      %204 = vector.broadcast %cst_103 : f32 to vector<2x256xf32>
      %c0_104 = arith.constant 0 : index
      %c0_105 = arith.constant 0 : index
      %205 = vector.load %arg10[%c0_104, %c0_105] : memref<2x256xf32, #tpu.memory_space<vmem>>, vector<2x256xf32>
      tpu.vector_store %arg10[%c0_104, %c0_105], %204 {strides = array<i32>} : memref<2x256xf32, #tpu.memory_space<vmem>>, vector<2x256xf32>,
      %cst_106 = arith.constant 0.000000e+00 : f32
      %206 = vector.broadcast %cst_106 : f32 to vector<2x64x64xf32>
      %c0_107 = arith.constant 0 : index
      %c0_108 = arith.constant 0 : index
      %c0_109 = arith.constant 0 : index
      %c0_110 = arith.constant 0 : index
      %207 = vector.load %arg3[%c0_107, %c0_108, %c0_109, %c0_110] : memref<3x2x66x66xf32, #tpu.memory_space<vmem>>, vector<1x2x66x66xf32>
      %208 = vector.shape_cast %207 : vector<1x2x66x66xf32> to vector<2x66x66xf32>
      %c0_111 = arith.constant 0 : index
      %209 = memref.load %arg1[%c0_111] : memref<54xf32, #tpu.memory_space<smem>>
      %210 = vector.extract_strided_slice %208 {offsets = [0, 0, 0], sizes = [2, 64, 64], strides = [1, 1, 1]} : vector<2x66x66xf32> to vector<2x64x64xf32>
      %211 = vector.broadcast %209 : f32 to vector<2x64x64xf32>
      %212 = arith.mulf %211, %210 : vector<2x64x64xf32>
      %213 = arith.addf %206, %212 : vector<2x64x64xf32>
      %c1_112 = arith.constant 1 : index
      %214 = memref.load %arg1[%c1_112] : memref<54xf32, #tpu.memory_space<smem>>
      %215 = vector.extract_strided_slice %208 {offsets = [0, 0, 1], sizes = [2, 64, 64], strides = [1, 1, 1]} : vector<2x66x66xf32> to vector<2x64x64xf32>
      %216 = vector.broadcast %214 : f32 to vector<2x64x64xf32>
      %217 = arith.mulf %216, %215 : vector<2x64x64xf32>
      %218 = arith.addf %213, %217 : vector<2x64x64xf32>
      %c2_113 = arith.constant 2 : index
      %219 = memref.load %arg1[%c2_113] : memref<54xf32, #tpu.memory_space<smem>>
      %220 = vector.extract_strided_slice %208 {offsets = [0, 0, 2], sizes = [2, 64, 64], strides = [1, 1, 1]} : vector<2x66x66xf32> to vector<2x64x64xf32>
      %221 = vector.broadcast %219 : f32 to vector<2x64x64xf32>
      %222 = arith.mulf %221, %220 : vector<2x64x64xf32>
      %223 = arith.addf %218, %222 : vector<2x64x64xf32>
      %c3_114 = arith.constant 3 : index
      %224 = memref.load %arg1[%c3_114] : memref<54xf32, #tpu.memory_space<smem>>
      %225 = vector.extract_strided_slice %208 {offsets = [0, 1, 0], sizes = [2, 64, 64], strides = [1, 1, 1]} : vector<2x66x66xf32> to vector<2x64x64xf32>
      %226 = vector.broadcast %224 : f32 to vector<2x64x64xf32>
      %227 = arith.mulf %226, %225 : vector<2x64x64xf32>
      %228 = arith.addf %223, %227 : vector<2x64x64xf32>
      %c4_115 = arith.constant 4 : index
      %229 = memref.load %arg1[%c4_115] : memref<54xf32, #tpu.memory_space<smem>>
      %230 = vector.extract_strided_slice %208 {offsets = [0, 1, 1], sizes = [2, 64, 64], strides = [1, 1, 1]} : vector<2x66x66xf32> to vector<2x64x64xf32>
      %231 = vector.broadcast %229 : f32 to vector<2x64x64xf32>
      %232 = arith.mulf %231, %230 : vector<2x64x64xf32>
      %233 = arith.addf %228, %232 : vector<2x64x64xf32>
      %c5_116 = arith.constant 5 : index
      %234 = memref.load %arg1[%c5_116] : memref<54xf32, #tpu.memory_space<smem>>
      %235 = vector.extract_strided_slice %208 {offsets = [0, 1, 2], sizes = [2, 64, 64], strides = [1, 1, 1]} : vector<2x66x66xf32> to vector<2x64x64xf32>
      %236 = vector.broadcast %234 : f32 to vector<2x64x64xf32>
      %237 = arith.mulf %236, %235 : vector<2x64x64xf32>
      %238 = arith.addf %233, %237 : vector<2x64x64xf32>
      %c6_117 = arith.constant 6 : index
      %239 = memref.load %arg1[%c6_117] : memref<54xf32, #tpu.memory_space<smem>>
      %240 = vector.extract_strided_slice %208 {offsets = [0, 2, 0], sizes = [2, 64, 64], strides = [1, 1, 1]} : vector<2x66x66xf32> to vector<2x64x64xf32>
      %241 = vector.broadcast %239 : f32 to vector<2x64x64xf32>
      %242 = arith.mulf %241, %240 : vector<2x64x64xf32>
      %243 = arith.addf %238, %242 : vector<2x64x64xf32>
      %c7_118 = arith.constant 7 : index
      %244 = memref.load %arg1[%c7_118] : memref<54xf32, #tpu.memory_space<smem>>
      %245 = vector.extract_strided_slice %208 {offsets = [0, 2, 1], sizes = [2, 64, 64], strides = [1, 1, 1]} : vector<2x66x66xf32> to vector<2x64x64xf32>
      %246 = vector.broadcast %244 : f32 to vector<2x64x64xf32>
      %247 = arith.mulf %246, %245 : vector<2x64x64xf32>
      %248 = arith.addf %243, %247 : vector<2x64x64xf32>
      %c8_119 = arith.constant 8 : index
      %249 = memref.load %arg1[%c8_119] : memref<54xf32, #tpu.memory_space<smem>>
      %250 = vector.extract_strided_slice %208 {offsets = [0, 2, 2], sizes = [2, 64, 64], strides = [1, 1, 1]} : vector<2x66x66xf32> to vector<2x64x64xf32>
      %251 = vector.broadcast %249 : f32 to vector<2x64x64xf32>
      %252 = arith.mulf %251, %250 : vector<2x64x64xf32>
      %253 = arith.addf %248, %252 : vector<2x64x64xf32>
      %c1_120 = arith.constant 1 : index
      %c0_121 = arith.constant 0 : index
      %c0_122 = arith.constant 0 : index
      %c0_123 = arith.constant 0 : index
      %254 = vector.load %arg3[%c1_120, %c0_121, %c0_122, %c0_123] : memref<3x2x66x66xf32, #tpu.memory_space<vmem>>, vector<1x2x66x66xf32>
      %255 = vector.shape_cast %254 : vector<1x2x66x66xf32> to vector<2x66x66xf32>
      %c9_124 = arith.constant 9 : index
      %256 = memref.load %arg1[%c9_124] : memref<54xf32, #tpu.memory_space<smem>>
      %257 = vector.extract_strided_slice %255 {offsets = [0, 0, 0], sizes = [2, 64, 64], strides = [1, 1, 1]} : vector<2x66x66xf32> to vector<2x64x64xf32>
      %258 = vector.broadcast %256 : f32 to vector<2x64x64xf32>
      %259 = arith.mulf %258, %257 : vector<2x64x64xf32>
      %260 = arith.addf %253, %259 : vector<2x64x64xf32>
      %c10_125 = arith.constant 10 : index
      %261 = memref.load %arg1[%c10_125] : memref<54xf32, #tpu.memory_space<smem>>
      %262 = vector.extract_strided_slice %255 {offsets = [0, 0, 1], sizes = [2, 64, 64], strides = [1, 1, 1]} : vector<2x66x66xf32> to vector<2x64x64xf32>
      %263 = vector.broadcast %261 : f32 to vector<2x64x64xf32>
      %264 = arith.mulf %263, %262 : vector<2x64x64xf32>
      %265 = arith.addf %260, %264 : vector<2x64x64xf32>
      %c11_126 = arith.constant 11 : index
      %266 = memref.load %arg1[%c11_126] : memref<54xf32, #tpu.memory_space<smem>>
      %267 = vector.extract_strided_slice %255 {offsets = [0, 0, 2], sizes = [2, 64, 64], strides = [1, 1, 1]} : vector<2x66x66xf32> to vector<2x64x64xf32>
      %268 = vector.broadcast %266 : f32 to vector<2x64x64xf32>
      %269 = arith.mulf %268, %267 : vector<2x64x64xf32>
      %270 = arith.addf %265, %269 : vector<2x64x64xf32>
      %c12_127 = arith.constant 12 : index
      %271 = memref.load %arg1[%c12_127] : memref<54xf32, #tpu.memory_space<smem>>
      %272 = vector.extract_strided_slice %255 {offsets = [0, 1, 0], sizes = [2, 64, 64], strides = [1, 1, 1]} : vector<2x66x66xf32> to vector<2x64x64xf32>
      %273 = vector.broadcast %271 : f32 to vector<2x64x64xf32>
      %274 = arith.mulf %273, %272 : vector<2x64x64xf32>
      %275 = arith.addf %270, %274 : vector<2x64x64xf32>
      %c13_128 = arith.constant 13 : index
      %276 = memref.load %arg1[%c13_128] : memref<54xf32, #tpu.memory_space<smem>>
      %277 = vector.extract_strided_slice %255 {offsets = [0, 1, 1], sizes = [2, 64, 64], strides = [1, 1, 1]} : vector<2x66x66xf32> to vector<2x64x64xf32>
      %278 = vector.broadcast %276 : f32 to vector<2x64x64xf32>
      %279 = arith.mulf %278, %277 : vector<2x64x64xf32>
      %280 = arith.addf %275, %279 : vector<2x64x64xf32>
      %c14_129 = arith.constant 14 : index
      %281 = memref.load %arg1[%c14_129] : memref<54xf32, #tpu.memory_space<smem>>
      %282 = vector.extract_strided_slice %255 {offsets = [0, 1, 2], sizes = [2, 64, 64], strides = [1, 1, 1]} : vector<2x66x66xf32> to vector<2x64x64xf32>
      %283 = vector.broadcast %281 : f32 to vector<2x64x64xf32>
      %284 = arith.mulf %283, %282 : vector<2x64x64xf32>
      %285 = arith.addf %280, %284 : vector<2x64x64xf32>
      %c15_130 = arith.constant 15 : index
      %286 = memref.load %arg1[%c15_130] : memref<54xf32, #tpu.memory_space<smem>>
      %287 = vector.extract_strided_slice %255 {offsets = [0, 2, 0], sizes = [2, 64, 64], strides = [1, 1, 1]} : vector<2x66x66xf32> to vector<2x64x64xf32>
      %288 = vector.broadcast %286 : f32 to vector<2x64x64xf32>
      %289 = arith.mulf %288, %287 : vector<2x64x64xf32>
      %290 = arith.addf %285, %289 : vector<2x64x64xf32>
      %c16_131 = arith.constant 16 : index
      %291 = memref.load %arg1[%c16_131] : memref<54xf32, #tpu.memory_space<smem>>
      %292 = vector.extract_strided_slice %255 {offsets = [0, 2, 1], sizes = [2, 64, 64], strides = [1, 1, 1]} : vector<2x66x66xf32> to vector<2x64x64xf32>
      %293 = vector.broadcast %291 : f32 to vector<2x64x64xf32>
      %294 = arith.mulf %293, %292 : vector<2x64x64xf32>
      %295 = arith.addf %290, %294 : vector<2x64x64xf32>
      %c17_132 = arith.constant 17 : index
      %296 = memref.load %arg1[%c17_132] : memref<54xf32, #tpu.memory_space<smem>>
      %297 = vector.extract_strided_slice %255 {offsets = [0, 2, 2], sizes = [2, 64, 64], strides = [1, 1, 1]} : vector<2x66x66xf32> to vector<2x64x64xf32>
      %298 = vector.broadcast %296 : f32 to vector<2x64x64xf32>
      %299 = arith.mulf %298, %297 : vector<2x64x64xf32>
      %300 = arith.addf %295, %299 : vector<2x64x64xf32>
      %c2_133 = arith.constant 2 : index
      %c0_134 = arith.constant 0 : index
      %c0_135 = arith.constant 0 : index
      %c0_136 = arith.constant 0 : index
      %301 = vector.load %arg3[%c2_133, %c0_134, %c0_135, %c0_136] : memref<3x2x66x66xf32, #tpu.memory_space<vmem>>, vector<1x2x66x66xf32>
      %302 = vector.shape_cast %301 : vector<1x2x66x66xf32> to vector<2x66x66xf32>
      %c18_137 = arith.constant 18 : index
      %303 = memref.load %arg1[%c18_137] : memref<54xf32, #tpu.memory_space<smem>>
      %304 = vector.extract_strided_slice %302 {offsets = [0, 0, 0], sizes = [2, 64, 64], strides = [1, 1, 1]} : vector<2x66x66xf32> to vector<2x64x64xf32>
      %305 = vector.broadcast %303 : f32 to vector<2x64x64xf32>
      %306 = arith.mulf %305, %304 : vector<2x64x64xf32>
      %307 = arith.addf %300, %306 : vector<2x64x64xf32>
      %c19_138 = arith.constant 19 : index
      %308 = memref.load %arg1[%c19_138] : memref<54xf32, #tpu.memory_space<smem>>
      %309 = vector.extract_strided_slice %302 {offsets = [0, 0, 1], sizes = [2, 64, 64], strides = [1, 1, 1]} : vector<2x66x66xf32> to vector<2x64x64xf32>
      %310 = vector.broadcast %308 : f32 to vector<2x64x64xf32>
      %311 = arith.mulf %310, %309 : vector<2x64x64xf32>
      %312 = arith.addf %307, %311 : vector<2x64x64xf32>
      %c20_139 = arith.constant 20 : index
      %313 = memref.load %arg1[%c20_139] : memref<54xf32, #tpu.memory_space<smem>>
      %314 = vector.extract_strided_slice %302 {offsets = [0, 0, 2], sizes = [2, 64, 64], strides = [1, 1, 1]} : vector<2x66x66xf32> to vector<2x64x64xf32>
      %315 = vector.broadcast %313 : f32 to vector<2x64x64xf32>
      %316 = arith.mulf %315, %314 : vector<2x64x64xf32>
      %317 = arith.addf %312, %316 : vector<2x64x64xf32>
      %c21_140 = arith.constant 21 : index
      %318 = memref.load %arg1[%c21_140] : memref<54xf32, #tpu.memory_space<smem>>
      %319 = vector.extract_strided_slice %302 {offsets = [0, 1, 0], sizes = [2, 64, 64], strides = [1, 1, 1]} : vector<2x66x66xf32> to vector<2x64x64xf32>
      %320 = vector.broadcast %318 : f32 to vector<2x64x64xf32>
      %321 = arith.mulf %320, %319 : vector<2x64x64xf32>
      %322 = arith.addf %317, %321 : vector<2x64x64xf32>
      %c22_141 = arith.constant 22 : index
      %323 = memref.load %arg1[%c22_141] : memref<54xf32, #tpu.memory_space<smem>>
      %324 = vector.extract_strided_slice %302 {offsets = [0, 1, 1], sizes = [2, 64, 64], strides = [1, 1, 1]} : vector<2x66x66xf32> to vector<2x64x64xf32>
      %325 = vector.broadcast %323 : f32 to vector<2x64x64xf32>
      %326 = arith.mulf %325, %324 : vector<2x64x64xf32>
      %327 = arith.addf %322, %326 : vector<2x64x64xf32>
      %c23_142 = arith.constant 23 : index
      %328 = memref.load %arg1[%c23_142] : memref<54xf32, #tpu.memory_space<smem>>
      %329 = vector.extract_strided_slice %302 {offsets = [0, 1, 2], sizes = [2, 64, 64], strides = [1, 1, 1]} : vector<2x66x66xf32> to vector<2x64x64xf32>
      %330 = vector.broadcast %328 : f32 to vector<2x64x64xf32>
      %331 = arith.mulf %330, %329 : vector<2x64x64xf32>
      %332 = arith.addf %327, %331 : vector<2x64x64xf32>
      %c24_143 = arith.constant 24 : index
      %333 = memref.load %arg1[%c24_143] : memref<54xf32, #tpu.memory_space<smem>>
      %334 = vector.extract_strided_slice %302 {offsets = [0, 2, 0], sizes = [2, 64, 64], strides = [1, 1, 1]} : vector<2x66x66xf32> to vector<2x64x64xf32>
      %335 = vector.broadcast %333 : f32 to vector<2x64x64xf32>
      %336 = arith.mulf %335, %334 : vector<2x64x64xf32>
      %337 = arith.addf %332, %336 : vector<2x64x64xf32>
      %c25_144 = arith.constant 25 : index
      %338 = memref.load %arg1[%c25_144] : memref<54xf32, #tpu.memory_space<smem>>
      %339 = vector.extract_strided_slice %302 {offsets = [0, 2, 1], sizes = [2, 64, 64], strides = [1, 1, 1]} : vector<2x66x66xf32> to vector<2x64x64xf32>
      %340 = vector.broadcast %338 : f32 to vector<2x64x64xf32>
      %341 = arith.mulf %340, %339 : vector<2x64x64xf32>
      %342 = arith.addf %337, %341 : vector<2x64x64xf32>
      %c26_145 = arith.constant 26 : index
      %343 = memref.load %arg1[%c26_145] : memref<54xf32, #tpu.memory_space<smem>>
      %344 = vector.extract_strided_slice %302 {offsets = [0, 2, 2], sizes = [2, 64, 64], strides = [1, 1, 1]} : vector<2x66x66xf32> to vector<2x64x64xf32>
      %345 = vector.broadcast %343 : f32 to vector<2x64x64xf32>
      %346 = arith.mulf %345, %344 : vector<2x64x64xf32>
      %347 = arith.addf %342, %346 : vector<2x64x64xf32>
      %c0_146 = arith.constant 0 : index
      %348 = memref.load %arg2[%c0_146] : memref<2xf32, #tpu.memory_space<smem>>
      %349 = vector.broadcast %348 : f32 to vector<2x64x64xf32>
      %350 = arith.addf %347, %349 : vector<2x64x64xf32>
      %cst_147 = arith.constant 0.000000e+00 : f32
      %351 = vector.broadcast %cst_147 : f32 to vector<2x64x64xf32>
      %352 = arith.maximumf %350, %351 : vector<2x64x64xf32>
      %c0_148 = arith.constant 0 : index
      %c0_149 = arith.constant 0 : index
      %c0_150 = arith.constant 0 : index
      %353 = vector.load %arg9[%c0_148, %c0_149, %c0_150] : memref<2x128x64xf32, #tpu.memory_space<vmem>>, vector<2x64x64xf32>
      tpu.vector_store %arg9[%c0_148, %c0_149, %c0_150], %352 {strides = array<i32>} : memref<2x128x64xf32, #tpu.memory_space<vmem>>, vector<2x64x64xf32>,
      %cst_151 = arith.constant 0.000000e+00 : f32
      %354 = vector.broadcast %cst_151 : f32 to vector<2x64x64xf32>
      %c0_152 = arith.constant 0 : index
      %c0_153 = arith.constant 0 : index
      %c0_154 = arith.constant 0 : index
      %c0_155 = arith.constant 0 : index
      %355 = vector.load %arg3[%c0_152, %c0_153, %c0_154, %c0_155] : memref<3x2x66x66xf32, #tpu.memory_space<vmem>>, vector<1x2x66x66xf32>
      %356 = vector.shape_cast %355 : vector<1x2x66x66xf32> to vector<2x66x66xf32>
      %c27_156 = arith.constant 27 : index
      %357 = memref.load %arg1[%c27_156] : memref<54xf32, #tpu.memory_space<smem>>
      %358 = vector.extract_strided_slice %356 {offsets = [0, 0, 0], sizes = [2, 64, 64], strides = [1, 1, 1]} : vector<2x66x66xf32> to vector<2x64x64xf32>
      %359 = vector.broadcast %357 : f32 to vector<2x64x64xf32>
      %360 = arith.mulf %359, %358 : vector<2x64x64xf32>
      %361 = arith.addf %354, %360 : vector<2x64x64xf32>
      %c28_157 = arith.constant 28 : index
      %362 = memref.load %arg1[%c28_157] : memref<54xf32, #tpu.memory_space<smem>>
      %363 = vector.extract_strided_slice %356 {offsets = [0, 0, 1], sizes = [2, 64, 64], strides = [1, 1, 1]} : vector<2x66x66xf32> to vector<2x64x64xf32>
      %364 = vector.broadcast %362 : f32 to vector<2x64x64xf32>
      %365 = arith.mulf %364, %363 : vector<2x64x64xf32>
      %366 = arith.addf %361, %365 : vector<2x64x64xf32>
      %c29_158 = arith.constant 29 : index
      %367 = memref.load %arg1[%c29_158] : memref<54xf32, #tpu.memory_space<smem>>
      %368 = vector.extract_strided_slice %356 {offsets = [0, 0, 2], sizes = [2, 64, 64], strides = [1, 1, 1]} : vector<2x66x66xf32> to vector<2x64x64xf32>
      %369 = vector.broadcast %367 : f32 to vector<2x64x64xf32>
      %370 = arith.mulf %369, %368 : vector<2x64x64xf32>
      %371 = arith.addf %366, %370 : vector<2x64x64xf32>
      %c30_159 = arith.constant 30 : index
      %372 = memref.load %arg1[%c30_159] : memref<54xf32, #tpu.memory_space<smem>>
      %373 = vector.extract_strided_slice %356 {offsets = [0, 1, 0], sizes = [2, 64, 64], strides = [1, 1, 1]} : vector<2x66x66xf32> to vector<2x64x64xf32>
      %374 = vector.broadcast %372 : f32 to vector<2x64x64xf32>
      %375 = arith.mulf %374, %373 : vector<2x64x64xf32>
      %376 = arith.addf %371, %375 : vector<2x64x64xf32>
      %c31_160 = arith.constant 31 : index
      %377 = memref.load %arg1[%c31_160] : memref<54xf32, #tpu.memory_space<smem>>
      %378 = vector.extract_strided_slice %356 {offsets = [0, 1, 1], sizes = [2, 64, 64], strides = [1, 1, 1]} : vector<2x66x66xf32> to vector<2x64x64xf32>
      %379 = vector.broadcast %377 : f32 to vector<2x64x64xf32>
      %380 = arith.mulf %379, %378 : vector<2x64x64xf32>
      %381 = arith.addf %376, %380 : vector<2x64x64xf32>
      %c32 = arith.constant 32 : index
      %382 = memref.load %arg1[%c32] : memref<54xf32, #tpu.memory_space<smem>>
      %383 = vector.extract_strided_slice %356 {offsets = [0, 1, 2], sizes = [2, 64, 64], strides = [1, 1, 1]} : vector<2x66x66xf32> to vector<2x64x64xf32>
      %384 = vector.broadcast %382 : f32 to vector<2x64x64xf32>
      %385 = arith.mulf %384, %383 : vector<2x64x64xf32>
      %386 = arith.addf %381, %385 : vector<2x64x64xf32>
      %c33 = arith.constant 33 : index
      %387 = memref.load %arg1[%c33] : memref<54xf32, #tpu.memory_space<smem>>
      %388 = vector.extract_strided_slice %356 {offsets = [0, 2, 0], sizes = [2, 64, 64], strides = [1, 1, 1]} : vector<2x66x66xf32> to vector<2x64x64xf32>
      %389 = vector.broadcast %387 : f32 to vector<2x64x64xf32>
      %390 = arith.mulf %389, %388 : vector<2x64x64xf32>
      %391 = arith.addf %386, %390 : vector<2x64x64xf32>
      %c34 = arith.constant 34 : index
      %392 = memref.load %arg1[%c34] : memref<54xf32, #tpu.memory_space<smem>>
      %393 = vector.extract_strided_slice %356 {offsets = [0, 2, 1], sizes = [2, 64, 64], strides = [1, 1, 1]} : vector<2x66x66xf32> to vector<2x64x64xf32>
      %394 = vector.broadcast %392 : f32 to vector<2x64x64xf32>
      %395 = arith.mulf %394, %393 : vector<2x64x64xf32>
      %396 = arith.addf %391, %395 : vector<2x64x64xf32>
      %c35 = arith.constant 35 : index
      %397 = memref.load %arg1[%c35] : memref<54xf32, #tpu.memory_space<smem>>
      %398 = vector.extract_strided_slice %356 {offsets = [0, 2, 2], sizes = [2, 64, 64], strides = [1, 1, 1]} : vector<2x66x66xf32> to vector<2x64x64xf32>
      %399 = vector.broadcast %397 : f32 to vector<2x64x64xf32>
      %400 = arith.mulf %399, %398 : vector<2x64x64xf32>
      %401 = arith.addf %396, %400 : vector<2x64x64xf32>
      %c1_161 = arith.constant 1 : index
      %c0_162 = arith.constant 0 : index
      %c0_163 = arith.constant 0 : index
      %c0_164 = arith.constant 0 : index
      %402 = vector.load %arg3[%c1_161, %c0_162, %c0_163, %c0_164] : memref<3x2x66x66xf32, #tpu.memory_space<vmem>>, vector<1x2x66x66xf32>
      %403 = vector.shape_cast %402 : vector<1x2x66x66xf32> to vector<2x66x66xf32>
      %c36 = arith.constant 36 : index
      %404 = memref.load %arg1[%c36] : memref<54xf32, #tpu.memory_space<smem>>
      %405 = vector.extract_strided_slice %403 {offsets = [0, 0, 0], sizes = [2, 64, 64], strides = [1, 1, 1]} : vector<2x66x66xf32> to vector<2x64x64xf32>
      %406 = vector.broadcast %404 : f32 to vector<2x64x64xf32>
      %407 = arith.mulf %406, %405 : vector<2x64x64xf32>
      %408 = arith.addf %401, %407 : vector<2x64x64xf32>
      %c37 = arith.constant 37 : index
      %409 = memref.load %arg1[%c37] : memref<54xf32, #tpu.memory_space<smem>>
      %410 = vector.extract_strided_slice %403 {offsets = [0, 0, 1], sizes = [2, 64, 64], strides = [1, 1, 1]} : vector<2x66x66xf32> to vector<2x64x64xf32>
      %411 = vector.broadcast %409 : f32 to vector<2x64x64xf32>
      %412 = arith.mulf %411, %410 : vector<2x64x64xf32>
      %413 = arith.addf %408, %412 : vector<2x64x64xf32>
      %c38 = arith.constant 38 : index
      %414 = memref.load %arg1[%c38] : memref<54xf32, #tpu.memory_space<smem>>
      %415 = vector.extract_strided_slice %403 {offsets = [0, 0, 2], sizes = [2, 64, 64], strides = [1, 1, 1]} : vector<2x66x66xf32> to vector<2x64x64xf32>
      %416 = vector.broadcast %414 : f32 to vector<2x64x64xf32>
      %417 = arith.mulf %416, %415 : vector<2x64x64xf32>
      %418 = arith.addf %413, %417 : vector<2x64x64xf32>
      %c39 = arith.constant 39 : index
      %419 = memref.load %arg1[%c39] : memref<54xf32, #tpu.memory_space<smem>>
      %420 = vector.extract_strided_slice %403 {offsets = [0, 1, 0], sizes = [2, 64, 64], strides = [1, 1, 1]} : vector<2x66x66xf32> to vector<2x64x64xf32>
      %421 = vector.broadcast %419 : f32 to vector<2x64x64xf32>
      %422 = arith.mulf %421, %420 : vector<2x64x64xf32>
      %423 = arith.addf %418, %422 : vector<2x64x64xf32>
      %c40 = arith.constant 40 : index
      %424 = memref.load %arg1[%c40] : memref<54xf32, #tpu.memory_space<smem>>
      %425 = vector.extract_strided_slice %403 {offsets = [0, 1, 1], sizes = [2, 64, 64], strides = [1, 1, 1]} : vector<2x66x66xf32> to vector<2x64x64xf32>
      %426 = vector.broadcast %424 : f32 to vector<2x64x64xf32>
      %427 = arith.mulf %426, %425 : vector<2x64x64xf32>
      %428 = arith.addf %423, %427 : vector<2x64x64xf32>
      %c41 = arith.constant 41 : index
      %429 = memref.load %arg1[%c41] : memref<54xf32, #tpu.memory_space<smem>>
      %430 = vector.extract_strided_slice %403 {offsets = [0, 1, 2], sizes = [2, 64, 64], strides = [1, 1, 1]} : vector<2x66x66xf32> to vector<2x64x64xf32>
      %431 = vector.broadcast %429 : f32 to vector<2x64x64xf32>
      %432 = arith.mulf %431, %430 : vector<2x64x64xf32>
      %433 = arith.addf %428, %432 : vector<2x64x64xf32>
      %c42 = arith.constant 42 : index
      %434 = memref.load %arg1[%c42] : memref<54xf32, #tpu.memory_space<smem>>
      %435 = vector.extract_strided_slice %403 {offsets = [0, 2, 0], sizes = [2, 64, 64], strides = [1, 1, 1]} : vector<2x66x66xf32> to vector<2x64x64xf32>
      %436 = vector.broadcast %434 : f32 to vector<2x64x64xf32>
      %437 = arith.mulf %436, %435 : vector<2x64x64xf32>
      %438 = arith.addf %433, %437 : vector<2x64x64xf32>
      %c43 = arith.constant 43 : index
      %439 = memref.load %arg1[%c43] : memref<54xf32, #tpu.memory_space<smem>>
      %440 = vector.extract_strided_slice %403 {offsets = [0, 2, 1], sizes = [2, 64, 64], strides = [1, 1, 1]} : vector<2x66x66xf32> to vector<2x64x64xf32>
      %441 = vector.broadcast %439 : f32 to vector<2x64x64xf32>
      %442 = arith.mulf %441, %440 : vector<2x64x64xf32>
      %443 = arith.addf %438, %442 : vector<2x64x64xf32>
      %c44 = arith.constant 44 : index
      %444 = memref.load %arg1[%c44] : memref<54xf32, #tpu.memory_space<smem>>
      %445 = vector.extract_strided_slice %403 {offsets = [0, 2, 2], sizes = [2, 64, 64], strides = [1, 1, 1]} : vector<2x66x66xf32> to vector<2x64x64xf32>
      %446 = vector.broadcast %444 : f32 to vector<2x64x64xf32>
      %447 = arith.mulf %446, %445 : vector<2x64x64xf32>
      %448 = arith.addf %443, %447 : vector<2x64x64xf32>
      %c2_165 = arith.constant 2 : index
      %c0_166 = arith.constant 0 : index
      %c0_167 = arith.constant 0 : index
      %c0_168 = arith.constant 0 : index
      %449 = vector.load %arg3[%c2_165, %c0_166, %c0_167, %c0_168] : memref<3x2x66x66xf32, #tpu.memory_space<vmem>>, vector<1x2x66x66xf32>
      %450 = vector.shape_cast %449 : vector<1x2x66x66xf32> to vector<2x66x66xf32>
      %c45 = arith.constant 45 : index
      %451 = memref.load %arg1[%c45] : memref<54xf32, #tpu.memory_space<smem>>
      %452 = vector.extract_strided_slice %450 {offsets = [0, 0, 0], sizes = [2, 64, 64], strides = [1, 1, 1]} : vector<2x66x66xf32> to vector<2x64x64xf32>
      %453 = vector.broadcast %451 : f32 to vector<2x64x64xf32>
      %454 = arith.mulf %453, %452 : vector<2x64x64xf32>
      %455 = arith.addf %448, %454 : vector<2x64x64xf32>
      %c46 = arith.constant 46 : index
      %456 = memref.load %arg1[%c46] : memref<54xf32, #tpu.memory_space<smem>>
      %457 = vector.extract_strided_slice %450 {offsets = [0, 0, 1], sizes = [2, 64, 64], strides = [1, 1, 1]} : vector<2x66x66xf32> to vector<2x64x64xf32>
      %458 = vector.broadcast %456 : f32 to vector<2x64x64xf32>
      %459 = arith.mulf %458, %457 : vector<2x64x64xf32>
      %460 = arith.addf %455, %459 : vector<2x64x64xf32>
      %c47 = arith.constant 47 : index
      %461 = memref.load %arg1[%c47] : memref<54xf32, #tpu.memory_space<smem>>
      %462 = vector.extract_strided_slice %450 {offsets = [0, 0, 2], sizes = [2, 64, 64], strides = [1, 1, 1]} : vector<2x66x66xf32> to vector<2x64x64xf32>
      %463 = vector.broadcast %461 : f32 to vector<2x64x64xf32>
      %464 = arith.mulf %463, %462 : vector<2x64x64xf32>
      %465 = arith.addf %460, %464 : vector<2x64x64xf32>
      %c48 = arith.constant 48 : index
      %466 = memref.load %arg1[%c48] : memref<54xf32, #tpu.memory_space<smem>>
      %467 = vector.extract_strided_slice %450 {offsets = [0, 1, 0], sizes = [2, 64, 64], strides = [1, 1, 1]} : vector<2x66x66xf32> to vector<2x64x64xf32>
      %468 = vector.broadcast %466 : f32 to vector<2x64x64xf32>
      %469 = arith.mulf %468, %467 : vector<2x64x64xf32>
      %470 = arith.addf %465, %469 : vector<2x64x64xf32>
      %c49 = arith.constant 49 : index
      %471 = memref.load %arg1[%c49] : memref<54xf32, #tpu.memory_space<smem>>
      %472 = vector.extract_strided_slice %450 {offsets = [0, 1, 1], sizes = [2, 64, 64], strides = [1, 1, 1]} : vector<2x66x66xf32> to vector<2x64x64xf32>
      %473 = vector.broadcast %471 : f32 to vector<2x64x64xf32>
      %474 = arith.mulf %473, %472 : vector<2x64x64xf32>
      %475 = arith.addf %470, %474 : vector<2x64x64xf32>
      %c50 = arith.constant 50 : index
      %476 = memref.load %arg1[%c50] : memref<54xf32, #tpu.memory_space<smem>>
      %477 = vector.extract_strided_slice %450 {offsets = [0, 1, 2], sizes = [2, 64, 64], strides = [1, 1, 1]} : vector<2x66x66xf32> to vector<2x64x64xf32>
      %478 = vector.broadcast %476 : f32 to vector<2x64x64xf32>
      %479 = arith.mulf %478, %477 : vector<2x64x64xf32>
      %480 = arith.addf %475, %479 : vector<2x64x64xf32>
      %c51 = arith.constant 51 : index
      %481 = memref.load %arg1[%c51] : memref<54xf32, #tpu.memory_space<smem>>
      %482 = vector.extract_strided_slice %450 {offsets = [0, 2, 0], sizes = [2, 64, 64], strides = [1, 1, 1]} : vector<2x66x66xf32> to vector<2x64x64xf32>
      %483 = vector.broadcast %481 : f32 to vector<2x64x64xf32>
      %484 = arith.mulf %483, %482 : vector<2x64x64xf32>
      %485 = arith.addf %480, %484 : vector<2x64x64xf32>
      %c52 = arith.constant 52 : index
      %486 = memref.load %arg1[%c52] : memref<54xf32, #tpu.memory_space<smem>>
      %487 = vector.extract_strided_slice %450 {offsets = [0, 2, 1], sizes = [2, 64, 64], strides = [1, 1, 1]} : vector<2x66x66xf32> to vector<2x64x64xf32>
      %488 = vector.broadcast %486 : f32 to vector<2x64x64xf32>
      %489 = arith.mulf %488, %487 : vector<2x64x64xf32>
      %490 = arith.addf %485, %489 : vector<2x64x64xf32>
      %c53 = arith.constant 53 : index
      %491 = memref.load %arg1[%c53] : memref<54xf32, #tpu.memory_space<smem>>
      %492 = vector.extract_strided_slice %450 {offsets = [0, 2, 2], sizes = [2, 64, 64], strides = [1, 1, 1]} : vector<2x66x66xf32> to vector<2x64x64xf32>
      %493 = vector.broadcast %491 : f32 to vector<2x64x64xf32>
      %494 = arith.mulf %493, %492 : vector<2x64x64xf32>
      %495 = arith.addf %490, %494 : vector<2x64x64xf32>
      %c1_169 = arith.constant 1 : index
      %496 = memref.load %arg2[%c1_169] : memref<2xf32, #tpu.memory_space<smem>>
      %497 = vector.broadcast %496 : f32 to vector<2x64x64xf32>
      %498 = arith.addf %495, %497 : vector<2x64x64xf32>
      %cst_170 = arith.constant 0.000000e+00 : f32
      %499 = vector.broadcast %cst_170 : f32 to vector<2x64x64xf32>
      %500 = arith.maximumf %498, %499 : vector<2x64x64xf32>
      %c0_171 = arith.constant 0 : index
      %c64 = arith.constant 64 : index
      %c0_172 = arith.constant 0 : index
      %501 = vector.load %arg9[%c0_171, %c64, %c0_172] : memref<2x128x64xf32, #tpu.memory_space<vmem>>, vector<2x64x64xf32>
      tpu.vector_store %arg9[%c0_171, %c64, %c0_172], %500 {strides = array<i32>} : memref<2x128x64xf32, #tpu.memory_space<vmem>>, vector<2x64x64xf32>,
    } else {
    }
    %c32_i32 = arith.constant 32 : i32
    %3 = arith.muli %arg0, %c32_i32 : i32
    %4 = tpu.assume_multiple %3, 32 : i32
    %c0 = arith.constant 0 : index
    %5 = arith.index_cast %4 : i32 to index
    %c0_1 = arith.constant 0 : index
    %6 = vector.load %arg9[%c0, %5, %c0_1] : memref<2x128x64xf32, #tpu.memory_space<vmem>>, vector<2x32x64xf32>
    %c0_2 = arith.constant 0 : index
    %c0_3 = arith.constant 0 : index
    %7 = vector.load %arg10[%c0_2, %c0_3] : memref<2x256xf32, #tpu.memory_space<vmem>>, vector<2x256xf32>
    %8 = vector.extract_strided_slice %6 {offsets = [0, 0, 0], sizes = [2, 1, 64], strides = [1, 1, 1]} : vector<2x32x64xf32> to vector<2x1x64xf32>
    %9 = vector.shape_cast %8 : vector<2x1x64xf32> to vector<2x64xf32>
    %c0_4 = arith.constant 0 : index
    %c0_5 = arith.constant 0 : index
    %c0_6 = arith.constant 0 : index
    %10 = vector.load %arg4[%c0_4, %c0_5, %c0_6] : memref<32x64x256xf32, #tpu.memory_space<vmem>>, vector<1x64x256xf32>
    %11 = vector.shape_cast %10 : vector<1x64x256xf32> to vector<64x256xf32>
    %cst = arith.constant dense<0.000000e+00> : vector<2x256xf32>
    %12 = tpu.matmul %9, %11, %cst {dimension_numbers = #tpu.dot_dimension_numbers<[1], [0], [0], [1], [0, 0, 1, 1], [], []>} : vector<2x64xf32>, vector<64x256xf32>, vector<2x256xf32> -> vector<2x256xf32>
    %13 = arith.addf %7, %12 : vector<2x256xf32>
    %14 = vector.extract_strided_slice %6 {offsets = [0, 1, 0], sizes = [2, 1, 64], strides = [1, 1, 1]} : vector<2x32x64xf32> to vector<2x1x64xf32>
    %15 = vector.shape_cast %14 : vector<2x1x64xf32> to vector<2x64xf32>
    %c1 = arith.constant 1 : index
    %c0_7 = arith.constant 0 : index
    %c0_8 = arith.constant 0 : index
    %16 = vector.load %arg4[%c1, %c0_7, %c0_8] : memref<32x64x256xf32, #tpu.memory_space<vmem>>, vector<1x64x256xf32>
    %17 = vector.shape_cast %16 : vector<1x64x256xf32> to vector<64x256xf32>
    %cst_9 = arith.constant dense<0.000000e+00> : vector<2x256xf32>
    %18 = tpu.matmul %15, %17, %cst_9 {dimension_numbers = #tpu.dot_dimension_numbers<[1], [0], [0], [1], [0, 0, 1, 1], [], []>} : vector<2x64xf32>, vector<64x256xf32>, vector<2x256xf32> -> vector<2x256xf32>
    %19 = arith.addf %13, %18 : vector<2x256xf32>
    %20 = vector.extract_strided_slice %6 {offsets = [0, 2, 0], sizes = [2, 1, 64], strides = [1, 1, 1]} : vector<2x32x64xf32> to vector<2x1x64xf32>
    %21 = vector.shape_cast %20 : vector<2x1x64xf32> to vector<2x64xf32>
    %c2 = arith.constant 2 : index
    %c0_10 = arith.constant 0 : index
    %c0_11 = arith.constant 0 : index
    %22 = vector.load %arg4[%c2, %c0_10, %c0_11] : memref<32x64x256xf32, #tpu.memory_space<vmem>>, vector<1x64x256xf32>
    %23 = vector.shape_cast %22 : vector<1x64x256xf32> to vector<64x256xf32>
    %cst_12 = arith.constant dense<0.000000e+00> : vector<2x256xf32>
    %24 = tpu.matmul %21, %23, %cst_12 {dimension_numbers = #tpu.dot_dimension_numbers<[1], [0], [0], [1], [0, 0, 1, 1], [], []>} : vector<2x64xf32>, vector<64x256xf32>, vector<2x256xf32> -> vector<2x256xf32>
    %25 = arith.addf %19, %24 : vector<2x256xf32>
    %26 = vector.extract_strided_slice %6 {offsets = [0, 3, 0], sizes = [2, 1, 64], strides = [1, 1, 1]} : vector<2x32x64xf32> to vector<2x1x64xf32>
    %27 = vector.shape_cast %26 : vector<2x1x64xf32> to vector<2x64xf32>
    %c3 = arith.constant 3 : index
    %c0_13 = arith.constant 0 : index
    %c0_14 = arith.constant 0 : index
    %28 = vector.load %arg4[%c3, %c0_13, %c0_14] : memref<32x64x256xf32, #tpu.memory_space<vmem>>, vector<1x64x256xf32>
    %29 = vector.shape_cast %28 : vector<1x64x256xf32> to vector<64x256xf32>
    %cst_15 = arith.constant dense<0.000000e+00> : vector<2x256xf32>
    %30 = tpu.matmul %27, %29, %cst_15 {dimension_numbers = #tpu.dot_dimension_numbers<[1], [0], [0], [1], [0, 0, 1, 1], [], []>} : vector<2x64xf32>, vector<64x256xf32>, vector<2x256xf32> -> vector<2x256xf32>
    %31 = arith.addf %25, %30 : vector<2x256xf32>
    %32 = vector.extract_strided_slice %6 {offsets = [0, 4, 0], sizes = [2, 1, 64], strides = [1, 1, 1]} : vector<2x32x64xf32> to vector<2x1x64xf32>
    %33 = vector.shape_cast %32 : vector<2x1x64xf32> to vector<2x64xf32>
    %c4 = arith.constant 4 : index
    %c0_16 = arith.constant 0 : index
    %c0_17 = arith.constant 0 : index
    %34 = vector.load %arg4[%c4, %c0_16, %c0_17] : memref<32x64x256xf32, #tpu.memory_space<vmem>>, vector<1x64x256xf32>
    %35 = vector.shape_cast %34 : vector<1x64x256xf32> to vector<64x256xf32>
    %cst_18 = arith.constant dense<0.000000e+00> : vector<2x256xf32>
    %36 = tpu.matmul %33, %35, %cst_18 {dimension_numbers = #tpu.dot_dimension_numbers<[1], [0], [0], [1], [0, 0, 1, 1], [], []>} : vector<2x64xf32>, vector<64x256xf32>, vector<2x256xf32> -> vector<2x256xf32>
    %37 = arith.addf %31, %36 : vector<2x256xf32>
    %38 = vector.extract_strided_slice %6 {offsets = [0, 5, 0], sizes = [2, 1, 64], strides = [1, 1, 1]} : vector<2x32x64xf32> to vector<2x1x64xf32>
    %39 = vector.shape_cast %38 : vector<2x1x64xf32> to vector<2x64xf32>
    %c5 = arith.constant 5 : index
    %c0_19 = arith.constant 0 : index
    %c0_20 = arith.constant 0 : index
    %40 = vector.load %arg4[%c5, %c0_19, %c0_20] : memref<32x64x256xf32, #tpu.memory_space<vmem>>, vector<1x64x256xf32>
    %41 = vector.shape_cast %40 : vector<1x64x256xf32> to vector<64x256xf32>
    %cst_21 = arith.constant dense<0.000000e+00> : vector<2x256xf32>
    %42 = tpu.matmul %39, %41, %cst_21 {dimension_numbers = #tpu.dot_dimension_numbers<[1], [0], [0], [1], [0, 0, 1, 1], [], []>} : vector<2x64xf32>, vector<64x256xf32>, vector<2x256xf32> -> vector<2x256xf32>
    %43 = arith.addf %37, %42 : vector<2x256xf32>
    %44 = vector.extract_strided_slice %6 {offsets = [0, 6, 0], sizes = [2, 1, 64], strides = [1, 1, 1]} : vector<2x32x64xf32> to vector<2x1x64xf32>
    %45 = vector.shape_cast %44 : vector<2x1x64xf32> to vector<2x64xf32>
    %c6 = arith.constant 6 : index
    %c0_22 = arith.constant 0 : index
    %c0_23 = arith.constant 0 : index
    %46 = vector.load %arg4[%c6, %c0_22, %c0_23] : memref<32x64x256xf32, #tpu.memory_space<vmem>>, vector<1x64x256xf32>
    %47 = vector.shape_cast %46 : vector<1x64x256xf32> to vector<64x256xf32>
    %cst_24 = arith.constant dense<0.000000e+00> : vector<2x256xf32>
    %48 = tpu.matmul %45, %47, %cst_24 {dimension_numbers = #tpu.dot_dimension_numbers<[1], [0], [0], [1], [0, 0, 1, 1], [], []>} : vector<2x64xf32>, vector<64x256xf32>, vector<2x256xf32> -> vector<2x256xf32>
    %49 = arith.addf %43, %48 : vector<2x256xf32>
    %50 = vector.extract_strided_slice %6 {offsets = [0, 7, 0], sizes = [2, 1, 64], strides = [1, 1, 1]} : vector<2x32x64xf32> to vector<2x1x64xf32>
    %51 = vector.shape_cast %50 : vector<2x1x64xf32> to vector<2x64xf32>
    %c7 = arith.constant 7 : index
    %c0_25 = arith.constant 0 : index
    %c0_26 = arith.constant 0 : index
    %52 = vector.load %arg4[%c7, %c0_25, %c0_26] : memref<32x64x256xf32, #tpu.memory_space<vmem>>, vector<1x64x256xf32>
    %53 = vector.shape_cast %52 : vector<1x64x256xf32> to vector<64x256xf32>
    %cst_27 = arith.constant dense<0.000000e+00> : vector<2x256xf32>
    %54 = tpu.matmul %51, %53, %cst_27 {dimension_numbers = #tpu.dot_dimension_numbers<[1], [0], [0], [1], [0, 0, 1, 1], [], []>} : vector<2x64xf32>, vector<64x256xf32>, vector<2x256xf32> -> vector<2x256xf32>
    %55 = arith.addf %49, %54 : vector<2x256xf32>
    %56 = vector.extract_strided_slice %6 {offsets = [0, 8, 0], sizes = [2, 1, 64], strides = [1, 1, 1]} : vector<2x32x64xf32> to vector<2x1x64xf32>
    %57 = vector.shape_cast %56 : vector<2x1x64xf32> to vector<2x64xf32>
    %c8 = arith.constant 8 : index
    %c0_28 = arith.constant 0 : index
    %c0_29 = arith.constant 0 : index
    %58 = vector.load %arg4[%c8, %c0_28, %c0_29] : memref<32x64x256xf32, #tpu.memory_space<vmem>>, vector<1x64x256xf32>
    %59 = vector.shape_cast %58 : vector<1x64x256xf32> to vector<64x256xf32>
    %cst_30 = arith.constant dense<0.000000e+00> : vector<2x256xf32>
    %60 = tpu.matmul %57, %59, %cst_30 {dimension_numbers = #tpu.dot_dimension_numbers<[1], [0], [0], [1], [0, 0, 1, 1], [], []>} : vector<2x64xf32>, vector<64x256xf32>, vector<2x256xf32> -> vector<2x256xf32>
    %61 = arith.addf %55, %60 : vector<2x256xf32>
    %62 = vector.extract_strided_slice %6 {offsets = [0, 9, 0], sizes = [2, 1, 64], strides = [1, 1, 1]} : vector<2x32x64xf32> to vector<2x1x64xf32>
    %63 = vector.shape_cast %62 : vector<2x1x64xf32> to vector<2x64xf32>
    %c9 = arith.constant 9 : index
    %c0_31 = arith.constant 0 : index
    %c0_32 = arith.constant 0 : index
    %64 = vector.load %arg4[%c9, %c0_31, %c0_32] : memref<32x64x256xf32, #tpu.memory_space<vmem>>, vector<1x64x256xf32>
    %65 = vector.shape_cast %64 : vector<1x64x256xf32> to vector<64x256xf32>
    %cst_33 = arith.constant dense<0.000000e+00> : vector<2x256xf32>
    %66 = tpu.matmul %63, %65, %cst_33 {dimension_numbers = #tpu.dot_dimension_numbers<[1], [0], [0], [1], [0, 0, 1, 1], [], []>} : vector<2x64xf32>, vector<64x256xf32>, vector<2x256xf32> -> vector<2x256xf32>
    %67 = arith.addf %61, %66 : vector<2x256xf32>
    %68 = vector.extract_strided_slice %6 {offsets = [0, 10, 0], sizes = [2, 1, 64], strides = [1, 1, 1]} : vector<2x32x64xf32> to vector<2x1x64xf32>
    %69 = vector.shape_cast %68 : vector<2x1x64xf32> to vector<2x64xf32>
    %c10 = arith.constant 10 : index
    %c0_34 = arith.constant 0 : index
    %c0_35 = arith.constant 0 : index
    %70 = vector.load %arg4[%c10, %c0_34, %c0_35] : memref<32x64x256xf32, #tpu.memory_space<vmem>>, vector<1x64x256xf32>
    %71 = vector.shape_cast %70 : vector<1x64x256xf32> to vector<64x256xf32>
    %cst_36 = arith.constant dense<0.000000e+00> : vector<2x256xf32>
    %72 = tpu.matmul %69, %71, %cst_36 {dimension_numbers = #tpu.dot_dimension_numbers<[1], [0], [0], [1], [0, 0, 1, 1], [], []>} : vector<2x64xf32>, vector<64x256xf32>, vector<2x256xf32> -> vector<2x256xf32>
    %73 = arith.addf %67, %72 : vector<2x256xf32>
    %74 = vector.extract_strided_slice %6 {offsets = [0, 11, 0], sizes = [2, 1, 64], strides = [1, 1, 1]} : vector<2x32x64xf32> to vector<2x1x64xf32>
    %75 = vector.shape_cast %74 : vector<2x1x64xf32> to vector<2x64xf32>
    %c11 = arith.constant 11 : index
    %c0_37 = arith.constant 0 : index
    %c0_38 = arith.constant 0 : index
    %76 = vector.load %arg4[%c11, %c0_37, %c0_38] : memref<32x64x256xf32, #tpu.memory_space<vmem>>, vector<1x64x256xf32>
    %77 = vector.shape_cast %76 : vector<1x64x256xf32> to vector<64x256xf32>
    %cst_39 = arith.constant dense<0.000000e+00> : vector<2x256xf32>
    %78 = tpu.matmul %75, %77, %cst_39 {dimension_numbers = #tpu.dot_dimension_numbers<[1], [0], [0], [1], [0, 0, 1, 1], [], []>} : vector<2x64xf32>, vector<64x256xf32>, vector<2x256xf32> -> vector<2x256xf32>
    %79 = arith.addf %73, %78 : vector<2x256xf32>
    %80 = vector.extract_strided_slice %6 {offsets = [0, 12, 0], sizes = [2, 1, 64], strides = [1, 1, 1]} : vector<2x32x64xf32> to vector<2x1x64xf32>
    %81 = vector.shape_cast %80 : vector<2x1x64xf32> to vector<2x64xf32>
    %c12 = arith.constant 12 : index
    %c0_40 = arith.constant 0 : index
    %c0_41 = arith.constant 0 : index
    %82 = vector.load %arg4[%c12, %c0_40, %c0_41] : memref<32x64x256xf32, #tpu.memory_space<vmem>>, vector<1x64x256xf32>
    %83 = vector.shape_cast %82 : vector<1x64x256xf32> to vector<64x256xf32>
    %cst_42 = arith.constant dense<0.000000e+00> : vector<2x256xf32>
    %84 = tpu.matmul %81, %83, %cst_42 {dimension_numbers = #tpu.dot_dimension_numbers<[1], [0], [0], [1], [0, 0, 1, 1], [], []>} : vector<2x64xf32>, vector<64x256xf32>, vector<2x256xf32> -> vector<2x256xf32>
    %85 = arith.addf %79, %84 : vector<2x256xf32>
    %86 = vector.extract_strided_slice %6 {offsets = [0, 13, 0], sizes = [2, 1, 64], strides = [1, 1, 1]} : vector<2x32x64xf32> to vector<2x1x64xf32>
    %87 = vector.shape_cast %86 : vector<2x1x64xf32> to vector<2x64xf32>
    %c13 = arith.constant 13 : index
    %c0_43 = arith.constant 0 : index
    %c0_44 = arith.constant 0 : index
    %88 = vector.load %arg4[%c13, %c0_43, %c0_44] : memref<32x64x256xf32, #tpu.memory_space<vmem>>, vector<1x64x256xf32>
    %89 = vector.shape_cast %88 : vector<1x64x256xf32> to vector<64x256xf32>
    %cst_45 = arith.constant dense<0.000000e+00> : vector<2x256xf32>
    %90 = tpu.matmul %87, %89, %cst_45 {dimension_numbers = #tpu.dot_dimension_numbers<[1], [0], [0], [1], [0, 0, 1, 1], [], []>} : vector<2x64xf32>, vector<64x256xf32>, vector<2x256xf32> -> vector<2x256xf32>
    %91 = arith.addf %85, %90 : vector<2x256xf32>
    %92 = vector.extract_strided_slice %6 {offsets = [0, 14, 0], sizes = [2, 1, 64], strides = [1, 1, 1]} : vector<2x32x64xf32> to vector<2x1x64xf32>
    %93 = vector.shape_cast %92 : vector<2x1x64xf32> to vector<2x64xf32>
    %c14 = arith.constant 14 : index
    %c0_46 = arith.constant 0 : index
    %c0_47 = arith.constant 0 : index
    %94 = vector.load %arg4[%c14, %c0_46, %c0_47] : memref<32x64x256xf32, #tpu.memory_space<vmem>>, vector<1x64x256xf32>
    %95 = vector.shape_cast %94 : vector<1x64x256xf32> to vector<64x256xf32>
    %cst_48 = arith.constant dense<0.000000e+00> : vector<2x256xf32>
    %96 = tpu.matmul %93, %95, %cst_48 {dimension_numbers = #tpu.dot_dimension_numbers<[1], [0], [0], [1], [0, 0, 1, 1], [], []>} : vector<2x64xf32>, vector<64x256xf32>, vector<2x256xf32> -> vector<2x256xf32>
    %97 = arith.addf %91, %96 : vector<2x256xf32>
    %98 = vector.extract_strided_slice %6 {offsets = [0, 15, 0], sizes = [2, 1, 64], strides = [1, 1, 1]} : vector<2x32x64xf32> to vector<2x1x64xf32>
    %99 = vector.shape_cast %98 : vector<2x1x64xf32> to vector<2x64xf32>
    %c15 = arith.constant 15 : index
    %c0_49 = arith.constant 0 : index
    %c0_50 = arith.constant 0 : index
    %100 = vector.load %arg4[%c15, %c0_49, %c0_50] : memref<32x64x256xf32, #tpu.memory_space<vmem>>, vector<1x64x256xf32>
    %101 = vector.shape_cast %100 : vector<1x64x256xf32> to vector<64x256xf32>
    %cst_51 = arith.constant dense<0.000000e+00> : vector<2x256xf32>
    %102 = tpu.matmul %99, %101, %cst_51 {dimension_numbers = #tpu.dot_dimension_numbers<[1], [0], [0], [1], [0, 0, 1, 1], [], []>} : vector<2x64xf32>, vector<64x256xf32>, vector<2x256xf32> -> vector<2x256xf32>
    %103 = arith.addf %97, %102 : vector<2x256xf32>
    %104 = vector.extract_strided_slice %6 {offsets = [0, 16, 0], sizes = [2, 1, 64], strides = [1, 1, 1]} : vector<2x32x64xf32> to vector<2x1x64xf32>
    %105 = vector.shape_cast %104 : vector<2x1x64xf32> to vector<2x64xf32>
    %c16 = arith.constant 16 : index
    %c0_52 = arith.constant 0 : index
    %c0_53 = arith.constant 0 : index
    %106 = vector.load %arg4[%c16, %c0_52, %c0_53] : memref<32x64x256xf32, #tpu.memory_space<vmem>>, vector<1x64x256xf32>
    %107 = vector.shape_cast %106 : vector<1x64x256xf32> to vector<64x256xf32>
    %cst_54 = arith.constant dense<0.000000e+00> : vector<2x256xf32>
    %108 = tpu.matmul %105, %107, %cst_54 {dimension_numbers = #tpu.dot_dimension_numbers<[1], [0], [0], [1], [0, 0, 1, 1], [], []>} : vector<2x64xf32>, vector<64x256xf32>, vector<2x256xf32> -> vector<2x256xf32>
    %109 = arith.addf %103, %108 : vector<2x256xf32>
    %110 = vector.extract_strided_slice %6 {offsets = [0, 17, 0], sizes = [2, 1, 64], strides = [1, 1, 1]} : vector<2x32x64xf32> to vector<2x1x64xf32>
    %111 = vector.shape_cast %110 : vector<2x1x64xf32> to vector<2x64xf32>
    %c17 = arith.constant 17 : index
    %c0_55 = arith.constant 0 : index
    %c0_56 = arith.constant 0 : index
    %112 = vector.load %arg4[%c17, %c0_55, %c0_56] : memref<32x64x256xf32, #tpu.memory_space<vmem>>, vector<1x64x256xf32>
    %113 = vector.shape_cast %112 : vector<1x64x256xf32> to vector<64x256xf32>
    %cst_57 = arith.constant dense<0.000000e+00> : vector<2x256xf32>
    %114 = tpu.matmul %111, %113, %cst_57 {dimension_numbers = #tpu.dot_dimension_numbers<[1], [0], [0], [1], [0, 0, 1, 1], [], []>} : vector<2x64xf32>, vector<64x256xf32>, vector<2x256xf32> -> vector<2x256xf32>
    %115 = arith.addf %109, %114 : vector<2x256xf32>
    %116 = vector.extract_strided_slice %6 {offsets = [0, 18, 0], sizes = [2, 1, 64], strides = [1, 1, 1]} : vector<2x32x64xf32> to vector<2x1x64xf32>
    %117 = vector.shape_cast %116 : vector<2x1x64xf32> to vector<2x64xf32>
    %c18 = arith.constant 18 : index
    %c0_58 = arith.constant 0 : index
    %c0_59 = arith.constant 0 : index
    %118 = vector.load %arg4[%c18, %c0_58, %c0_59] : memref<32x64x256xf32, #tpu.memory_space<vmem>>, vector<1x64x256xf32>
    %119 = vector.shape_cast %118 : vector<1x64x256xf32> to vector<64x256xf32>
    %cst_60 = arith.constant dense<0.000000e+00> : vector<2x256xf32>
    %120 = tpu.matmul %117, %119, %cst_60 {dimension_numbers = #tpu.dot_dimension_numbers<[1], [0], [0], [1], [0, 0, 1, 1], [], []>} : vector<2x64xf32>, vector<64x256xf32>, vector<2x256xf32> -> vector<2x256xf32>
    %121 = arith.addf %115, %120 : vector<2x256xf32>
    %122 = vector.extract_strided_slice %6 {offsets = [0, 19, 0], sizes = [2, 1, 64], strides = [1, 1, 1]} : vector<2x32x64xf32> to vector<2x1x64xf32>
    %123 = vector.shape_cast %122 : vector<2x1x64xf32> to vector<2x64xf32>
    %c19 = arith.constant 19 : index
    %c0_61 = arith.constant 0 : index
    %c0_62 = arith.constant 0 : index
    %124 = vector.load %arg4[%c19, %c0_61, %c0_62] : memref<32x64x256xf32, #tpu.memory_space<vmem>>, vector<1x64x256xf32>
    %125 = vector.shape_cast %124 : vector<1x64x256xf32> to vector<64x256xf32>
    %cst_63 = arith.constant dense<0.000000e+00> : vector<2x256xf32>
    %126 = tpu.matmul %123, %125, %cst_63 {dimension_numbers = #tpu.dot_dimension_numbers<[1], [0], [0], [1], [0, 0, 1, 1], [], []>} : vector<2x64xf32>, vector<64x256xf32>, vector<2x256xf32> -> vector<2x256xf32>
    %127 = arith.addf %121, %126 : vector<2x256xf32>
    %128 = vector.extract_strided_slice %6 {offsets = [0, 20, 0], sizes = [2, 1, 64], strides = [1, 1, 1]} : vector<2x32x64xf32> to vector<2x1x64xf32>
    %129 = vector.shape_cast %128 : vector<2x1x64xf32> to vector<2x64xf32>
    %c20 = arith.constant 20 : index
    %c0_64 = arith.constant 0 : index
    %c0_65 = arith.constant 0 : index
    %130 = vector.load %arg4[%c20, %c0_64, %c0_65] : memref<32x64x256xf32, #tpu.memory_space<vmem>>, vector<1x64x256xf32>
    %131 = vector.shape_cast %130 : vector<1x64x256xf32> to vector<64x256xf32>
    %cst_66 = arith.constant dense<0.000000e+00> : vector<2x256xf32>
    %132 = tpu.matmul %129, %131, %cst_66 {dimension_numbers = #tpu.dot_dimension_numbers<[1], [0], [0], [1], [0, 0, 1, 1], [], []>} : vector<2x64xf32>, vector<64x256xf32>, vector<2x256xf32> -> vector<2x256xf32>
    %133 = arith.addf %127, %132 : vector<2x256xf32>
    %134 = vector.extract_strided_slice %6 {offsets = [0, 21, 0], sizes = [2, 1, 64], strides = [1, 1, 1]} : vector<2x32x64xf32> to vector<2x1x64xf32>
    %135 = vector.shape_cast %134 : vector<2x1x64xf32> to vector<2x64xf32>
    %c21 = arith.constant 21 : index
    %c0_67 = arith.constant 0 : index
    %c0_68 = arith.constant 0 : index
    %136 = vector.load %arg4[%c21, %c0_67, %c0_68] : memref<32x64x256xf32, #tpu.memory_space<vmem>>, vector<1x64x256xf32>
    %137 = vector.shape_cast %136 : vector<1x64x256xf32> to vector<64x256xf32>
    %cst_69 = arith.constant dense<0.000000e+00> : vector<2x256xf32>
    %138 = tpu.matmul %135, %137, %cst_69 {dimension_numbers = #tpu.dot_dimension_numbers<[1], [0], [0], [1], [0, 0, 1, 1], [], []>} : vector<2x64xf32>, vector<64x256xf32>, vector<2x256xf32> -> vector<2x256xf32>
    %139 = arith.addf %133, %138 : vector<2x256xf32>
    %140 = vector.extract_strided_slice %6 {offsets = [0, 22, 0], sizes = [2, 1, 64], strides = [1, 1, 1]} : vector<2x32x64xf32> to vector<2x1x64xf32>
    %141 = vector.shape_cast %140 : vector<2x1x64xf32> to vector<2x64xf32>
    %c22 = arith.constant 22 : index
    %c0_70 = arith.constant 0 : index
    %c0_71 = arith.constant 0 : index
    %142 = vector.load %arg4[%c22, %c0_70, %c0_71] : memref<32x64x256xf32, #tpu.memory_space<vmem>>, vector<1x64x256xf32>
    %143 = vector.shape_cast %142 : vector<1x64x256xf32> to vector<64x256xf32>
    %cst_72 = arith.constant dense<0.000000e+00> : vector<2x256xf32>
    %144 = tpu.matmul %141, %143, %cst_72 {dimension_numbers = #tpu.dot_dimension_numbers<[1], [0], [0], [1], [0, 0, 1, 1], [], []>} : vector<2x64xf32>, vector<64x256xf32>, vector<2x256xf32> -> vector<2x256xf32>
    %145 = arith.addf %139, %144 : vector<2x256xf32>
    %146 = vector.extract_strided_slice %6 {offsets = [0, 23, 0], sizes = [2, 1, 64], strides = [1, 1, 1]} : vector<2x32x64xf32> to vector<2x1x64xf32>
    %147 = vector.shape_cast %146 : vector<2x1x64xf32> to vector<2x64xf32>
    %c23 = arith.constant 23 : index
    %c0_73 = arith.constant 0 : index
    %c0_74 = arith.constant 0 : index
    %148 = vector.load %arg4[%c23, %c0_73, %c0_74] : memref<32x64x256xf32, #tpu.memory_space<vmem>>, vector<1x64x256xf32>
    %149 = vector.shape_cast %148 : vector<1x64x256xf32> to vector<64x256xf32>
    %cst_75 = arith.constant dense<0.000000e+00> : vector<2x256xf32>
    %150 = tpu.matmul %147, %149, %cst_75 {dimension_numbers = #tpu.dot_dimension_numbers<[1], [0], [0], [1], [0, 0, 1, 1], [], []>} : vector<2x64xf32>, vector<64x256xf32>, vector<2x256xf32> -> vector<2x256xf32>
    %151 = arith.addf %145, %150 : vector<2x256xf32>
    %152 = vector.extract_strided_slice %6 {offsets = [0, 24, 0], sizes = [2, 1, 64], strides = [1, 1, 1]} : vector<2x32x64xf32> to vector<2x1x64xf32>
    %153 = vector.shape_cast %152 : vector<2x1x64xf32> to vector<2x64xf32>
    %c24 = arith.constant 24 : index
    %c0_76 = arith.constant 0 : index
    %c0_77 = arith.constant 0 : index
    %154 = vector.load %arg4[%c24, %c0_76, %c0_77] : memref<32x64x256xf32, #tpu.memory_space<vmem>>, vector<1x64x256xf32>
    %155 = vector.shape_cast %154 : vector<1x64x256xf32> to vector<64x256xf32>
    %cst_78 = arith.constant dense<0.000000e+00> : vector<2x256xf32>
    %156 = tpu.matmul %153, %155, %cst_78 {dimension_numbers = #tpu.dot_dimension_numbers<[1], [0], [0], [1], [0, 0, 1, 1], [], []>} : vector<2x64xf32>, vector<64x256xf32>, vector<2x256xf32> -> vector<2x256xf32>
    %157 = arith.addf %151, %156 : vector<2x256xf32>
    %158 = vector.extract_strided_slice %6 {offsets = [0, 25, 0], sizes = [2, 1, 64], strides = [1, 1, 1]} : vector<2x32x64xf32> to vector<2x1x64xf32>
    %159 = vector.shape_cast %158 : vector<2x1x64xf32> to vector<2x64xf32>
    %c25 = arith.constant 25 : index
    %c0_79 = arith.constant 0 : index
    %c0_80 = arith.constant 0 : index
    %160 = vector.load %arg4[%c25, %c0_79, %c0_80] : memref<32x64x256xf32, #tpu.memory_space<vmem>>, vector<1x64x256xf32>
    %161 = vector.shape_cast %160 : vector<1x64x256xf32> to vector<64x256xf32>
    %cst_81 = arith.constant dense<0.000000e+00> : vector<2x256xf32>
    %162 = tpu.matmul %159, %161, %cst_81 {dimension_numbers = #tpu.dot_dimension_numbers<[1], [0], [0], [1], [0, 0, 1, 1], [], []>} : vector<2x64xf32>, vector<64x256xf32>, vector<2x256xf32> -> vector<2x256xf32>
    %163 = arith.addf %157, %162 : vector<2x256xf32>
    %164 = vector.extract_strided_slice %6 {offsets = [0, 26, 0], sizes = [2, 1, 64], strides = [1, 1, 1]} : vector<2x32x64xf32> to vector<2x1x64xf32>
    %165 = vector.shape_cast %164 : vector<2x1x64xf32> to vector<2x64xf32>
    %c26 = arith.constant 26 : index
    %c0_82 = arith.constant 0 : index
    %c0_83 = arith.constant 0 : index
    %166 = vector.load %arg4[%c26, %c0_82, %c0_83] : memref<32x64x256xf32, #tpu.memory_space<vmem>>, vector<1x64x256xf32>
    %167 = vector.shape_cast %166 : vector<1x64x256xf32> to vector<64x256xf32>
    %cst_84 = arith.constant dense<0.000000e+00> : vector<2x256xf32>
    %168 = tpu.matmul %165, %167, %cst_84 {dimension_numbers = #tpu.dot_dimension_numbers<[1], [0], [0], [1], [0, 0, 1, 1], [], []>} : vector<2x64xf32>, vector<64x256xf32>, vector<2x256xf32> -> vector<2x256xf32>
    %169 = arith.addf %163, %168 : vector<2x256xf32>
    %170 = vector.extract_strided_slice %6 {offsets = [0, 27, 0], sizes = [2, 1, 64], strides = [1, 1, 1]} : vector<2x32x64xf32> to vector<2x1x64xf32>
    %171 = vector.shape_cast %170 : vector<2x1x64xf32> to vector<2x64xf32>
    %c27 = arith.constant 27 : index
    %c0_85 = arith.constant 0 : index
    %c0_86 = arith.constant 0 : index
    %172 = vector.load %arg4[%c27, %c0_85, %c0_86] : memref<32x64x256xf32, #tpu.memory_space<vmem>>, vector<1x64x256xf32>
    %173 = vector.shape_cast %172 : vector<1x64x256xf32> to vector<64x256xf32>
    %cst_87 = arith.constant dense<0.000000e+00> : vector<2x256xf32>
    %174 = tpu.matmul %171, %173, %cst_87 {dimension_numbers = #tpu.dot_dimension_numbers<[1], [0], [0], [1], [0, 0, 1, 1], [], []>} : vector<2x64xf32>, vector<64x256xf32>, vector<2x256xf32> -> vector<2x256xf32>
    %175 = arith.addf %169, %174 : vector<2x256xf32>
    %176 = vector.extract_strided_slice %6 {offsets = [0, 28, 0], sizes = [2, 1, 64], strides = [1, 1, 1]} : vector<2x32x64xf32> to vector<2x1x64xf32>
    %177 = vector.shape_cast %176 : vector<2x1x64xf32> to vector<2x64xf32>
    %c28 = arith.constant 28 : index
    %c0_88 = arith.constant 0 : index
    %c0_89 = arith.constant 0 : index
    %178 = vector.load %arg4[%c28, %c0_88, %c0_89] : memref<32x64x256xf32, #tpu.memory_space<vmem>>, vector<1x64x256xf32>
    %179 = vector.shape_cast %178 : vector<1x64x256xf32> to vector<64x256xf32>
    %cst_90 = arith.constant dense<0.000000e+00> : vector<2x256xf32>
    %180 = tpu.matmul %177, %179, %cst_90 {dimension_numbers = #tpu.dot_dimension_numbers<[1], [0], [0], [1], [0, 0, 1, 1], [], []>} : vector<2x64xf32>, vector<64x256xf32>, vector<2x256xf32> -> vector<2x256xf32>
    %181 = arith.addf %175, %180 : vector<2x256xf32>
    %182 = vector.extract_strided_slice %6 {offsets = [0, 29, 0], sizes = [2, 1, 64], strides = [1, 1, 1]} : vector<2x32x64xf32> to vector<2x1x64xf32>
    %183 = vector.shape_cast %182 : vector<2x1x64xf32> to vector<2x64xf32>
    %c29 = arith.constant 29 : index
    %c0_91 = arith.constant 0 : index
    %c0_92 = arith.constant 0 : index
    %184 = vector.load %arg4[%c29, %c0_91, %c0_92] : memref<32x64x256xf32, #tpu.memory_space<vmem>>, vector<1x64x256xf32>
    %185 = vector.shape_cast %184 : vector<1x64x256xf32> to vector<64x256xf32>
    %cst_93 = arith.constant dense<0.000000e+00> : vector<2x256xf32>
    %186 = tpu.matmul %183, %185, %cst_93 {dimension_numbers = #tpu.dot_dimension_numbers<[1], [0], [0], [1], [0, 0, 1, 1], [], []>} : vector<2x64xf32>, vector<64x256xf32>, vector<2x256xf32> -> vector<2x256xf32>
    %187 = arith.addf %181, %186 : vector<2x256xf32>
    %188 = vector.extract_strided_slice %6 {offsets = [0, 30, 0], sizes = [2, 1, 64], strides = [1, 1, 1]} : vector<2x32x64xf32> to vector<2x1x64xf32>
    %189 = vector.shape_cast %188 : vector<2x1x64xf32> to vector<2x64xf32>
    %c30 = arith.constant 30 : index
    %c0_94 = arith.constant 0 : index
    %c0_95 = arith.constant 0 : index
    %190 = vector.load %arg4[%c30, %c0_94, %c0_95] : memref<32x64x256xf32, #tpu.memory_space<vmem>>, vector<1x64x256xf32>
    %191 = vector.shape_cast %190 : vector<1x64x256xf32> to vector<64x256xf32>
    %cst_96 = arith.constant dense<0.000000e+00> : vector<2x256xf32>
    %192 = tpu.matmul %189, %191, %cst_96 {dimension_numbers = #tpu.dot_dimension_numbers<[1], [0], [0], [1], [0, 0, 1, 1], [], []>} : vector<2x64xf32>, vector<64x256xf32>, vector<2x256xf32> -> vector<2x256xf32>
    %193 = arith.addf %187, %192 : vector<2x256xf32>
    %194 = vector.extract_strided_slice %6 {offsets = [0, 31, 0], sizes = [2, 1, 64], strides = [1, 1, 1]} : vector<2x32x64xf32> to vector<2x1x64xf32>
    %195 = vector.shape_cast %194 : vector<2x1x64xf32> to vector<2x64xf32>
    %c31 = arith.constant 31 : index
    %c0_97 = arith.constant 0 : index
    %c0_98 = arith.constant 0 : index
    %196 = vector.load %arg4[%c31, %c0_97, %c0_98] : memref<32x64x256xf32, #tpu.memory_space<vmem>>, vector<1x64x256xf32>
    %197 = vector.shape_cast %196 : vector<1x64x256xf32> to vector<64x256xf32>
    %cst_99 = arith.constant dense<0.000000e+00> : vector<2x256xf32>
    %198 = tpu.matmul %195, %197, %cst_99 {dimension_numbers = #tpu.dot_dimension_numbers<[1], [0], [0], [1], [0, 0, 1, 1], [], []>} : vector<2x64xf32>, vector<64x256xf32>, vector<2x256xf32> -> vector<2x256xf32>
    %199 = arith.addf %193, %198 : vector<2x256xf32>
    %c0_100 = arith.constant 0 : index
    %c0_101 = arith.constant 0 : index
    %200 = vector.load %arg10[%c0_100, %c0_101] : memref<2x256xf32, #tpu.memory_space<vmem>>, vector<2x256xf32>
    tpu.vector_store %arg10[%c0_100, %c0_101], %199 {strides = array<i32>} : memref<2x256xf32, #tpu.memory_space<vmem>>, vector<2x256xf32>,
    %c3_i32 = arith.constant 3 : i32
    %201 = arith.cmpi eq, %arg0, %c3_i32 : i32
    %202 = arith.extui %201 : i1 to i32
    %c0_i32_102 = arith.constant 0 : i32
    %203 = arith.cmpi ne, %202, %c0_i32_102 : i32
    scf.if %203 {
      %c0_103 = arith.constant 0 : index
      %c0_104 = arith.constant 0 : index
      %204 = vector.load %arg10[%c0_103, %c0_104] : memref<2x256xf32, #tpu.memory_space<vmem>>, vector<2x256xf32>
      %c0_105 = arith.constant 0 : index
      %c0_106 = arith.constant 0 : index
      %205 = vector.load %arg5[%c0_105, %c0_106] : memref<1x256xf32, #tpu.memory_space<vmem>>, vector<1x256xf32>
      %206 = vector.broadcast %205 : vector<1x256xf32> to vector<2x256xf32>
      %207 = arith.addf %204, %206 : vector<2x256xf32>
      %cst_107 = arith.constant 0.000000e+00 : f32
      %208 = vector.broadcast %cst_107 : f32 to vector<2x256xf32>
      %209 = arith.maximumf %207, %208 : vector<2x256xf32>
      %c0_108 = arith.constant 0 : index
      %c0_109 = arith.constant 0 : index
      %210 = vector.load %arg6[%c0_108, %c0_109] : memref<256x10xf32, #tpu.memory_space<vmem>>, vector<256x10xf32>
      %cst_110 = arith.constant dense<0.000000e+00> : vector<2x10xf32>
      %211 = tpu.matmul %209, %210, %cst_110 {dimension_numbers = #tpu.dot_dimension_numbers<[1], [0], [0], [1], [0, 0, 1, 1], [], []>} : vector<2x256xf32>, vector<256x10xf32>, vector<2x10xf32> -> vector<2x10xf32>
      %c0_111 = arith.constant 0 : index
      %c0_112 = arith.constant 0 : index
      %212 = vector.load %arg7[%c0_111, %c0_112] : memref<1x10xf32, #tpu.memory_space<vmem>>, vector<1x10xf32>
      %213 = vector.broadcast %212 : vector<1x10xf32> to vector<2x10xf32>
      %214 = arith.addf %211, %213 : vector<2x10xf32>
      %c0_113 = arith.constant 0 : index
      %c0_114 = arith.constant 0 : index
      %215 = vector.load %arg8[%c0_113, %c0_114] : memref<2x10xf32, #tpu.memory_space<vmem>>, vector<2x10xf32>
      tpu.vector_store %arg8[%c0_113, %c0_114], %214 {strides = array<i32>} : memref<2x10xf32, #tpu.memory_space<vmem>>, vector<2x10xf32>,
    } else {
    }
    return
  }
  func.func @transform_0(%arg0: i32) -> i32 {
    %c0_i32 = arith.constant 0 : i32
    %c0_i32_0 = arith.constant 0 : i32
    return %c0_i32 : i32
  }
  func.func @transform_1(%arg0: i32) -> i32 {
    %c0_i32 = arith.constant 0 : i32
    %c0_i32_0 = arith.constant 0 : i32
    return %c0_i32 : i32
  }
  func.func @transform_2(%arg0: i32) -> (i32, i32, i32, i32) {
    %c0_i32 = arith.constant 0 : i32
    %c0_i32_0 = arith.constant 0 : i32
    %c0_i32_1 = arith.constant 0 : i32
    %c0_i32_2 = arith.constant 0 : i32
    %c0_i32_3 = arith.constant 0 : i32
    return %c0_i32, %c0_i32_0, %c0_i32_1, %c0_i32_2 : i32, i32, i32, i32
  }
  func.func @transform_3(%arg0: i32) -> (i32, i32, i32) {
    %c0_i32 = arith.constant 0 : i32
    %c0_i32_0 = arith.constant 0 : i32
    %c0_i32_1 = arith.constant 0 : i32
    return %arg0, %c0_i32, %c0_i32_0 : i32, i32, i32
  }
  func.func @transform_4(%arg0: i32) -> (i32, i32) {
    %c0_i32 = arith.constant 0 : i32
    %c0_i32_0 = arith.constant 0 : i32
    %c0_i32_1 = arith.constant 0 : i32
    return %c0_i32, %c0_i32_0 : i32, i32
  }
  func.func @transform_5(%arg0: i32) -> (i32, i32) {
    %c0_i32 = arith.constant 0 : i32
    %c0_i32_0 = arith.constant 0 : i32
    %c0_i32_1 = arith.constant 0 : i32
    return %c0_i32, %c0_i32_0 : i32, i32
  }
  func.func @transform_6(%arg0: i32) -> (i32, i32) {
    %c0_i32 = arith.constant 0 : i32
    %c0_i32_0 = arith.constant 0 : i32
    %c0_i32_1 = arith.constant 0 : i32
    return %c0_i32, %c0_i32_0 : i32, i32
  }
  func.func @transform_7(%arg0: i32) -> (i32, i32) {
    %c0_i32 = arith.constant 0 : i32
    %c0_i32_0 = arith.constant 0 : i32
    %c0_i32_1 = arith.constant 0 : i32
    return %c0_i32, %c0_i32_0 : i32, i32
  }
}

</mosaic_0001>

<llo_original>
// kernel: cnn_two_forward.1
$region0: #{cnn_two_forward.1}
  #allocation0 [shape = 'u32[]', space=smem, size = 0x4, offset = 0x4, fixed_abs, tag = 'smem constant byte address 0x4 - core index']
  #allocation1 [shape = 'u32[144,128]{1,0:T(1,128)}', space=vmem, size = 0x12000, scoped, tag = 'internal scratch']
  #allocation2 [shape = 'f32[2,128,64]{2,1,0:T(8,128)}', space=vmem, size = 0x20000, scoped, tag = 'scratch operand']
  #allocation3 [shape = 'f32[2,256]{1,0:T(2,128)}', space=vmem, size = 0x800, scoped, tag = 'scratch operand']
  %s0 = inlined_call_operand.hbm [shape: f32[54], index: 0, kind: input, shape index: {}]
  %s1 = inlined_call_operand.hbm [shape: f32[2], index: 1, kind: input, shape index: {}]
  %s2 = inlined_call_operand.vmem [shape: f32[3,2,66,66], index: 2, kind: input, shape index: {}]
  %s3 = inlined_call_operand.hbm [shape: f32[128,64,256], index: 3, kind: input, shape index: {}]
  %s4 = inlined_call_operand.hbm [shape: f32[1,256], index: 4, kind: input, shape index: {}]
  %s5 = inlined_call_operand.vmem [shape: f32[256,10], index: 5, kind: input, shape index: {}]
  %s6 = inlined_call_operand.hbm [shape: f32[1,10], index: 6, kind: input, shape index: {}]
  %s7 = inlined_call_operand.hbm [shape: f32[2,10], index: 7, kind: output, shape index: {}]
  %s8 = sld [smem:[#allocation0]]
  $region89: #{cnn_two_forward.1} parent=0
    _
  %s10 = ssub.s32 1, %s8
  %s11 = scalar_select 0, %s10, %s8
  $region1: #{cnn_two_forward.1} parent=0
    #allocation4 [shape = 'u8[512]{0}', space=smem, size = 0x200, scoped, tag = 'input window, operand 0, single buffered']
    #allocation5 [shape = 's32[2]{0}', space=sflag, size = 0x8, scoped, tag = 'scoped memory for cnn_two_forward.1']
    #allocation6 [shape = 's32[2]{0}', space=sflag, size = 0x8, scoped, tag = 'scoped memory for cnn_two_forward.1']
    #allocation7 [shape = 's32[2]{0}', space=sflag, size = 0x8, scoped, tag = 'scoped memory for cnn_two_forward.1']
    #allocation8 [shape = 'u8[512]{0}', space=smem, size = 0x200, scoped, tag = 'input window, operand 1, single buffered']
    #allocation9 [shape = 's32[1]{0}', space=sflag, size = 0x4, scoped, tag = 'scoped memory for cnn_two_forward.1']
    #allocation10 [shape = 'u8[4194304]{0}', space=vmem, size = 0x400000, scoped, tag = 'input window, operand 3']
    #allocation11 [shape = 'u8[1024]{0}', space=vmem, size = 0x400, scoped, tag = 'input window, operand 4, single buffered']
    #allocation12 [shape = 's32[1]{0}', space=sflag, size = 0x4, scoped, tag = 'scoped memory for cnn_two_forward.1']
    #allocation13 [shape = 'u8[512]{0}', space=vmem, size = 0x400, scoped, tag = 'input window, operand 6, single buffered']
    #allocation14 [shape = 'u8[1024]{0}', space=vmem, size = 0x400, scoped, tag = 'output window, operand 0, single buffered']
    %12 = vsyncpa [#allocation7], 0
    %13 = vsyncpa [#allocation9], 0
    %14 = vsyncpa [#allocation5], 0
    %s15 = scalar_lea.sflag [#allocation5], 1
    %16 = vsyncpa %s15, 0
    %17 = vsyncpa [#allocation12], 0
    %18 = vsyncpa [#allocation6], 0
    loop: start=0, step=1, limit=6
    $region2: #{cnn_two_forward.1} parent=1 // loop_pre_header
      _
    $region3: #{cnn_two_forward.1} parent=1 // loop_header
      %s20 = sphi 0, %s24
      %p21 = scmp.ge.s32.totalorder %s20, 6
      %s28 = sphi 0, %s28
      %s30 = sphi 0, %s28
      %s31 = sphi 0, %s30
      %s45 = sphi 0, %s31
      %s49 = sphi 0, %s49
      %s51 = sphi 0, %s49
      %s52 = sphi 0, %s51
      %s66 = sphi 0, %s52
      %s70 = sphi 0, %s70
      %s72 = sphi 0, %s70
      %s73 = sphi 0, %s72
      %s87 = sphi 0, %s73
      %s93 = sphi 0, %s95
      %s96 = sphi 0, %s93
      %s97 = sphi 0, %s96
      %s113 = sphi 0, %s97
      %s117 = sphi 0, %s117
      %s119 = sphi 0, %s117
      %s120 = sphi 0, %s119
      %s134 = sphi 0, %s120
      %s138 = sphi 0, %s138
      %s140 = sphi 0, %s138
      %s141 = sphi 0, %s140
      %s155 = sphi 0, %s141
      %s159 = sphi 0, %s159
      %s161 = sphi 0, %s159
      %s162 = sphi 0, %s161
      %s176 = sphi 0, %s162
      %s180 = sphi 0, %s180
      %s182 = sphi 0, %s180
      %s183 = sphi 0, %s182
      %s197 = sphi 0, %s183
    $region4: #{cnn_two_forward.1} parent=1 // loop_header_branch
      %23 = sbr.rel (%p21) target = $region8
    $region5: #{cnn_two_forward.1} parent=1 // loop_body
      %s25 = ssub.s32 %s20, 1
      %s26 = ssub.s32 %s20, 2
      %s27 = sadd.s32 %s20, 1
      %s29 = sadd.s32 %s28, 1
      %p32 = scmp.eq.s32.totalorder %s20, 3
      %p33 = scmp.ne.s32.totalorder %s28, %s30
      %p34 = scmp.eq.s32.totalorder %s20, 0
      %p35 = por %p33, %p34
      %p36 = scmp.ne.s32.totalorder %s28, %s30
      %p37 = scmp.eq.s32.totalorder %s25, 3
      %p38 = por %p36, %p37
      %p39 = scmp.ne.s32.totalorder %s30, %s31
      %p40 = scmp.eq.s32.totalorder %s25, 0
      %p41 = por %p39, %p40
      %p42 = scmp.ne.s32.totalorder %s30, %s31
      %p43 = scmp.eq.s32.totalorder %s26, 3
      %p44 = por %p42, %p43
      %p46 = scmp.ne.s32.totalorder %s31, %s45
      %p47 = scmp.eq.s32.totalorder %s26, 0
      %p48 = por %p46, %p47
      %s50 = sadd.s32 %s49, 1
      %p53 = scmp.eq.s32.totalorder %s20, 3
      %p54 = scmp.ne.s32.totalorder %s49, %s51
      %p55 = scmp.eq.s32.totalorder %s20, 0
      %p56 = por %p54, %p55
      %p57 = scmp.ne.s32.totalorder %s49, %s51
      %p58 = scmp.eq.s32.totalorder %s25, 3
      %p59 = por %p57, %p58
      %p60 = scmp.ne.s32.totalorder %s51, %s52
      %p61 = scmp.eq.s32.totalorder %s25, 0
      %p62 = por %p60, %p61
      %p63 = scmp.ne.s32.totalorder %s51, %s52
      %p64 = scmp.eq.s32.totalorder %s26, 3
      %p65 = por %p63, %p64
      %p67 = scmp.ne.s32.totalorder %s52, %s66
      %p68 = scmp.eq.s32.totalorder %s26, 0
      %p69 = por %p67, %p68
      %s71 = sadd.s32 %s70, 1
      %p74 = scmp.eq.s32.totalorder %s20, 3
      %p75 = scmp.ne.s32.totalorder %s70, %s72
      %p76 = scmp.eq.s32.totalorder %s20, 0
      %p77 = por %p75, %p76
      %p78 = scmp.ne.s32.totalorder %s70, %s72
      %p79 = scmp.eq.s32.totalorder %s25, 3
      %p80 = por %p78, %p79
      %p81 = scmp.ne.s32.totalorder %s72, %s73
      %p82 = scmp.eq.s32.totalorder %s25, 0
      %p83 = por %p81, %p82
      %p84 = scmp.ne.s32.totalorder %s72, %s73
      %p85 = scmp.eq.s32.totalorder %s26, 3
      %p86 = por %p84, %p85
      %p88 = scmp.ne.s32.totalorder %s73, %s87
      %p89 = scmp.eq.s32.totalorder %s26, 0
      %p90 = por %p88, %p89
      %s91 = ssub.s32 %s20, %s27
      %p92 = scmp.eq.s32.totalorder %s91, 0
      %s94 = sadd.s32 %s93, 1
      %s95 = scalar_select %p92, %s93, %s94
      %p98 = pneg %p92
      %p99 = scmp.eq.s32.totalorder %s20, 3
      %p100 = por %p98, %p99
      %p101 = scmp.ne.s32.totalorder %s93, %s96
      %p102 = scmp.eq.s32.totalorder %s20, 0
      %p103 = por %p101, %p102
      %p104 = scmp.ne.s32.totalorder %s93, %s96
      %p105 = scmp.eq.s32.totalorder %s25, 3
      %p106 = por %p104, %p105
      %p107 = scmp.ne.s32.totalorder %s96, %s97
      %p108 = scmp.eq.s32.totalorder %s25, 0
      %p109 = por %p107, %p108
      %p110 = scmp.ne.s32.totalorder %s96, %s97
      %p111 = scmp.eq.s32.totalorder %s26, 3
      %p112 = por %p110, %p111
      %p114 = scmp.ne.s32.totalorder %s97, %s113
      %p115 = scmp.eq.s32.totalorder %s26, 0
      %p116 = por %p114, %p115
      %s118 = sadd.s32 %s117, 1
      %p121 = scmp.eq.s32.totalorder %s20, 3
      %p122 = scmp.ne.s32.totalorder %s117, %s119
      %p123 = scmp.eq.s32.totalorder %s20, 0
      %p124 = por %p122, %p123
      %p125 = scmp.ne.s32.totalorder %s117, %s119
      %p126 = scmp.eq.s32.totalorder %s25, 3
      %p127 = por %p125, %p126
      %p128 = scmp.ne.s32.totalorder %s119, %s120
      %p129 = scmp.eq.s32.totalorder %s25, 0
      %p130 = por %p128, %p129
      %p131 = scmp.ne.s32.totalorder %s119, %s120
      %p132 = scmp.eq.s32.totalorder %s26, 3
      %p133 = por %p131, %p132
      %p135 = scmp.ne.s32.totalorder %s120, %s134
      %p136 = scmp.eq.s32.totalorder %s26, 0
      %p137 = por %p135, %p136
      %s139 = sadd.s32 %s138, 1
      %p142 = scmp.eq.s32.totalorder %s20, 3
      %p143 = scmp.ne.s32.totalorder %s138, %s140
      %p144 = scmp.eq.s32.totalorder %s20, 0
      %p145 = por %p143, %p144
      %p146 = scmp.ne.s32.totalorder %s138, %s140
      %p147 = scmp.eq.s32.totalorder %s25, 3
      %p148 = por %p146, %p147
      %p149 = scmp.ne.s32.totalorder %s140, %s141
      %p150 = scmp.eq.s32.totalorder %s25, 0
      %p151 = por %p149, %p150
      %p152 = scmp.ne.s32.totalorder %s140, %s141
      %p153 = scmp.eq.s32.totalorder %s26, 3
      %p154 = por %p152, %p153
      %p156 = scmp.ne.s32.totalorder %s141, %s155
      %p157 = scmp.eq.s32.totalorder %s26, 0
      %p158 = por %p156, %p157
      %s160 = sadd.s32 %s159, 1
      %p163 = scmp.eq.s32.totalorder %s20, 3
      %p164 = scmp.ne.s32.totalorder %s159, %s161
      %p165 = scmp.eq.s32.totalorder %s20, 0
      %p166 = por %p164, %p165
      %p167 = scmp.ne.s32.totalorder %s159, %s161
      %p168 = scmp.eq.s32.totalorder %s25, 3
      %p169 = por %p167, %p168
      %p170 = scmp.ne.s32.totalorder %s161, %s162
      %p171 = scmp.eq.s32.totalorder %s25, 0
      %p172 = por %p170, %p171
      %p173 = scmp.ne.s32.totalorder %s161, %s162
      %p174 = scmp.eq.s32.totalorder %s26, 3
      %p175 = por %p173, %p174
      %p177 = scmp.ne.s32.totalorder %s162, %s176
      %p178 = scmp.eq.s32.totalorder %s26, 0
      %p179 = por %p177, %p178
      %s181 = sadd.s32 %s180, 1
      %p184 = scmp.eq.s32.totalorder %s20, 3
      %p185 = scmp.ne.s32.totalorder %s180, %s182
      %p186 = scmp.eq.s32.totalorder %s20, 0
      %p187 = por %p185, %p186
      %p188 = scmp.ne.s32.totalorder %s180, %s182
      %p189 = scmp.eq.s32.totalorder %s25, 3
      %p190 = por %p188, %p189
      %p191 = scmp.ne.s32.totalorder %s182, %s183
      %p192 = scmp.eq.s32.totalorder %s25, 0
      %p193 = por %p191, %p192
      %p194 = scmp.ne.s32.totalorder %s182, %s183
      %p195 = scmp.eq.s32.totalorder %s26, 3
      %p196 = por %p194, %p195
      %p198 = scmp.ne.s32.totalorder %s183, %s197
      %p199 = scmp.eq.s32.totalorder %s26, 0
      %p200 = por %p198, %p199
      %p201 = scmp.le.s32.totalorder 1, %s20
      %p202 = scmp.lt.s32.totalorder %s20, 5
      %p203 = pnand %p201, %p202
      %p204 = pneg %p203
      // Predicated region
      $region9: #{cnn_two_forward.1} parent=5 // pred_check
        _
      $region10: #{cnn_two_forward.1} parent=5 // pred_check_branch
        %206 = sbr.rel (%p203) target = $region12
      $region11: #{cnn_two_forward.1} parent=5 // pred_region
        %s207 = ssub.s32 %s20, 1
        // Predicated region
        $region13: #{cnn_two_forward.1} parent=11 // pred_check
          %p208 = pneg %p41
        $region14: #{cnn_two_forward.1} parent=11 // pred_check_branch
          %210 = sbr.rel (%p208) target = $region16
        $region15: #{cnn_two_forward.1} parent=11 // pred_region
          %s212 = ssub.s32 16, 16
          %213 = vsyncadd [#allocation7], %s212
          %216 = dma.hbm_to_smem %s0, 16, [#allocation4], [#allocation7]
        $region16: #{cnn_two_forward.1} parent=11 // pred_fallthru
          _
        // Predicated region
        $region17: #{cnn_two_forward.1} parent=11 // pred_check
          %p217 = pneg %p62
        $region18: #{cnn_two_forward.1} parent=11 // pred_check_branch
          %219 = sbr.rel (%p217) target = $region20
        $region19: #{cnn_two_forward.1} parent=11 // pred_region
          %s221 = ssub.s32 16, 16
          %222 = vsyncadd [#allocation9], %s221
          %225 = dma.hbm_to_smem %s1, 16, [#allocation8], [#allocation9]
        $region20: #{cnn_two_forward.1} parent=11 // pred_fallthru
          _
        // Predicated region
        $region21: #{cnn_two_forward.1} parent=11 // pred_check
          %p226 = pneg %p83
        $region22: #{cnn_two_forward.1} parent=11 // pred_check_branch
          %228 = sbr.rel (%p226) target = $region24
        $region23: #{cnn_two_forward.1} parent=11 // pred_region
          _
        $region24: #{cnn_two_forward.1} parent=11 // pred_fallthru
          _
        // Predicated region
        $region25: #{cnn_two_forward.1} parent=11 // pred_check
          %p229 = pneg %p130
        $region26: #{cnn_two_forward.1} parent=11 // pred_check_branch
          %231 = sbr.rel (%p229) target = $region28
        $region27: #{cnn_two_forward.1} parent=11 // pred_region
          %s233 = ssub.s32 32, 32
          %234 = vsyncadd [#allocation12], %s233
          %s236 = sshll.u32 [#allocation11], 4
          %s237 = int_to_ptr.vmem [resolvable:$true] %s236
          %239 = dma.hbm_to_vmem [thread:$0]  %s4, 32, %s237, [#allocation12]
        $region28: #{cnn_two_forward.1} parent=11 // pred_fallthru
          _
        // Predicated region
        $region29: #{cnn_two_forward.1} parent=11 // pred_check
          %p240 = pneg %p151
        $region30: #{cnn_two_forward.1} parent=11 // pred_check_branch
          %242 = sbr.rel (%p240) target = $region32
        $region31: #{cnn_two_forward.1} parent=11 // pred_region
          _
        $region32: #{cnn_two_forward.1} parent=11 // pred_fallthru
          _
        // Predicated region
        $region33: #{cnn_two_forward.1} parent=11 // pred_check
          %p243 = pneg %p172
        $region34: #{cnn_two_forward.1} parent=11 // pred_check_branch
          %245 = sbr.rel (%p243) target = $region36
        $region35: #{cnn_two_forward.1} parent=11 // pred_region
          %s247 = ssub.s32 16, 16
          %248 = vsyncadd [#allocation12], %s247
          %s250 = sshll.u32 [#allocation13], 4
          %s251 = int_to_ptr.vmem [resolvable:$true] %s250
          %253 = dma.hbm_to_vmem [thread:$0]  %s6, 16, %s251, [#allocation12]
        $region36: #{cnn_two_forward.1} parent=11 // pred_fallthru
          _
      $region12: #{cnn_two_forward.1} parent=5 // pred_fallthru
        _
      %p254 = scmp.lt.s32.totalorder %s20, 4
      // Predicated region
      $region37: #{cnn_two_forward.1} parent=5 // pred_check
        %p255 = pneg %p254
      $region38: #{cnn_two_forward.1} parent=5 // pred_check_branch
        %257 = sbr.rel (%p255) target = $region40
      $region39: #{cnn_two_forward.1} parent=5 // pred_region
        // Predicated region
        $region41: #{cnn_two_forward.1} parent=39 // pred_check
          %p258 = pneg %p103
        $region42: #{cnn_two_forward.1} parent=39 // pred_check_branch
          %260 = sbr.rel (%p258) target = $region44
        $region43: #{cnn_two_forward.1} parent=39 // pred_region
          %s261 = sand.u32 %s93, 1
          %s262 = scalar_lea.sflag [#allocation5], %s261
          %s263 = sand.u32 %s93, 1
          %s264 = smul.addr %s263, 4096
          %s265 = scalar_lea.vmem [#allocation10], %s264
          %s266 = smul.u32 32, %s20
          %s268 = ssub.s32 65536, 65536
          %269 = vsyncadd %s262, %s268
          %s270 = smul.addr %s266, 16
          %s271 = smul.addr %s270, 128
          %s272 = scalar_lea.hbm %s3, %s271
          %s273 = sshll.u32 %s265, 4
          %s274 = int_to_ptr.vmem [resolvable:$true] %s273
          %279 = dma.hbm_to_vmem [thread:$0]  %s272, 65536, %s274, %s262, 256, 256, 16
        $region44: #{cnn_two_forward.1} parent=39 // pred_fallthru
          _
      $region40: #{cnn_two_forward.1} parent=5 // pred_fallthru
        _
      %p280 = scmp.le.s32.totalorder 1, %s20
      %p281 = scmp.lt.s32.totalorder %s20, 5
      %p282 = pnand %p280, %p281
      %p283 = pneg %p282
      // Predicated region
      $region45: #{cnn_two_forward.1} parent=5 // pred_check
        _
      $region46: #{cnn_two_forward.1} parent=5 // pred_check_branch
        %285 = sbr.rel (%p282) target = $region48
      $region47: #{cnn_two_forward.1} parent=5 // pred_region
        %s286 = ssub.s32 %s20, 1
        // Predicated region
        $region49: #{cnn_two_forward.1} parent=47 // pred_check
          %p287 = pneg %p41
        $region50: #{cnn_two_forward.1} parent=47 // pred_check_branch
          %289 = sbr.rel (%p287) target = $region52
        $region51: #{cnn_two_forward.1} parent=47 // pred_region
          %290 = dma.done [#allocation7], 16
        $region52: #{cnn_two_forward.1} parent=47 // pred_fallthru
          _
        // Predicated region
        $region53: #{cnn_two_forward.1} parent=47 // pred_check
          %p291 = pneg %p62
        $region54: #{cnn_two_forward.1} parent=47 // pred_check_branch
          %293 = sbr.rel (%p291) target = $region56
        $region55: #{cnn_two_forward.1} parent=47 // pred_region
          %294 = dma.done [#allocation9], 16
        $region56: #{cnn_two_forward.1} parent=47 // pred_fallthru
          _
        %s295 = sand.u32 %s96, 1
        %s296 = scalar_lea.sflag [#allocation5], %s295
        %s297 = sand.u32 %s96, 1
        %s298 = smul.addr %s297, 4096
        %s299 = scalar_lea.vmem [#allocation10], %s298
        // Predicated region
        $region57: #{cnn_two_forward.1} parent=47 // pred_check
          %p300 = pneg %p109
        $region58: #{cnn_two_forward.1} parent=47 // pred_check_branch
          %302 = sbr.rel (%p300) target = $region60
        $region59: #{cnn_two_forward.1} parent=47 // pred_region
          %303 = dma.done %s296, 65536
        $region60: #{cnn_two_forward.1} parent=47 // pred_fallthru
          _
        // Predicated region
        $region61: #{cnn_two_forward.1} parent=47 // pred_check
          %p304 = pneg %p130
        $region62: #{cnn_two_forward.1} parent=47 // pred_check_branch
          %306 = sbr.rel (%p304) target = $region64
        $region63: #{cnn_two_forward.1} parent=47 // pred_region
          %307 = dma.done [#allocation12], 32
        $region64: #{cnn_two_forward.1} parent=47 // pred_fallthru
          _
        // Predicated region
        $region65: #{cnn_two_forward.1} parent=47 // pred_check
          %p308 = pneg %p172
        $region66: #{cnn_two_forward.1} parent=47 // pred_check_branch
          %310 = sbr.rel (%p308) target = $region68
        $region67: #{cnn_two_forward.1} parent=47 // pred_region
          %311 = dma.done [#allocation12], 16
        $region68: #{cnn_two_forward.1} parent=47 // pred_fallthru
          _
        %312 = sfence
        %p313 = pneg %p41
        %p314 = pneg %p38
        %p315 = pneg %p62
        %p316 = pneg %p59
        %p317 = pneg %p83
        %p318 = pneg %p80
        %s319 = sand.u32 %s96, 1
        %s320 = scalar_lea.sflag [#allocation5], %s319
        %s321 = sand.u32 %s96, 1
        %s322 = smul.addr %s321, 4096
        %s323 = scalar_lea.vmem [#allocation10], %s322
        %p324 = pneg %p109
        %p325 = pneg %p106
        %p326 = pneg %p130
        %p327 = pneg %p127
        %p328 = pneg %p151
        %p329 = pneg %p148
        %p330 = pneg %p172
        %p331 = pneg %p169
        %p332 = pneg %p193
        %p333 = pneg %p190
        %s334 = smul.u32 32, %s25
        %p335 = scmp.eq.s32.totalorder %s25, 0
        // Predicated region
        $region69: #{cnn_two_forward.1} parent=47 // pred_check
          %p336 = pneg %p335
        $region70: #{cnn_two_forward.1} parent=47 // pred_check_branch
          %338 = sbr.rel (%p336) target = $region72
        $region71: #{cnn_two_forward.1} parent=47 // pred_region
          %339 = vst [vmem:[#allocation3] sm:$0xf] 0.0
          %v340 = vld [vmem:[%s2] sm:$0xff]
          %v341 = vld [vmem:[%s2 + $0x8] sm:$0xff]
          %v342 = vld [vmem:[%s2 + $0x10] sm:$0xff]
          %v343 = vld [vmem:[%s2 + $0x18] sm:$0xff]
          %v344 = vld [vmem:[%s2 + $0x20] sm:$0xff]
          %v345 = vld [vmem:[%s2 + $0x28] sm:$0xff]
          %v346 = vld [vmem:[%s2 + $0x30] sm:$0xff]
          %v347 = vld [vmem:[%s2 + $0x38] sm:$0xff]
          %v348 = vld [vmem:[%s2 + $0x40] sm:$0x3]
          %v349 = vld [vmem:[%s2 + $0x48] sm:$0xff]
          %v350 = vld [vmem:[%s2 + $0x50] sm:$0xff]
          %v351 = vld [vmem:[%s2 + $0x58] sm:$0xff]
          %v352 = vld [vmem:[%s2 + $0x60] sm:$0xff]
          %v353 = vld [vmem:[%s2 + $0x68] sm:$0xff]
          %v354 = vld [vmem:[%s2 + $0x70] sm:$0xff]
          %v355 = vld [vmem:[%s2 + $0x78] sm:$0xff]
          %v356 = vld [vmem:[%s2 + $0x80] sm:$0xff]
          %v357 = vld [vmem:[%s2 + $0x88] sm:$0x3]
          %s358 = sld [smem:[#allocation4]]
          %v359 = vstv %s358
          %v360 = vmul.f32 %v359, %v340
          %v361 = vmul.f32 %v359, %v341
          %v362 = vmul.f32 %v359, %v342
          %v363 = vmul.f32 %v359, %v343
          %v364 = vmul.f32 %v359, %v344
          %v365 = vmul.f32 %v359, %v345
          %v366 = vmul.f32 %v359, %v346
          %v367 = vmul.f32 %v359, %v347
          %v368 = vmul.f32 %v359, %v349
          %v369 = vmul.f32 %v359, %v350
          %v370 = vmul.f32 %v359, %v351
          %v371 = vmul.f32 %v359, %v352
          %v372 = vmul.f32 %v359, %v353
          %v373 = vmul.f32 %v359, %v354
          %v374 = vmul.f32 %v359, %v355
          %v375 = vmul.f32 %v359, %v356
          %v376 = vadd.f32 %v360, 0.0
          %v377 = vadd.f32 %v361, 0.0
          %v378 = vadd.f32 %v362, 0.0
          %v379 = vadd.f32 %v363, 0.0
          %v380 = vadd.f32 %v364, 0.0
          %v381 = vadd.f32 %v365, 0.0
          %v382 = vadd.f32 %v366, 0.0
          %v383 = vadd.f32 %v367, 0.0
          %v384 = vadd.f32 %v368, 0.0
          %v385 = vadd.f32 %v369, 0.0
          %v386 = vadd.f32 %v370, 0.0
          %v387 = vadd.f32 %v371, 0.0
          %v388 = vadd.f32 %v372, 0.0
          %v389 = vadd.f32 %v373, 0.0
          %v390 = vadd.f32 %v374, 0.0
          %v391 = vadd.f32 %v375, 0.0
          %s392 = sld [smem:[#allocation4 + $0x1]]
          %v393 = vstv %s392
          %v394 = vmul.f32 %v393, %v340
          %v395 = vmul.f32 %v393, %v341
          %v396 = vmul.f32 %v393, %v342
          %v397 = vmul.f32 %v393, %v343
          %v398 = vmul.f32 %v393, %v344
          %v399 = vmul.f32 %v393, %v345
          %v400 = vmul.f32 %v393, %v346
          %v401 = vmul.f32 %v393, %v347
          %v402 = vmul.f32 %v393, %v349
          %v403 = vmul.f32 %v393, %v350
          %v404 = vmul.f32 %v393, %v351
          %v405 = vmul.f32 %v393, %v352
          %v406 = vmul.f32 %v393, %v353
          %v407 = vmul.f32 %v393, %v354
          %v408 = vmul.f32 %v393, %v355
          %v409 = vmul.f32 %v393, %v356
          %426 = vrot.lane.b32.xlu0 %v394, 127
          %v427 = vpop.permute.xlu0 %426
          %428 = vrot.lane.b32.xlu0 %v395, 127
          %v429 = vpop.permute.xlu0 %428
          %430 = vrot.lane.b32.xlu0 %v396, 127
          %v431 = vpop.permute.xlu0 %430
          %432 = vrot.lane.b32.xlu0 %v397, 127
          %v433 = vpop.permute.xlu0 %432
          %434 = vrot.lane.b32.xlu0 %v398, 127
          %v435 = vpop.permute.xlu0 %434
          %436 = vrot.lane.b32.xlu0 %v399, 127
          %v437 = vpop.permute.xlu0 %436
          %438 = vrot.lane.b32.xlu0 %v400, 127
          %v439 = vpop.permute.xlu0 %438
          %440 = vrot.lane.b32.xlu0 %v401, 127
          %v441 = vpop.permute.xlu0 %440
          %442 = vrot.lane.b32.xlu0 %v402, 127
          %v443 = vpop.permute.xlu0 %442
          %444 = vrot.lane.b32.xlu0 %v403, 127
          %v445 = vpop.permute.xlu0 %444
          %446 = vrot.lane.b32.xlu0 %v404, 127
          %v447 = vpop.permute.xlu0 %446
          %448 = vrot.lane.b32.xlu0 %v405, 127
          %v449 = vpop.permute.xlu0 %448
          %450 = vrot.lane.b32.xlu0 %v406, 127
          %v451 = vpop.permute.xlu0 %450
          %452 = vrot.lane.b32.xlu0 %v407, 127
          %v453 = vpop.permute.xlu0 %452
          %454 = vrot.lane.b32.xlu0 %v408, 127
          %v455 = vpop.permute.xlu0 %454
          %456 = vrot.lane.b32.xlu0 %v409, 127
          %v457 = vpop.permute.xlu0 %456
          %v474 = vadd.f32 %v376, %v427
          %v475 = vadd.f32 %v377, %v429
          %v476 = vadd.f32 %v378, %v431
          %v477 = vadd.f32 %v379, %v433
          %v478 = vadd.f32 %v380, %v435
          %v479 = vadd.f32 %v381, %v437
          %v480 = vadd.f32 %v382, %v439
          %v481 = vadd.f32 %v383, %v441
          %v482 = vadd.f32 %v384, %v443
          %v483 = vadd.f32 %v385, %v445
          %v484 = vadd.f32 %v386, %v447
          %v485 = vadd.f32 %v387, %v449
          %v486 = vadd.f32 %v388, %v451
          %v487 = vadd.f32 %v389, %v453
          %v488 = vadd.f32 %v390, %v455
          %v489 = vadd.f32 %v391, %v457
          %s490 = sld [smem:[#allocation4 + $0x2]]
          %v491 = vstv %s490
          %v492 = vmul.f32 %v491, %v340
          %v493 = vmul.f32 %v491, %v341
          %v494 = vmul.f32 %v491, %v342
          %v495 = vmul.f32 %v491, %v343
          %v496 = vmul.f32 %v491, %v344
          %v497 = vmul.f32 %v491, %v345
          %v498 = vmul.f32 %v491, %v346
          %v499 = vmul.f32 %v491, %v347
          %v500 = vmul.f32 %v491, %v349
          %v501 = vmul.f32 %v491, %v350
          %v502 = vmul.f32 %v491, %v351
          %v503 = vmul.f32 %v491, %v352
          %v504 = vmul.f32 %v491, %v353
          %v505 = vmul.f32 %v491, %v354
          %v506 = vmul.f32 %v491, %v355
          %v507 = vmul.f32 %v491, %v356
          %524 = vrot.lane.b32.xlu0 %v492, 126
          %v525 = vpop.permute.xlu0 %524
          %526 = vrot.lane.b32.xlu0 %v493, 126
          %v527 = vpop.permute.xlu0 %526
          %528 = vrot.lane.b32.xlu0 %v494, 126
          %v529 = vpop.permute.xlu0 %528
          %530 = vrot.lane.b32.xlu0 %v495, 126
          %v531 = vpop.permute.xlu0 %530
          %532 = vrot.lane.b32.xlu0 %v496, 126
          %v533 = vpop.permute.xlu0 %532
          %534 = vrot.lane.b32.xlu0 %v497, 126
          %v535 = vpop.permute.xlu0 %534
          %536 = vrot.lane.b32.xlu0 %v498, 126
          %v537 = vpop.permute.xlu0 %536
          %538 = vrot.lane.b32.xlu0 %v499, 126
          %v539 = vpop.permute.xlu0 %538
          %540 = vrot.lane.b32.xlu0 %v500, 126
          %v541 = vpop.permute.xlu0 %540
          %542 = vrot.lane.b32.xlu0 %v501, 126
          %v543 = vpop.permute.xlu0 %542
          %544 = vrot.lane.b32.xlu0 %v502, 126
          %v545 = vpop.permute.xlu0 %544
          %546 = vrot.lane.b32.xlu0 %v503, 126
          %v547 = vpop.permute.xlu0 %546
          %548 = vrot.lane.b32.xlu0 %v504, 126
          %v549 = vpop.permute.xlu0 %548
          %550 = vrot.lane.b32.xlu0 %v505, 126
          %v551 = vpop.permute.xlu0 %550
          %552 = vrot.lane.b32.xlu0 %v506, 126
          %v553 = vpop.permute.xlu0 %552
          %554 = vrot.lane.b32.xlu0 %v507, 126
          %v555 = vpop.permute.xlu0 %554
          %v572 = vadd.f32 %v474, %v525
          %v573 = vadd.f32 %v475, %v527
          %v574 = vadd.f32 %v476, %v529
          %v575 = vadd.f32 %v477, %v531
          %v576 = vadd.f32 %v478, %v533
          %v577 = vadd.f32 %v479, %v535
          %v578 = vadd.f32 %v480, %v537
          %v579 = vadd.f32 %v481, %v539
          %v580 = vadd.f32 %v482, %v541
          %v581 = vadd.f32 %v483, %v543
          %v582 = vadd.f32 %v484, %v545
          %v583 = vadd.f32 %v485, %v547
          %v584 = vadd.f32 %v486, %v549
          %v585 = vadd.f32 %v487, %v551
          %v586 = vadd.f32 %v488, %v553
          %v587 = vadd.f32 %v489, %v555
          %s588 = sld [smem:[#allocation4 + $0x3]]
          %v589 = vstv %s588
          %v590 = vmul.f32 %v589, %v340
          %v591 = vmul.f32 %v589, %v341
          %v592 = vmul.f32 %v589, %v342
          %v593 = vmul.f32 %v589, %v343
          %v594 = vmul.f32 %v589, %v344
          %v595 = vmul.f32 %v589, %v345
          %v596 = vmul.f32 %v589, %v346
          %v597 = vmul.f32 %v589, %v347
          %v598 = vmul.f32 %v589, %v348
          %v599 = vmul.f32 %v589, %v349
          %v600 = vmul.f32 %v589, %v350
          %v601 = vmul.f32 %v589, %v351
          %v602 = vmul.f32 %v589, %v352
          %v603 = vmul.f32 %v589, %v353
          %v604 = vmul.f32 %v589, %v354
          %v605 = vmul.f32 %v589, %v355
          %v606 = vmul.f32 %v589, %v356
          %v607 = vmul.f32 %v589, %v357
          %vm626 = vcmask 1046528
          %v627 = vrot.slane %v590, 1
          %v628 = vrot.slane %v591, 1
          %v629 = vsel %vm626, %v627, %v628
          %v630 = vrot.slane %v592, 1
          %v631 = vsel %vm626, %v628, %v630
          %v632 = vrot.slane %v593, 1
          %v633 = vsel %vm626, %v630, %v632
          %v634 = vrot.slane %v594, 1
          %v635 = vsel %vm626, %v632, %v634
          %v636 = vrot.slane %v595, 1
          %v637 = vsel %vm626, %v634, %v636
          %v638 = vrot.slane %v596, 1
          %v639 = vsel %vm626, %v636, %v638
          %v640 = vrot.slane %v597, 1
          %v641 = vsel %vm626, %v638, %v640
          %v642 = vrot.slane %v598, 1
          %v643 = vsel %vm626, %v640, %v642
          %v644 = vrot.slane %v599, 1
          %v645 = vrot.slane %v600, 1
          %v646 = vsel %vm626, %v644, %v645
          %v647 = vrot.slane %v601, 1
          %v648 = vsel %vm626, %v645, %v647
          %v649 = vrot.slane %v602, 1
          %v650 = vsel %vm626, %v647, %v649
          %v651 = vrot.slane %v603, 1
          %v652 = vsel %vm626, %v649, %v651
          %v653 = vrot.slane %v604, 1
          %v654 = vsel %vm626, %v651, %v653
          %v655 = vrot.slane %v605, 1
          %v656 = vsel %vm626, %v653, %v655
          %v657 = vrot.slane %v606, 1
          %v658 = vsel %vm626, %v655, %v657
          %v659 = vrot.slane %v607, 1
          %v660 = vsel %vm626, %v657, %v659
          %v677 = vadd.f32 %v572, %v629
          %v678 = vadd.f32 %v573, %v631
          %v679 = vadd.f32 %v574, %v633
          %v680 = vadd.f32 %v575, %v635
          %v681 = vadd.f32 %v576, %v637
          %v682 = vadd.f32 %v577, %v639
          %v683 = vadd.f32 %v578, %v641
          %v684 = vadd.f32 %v579, %v643
          %v685 = vadd.f32 %v580, %v646
          %v686 = vadd.f32 %v581, %v648
          %v687 = vadd.f32 %v582, %v650
          %v688 = vadd.f32 %v583, %v652
          %v689 = vadd.f32 %v584, %v654
          %v690 = vadd.f32 %v585, %v656
          %v691 = vadd.f32 %v586, %v658
          %v692 = vadd.f32 %v587, %v660
          %s693 = sld [smem:[#allocation4 + $0x4]]
          %v694 = vstv %s693
          %v695 = vmul.f32 %v694, %v340
          %v696 = vmul.f32 %v694, %v341
          %v697 = vmul.f32 %v694, %v342
          %v698 = vmul.f32 %v694, %v343
          %v699 = vmul.f32 %v694, %v344
          %v700 = vmul.f32 %v694, %v345
          %v701 = vmul.f32 %v694, %v346
          %v702 = vmul.f32 %v694, %v347
          %v703 = vmul.f32 %v694, %v348
          %v704 = vmul.f32 %v694, %v349
          %v705 = vmul.f32 %v694, %v350
          %v706 = vmul.f32 %v694, %v351
          %v707 = vmul.f32 %v694, %v352
          %v708 = vmul.f32 %v694, %v353
          %v709 = vmul.f32 %v694, %v354
          %v710 = vmul.f32 %v694, %v355
          %v711 = vmul.f32 %v694, %v356
          %v712 = vmul.f32 %v694, %v357
          %v731 = vrot.slane %v695, 1
          %v732 = vrot.slane %v696, 1
          %v733 = vsel %vm626, %v731, %v732
          %v734 = vrot.slane %v697, 1
          %v735 = vsel %vm626, %v732, %v734
          %v736 = vrot.slane %v698, 1
          %v737 = vsel %vm626, %v734, %v736
          %v738 = vrot.slane %v699, 1
          %v739 = vsel %vm626, %v736, %v738
          %v740 = vrot.slane %v700, 1
          %v741 = vsel %vm626, %v738, %v740
          %v742 = vrot.slane %v701, 1
          %v743 = vsel %vm626, %v740, %v742
          %v744 = vrot.slane %v702, 1
          %v745 = vsel %vm626, %v742, %v744
          %v746 = vrot.slane %v703, 1
          %v747 = vsel %vm626, %v744, %v746
          %v748 = vrot.slane %v704, 1
          %v749 = vrot.slane %v705, 1
          %v750 = vsel %vm626, %v748, %v749
          %v751 = vrot.slane %v706, 1
          %v752 = vsel %vm626, %v749, %v751
          %v753 = vrot.slane %v707, 1
          %v754 = vsel %vm626, %v751, %v753
          %v755 = vrot.slane %v708, 1
          %v756 = vsel %vm626, %v753, %v755
          %v757 = vrot.slane %v709, 1
          %v758 = vsel %vm626, %v755, %v757
          %v759 = vrot.slane %v710, 1
          %v760 = vsel %vm626, %v757, %v759
          %v761 = vrot.slane %v711, 1
          %v762 = vsel %vm626, %v759, %v761
          %v763 = vrot.slane %v712, 1
          %v764 = vsel %vm626, %v761, %v763
          %765 = vrot.lane.b32.xlu0 %v733, 127
          %v766 = vpop.permute.xlu0 %765
          %767 = vrot.lane.b32.xlu0 %v735, 127
          %v768 = vpop.permute.xlu0 %767
          %769 = vrot.lane.b32.xlu0 %v737, 127
          %v770 = vpop.permute.xlu0 %769
          %771 = vrot.lane.b32.xlu0 %v739, 127
          %v772 = vpop.permute.xlu0 %771
          %773 = vrot.lane.b32.xlu0 %v741, 127
          %v774 = vpop.permute.xlu0 %773
          %775 = vrot.lane.b32.xlu0 %v743, 127
          %v776 = vpop.permute.xlu0 %775
          %777 = vrot.lane.b32.xlu0 %v745, 127
          %v778 = vpop.permute.xlu0 %777
          %779 = vrot.lane.b32.xlu0 %v747, 127
          %v780 = vpop.permute.xlu0 %779
          %781 = vrot.lane.b32.xlu0 %v750, 127
          %v782 = vpop.permute.xlu0 %781
          %783 = vrot.lane.b32.xlu0 %v752, 127
          %v784 = vpop.permute.xlu0 %783
          %785 = vrot.lane.b32.xlu0 %v754, 127
          %v786 = vpop.permute.xlu0 %785
          %787 = vrot.lane.b32.xlu0 %v756, 127
          %v788 = vpop.permute.xlu0 %787
          %789 = vrot.lane.b32.xlu0 %v758, 127
          %v790 = vpop.permute.xlu0 %789
          %791 = vrot.lane.b32.xlu0 %v760, 127
          %v792 = vpop.permute.xlu0 %791
          %793 = vrot.lane.b32.xlu0 %v762, 127
          %v794 = vpop.permute.xlu0 %793
          %795 = vrot.lane.b32.xlu0 %v764, 127
          %v796 = vpop.permute.xlu0 %795
          %v813 = vadd.f32 %v677, %v766
          %v814 = vadd.f32 %v678, %v768
          %v815 = vadd.f32 %v679, %v770
          %v816 = vadd.f32 %v680, %v772
          %v817 = vadd.f32 %v681, %v774
          %v818 = vadd.f32 %v682, %v776
          %v819 = vadd.f32 %v683, %v778
          %v820 = vadd.f32 %v684, %v780
          %v821 = vadd.f32 %v685, %v782
          %v822 = vadd.f32 %v686, %v784
          %v823 = vadd.f32 %v687, %v786
          %v824 = vadd.f32 %v688, %v788
          %v825 = vadd.f32 %v689, %v790
          %v826 = vadd.f32 %v690, %v792
          %v827 = vadd.f32 %v691, %v794
          %v828 = vadd.f32 %v692, %v796
          %s829 = sld [smem:[#allocation4 + $0x5]]
          %v830 = vstv %s829
          %v831 = vmul.f32 %v830, %v340
          %v832 = vmul.f32 %v830, %v341
          %v833 = vmul.f32 %v830, %v342
          %v834 = vmul.f32 %v830, %v343
          %v835 = vmul.f32 %v830, %v344
          %v836 = vmul.f32 %v830, %v345
          %v837 = vmul.f32 %v830, %v346
          %v838 = vmul.f32 %v830, %v347
          %v839 = vmul.f32 %v830, %v348
          %v840 = vmul.f32 %v830, %v349
          %v841 = vmul.f32 %v830, %v350
          %v842 = vmul.f32 %v830, %v351
          %v843 = vmul.f32 %v830, %v352
          %v844 = vmul.f32 %v830, %v353
          %v845 = vmul.f32 %v830, %v354
          %v846 = vmul.f32 %v830, %v355
          %v847 = vmul.f32 %v830, %v356
          %v848 = vmul.f32 %v830, %v357
          %v867 = vrot.slane %v831, 1
          %v868 = vrot.slane %v832, 1
          %v869 = vsel %vm626, %v867, %v868
          %v870 = vrot.slane %v833, 1
          %v871 = vsel %vm626, %v868, %v870
          %v872 = vrot.slane %v834, 1
          %v873 = vsel %vm626, %v870, %v872
          %v874 = vrot.slane %v835, 1
          %v875 = vsel %vm626, %v872, %v874
          %v876 = vrot.slane %v836, 1
          %v877 = vsel %vm626, %v874, %v876
          %v878 = vrot.slane %v837, 1
          %v879 = vsel %vm626, %v876, %v878
          %v880 = vrot.slane %v838, 1
          %v881 = vsel %vm626, %v878, %v880
          %v882 = vrot.slane %v839, 1
          %v883 = vsel %vm626, %v880, %v882
          %v884 = vrot.slane %v840, 1
          %v885 = vrot.slane %v841, 1
          %v886 = vsel %vm626, %v884, %v885
          %v887 = vrot.slane %v842, 1
          %v888 = vsel %vm626, %v885, %v887
          %v889 = vrot.slane %v843, 1
          %v890 = vsel %vm626, %v887, %v889
          %v891 = vrot.slane %v844, 1
          %v892 = vsel %vm626, %v889, %v891
          %v893 = vrot.slane %v845, 1
          %v894 = vsel %vm626, %v891, %v893
          %v895 = vrot.slane %v846, 1
          %v896 = vsel %vm626, %v893, %v895
          %v897 = vrot.slane %v847, 1
          %v898 = vsel %vm626, %v895, %v897
          %v899 = vrot.slane %v848, 1
          %v900 = vsel %vm626, %v897, %v899
          %901 = vrot.lane.b32.xlu0 %v869, 126
          %v902 = vpop.permute.xlu0 %901
          %903 = vrot.lane.b32.xlu0 %v871, 126
          %v904 = vpop.permute.xlu0 %903
          %905 = vrot.lane.b32.xlu0 %v873, 126
          %v906 = vpop.permute.xlu0 %905
          %907 = vrot.lane.b32.xlu0 %v875, 126
          %v908 = vpop.permute.xlu0 %907
          %909 = vrot.lane.b32.xlu0 %v877, 126
          %v910 = vpop.permute.xlu0 %909
          %911 = vrot.lane.b32.xlu0 %v879, 126
          %v912 = vpop.permute.xlu0 %911
          %913 = vrot.lane.b32.xlu0 %v881, 126
          %v914 = vpop.permute.xlu0 %913
          %915 = vrot.lane.b32.xlu0 %v883, 126
          %v916 = vpop.permute.xlu0 %915
          %917 = vrot.lane.b32.xlu0 %v886, 126
          %v918 = vpop.permute.xlu0 %917
          %919 = vrot.lane.b32.xlu0 %v888, 126
          %v920 = vpop.permute.xlu0 %919
          %921 = vrot.lane.b32.xlu0 %v890, 126
          %v922 = vpop.permute.xlu0 %921
          %923 = vrot.lane.b32.xlu0 %v892, 126
          %v924 = vpop.permute.xlu0 %923
          %925 = vrot.lane.b32.xlu0 %v894, 126
          %v926 = vpop.permute.xlu0 %925
          %927 = vrot.lane.b32.xlu0 %v896, 126
          %v928 = vpop.permute.xlu0 %927
          %929 = vrot.lane.b32.xlu0 %v898, 126
          %v930 = vpop.permute.xlu0 %929
          %931 = vrot.lane.b32.xlu0 %v900, 126
          %v932 = vpop.permute.xlu0 %931
          %v949 = vadd.f32 %v813, %v902
          %v950 = vadd.f32 %v814, %v904
          %v951 = vadd.f32 %v815, %v906
          %v952 = vadd.f32 %v816, %v908
          %v953 = vadd.f32 %v817, %v910
          %v954 = vadd.f32 %v818, %v912
          %v955 = vadd.f32 %v819, %v914
          %v956 = vadd.f32 %v820, %v916
          %v957 = vadd.f32 %v821, %v918
          %v958 = vadd.f32 %v822, %v920
          %v959 = vadd.f32 %v823, %v922
          %v960 = vadd.f32 %v824, %v924
          %v961 = vadd.f32 %v825, %v926
          %v962 = vadd.f32 %v826, %v928
          %v963 = vadd.f32 %v827, %v930
          %v964 = vadd.f32 %v828, %v932
          %s965 = sld [smem:[#allocation4 + $0x6]]
          %v966 = vstv %s965
          %v967 = vmul.f32 %v966, %v340
          %v968 = vmul.f32 %v966, %v341
          %v969 = vmul.f32 %v966, %v342
          %v970 = vmul.f32 %v966, %v343
          %v971 = vmul.f32 %v966, %v344
          %v972 = vmul.f32 %v966, %v345
          %v973 = vmul.f32 %v966, %v346
          %v974 = vmul.f32 %v966, %v347
          %v975 = vmul.f32 %v966, %v348
          %v976 = vmul.f32 %v966, %v349
          %v977 = vmul.f32 %v966, %v350
          %v978 = vmul.f32 %v966, %v351
          %v979 = vmul.f32 %v966, %v352
          %v980 = vmul.f32 %v966, %v353
          %v981 = vmul.f32 %v966, %v354
          %v982 = vmul.f32 %v966, %v355
          %v983 = vmul.f32 %v966, %v356
          %v984 = vmul.f32 %v966, %v357
          %vm1003 = vcmask 1045504
          %v1004 = vrot.slane %v967, 2
          %v1005 = vrot.slane %v968, 2
          %v1006 = vsel %vm1003, %v1004, %v1005
          %v1007 = vrot.slane %v969, 2
          %v1008 = vsel %vm1003, %v1005, %v1007
          %v1009 = vrot.slane %v970, 2
          %v1010 = vsel %vm1003, %v1007, %v1009
          %v1011 = vrot.slane %v971, 2
          %v1012 = vsel %vm1003, %v1009, %v1011
          %v1013 = vrot.slane %v972, 2
          %v1014 = vsel %vm1003, %v1011, %v1013
          %v1015 = vrot.slane %v973, 2
          %v1016 = vsel %vm1003, %v1013, %v1015
          %v1017 = vrot.slane %v974, 2
          %v1018 = vsel %vm1003, %v1015, %v1017
          %v1019 = vrot.slane %v975, 2
          %v1020 = vsel %vm1003, %v1017, %v1019
          %v1021 = vrot.slane %v976, 2
          %v1022 = vrot.slane %v977, 2
          %v1023 = vsel %vm1003, %v1021, %v1022
          %v1024 = vrot.slane %v978, 2
          %v1025 = vsel %vm1003, %v1022, %v1024
          %v1026 = vrot.slane %v979, 2
          %v1027 = vsel %vm1003, %v1024, %v1026
          %v1028 = vrot.slane %v980, 2
          %v1029 = vsel %vm1003, %v1026, %v1028
          %v1030 = vrot.slane %v981, 2
          %v1031 = vsel %vm1003, %v1028, %v1030
          %v1032 = vrot.slane %v982, 2
          %v1033 = vsel %vm1003, %v1030, %v1032
          %v1034 = vrot.slane %v983, 2
          %v1035 = vsel %vm1003, %v1032, %v1034
          %v1036 = vrot.slane %v984, 2
          %v1037 = vsel %vm1003, %v1034, %v1036
          %v1054 = vadd.f32 %v949, %v1006
          %v1055 = vadd.f32 %v950, %v1008
          %v1056 = vadd.f32 %v951, %v1010
          %v1057 = vadd.f32 %v952, %v1012
          %v1058 = vadd.f32 %v953, %v1014
          %v1059 = vadd.f32 %v954, %v1016
          %v1060 = vadd.f32 %v955, %v1018
          %v1061 = vadd.f32 %v956, %v1020
          %v1062 = vadd.f32 %v957, %v1023
          %v1063 = vadd.f32 %v958, %v1025
          %v1064 = vadd.f32 %v959, %v1027
          %v1065 = vadd.f32 %v960, %v1029
          %v1066 = vadd.f32 %v961, %v1031
          %v1067 = vadd.f32 %v962, %v1033
          %v1068 = vadd.f32 %v963, %v1035
          %v1069 = vadd.f32 %v964, %v1037
          %s1070 = sld [smem:[#allocation4 + $0x7]]
          %v1071 = vstv %s1070
          %v1072 = vmul.f32 %v1071, %v340
          %v1073 = vmul.f32 %v1071, %v341
          %v1074 = vmul.f32 %v1071, %v342
          %v1075 = vmul.f32 %v1071, %v343
          %v1076 = vmul.f32 %v1071, %v344
          %v1077 = vmul.f32 %v1071, %v345
          %v1078 = vmul.f32 %v1071, %v346
          %v1079 = vmul.f32 %v1071, %v347
          %v1080 = vmul.f32 %v1071, %v348
          %v1081 = vmul.f32 %v1071, %v349
          %v1082 = vmul.f32 %v1071, %v350
          %v1083 = vmul.f32 %v1071, %v351
          %v1084 = vmul.f32 %v1071, %v352
          %v1085 = vmul.f32 %v1071, %v353
          %v1086 = vmul.f32 %v1071, %v354
          %v1087 = vmul.f32 %v1071, %v355
          %v1088 = vmul.f32 %v1071, %v356
          %v1089 = vmul.f32 %v1071, %v357
          %v1108 = vrot.slane %v1072, 2
          %v1109 = vrot.slane %v1073, 2
          %v1110 = vsel %vm1003, %v1108, %v1109
          %v1111 = vrot.slane %v1074, 2
          %v1112 = vsel %vm1003, %v1109, %v1111
          %v1113 = vrot.slane %v1075, 2
          %v1114 = vsel %vm1003, %v1111, %v1113
          %v1115 = vrot.slane %v1076, 2
          %v1116 = vsel %vm1003, %v1113, %v1115
          %v1117 = vrot.slane %v1077, 2
          %v1118 = vsel %vm1003, %v1115, %v1117
          %v1119 = vrot.slane %v1078, 2
          %v1120 = vsel %vm1003, %v1117, %v1119
          %v1121 = vrot.slane %v1079, 2
          %v1122 = vsel %vm1003, %v1119, %v1121
          %v1123 = vrot.slane %v1080, 2
          %v1124 = vsel %vm1003, %v1121, %v1123
          %v1125 = vrot.slane %v1081, 2
          %v1126 = vrot.slane %v1082, 2
          %v1127 = vsel %vm1003, %v1125, %v1126
          %v1128 = vrot.slane %v1083, 2
          %v1129 = vsel %vm1003, %v1126, %v1128
          %v1130 = vrot.slane %v1084, 2
          %v1131 = vsel %vm1003, %v1128, %v1130
          %v1132 = vrot.slane %v1085, 2
          %v1133 = vsel %vm1003, %v1130, %v1132
          %v1134 = vrot.slane %v1086, 2
          %v1135 = vsel %vm1003, %v1132, %v1134
          %v1136 = vrot.slane %v1087, 2
          %v1137 = vsel %vm1003, %v1134, %v1136
          %v1138 = vrot.slane %v1088, 2
          %v1139 = vsel %vm1003, %v1136, %v1138
          %v1140 = vrot.slane %v1089, 2
          %v1141 = vsel %vm1003, %v1138, %v1140
          %1142 = vrot.lane.b32.xlu0 %v1110, 127
          %v1143 = vpop.permute.xlu0 %1142
          %1144 = vrot.lane.b32.xlu0 %v1112, 127
          %v1145 = vpop.permute.xlu0 %1144
          %1146 = vrot.lane.b32.xlu0 %v1114, 127
          %v1147 = vpop.permute.xlu0 %1146
          %1148 = vrot.lane.b32.xlu0 %v1116, 127
          %v1149 = vpop.permute.xlu0 %1148
          %1150 = vrot.lane.b32.xlu0 %v1118, 127
          %v1151 = vpop.permute.xlu0 %1150
          %1152 = vrot.lane.b32.xlu0 %v1120, 127
          %v1153 = vpop.permute.xlu0 %1152
          %1154 = vrot.lane.b32.xlu0 %v1122, 127
          %v1155 = vpop.permute.xlu0 %1154
          %1156 = vrot.lane.b32.xlu0 %v1124, 127
          %v1157 = vpop.permute.xlu0 %1156
          %1158 = vrot.lane.b32.xlu0 %v1127, 127
          %v1159 = vpop.permute.xlu0 %1158
          %1160 = vrot.lane.b32.xlu0 %v1129, 127
          %v1161 = vpop.permute.xlu0 %1160
          %1162 = vrot.lane.b32.xlu0 %v1131, 127
          %v1163 = vpop.permute.xlu0 %1162
          %1164 = vrot.lane.b32.xlu0 %v1133, 127
          %v1165 = vpop.permute.xlu0 %1164
          %1166 = vrot.lane.b32.xlu0 %v1135, 127
          %v1167 = vpop.permute.xlu0 %1166
          %1168 = vrot.lane.b32.xlu0 %v1137, 127
          %v1169 = vpop.permute.xlu0 %1168
          %1170 = vrot.lane.b32.xlu0 %v1139, 127
          %v1171 = vpop.permute.xlu0 %1170
          %1172 = vrot.lane.b32.xlu0 %v1141, 127
          %v1173 = vpop.permute.xlu0 %1172
          %v1190 = vadd.f32 %v1054, %v1143
          %v1191 = vadd.f32 %v1055, %v1145
          %v1192 = vadd.f32 %v1056, %v1147
          %v1193 = vadd.f32 %v1057, %v1149
          %v1194 = vadd.f32 %v1058, %v1151
          %v1195 = vadd.f32 %v1059, %v1153
          %v1196 = vadd.f32 %v1060, %v1155
          %v1197 = vadd.f32 %v1061, %v1157
          %v1198 = vadd.f32 %v1062, %v1159
          %v1199 = vadd.f32 %v1063, %v1161
          %v1200 = vadd.f32 %v1064, %v1163
          %v1201 = vadd.f32 %v1065, %v1165
          %v1202 = vadd.f32 %v1066, %v1167
          %v1203 = vadd.f32 %v1067, %v1169
          %v1204 = vadd.f32 %v1068, %v1171
          %v1205 = vadd.f32 %v1069, %v1173
          %s1206 = sld [smem:[#allocation4 + $0x8]]
          %v1207 = vstv %s1206
          %v1208 = vmul.f32 %v1207, %v340
          %v1209 = vmul.f32 %v1207, %v341
          %v1210 = vmul.f32 %v1207, %v342
          %v1211 = vmul.f32 %v1207, %v343
          %v1212 = vmul.f32 %v1207, %v344
          %v1213 = vmul.f32 %v1207, %v345
          %v1214 = vmul.f32 %v1207, %v346
          %v1215 = vmul.f32 %v1207, %v347
          %v1216 = vmul.f32 %v1207, %v348
          %v1217 = vmul.f32 %v1207, %v349
          %v1218 = vmul.f32 %v1207, %v350
          %v1219 = vmul.f32 %v1207, %v351
          %v1220 = vmul.f32 %v1207, %v352
          %v1221 = vmul.f32 %v1207, %v353
          %v1222 = vmul.f32 %v1207, %v354
          %v1223 = vmul.f32 %v1207, %v355
          %v1224 = vmul.f32 %v1207, %v356
          %v1225 = vmul.f32 %v1207, %v357
          %v1244 = vrot.slane %v1208, 2
          %v1245 = vrot.slane %v1209, 2
          %v1246 = vsel %vm1003, %v1244, %v1245
          %v1247 = vrot.slane %v1210, 2
          %v1248 = vsel %vm1003, %v1245, %v1247
          %v1249 = vrot.slane %v1211, 2
          %v1250 = vsel %vm1003, %v1247, %v1249
          %v1251 = vrot.slane %v1212, 2
          %v1252 = vsel %vm1003, %v1249, %v1251
          %v1253 = vrot.slane %v1213, 2
          %v1254 = vsel %vm1003, %v1251, %v1253
          %v1255 = vrot.slane %v1214, 2
          %v1256 = vsel %vm1003, %v1253, %v1255
          %v1257 = vrot.slane %v1215, 2
          %v1258 = vsel %vm1003, %v1255, %v1257
          %v1259 = vrot.slane %v1216, 2
          %v1260 = vsel %vm1003, %v1257, %v1259
          %v1261 = vrot.slane %v1217, 2
          %v1262 = vrot.slane %v1218, 2
          %v1263 = vsel %vm1003, %v1261, %v1262
          %v1264 = vrot.slane %v1219, 2
          %v1265 = vsel %vm1003, %v1262, %v1264
          %v1266 = vrot.slane %v1220, 2
          %v1267 = vsel %vm1003, %v1264, %v1266
          %v1268 = vrot.slane %v1221, 2
          %v1269 = vsel %vm1003, %v1266, %v1268
          %v1270 = vrot.slane %v1222, 2
          %v1271 = vsel %vm1003, %v1268, %v1270
          %v1272 = vrot.slane %v1223, 2
          %v1273 = vsel %vm1003, %v1270, %v1272
          %v1274 = vrot.slane %v1224, 2
          %v1275 = vsel %vm1003, %v1272, %v1274
          %v1276 = vrot.slane %v1225, 2
          %v1277 = vsel %vm1003, %v1274, %v1276
          %1278 = vrot.lane.b32.xlu0 %v1246, 126
          %v1279 = vpop.permute.xlu0 %1278
          %1280 = vrot.lane.b32.xlu0 %v1248, 126
          %v1281 = vpop.permute.xlu0 %1280
          %1282 = vrot.lane.b32.xlu0 %v1250, 126
          %v1283 = vpop.permute.xlu0 %1282
          %1284 = vrot.lane.b32.xlu0 %v1252, 126
          %v1285 = vpop.permute.xlu0 %1284
          %1286 = vrot.lane.b32.xlu0 %v1254, 126
          %v1287 = vpop.permute.xlu0 %1286
          %1288 = vrot.lane.b32.xlu0 %v1256, 126
          %v1289 = vpop.permute.xlu0 %1288
          %1290 = vrot.lane.b32.xlu0 %v1258, 126
          %v1291 = vpop.permute.xlu0 %1290
          %1292 = vrot.lane.b32.xlu0 %v1260, 126
          %v1293 = vpop.permute.xlu0 %1292
          %1294 = vrot.lane.b32.xlu0 %v1263, 126
          %v1295 = vpop.permute.xlu0 %1294
          %1296 = vrot.lane.b32.xlu0 %v1265, 126
          %v1297 = vpop.permute.xlu0 %1296
          %1298 = vrot.lane.b32.xlu0 %v1267, 126
          %v1299 = vpop.permute.xlu0 %1298
          %1300 = vrot.lane.b32.xlu0 %v1269, 126
          %v1301 = vpop.permute.xlu0 %1300
          %1302 = vrot.lane.b32.xlu0 %v1271, 126
          %v1303 = vpop.permute.xlu0 %1302
          %1304 = vrot.lane.b32.xlu0 %v1273, 126
          %v1305 = vpop.permute.xlu0 %1304
          %1306 = vrot.lane.b32.xlu0 %v1275, 126
          %v1307 = vpop.permute.xlu0 %1306
          %1308 = vrot.lane.b32.xlu0 %v1277, 126
          %v1309 = vpop.permute.xlu0 %1308
          %v1326 = vadd.f32 %v1190, %v1279
          %v1327 = vadd.f32 %v1191, %v1281
          %v1328 = vadd.f32 %v1192, %v1283
          %v1329 = vadd.f32 %v1193, %v1285
          %v1330 = vadd.f32 %v1194, %v1287
          %v1331 = vadd.f32 %v1195, %v1289
          %v1332 = vadd.f32 %v1196, %v1291
          %v1333 = vadd.f32 %v1197, %v1293
          %v1334 = vadd.f32 %v1198, %v1295
          %v1335 = vadd.f32 %v1199, %v1297
          %v1336 = vadd.f32 %v1200, %v1299
          %v1337 = vadd.f32 %v1201, %v1301
          %v1338 = vadd.f32 %v1202, %v1303
          %v1339 = vadd.f32 %v1203, %v1305
          %v1340 = vadd.f32 %v1204, %v1307
          %v1341 = vadd.f32 %v1205, %v1309
          %s1342 = scalar_lea.vmem %s2, 144
          %v1343 = vld [vmem:[%s1342] sm:$0xff]
          %v1344 = vld [vmem:[%s1342 + $0x8] sm:$0xff]
          %v1345 = vld [vmem:[%s1342 + $0x10] sm:$0xff]
          %v1346 = vld [vmem:[%s1342 + $0x18] sm:$0xff]
          %v1347 = vld [vmem:[%s1342 + $0x20] sm:$0xff]
          %v1348 = vld [vmem:[%s1342 + $0x28] sm:$0xff]
          %v1349 = vld [vmem:[%s1342 + $0x30] sm:$0xff]
          %v1350 = vld [vmem:[%s1342 + $0x38] sm:$0xff]
          %v1351 = vld [vmem:[%s1342 + $0x40] sm:$0x3]
          %v1352 = vld [vmem:[%s1342 + $0x48] sm:$0xff]
          %v1353 = vld [vmem:[%s1342 + $0x50] sm:$0xff]
          %v1354 = vld [vmem:[%s1342 + $0x58] sm:$0xff]
          %v1355 = vld [vmem:[%s1342 + $0x60] sm:$0xff]
          %v1356 = vld [vmem:[%s1342 + $0x68] sm:$0xff]
          %v1357 = vld [vmem:[%s1342 + $0x70] sm:$0xff]
          %v1358 = vld [vmem:[%s1342 + $0x78] sm:$0xff]
          %v1359 = vld [vmem:[%s1342 + $0x80] sm:$0xff]
          %v1360 = vld [vmem:[%s1342 + $0x88] sm:$0x3]
          %s1361 = sld [smem:[#allocation4 + $0x9]]
          %v1362 = vstv %s1361
          %v1363 = vmul.f32 %v1362, %v1343
          %v1364 = vmul.f32 %v1362, %v1344
          %v1365 = vmul.f32 %v1362, %v1345
          %v1366 = vmul.f32 %v1362, %v1346
          %v1367 = vmul.f32 %v1362, %v1347
          %v1368 = vmul.f32 %v1362, %v1348
          %v1369 = vmul.f32 %v1362, %v1349
          %v1370 = vmul.f32 %v1362, %v1350
          %v1371 = vmul.f32 %v1362, %v1352
          %v1372 = vmul.f32 %v1362, %v1353
          %v1373 = vmul.f32 %v1362, %v1354
          %v1374 = vmul.f32 %v1362, %v1355
          %v1375 = vmul.f32 %v1362, %v1356
          %v1376 = vmul.f32 %v1362, %v1357
          %v1377 = vmul.f32 %v1362, %v1358
          %v1378 = vmul.f32 %v1362, %v1359
          %v1379 = vadd.f32 %v1326, %v1363
          %v1380 = vadd.f32 %v1327, %v1364
          %v1381 = vadd.f32 %v1328, %v1365
          %v1382 = vadd.f32 %v1329, %v1366
          %v1383 = vadd.f32 %v1330, %v1367
          %v1384 = vadd.f32 %v1331, %v1368
          %v1385 = vadd.f32 %v1332, %v1369
          %v1386 = vadd.f32 %v1333, %v1370
          %v1387 = vadd.f32 %v1334, %v1371
          %v1388 = vadd.f32 %v1335, %v1372
          %v1389 = vadd.f32 %v1336, %v1373
          %v1390 = vadd.f32 %v1337, %v1374
          %v1391 = vadd.f32 %v1338, %v1375
          %v1392 = vadd.f32 %v1339, %v1376
          %v1393 = vadd.f32 %v1340, %v1377
          %v1394 = vadd.f32 %v1341, %v1378
          %s1395 = sld [smem:[#allocation4 + $0xa]]
          %v1396 = vstv %s1395
          %v1397 = vmul.f32 %v1396, %v1343
          %v1398 = vmul.f32 %v1396, %v1344
          %v1399 = vmul.f32 %v1396, %v1345
          %v1400 = vmul.f32 %v1396, %v1346
          %v1401 = vmul.f32 %v1396, %v1347
          %v1402 = vmul.f32 %v1396, %v1348
          %v1403 = vmul.f32 %v1396, %v1349
          %v1404 = vmul.f32 %v1396, %v1350
          %v1405 = vmul.f32 %v1396, %v1352
          %v1406 = vmul.f32 %v1396, %v1353
          %v1407 = vmul.f32 %v1396, %v1354
          %v1408 = vmul.f32 %v1396, %v1355
          %v1409 = vmul.f32 %v1396, %v1356
          %v1410 = vmul.f32 %v1396, %v1357
          %v1411 = vmul.f32 %v1396, %v1358
          %v1412 = vmul.f32 %v1396, %v1359
          %1429 = vrot.lane.b32.xlu0 %v1397, 127
          %v1430 = vpop.permute.xlu0 %1429
          %1431 = vrot.lane.b32.xlu0 %v1398, 127
          %v1432 = vpop.permute.xlu0 %1431
          %1433 = vrot.lane.b32.xlu0 %v1399, 127
          %v1434 = vpop.permute.xlu0 %1433
          %1435 = vrot.lane.b32.xlu0 %v1400, 127
          %v1436 = vpop.permute.xlu0 %1435
          %1437 = vrot.lane.b32.xlu0 %v1401, 127
          %v1438 = vpop.permute.xlu0 %1437
          %1439 = vrot.lane.b32.xlu0 %v1402, 127
          %v1440 = vpop.permute.xlu0 %1439
          %1441 = vrot.lane.b32.xlu0 %v1403, 127
          %v1442 = vpop.permute.xlu0 %1441
          %1443 = vrot.lane.b32.xlu0 %v1404, 127
          %v1444 = vpop.permute.xlu0 %1443
          %1445 = vrot.lane.b32.xlu0 %v1405, 127
          %v1446 = vpop.permute.xlu0 %1445
          %1447 = vrot.lane.b32.xlu0 %v1406, 127
          %v1448 = vpop.permute.xlu0 %1447
          %1449 = vrot.lane.b32.xlu0 %v1407, 127
          %v1450 = vpop.permute.xlu0 %1449
          %1451 = vrot.lane.b32.xlu0 %v1408, 127
          %v1452 = vpop.permute.xlu0 %1451
          %1453 = vrot.lane.b32.xlu0 %v1409, 127
          %v1454 = vpop.permute.xlu0 %1453
          %1455 = vrot.lane.b32.xlu0 %v1410, 127
          %v1456 = vpop.permute.xlu0 %1455
          %1457 = vrot.lane.b32.xlu0 %v1411, 127
          %v1458 = vpop.permute.xlu0 %1457
          %1459 = vrot.lane.b32.xlu0 %v1412, 127
          %v1460 = vpop.permute.xlu0 %1459
          %v1477 = vadd.f32 %v1379, %v1430
          %v1478 = vadd.f32 %v1380, %v1432
          %v1479 = vadd.f32 %v1381, %v1434
          %v1480 = vadd.f32 %v1382, %v1436
          %v1481 = vadd.f32 %v1383, %v1438
          %v1482 = vadd.f32 %v1384, %v1440
          %v1483 = vadd.f32 %v1385, %v1442
          %v1484 = vadd.f32 %v1386, %v1444
          %v1485 = vadd.f32 %v1387, %v1446
          %v1486 = vadd.f32 %v1388, %v1448
          %v1487 = vadd.f32 %v1389, %v1450
          %v1488 = vadd.f32 %v1390, %v1452
          %v1489 = vadd.f32 %v1391, %v1454
          %v1490 = vadd.f32 %v1392, %v1456
          %v1491 = vadd.f32 %v1393, %v1458
          %v1492 = vadd.f32 %v1394, %v1460
          %s1493 = sld [smem:[#allocation4 + $0xb]]
          %v1494 = vstv %s1493
          %v1495 = vmul.f32 %v1494, %v1343
          %v1496 = vmul.f32 %v1494, %v1344
          %v1497 = vmul.f32 %v1494, %v1345
          %v1498 = vmul.f32 %v1494, %v1346
          %v1499 = vmul.f32 %v1494, %v1347
          %v1500 = vmul.f32 %v1494, %v1348
          %v1501 = vmul.f32 %v1494, %v1349
          %v1502 = vmul.f32 %v1494, %v1350
          %v1503 = vmul.f32 %v1494, %v1352
          %v1504 = vmul.f32 %v1494, %v1353
          %v1505 = vmul.f32 %v1494, %v1354
          %v1506 = vmul.f32 %v1494, %v1355
          %v1507 = vmul.f32 %v1494, %v1356
          %v1508 = vmul.f32 %v1494, %v1357
          %v1509 = vmul.f32 %v1494, %v1358
          %v1510 = vmul.f32 %v1494, %v1359
          %1527 = vrot.lane.b32.xlu0 %v1495, 126
          %v1528 = vpop.permute.xlu0 %1527
          %1529 = vrot.lane.b32.xlu0 %v1496, 126
          %v1530 = vpop.permute.xlu0 %1529
          %1531 = vrot.lane.b32.xlu0 %v1497, 126
          %v1532 = vpop.permute.xlu0 %1531
          %1533 = vrot.lane.b32.xlu0 %v1498, 126
          %v1534 = vpop.permute.xlu0 %1533
          %1535 = vrot.lane.b32.xlu0 %v1499, 126
          %v1536 = vpop.permute.xlu0 %1535
          %1537 = vrot.lane.b32.xlu0 %v1500, 126
          %v1538 = vpop.permute.xlu0 %1537
          %1539 = vrot.lane.b32.xlu0 %v1501, 126
          %v1540 = vpop.permute.xlu0 %1539
          %1541 = vrot.lane.b32.xlu0 %v1502, 126
          %v1542 = vpop.permute.xlu0 %1541
          %1543 = vrot.lane.b32.xlu0 %v1503, 126
          %v1544 = vpop.permute.xlu0 %1543
          %1545 = vrot.lane.b32.xlu0 %v1504, 126
          %v1546 = vpop.permute.xlu0 %1545
          %1547 = vrot.lane.b32.xlu0 %v1505, 126
          %v1548 = vpop.permute.xlu0 %1547
          %1549 = vrot.lane.b32.xlu0 %v1506, 126
          %v1550 = vpop.permute.xlu0 %1549
          %1551 = vrot.lane.b32.xlu0 %v1507, 126
          %v1552 = vpop.permute.xlu0 %1551
          %1553 = vrot.lane.b32.xlu0 %v1508, 126
          %v1554 = vpop.permute.xlu0 %1553
          %1555 = vrot.lane.b32.xlu0 %v1509, 126
          %v1556 = vpop.permute.xlu0 %1555
          %1557 = vrot.lane.b32.xlu0 %v1510, 126
          %v1558 = vpop.permute.xlu0 %1557
          %v1575 = vadd.f32 %v1477, %v1528
          %v1576 = vadd.f32 %v1478, %v1530
          %v1577 = vadd.f32 %v1479, %v1532
          %v1578 = vadd.f32 %v1480, %v1534
          %v1579 = vadd.f32 %v1481, %v1536
          %v1580 = vadd.f32 %v1482, %v1538
          %v1581 = vadd.f32 %v1483, %v1540
          %v1582 = vadd.f32 %v1484, %v1542
          %v1583 = vadd.f32 %v1485, %v1544
          %v1584 = vadd.f32 %v1486, %v1546
          %v1585 = vadd.f32 %v1487, %v1548
          %v1586 = vadd.f32 %v1488, %v1550
          %v1587 = vadd.f32 %v1489, %v1552
          %v1588 = vadd.f32 %v1490, %v1554
          %v1589 = vadd.f32 %v1491, %v1556
          %v1590 = vadd.f32 %v1492, %v1558
          %s1591 = sld [smem:[#allocation4 + $0xc]]
          %v1592 = vstv %s1591
          %v1593 = vmul.f32 %v1592, %v1343
          %v1594 = vmul.f32 %v1592, %v1344
          %v1595 = vmul.f32 %v1592, %v1345
          %v1596 = vmul.f32 %v1592, %v1346
          %v1597 = vmul.f32 %v1592, %v1347
          %v1598 = vmul.f32 %v1592, %v1348
          %v1599 = vmul.f32 %v1592, %v1349
          %v1600 = vmul.f32 %v1592, %v1350
          %v1601 = vmul.f32 %v1592, %v1351
          %v1602 = vmul.f32 %v1592, %v1352
          %v1603 = vmul.f32 %v1592, %v1353
          %v1604 = vmul.f32 %v1592, %v1354
          %v1605 = vmul.f32 %v1592, %v1355
          %v1606 = vmul.f32 %v1592, %v1356
          %v1607 = vmul.f32 %v1592, %v1357
          %v1608 = vmul.f32 %v1592, %v1358
          %v1609 = vmul.f32 %v1592, %v1359
          %v1610 = vmul.f32 %v1592, %v1360
          %v1629 = vrot.slane %v1593, 1
          %v1630 = vrot.slane %v1594, 1
          %v1631 = vsel %vm626, %v1629, %v1630
          %v1632 = vrot.slane %v1595, 1
          %v1633 = vsel %vm626, %v1630, %v1632
          %v1634 = vrot.slane %v1596, 1
          %v1635 = vsel %vm626, %v1632, %v1634
          %v1636 = vrot.slane %v1597, 1
          %v1637 = vsel %vm626, %v1634, %v1636
          %v1638 = vrot.slane %v1598, 1
          %v1639 = vsel %vm626, %v1636, %v1638
          %v1640 = vrot.slane %v1599, 1
          %v1641 = vsel %vm626, %v1638, %v1640
          %v1642 = vrot.slane %v1600, 1
          %v1643 = vsel %vm626, %v1640, %v1642
          %v1644 = vrot.slane %v1601, 1
          %v1645 = vsel %vm626, %v1642, %v1644
          %v1646 = vrot.slane %v1602, 1
          %v1647 = vrot.slane %v1603, 1
          %v1648 = vsel %vm626, %v1646, %v1647
          %v1649 = vrot.slane %v1604, 1
          %v1650 = vsel %vm626, %v1647, %v1649
          %v1651 = vrot.slane %v1605, 1
          %v1652 = vsel %vm626, %v1649, %v1651
          %v1653 = vrot.slane %v1606, 1
          %v1654 = vsel %vm626, %v1651, %v1653
          %v1655 = vrot.slane %v1607, 1
          %v1656 = vsel %vm626, %v1653, %v1655
          %v1657 = vrot.slane %v1608, 1
          %v1658 = vsel %vm626, %v1655, %v1657
          %v1659 = vrot.slane %v1609, 1
          %v1660 = vsel %vm626, %v1657, %v1659
          %v1661 = vrot.slane %v1610, 1
          %v1662 = vsel %vm626, %v1659, %v1661
          %v1679 = vadd.f32 %v1575, %v1631
          %v1680 = vadd.f32 %v1576, %v1633
          %v1681 = vadd.f32 %v1577, %v1635
          %v1682 = vadd.f32 %v1578, %v1637
          %v1683 = vadd.f32 %v1579, %v1639
          %v1684 = vadd.f32 %v1580, %v1641
          %v1685 = vadd.f32 %v1581, %v1643
          %v1686 = vadd.f32 %v1582, %v1645
          %v1687 = vadd.f32 %v1583, %v1648
          %v1688 = vadd.f32 %v1584, %v1650
          %v1689 = vadd.f32 %v1585, %v1652
          %v1690 = vadd.f32 %v1586, %v1654
          %v1691 = vadd.f32 %v1587, %v1656
          %v1692 = vadd.f32 %v1588, %v1658
          %v1693 = vadd.f32 %v1589, %v1660
          %v1694 = vadd.f32 %v1590, %v1662
          %s1695 = sld [smem:[#allocation4 + $0xd]]
          %v1696 = vstv %s1695
          %v1697 = vmul.f32 %v1696, %v1343
          %v1698 = vmul.f32 %v1696, %v1344
          %v1699 = vmul.f32 %v1696, %v1345
          %v1700 = vmul.f32 %v1696, %v1346
          %v1701 = vmul.f32 %v1696, %v1347
          %v1702 = vmul.f32 %v1696, %v1348
          %v1703 = vmul.f32 %v1696, %v1349
          %v1704 = vmul.f32 %v1696, %v1350
          %v1705 = vmul.f32 %v1696, %v1351
          %v1706 = vmul.f32 %v1696, %v1352
          %v1707 = vmul.f32 %v1696, %v1353
          %v1708 = vmul.f32 %v1696, %v1354
          %v1709 = vmul.f32 %v1696, %v1355
          %v1710 = vmul.f32 %v1696, %v1356
          %v1711 = vmul.f32 %v1696, %v1357
          %v1712 = vmul.f32 %v1696, %v1358
          %v1713 = vmul.f32 %v1696, %v1359
          %v1714 = vmul.f32 %v1696, %v1360
          %v1733 = vrot.slane %v1697, 1
          %v1734 = vrot.slane %v1698, 1
          %v1735 = vsel %vm626, %v1733, %v1734
          %v1736 = vrot.slane %v1699, 1
          %v1737 = vsel %vm626, %v1734, %v1736
          %v1738 = vrot.slane %v1700, 1
          %v1739 = vsel %vm626, %v1736, %v1738
          %v1740 = vrot.slane %v1701, 1
          %v1741 = vsel %vm626, %v1738, %v1740
          %v1742 = vrot.slane %v1702, 1
          %v1743 = vsel %vm626, %v1740, %v1742
          %v1744 = vrot.slane %v1703, 1
          %v1745 = vsel %vm626, %v1742, %v1744
          %v1746 = vrot.slane %v1704, 1
          %v1747 = vsel %vm626, %v1744, %v1746
          %v1748 = vrot.slane %v1705, 1
          %v1749 = vsel %vm626, %v1746, %v1748
          %v1750 = vrot.slane %v1706, 1
          %v1751 = vrot.slane %v1707, 1
          %v1752 = vsel %vm626, %v1750, %v1751
          %v1753 = vrot.slane %v1708, 1
          %v1754 = vsel %vm626, %v1751, %v1753
          %v1755 = vrot.slane %v1709, 1
          %v1756 = vsel %vm626, %v1753, %v1755
          %v1757 = vrot.slane %v1710, 1
          %v1758 = vsel %vm626, %v1755, %v1757
          %v1759 = vrot.slane %v1711, 1
          %v1760 = vsel %vm626, %v1757, %v1759
          %v1761 = vrot.slane %v1712, 1
          %v1762 = vsel %vm626, %v1759, %v1761
          %v1763 = vrot.slane %v1713, 1
          %v1764 = vsel %vm626, %v1761, %v1763
          %v1765 = vrot.slane %v1714, 1
          %v1766 = vsel %vm626, %v1763, %v1765
          %1767 = vrot.lane.b32.xlu0 %v1735, 127
          %v1768 = vpop.permute.xlu0 %1767
          %1769 = vrot.lane.b32.xlu0 %v1737, 127
          %v1770 = vpop.permute.xlu0 %1769
          %1771 = vrot.lane.b32.xlu0 %v1739, 127
          %v1772 = vpop.permute.xlu0 %1771
          %1773 = vrot.lane.b32.xlu0 %v1741, 127
          %v1774 = vpop.permute.xlu0 %1773
          %1775 = vrot.lane.b32.xlu0 %v1743, 127
          %v1776 = vpop.permute.xlu0 %1775
          %1777 = vrot.lane.b32.xlu0 %v1745, 127
          %v1778 = vpop.permute.xlu0 %1777
          %1779 = vrot.lane.b32.xlu0 %v1747, 127
          %v1780 = vpop.permute.xlu0 %1779
          %1781 = vrot.lane.b32.xlu0 %v1749, 127
          %v1782 = vpop.permute.xlu0 %1781
          %1783 = vrot.lane.b32.xlu0 %v1752, 127
          %v1784 = vpop.permute.xlu0 %1783
          %1785 = vrot.lane.b32.xlu0 %v1754, 127
          %v1786 = vpop.permute.xlu0 %1785
          %1787 = vrot.lane.b32.xlu0 %v1756, 127
          %v1788 = vpop.permute.xlu0 %1787
          %1789 = vrot.lane.b32.xlu0 %v1758, 127
          %v1790 = vpop.permute.xlu0 %1789
          %1791 = vrot.lane.b32.xlu0 %v1760, 127
          %v1792 = vpop.permute.xlu0 %1791
          %1793 = vrot.lane.b32.xlu0 %v1762, 127
          %v1794 = vpop.permute.xlu0 %1793
          %1795 = vrot.lane.b32.xlu0 %v1764, 127
          %v1796 = vpop.permute.xlu0 %1795
          %1797 = vrot.lane.b32.xlu0 %v1766, 127
          %v1798 = vpop.permute.xlu0 %1797
          %v1815 = vadd.f32 %v1679, %v1768
          %v1816 = vadd.f32 %v1680, %v1770
          %v1817 = vadd.f32 %v1681, %v1772
          %v1818 = vadd.f32 %v1682, %v1774
          %v1819 = vadd.f32 %v1683, %v1776
          %v1820 = vadd.f32 %v1684, %v1778
          %v1821 = vadd.f32 %v1685, %v1780
          %v1822 = vadd.f32 %v1686, %v1782
          %v1823 = vadd.f32 %v1687, %v1784
          %v1824 = vadd.f32 %v1688, %v1786
          %v1825 = vadd.f32 %v1689, %v1788
          %v1826 = vadd.f32 %v1690, %v1790
          %v1827 = vadd.f32 %v1691, %v1792
          %v1828 = vadd.f32 %v1692, %v1794
          %v1829 = vadd.f32 %v1693, %v1796
          %v1830 = vadd.f32 %v1694, %v1798
          %s1831 = sld [smem:[#allocation4 + $0xe]]
          %v1832 = vstv %s1831
          %v1833 = vmul.f32 %v1832, %v1343
          %v1834 = vmul.f32 %v1832, %v1344
          %v1835 = vmul.f32 %v1832, %v1345
          %v1836 = vmul.f32 %v1832, %v1346
          %v1837 = vmul.f32 %v1832, %v1347
          %v1838 = vmul.f32 %v1832, %v1348
          %v1839 = vmul.f32 %v1832, %v1349
          %v1840 = vmul.f32 %v1832, %v1350
          %v1841 = vmul.f32 %v1832, %v1351
          %v1842 = vmul.f32 %v1832, %v1352
          %v1843 = vmul.f32 %v1832, %v1353
          %v1844 = vmul.f32 %v1832, %v1354
          %v1845 = vmul.f32 %v1832, %v1355
          %v1846 = vmul.f32 %v1832, %v1356
          %v1847 = vmul.f32 %v1832, %v1357
          %v1848 = vmul.f32 %v1832, %v1358
          %v1849 = vmul.f32 %v1832, %v1359
          %v1850 = vmul.f32 %v1832, %v1360
          %v1869 = vrot.slane %v1833, 1
          %v1870 = vrot.slane %v1834, 1
          %v1871 = vsel %vm626, %v1869, %v1870
          %v1872 = vrot.slane %v1835, 1
          %v1873 = vsel %vm626, %v1870, %v1872
          %v1874 = vrot.slane %v1836, 1
          %v1875 = vsel %vm626, %v1872, %v1874
          %v1876 = vrot.slane %v1837, 1
          %v1877 = vsel %vm626, %v1874, %v1876
          %v1878 = vrot.slane %v1838, 1
          %v1879 = vsel %vm626, %v1876, %v1878
          %v1880 = vrot.slane %v1839, 1
          %v1881 = vsel %vm626, %v1878, %v1880
          %v1882 = vrot.slane %v1840, 1
          %v1883 = vsel %vm626, %v1880, %v1882
          %v1884 = vrot.slane %v1841, 1
          %v1885 = vsel %vm626, %v1882, %v1884
          %v1886 = vrot.slane %v1842, 1
          %v1887 = vrot.slane %v1843, 1
          %v1888 = vsel %vm626, %v1886, %v1887
          %v1889 = vrot.slane %v1844, 1
          %v1890 = vsel %vm626, %v1887, %v1889
          %v1891 = vrot.slane %v1845, 1
          %v1892 = vsel %vm626, %v1889, %v1891
          %v1893 = vrot.slane %v1846, 1
          %v1894 = vsel %vm626, %v1891, %v1893
          %v1895 = vrot.slane %v1847, 1
          %v1896 = vsel %vm626, %v1893, %v1895
          %v1897 = vrot.slane %v1848, 1
          %v1898 = vsel %vm626, %v1895, %v1897
          %v1899 = vrot.slane %v1849, 1
          %v1900 = vsel %vm626, %v1897, %v1899
          %v1901 = vrot.slane %v1850, 1
          %v1902 = vsel %vm626, %v1899, %v1901
          %1903 = vrot.lane.b32.xlu0 %v1871, 126
          %v1904 = vpop.permute.xlu0 %1903
          %1905 = vrot.lane.b32.xlu0 %v1873, 126
          %v1906 = vpop.permute.xlu0 %1905
          %1907 = vrot.lane.b32.xlu0 %v1875, 126
          %v1908 = vpop.permute.xlu0 %1907
          %1909 = vrot.lane.b32.xlu0 %v1877, 126
          %v1910 = vpop.permute.xlu0 %1909
          %1911 = vrot.lane.b32.xlu0 %v1879, 126
          %v1912 = vpop.permute.xlu0 %1911
          %1913 = vrot.lane.b32.xlu0 %v1881, 126
          %v1914 = vpop.permute.xlu0 %1913
          %1915 = vrot.lane.b32.xlu0 %v1883, 126
          %v1916 = vpop.permute.xlu0 %1915
          %1917 = vrot.lane.b32.xlu0 %v1885, 126
          %v1918 = vpop.permute.xlu0 %1917
          %1919 = vrot.lane.b32.xlu0 %v1888, 126
          %v1920 = vpop.permute.xlu0 %1919
          %1921 = vrot.lane.b32.xlu0 %v1890, 126
          %v1922 = vpop.permute.xlu0 %1921
          %1923 = vrot.lane.b32.xlu0 %v1892, 126
          %v1924 = vpop.permute.xlu0 %1923
          %1925 = vrot.lane.b32.xlu0 %v1894, 126
          %v1926 = vpop.permute.xlu0 %1925
          %1927 = vrot.lane.b32.xlu0 %v1896, 126
          %v1928 = vpop.permute.xlu0 %1927
          %1929 = vrot.lane.b32.xlu0 %v1898, 126
          %v1930 = vpop.permute.xlu0 %1929
          %1931 = vrot.lane.b32.xlu0 %v1900, 126
          %v1932 = vpop.permute.xlu0 %1931
          %1933 = vrot.lane.b32.xlu0 %v1902, 126
          %v1934 = vpop.permute.xlu0 %1933
          %v1951 = vadd.f32 %v1815, %v1904
          %v1952 = vadd.f32 %v1816, %v1906
          %v1953 = vadd.f32 %v1817, %v1908
          %v1954 = vadd.f32 %v1818, %v1910
          %v1955 = vadd.f32 %v1819, %v1912
          %v1956 = vadd.f32 %v1820, %v1914
          %v1957 = vadd.f32 %v1821, %v1916
          %v1958 = vadd.f32 %v1822, %v1918
          %v1959 = vadd.f32 %v1823, %v1920
          %v1960 = vadd.f32 %v1824, %v1922
          %v1961 = vadd.f32 %v1825, %v1924
          %v1962 = vadd.f32 %v1826, %v1926
          %v1963 = vadd.f32 %v1827, %v1928
          %v1964 = vadd.f32 %v1828, %v1930
          %v1965 = vadd.f32 %v1829, %v1932
          %v1966 = vadd.f32 %v1830, %v1934
          %s1967 = sld [smem:[#allocation4 + $0xf]]
          %v1968 = vstv %s1967
          %v1969 = vmul.f32 %v1968, %v1343
          %v1970 = vmul.f32 %v1968, %v1344
          %v1971 = vmul.f32 %v1968, %v1345
          %v1972 = vmul.f32 %v1968, %v1346
          %v1973 = vmul.f32 %v1968, %v1347
          %v1974 = vmul.f32 %v1968, %v1348
          %v1975 = vmul.f32 %v1968, %v1349
          %v1976 = vmul.f32 %v1968, %v1350
          %v1977 = vmul.f32 %v1968, %v1351
          %v1978 = vmul.f32 %v1968, %v1352
          %v1979 = vmul.f32 %v1968, %v1353
          %v1980 = vmul.f32 %v1968, %v1354
          %v1981 = vmul.f32 %v1968, %v1355
          %v1982 = vmul.f32 %v1968, %v1356
          %v1983 = vmul.f32 %v1968, %v1357
          %v1984 = vmul.f32 %v1968, %v1358
          %v1985 = vmul.f32 %v1968, %v1359
          %v1986 = vmul.f32 %v1968, %v1360
          %v2005 = vrot.slane %v1969, 2
          %v2006 = vrot.slane %v1970, 2
          %v2007 = vsel %vm1003, %v2005, %v2006
          %v2008 = vrot.slane %v1971, 2
          %v2009 = vsel %vm1003, %v2006, %v2008
          %v2010 = vrot.slane %v1972, 2
          %v2011 = vsel %vm1003, %v2008, %v2010
          %v2012 = vrot.slane %v1973, 2
          %v2013 = vsel %vm1003, %v2010, %v2012
          %v2014 = vrot.slane %v1974, 2
          %v2015 = vsel %vm1003, %v2012, %v2014
          %v2016 = vrot.slane %v1975, 2
          %v2017 = vsel %vm1003, %v2014, %v2016
          %v2018 = vrot.slane %v1976, 2
          %v2019 = vsel %vm1003, %v2016, %v2018
          %v2020 = vrot.slane %v1977, 2
          %v2021 = vsel %vm1003, %v2018, %v2020
          %v2022 = vrot.slane %v1978, 2
          %v2023 = vrot.slane %v1979, 2
          %v2024 = vsel %vm1003, %v2022, %v2023
          %v2025 = vrot.slane %v1980, 2
          %v2026 = vsel %vm1003, %v2023, %v2025
          %v2027 = vrot.slane %v1981, 2
          %v2028 = vsel %vm1003, %v2025, %v2027
          %v2029 = vrot.slane %v1982, 2
          %v2030 = vsel %vm1003, %v2027, %v2029
          %v2031 = vrot.slane %v1983, 2
          %v2032 = vsel %vm1003, %v2029, %v2031
          %v2033 = vrot.slane %v1984, 2
          %v2034 = vsel %vm1003, %v2031, %v2033
          %v2035 = vrot.slane %v1985, 2
          %v2036 = vsel %vm1003, %v2033, %v2035
          %v2037 = vrot.slane %v1986, 2
          %v2038 = vsel %vm1003, %v2035, %v2037
          %v2055 = vadd.f32 %v1951, %v2007
          %v2056 = vadd.f32 %v1952, %v2009
          %v2057 = vadd.f32 %v1953, %v2011
          %v2058 = vadd.f32 %v1954, %v2013
          %v2059 = vadd.f32 %v1955, %v2015
          %v2060 = vadd.f32 %v1956, %v2017
          %v2061 = vadd.f32 %v1957, %v2019
          %v2062 = vadd.f32 %v1958, %v2021
          %v2063 = vadd.f32 %v1959, %v2024
          %v2064 = vadd.f32 %v1960, %v2026
          %v2065 = vadd.f32 %v1961, %v2028
          %v2066 = vadd.f32 %v1962, %v2030
          %v2067 = vadd.f32 %v1963, %v2032
          %v2068 = vadd.f32 %v1964, %v2034
          %v2069 = vadd.f32 %v1965, %v2036
          %v2070 = vadd.f32 %v1966, %v2038
          %s2071 = sld [smem:[#allocation4 + $0x10]]
          %v2072 = vstv %s2071
          %v2073 = vmul.f32 %v2072, %v1343
          %v2074 = vmul.f32 %v2072, %v1344
          %v2075 = vmul.f32 %v2072, %v1345
          %v2076 = vmul.f32 %v2072, %v1346
          %v2077 = vmul.f32 %v2072, %v1347
          %v2078 = vmul.f32 %v2072, %v1348
          %v2079 = vmul.f32 %v2072, %v1349
          %v2080 = vmul.f32 %v2072, %v1350
          %v2081 = vmul.f32 %v2072, %v1351
          %v2082 = vmul.f32 %v2072, %v1352
          %v2083 = vmul.f32 %v2072, %v1353
          %v2084 = vmul.f32 %v2072, %v1354
          %v2085 = vmul.f32 %v2072, %v1355
          %v2086 = vmul.f32 %v2072, %v1356
          %v2087 = vmul.f32 %v2072, %v1357
          %v2088 = vmul.f32 %v2072, %v1358
          %v2089 = vmul.f32 %v2072, %v1359
          %v2090 = vmul.f32 %v2072, %v1360
          %v2109 = vrot.slane %v2073, 2
          %v2110 = vrot.slane %v2074, 2
          %v2111 = vsel %vm1003, %v2109, %v2110
          %v2112 = vrot.slane %v2075, 2
          %v2113 = vsel %vm1003, %v2110, %v2112
          %v2114 = vrot.slane %v2076, 2
          %v2115 = vsel %vm1003, %v2112, %v2114
          %v2116 = vrot.slane %v2077, 2
          %v2117 = vsel %vm1003, %v2114, %v2116
          %v2118 = vrot.slane %v2078, 2
          %v2119 = vsel %vm1003, %v2116, %v2118
          %v2120 = vrot.slane %v2079, 2
          %v2121 = vsel %vm1003, %v2118, %v2120
          %v2122 = vrot.slane %v2080, 2
          %v2123 = vsel %vm1003, %v2120, %v2122
          %v2124 = vrot.slane %v2081, 2
          %v2125 = vsel %vm1003, %v2122, %v2124
          %v2126 = vrot.slane %v2082, 2
          %v2127 = vrot.slane %v2083, 2
          %v2128 = vsel %vm1003, %v2126, %v2127
          %v2129 = vrot.slane %v2084, 2
          %v2130 = vsel %vm1003, %v2127, %v2129
          %v2131 = vrot.slane %v2085, 2
          %v2132 = vsel %vm1003, %v2129, %v2131
          %v2133 = vrot.slane %v2086, 2
          %v2134 = vsel %vm1003, %v2131, %v2133
          %v2135 = vrot.slane %v2087, 2
          %v2136 = vsel %vm1003, %v2133, %v2135
          %v2137 = vrot.slane %v2088, 2
          %v2138 = vsel %vm1003, %v2135, %v2137
          %v2139 = vrot.slane %v2089, 2
          %v2140 = vsel %vm1003, %v2137, %v2139
          %v2141 = vrot.slane %v2090, 2
          %v2142 = vsel %vm1003, %v2139, %v2141
          %2143 = vrot.lane.b32.xlu0 %v2111, 127
          %v2144 = vpop.permute.xlu0 %2143
          %2145 = vrot.lane.b32.xlu0 %v2113, 127
          %v2146 = vpop.permute.xlu0 %2145
          %2147 = vrot.lane.b32.xlu0 %v2115, 127
          %v2148 = vpop.permute.xlu0 %2147
          %2149 = vrot.lane.b32.xlu0 %v2117, 127
          %v2150 = vpop.permute.xlu0 %2149
          %2151 = vrot.lane.b32.xlu0 %v2119, 127
          %v2152 = vpop.permute.xlu0 %2151
          %2153 = vrot.lane.b32.xlu0 %v2121, 127
          %v2154 = vpop.permute.xlu0 %2153
          %2155 = vrot.lane.b32.xlu0 %v2123, 127
          %v2156 = vpop.permute.xlu0 %2155
          %2157 = vrot.lane.b32.xlu0 %v2125, 127
          %v2158 = vpop.permute.xlu0 %2157
          %2159 = vrot.lane.b32.xlu0 %v2128, 127
          %v2160 = vpop.permute.xlu0 %2159
          %2161 = vrot.lane.b32.xlu0 %v2130, 127
          %v2162 = vpop.permute.xlu0 %2161
          %2163 = vrot.lane.b32.xlu0 %v2132, 127
          %v2164 = vpop.permute.xlu0 %2163
          %2165 = vrot.lane.b32.xlu0 %v2134, 127
          %v2166 = vpop.permute.xlu0 %2165
          %2167 = vrot.lane.b32.xlu0 %v2136, 127
          %v2168 = vpop.permute.xlu0 %2167
          %2169 = vrot.lane.b32.xlu0 %v2138, 127
          %v2170 = vpop.permute.xlu0 %2169
          %2171 = vrot.lane.b32.xlu0 %v2140, 127
          %v2172 = vpop.permute.xlu0 %2171
          %2173 = vrot.lane.b32.xlu0 %v2142, 127
          %v2174 = vpop.permute.xlu0 %2173
          %v2191 = vadd.f32 %v2055, %v2144
          %v2192 = vadd.f32 %v2056, %v2146
          %v2193 = vadd.f32 %v2057, %v2148
          %v2194 = vadd.f32 %v2058, %v2150
          %v2195 = vadd.f32 %v2059, %v2152
          %v2196 = vadd.f32 %v2060, %v2154
          %v2197 = vadd.f32 %v2061, %v2156
          %v2198 = vadd.f32 %v2062, %v2158
          %v2199 = vadd.f32 %v2063, %v2160
          %v2200 = vadd.f32 %v2064, %v2162
          %v2201 = vadd.f32 %v2065, %v2164
          %v2202 = vadd.f32 %v2066, %v2166
          %v2203 = vadd.f32 %v2067, %v2168
          %v2204 = vadd.f32 %v2068, %v2170
          %v2205 = vadd.f32 %v2069, %v2172
          %v2206 = vadd.f32 %v2070, %v2174
          %s2207 = sld [smem:[#allocation4 + $0x11]]
          %v2208 = vstv %s2207
          %v2209 = vmul.f32 %v2208, %v1343
          %v2210 = vmul.f32 %v2208, %v1344
          %v2211 = vmul.f32 %v2208, %v1345
          %v2212 = vmul.f32 %v2208, %v1346
          %v2213 = vmul.f32 %v2208, %v1347
          %v2214 = vmul.f32 %v2208, %v1348
          %v2215 = vmul.f32 %v2208, %v1349
          %v2216 = vmul.f32 %v2208, %v1350
          %v2217 = vmul.f32 %v2208, %v1351
          %v2218 = vmul.f32 %v2208, %v1352
          %v2219 = vmul.f32 %v2208, %v1353
          %v2220 = vmul.f32 %v2208, %v1354
          %v2221 = vmul.f32 %v2208, %v1355
          %v2222 = vmul.f32 %v2208, %v1356
          %v2223 = vmul.f32 %v2208, %v1357
          %v2224 = vmul.f32 %v2208, %v1358
          %v2225 = vmul.f32 %v2208, %v1359
          %v2226 = vmul.f32 %v2208, %v1360
          %v2245 = vrot.slane %v2209, 2
          %v2246 = vrot.slane %v2210, 2
          %v2247 = vsel %vm1003, %v2245, %v2246
          %v2248 = vrot.slane %v2211, 2
          %v2249 = vsel %vm1003, %v2246, %v2248
          %v2250 = vrot.slane %v2212, 2
          %v2251 = vsel %vm1003, %v2248, %v2250
          %v2252 = vrot.slane %v2213, 2
          %v2253 = vsel %vm1003, %v2250, %v2252
          %v2254 = vrot.slane %v2214, 2
          %v2255 = vsel %vm1003, %v2252, %v2254
          %v2256 = vrot.slane %v2215, 2
          %v2257 = vsel %vm1003, %v2254, %v2256
          %v2258 = vrot.slane %v2216, 2
          %v2259 = vsel %vm1003, %v2256, %v2258
          %v2260 = vrot.slane %v2217, 2
          %v2261 = vsel %vm1003, %v2258, %v2260
          %v2262 = vrot.slane %v2218, 2
          %v2263 = vrot.slane %v2219, 2
          %v2264 = vsel %vm1003, %v2262, %v2263
          %v2265 = vrot.slane %v2220, 2
          %v2266 = vsel %vm1003, %v2263, %v2265
          %v2267 = vrot.slane %v2221, 2
          %v2268 = vsel %vm1003, %v2265, %v2267
          %v2269 = vrot.slane %v2222, 2
          %v2270 = vsel %vm1003, %v2267, %v2269
          %v2271 = vrot.slane %v2223, 2
          %v2272 = vsel %vm1003, %v2269, %v2271
          %v2273 = vrot.slane %v2224, 2
          %v2274 = vsel %vm1003, %v2271, %v2273
          %v2275 = vrot.slane %v2225, 2
          %v2276 = vsel %vm1003, %v2273, %v2275
          %v2277 = vrot.slane %v2226, 2
          %v2278 = vsel %vm1003, %v2275, %v2277
          %2279 = vrot.lane.b32.xlu0 %v2247, 126
          %v2280 = vpop.permute.xlu0 %2279
          %2281 = vrot.lane.b32.xlu0 %v2249, 126
          %v2282 = vpop.permute.xlu0 %2281
          %2283 = vrot.lane.b32.xlu0 %v2251, 126
          %v2284 = vpop.permute.xlu0 %2283
          %2285 = vrot.lane.b32.xlu0 %v2253, 126
          %v2286 = vpop.permute.xlu0 %2285
          %2287 = vrot.lane.b32.xlu0 %v2255, 126
          %v2288 = vpop.permute.xlu0 %2287
          %2289 = vrot.lane.b32.xlu0 %v2257, 126
          %v2290 = vpop.permute.xlu0 %2289
          %2291 = vrot.lane.b32.xlu0 %v2259, 126
          %v2292 = vpop.permute.xlu0 %2291
          %2293 = vrot.lane.b32.xlu0 %v2261, 126
          %v2294 = vpop.permute.xlu0 %2293
          %2295 = vrot.lane.b32.xlu0 %v2264, 126
          %v2296 = vpop.permute.xlu0 %2295
          %2297 = vrot.lane.b32.xlu0 %v2266, 126
          %v2298 = vpop.permute.xlu0 %2297
          %2299 = vrot.lane.b32.xlu0 %v2268, 126
          %v2300 = vpop.permute.xlu0 %2299
          %2301 = vrot.lane.b32.xlu0 %v2270, 126
          %v2302 = vpop.permute.xlu0 %2301
          %2303 = vrot.lane.b32.xlu0 %v2272, 126
          %v2304 = vpop.permute.xlu0 %2303
          %2305 = vrot.lane.b32.xlu0 %v2274, 126
          %v2306 = vpop.permute.xlu0 %2305
          %2307 = vrot.lane.b32.xlu0 %v2276, 126
          %v2308 = vpop.permute.xlu0 %2307
          %2309 = vrot.lane.b32.xlu0 %v2278, 126
          %v2310 = vpop.permute.xlu0 %2309
          %v2327 = vadd.f32 %v2191, %v2280
          %v2328 = vadd.f32 %v2192, %v2282
          %v2329 = vadd.f32 %v2193, %v2284
          %v2330 = vadd.f32 %v2194, %v2286
          %v2331 = vadd.f32 %v2195, %v2288
          %v2332 = vadd.f32 %v2196, %v2290
          %v2333 = vadd.f32 %v2197, %v2292
          %v2334 = vadd.f32 %v2198, %v2294
          %v2335 = vadd.f32 %v2199, %v2296
          %v2336 = vadd.f32 %v2200, %v2298
          %v2337 = vadd.f32 %v2201, %v2300
          %v2338 = vadd.f32 %v2202, %v2302
          %v2339 = vadd.f32 %v2203, %v2304
          %v2340 = vadd.f32 %v2204, %v2306
          %v2341 = vadd.f32 %v2205, %v2308
          %v2342 = vadd.f32 %v2206, %v2310
          %s2343 = scalar_lea.vmem %s2, 288
          %v2344 = vld [vmem:[%s2343] sm:$0xff]
          %v2345 = vld [vmem:[%s2343 + $0x8] sm:$0xff]
          %v2346 = vld [vmem:[%s2343 + $0x10] sm:$0xff]
          %v2347 = vld [vmem:[%s2343 + $0x18] sm:$0xff]
          %v2348 = vld [vmem:[%s2343 + $0x20] sm:$0xff]
          %v2349 = vld [vmem:[%s2343 + $0x28] sm:$0xff]
          %v2350 = vld [vmem:[%s2343 + $0x30] sm:$0xff]
          %v2351 = vld [vmem:[%s2343 + $0x38] sm:$0xff]
          %v2352 = vld [vmem:[%s2343 + $0x40] sm:$0x3]
          %v2353 = vld [vmem:[%s2343 + $0x48] sm:$0xff]
          %v2354 = vld [vmem:[%s2343 + $0x50] sm:$0xff]
          %v2355 = vld [vmem:[%s2343 + $0x58] sm:$0xff]
          %v2356 = vld [vmem:[%s2343 + $0x60] sm:$0xff]
          %v2357 = vld [vmem:[%s2343 + $0x68] sm:$0xff]
          %v2358 = vld [vmem:[%s2343 + $0x70] sm:$0xff]
          %v2359 = vld [vmem:[%s2343 + $0x78] sm:$0xff]
          %v2360 = vld [vmem:[%s2343 + $0x80] sm:$0xff]
          %v2361 = vld [vmem:[%s2343 + $0x88] sm:$0x3]
          %s2362 = sld [smem:[#allocation4 + $0x12]]
          %v2363 = vstv %s2362
          %v2364 = vmul.f32 %v2363, %v2344
          %v2365 = vmul.f32 %v2363, %v2345
          %v2366 = vmul.f32 %v2363, %v2346
          %v2367 = vmul.f32 %v2363, %v2347
          %v2368 = vmul.f32 %v2363, %v2348
          %v2369 = vmul.f32 %v2363, %v2349
          %v2370 = vmul.f32 %v2363, %v2350
          %v2371 = vmul.f32 %v2363, %v2351
          %v2372 = vmul.f32 %v2363, %v2353
          %v2373 = vmul.f32 %v2363, %v2354
          %v2374 = vmul.f32 %v2363, %v2355
          %v2375 = vmul.f32 %v2363, %v2356
          %v2376 = vmul.f32 %v2363, %v2357
          %v2377 = vmul.f32 %v2363, %v2358
          %v2378 = vmul.f32 %v2363, %v2359
          %v2379 = vmul.f32 %v2363, %v2360
          %v2380 = vadd.f32 %v2327, %v2364
          %v2381 = vadd.f32 %v2328, %v2365
          %v2382 = vadd.f32 %v2329, %v2366
          %v2383 = vadd.f32 %v2330, %v2367
          %v2384 = vadd.f32 %v2331, %v2368
          %v2385 = vadd.f32 %v2332, %v2369
          %v2386 = vadd.f32 %v2333, %v2370
          %v2387 = vadd.f32 %v2334, %v2371
          %v2388 = vadd.f32 %v2335, %v2372
          %v2389 = vadd.f32 %v2336, %v2373
          %v2390 = vadd.f32 %v2337, %v2374
          %v2391 = vadd.f32 %v2338, %v2375
          %v2392 = vadd.f32 %v2339, %v2376
          %v2393 = vadd.f32 %v2340, %v2377
          %v2394 = vadd.f32 %v2341, %v2378
          %v2395 = vadd.f32 %v2342, %v2379
          %s2396 = sld [smem:[#allocation4 + $0x13]]
          %v2397 = vstv %s2396
          %v2398 = vmul.f32 %v2397, %v2344
          %v2399 = vmul.f32 %v2397, %v2345
          %v2400 = vmul.f32 %v2397, %v2346
          %v2401 = vmul.f32 %v2397, %v2347
          %v2402 = vmul.f32 %v2397, %v2348
          %v2403 = vmul.f32 %v2397, %v2349
          %v2404 = vmul.f32 %v2397, %v2350
          %v2405 = vmul.f32 %v2397, %v2351
          %v2406 = vmul.f32 %v2397, %v2353
          %v2407 = vmul.f32 %v2397, %v2354
          %v2408 = vmul.f32 %v2397, %v2355
          %v2409 = vmul.f32 %v2397, %v2356
          %v2410 = vmul.f32 %v2397, %v2357
          %v2411 = vmul.f32 %v2397, %v2358
          %v2412 = vmul.f32 %v2397, %v2359
          %v2413 = vmul.f32 %v2397, %v2360
          %2430 = vrot.lane.b32.xlu0 %v2398, 127
          %v2431 = vpop.permute.xlu0 %2430
          %2432 = vrot.lane.b32.xlu0 %v2399, 127
          %v2433 = vpop.permute.xlu0 %2432
          %2434 = vrot.lane.b32.xlu0 %v2400, 127
          %v2435 = vpop.permute.xlu0 %2434
          %2436 = vrot.lane.b32.xlu0 %v2401, 127
          %v2437 = vpop.permute.xlu0 %2436
          %2438 = vrot.lane.b32.xlu0 %v2402, 127
          %v2439 = vpop.permute.xlu0 %2438
          %2440 = vrot.lane.b32.xlu0 %v2403, 127
          %v2441 = vpop.permute.xlu0 %2440
          %2442 = vrot.lane.b32.xlu0 %v2404, 127
          %v2443 = vpop.permute.xlu0 %2442
          %2444 = vrot.lane.b32.xlu0 %v2405, 127
          %v2445 = vpop.permute.xlu0 %2444
          %2446 = vrot.lane.b32.xlu0 %v2406, 127
          %v2447 = vpop.permute.xlu0 %2446
          %2448 = vrot.lane.b32.xlu0 %v2407, 127
          %v2449 = vpop.permute.xlu0 %2448
          %2450 = vrot.lane.b32.xlu0 %v2408, 127
          %v2451 = vpop.permute.xlu0 %2450
          %2452 = vrot.lane.b32.xlu0 %v2409, 127
          %v2453 = vpop.permute.xlu0 %2452
          %2454 = vrot.lane.b32.xlu0 %v2410, 127
          %v2455 = vpop.permute.xlu0 %2454
          %2456 = vrot.lane.b32.xlu0 %v2411, 127
          %v2457 = vpop.permute.xlu0 %2456
          %2458 = vrot.lane.b32.xlu0 %v2412, 127
          %v2459 = vpop.permute.xlu0 %2458
          %2460 = vrot.lane.b32.xlu0 %v2413, 127
          %v2461 = vpop.permute.xlu0 %2460
          %v2478 = vadd.f32 %v2380, %v2431
          %v2479 = vadd.f32 %v2381, %v2433
          %v2480 = vadd.f32 %v2382, %v2435
          %v2481 = vadd.f32 %v2383, %v2437
          %v2482 = vadd.f32 %v2384, %v2439
          %v2483 = vadd.f32 %v2385, %v2441
          %v2484 = vadd.f32 %v2386, %v2443
          %v2485 = vadd.f32 %v2387, %v2445
          %v2486 = vadd.f32 %v2388, %v2447
          %v2487 = vadd.f32 %v2389, %v2449
          %v2488 = vadd.f32 %v2390, %v2451
          %v2489 = vadd.f32 %v2391, %v2453
          %v2490 = vadd.f32 %v2392, %v2455
          %v2491 = vadd.f32 %v2393, %v2457
          %v2492 = vadd.f32 %v2394, %v2459
          %v2493 = vadd.f32 %v2395, %v2461
          %s2494 = sld [smem:[#allocation4 + $0x14]]
          %v2495 = vstv %s2494
          %v2496 = vmul.f32 %v2495, %v2344
          %v2497 = vmul.f32 %v2495, %v2345
          %v2498 = vmul.f32 %v2495, %v2346
          %v2499 = vmul.f32 %v2495, %v2347
          %v2500 = vmul.f32 %v2495, %v2348
          %v2501 = vmul.f32 %v2495, %v2349
          %v2502 = vmul.f32 %v2495, %v2350
          %v2503 = vmul.f32 %v2495, %v2351
          %v2504 = vmul.f32 %v2495, %v2353
          %v2505 = vmul.f32 %v2495, %v2354
          %v2506 = vmul.f32 %v2495, %v2355
          %v2507 = vmul.f32 %v2495, %v2356
          %v2508 = vmul.f32 %v2495, %v2357
          %v2509 = vmul.f32 %v2495, %v2358
          %v2510 = vmul.f32 %v2495, %v2359
          %v2511 = vmul.f32 %v2495, %v2360
          %2528 = vrot.lane.b32.xlu0 %v2496, 126
          %v2529 = vpop.permute.xlu0 %2528
          %2530 = vrot.lane.b32.xlu0 %v2497, 126
          %v2531 = vpop.permute.xlu0 %2530
          %2532 = vrot.lane.b32.xlu0 %v2498, 126
          %v2533 = vpop.permute.xlu0 %2532
          %2534 = vrot.lane.b32.xlu0 %v2499, 126
          %v2535 = vpop.permute.xlu0 %2534
          %2536 = vrot.lane.b32.xlu0 %v2500, 126
          %v2537 = vpop.permute.xlu0 %2536
          %2538 = vrot.lane.b32.xlu0 %v2501, 126
          %v2539 = vpop.permute.xlu0 %2538
          %2540 = vrot.lane.b32.xlu0 %v2502, 126
          %v2541 = vpop.permute.xlu0 %2540
          %2542 = vrot.lane.b32.xlu0 %v2503, 126
          %v2543 = vpop.permute.xlu0 %2542
          %2544 = vrot.lane.b32.xlu0 %v2504, 126
          %v2545 = vpop.permute.xlu0 %2544
          %2546 = vrot.lane.b32.xlu0 %v2505, 126
          %v2547 = vpop.permute.xlu0 %2546
          %2548 = vrot.lane.b32.xlu0 %v2506, 126
          %v2549 = vpop.permute.xlu0 %2548
          %2550 = vrot.lane.b32.xlu0 %v2507, 126
          %v2551 = vpop.permute.xlu0 %2550
          %2552 = vrot.lane.b32.xlu0 %v2508, 126
          %v2553 = vpop.permute.xlu0 %2552
          %2554 = vrot.lane.b32.xlu0 %v2509, 126
          %v2555 = vpop.permute.xlu0 %2554
          %2556 = vrot.lane.b32.xlu0 %v2510, 126
          %v2557 = vpop.permute.xlu0 %2556
          %2558 = vrot.lane.b32.xlu0 %v2511, 126
          %v2559 = vpop.permute.xlu0 %2558
          %v2576 = vadd.f32 %v2478, %v2529
          %v2577 = vadd.f32 %v2479, %v2531
          %v2578 = vadd.f32 %v2480, %v2533
          %v2579 = vadd.f32 %v2481, %v2535
          %v2580 = vadd.f32 %v2482, %v2537
          %v2581 = vadd.f32 %v2483, %v2539
          %v2582 = vadd.f32 %v2484, %v2541
          %v2583 = vadd.f32 %v2485, %v2543
          %v2584 = vadd.f32 %v2486, %v2545
          %v2585 = vadd.f32 %v2487, %v2547
          %v2586 = vadd.f32 %v2488, %v2549
          %v2587 = vadd.f32 %v2489, %v2551
          %v2588 = vadd.f32 %v2490, %v2553
          %v2589 = vadd.f32 %v2491, %v2555
          %v2590 = vadd.f32 %v2492, %v2557
          %v2591 = vadd.f32 %v2493, %v2559
          %s2592 = sld [smem:[#allocation4 + $0x15]]
          %v2593 = vstv %s2592
          %v2594 = vmul.f32 %v2593, %v2344
          %v2595 = vmul.f32 %v2593, %v2345
          %v2596 = vmul.f32 %v2593, %v2346
          %v2597 = vmul.f32 %v2593, %v2347
          %v2598 = vmul.f32 %v2593, %v2348
          %v2599 = vmul.f32 %v2593, %v2349
          %v2600 = vmul.f32 %v2593, %v2350
          %v2601 = vmul.f32 %v2593, %v2351
          %v2602 = vmul.f32 %v2593, %v2352
          %v2603 = vmul.f32 %v2593, %v2353
          %v2604 = vmul.f32 %v2593, %v2354
          %v2605 = vmul.f32 %v2593, %v2355
          %v2606 = vmul.f32 %v2593, %v2356
          %v2607 = vmul.f32 %v2593, %v2357
          %v2608 = vmul.f32 %v2593, %v2358
          %v2609 = vmul.f32 %v2593, %v2359
          %v2610 = vmul.f32 %v2593, %v2360
          %v2611 = vmul.f32 %v2593, %v2361
          %v2630 = vrot.slane %v2594, 1
          %v2631 = vrot.slane %v2595, 1
          %v2632 = vsel %vm626, %v2630, %v2631
          %v2633 = vrot.slane %v2596, 1
          %v2634 = vsel %vm626, %v2631, %v2633
          %v2635 = vrot.slane %v2597, 1
          %v2636 = vsel %vm626, %v2633, %v2635
          %v2637 = vrot.slane %v2598, 1
          %v2638 = vsel %vm626, %v2635, %v2637
          %v2639 = vrot.slane %v2599, 1
          %v2640 = vsel %vm626, %v2637, %v2639
          %v2641 = vrot.slane %v2600, 1
          %v2642 = vsel %vm626, %v2639, %v2641
          %v2643 = vrot.slane %v2601, 1
          %v2644 = vsel %vm626, %v2641, %v2643
          %v2645 = vrot.slane %v2602, 1
          %v2646 = vsel %vm626, %v2643, %v2645
          %v2647 = vrot.slane %v2603, 1
          %v2648 = vrot.slane %v2604, 1
          %v2649 = vsel %vm626, %v2647, %v2648
          %v2650 = vrot.slane %v2605, 1
          %v2651 = vsel %vm626, %v2648, %v2650
          %v2652 = vrot.slane %v2606, 1
          %v2653 = vsel %vm626, %v2650, %v2652
          %v2654 = vrot.slane %v2607, 1
          %v2655 = vsel %vm626, %v2652, %v2654
          %v2656 = vrot.slane %v2608, 1
          %v2657 = vsel %vm626, %v2654, %v2656
          %v2658 = vrot.slane %v2609, 1
          %v2659 = vsel %vm626, %v2656, %v2658
          %v2660 = vrot.slane %v2610, 1
          %v2661 = vsel %vm626, %v2658, %v2660
          %v2662 = vrot.slane %v2611, 1
          %v2663 = vsel %vm626, %v2660, %v2662
          %v2680 = vadd.f32 %v2576, %v2632
          %v2681 = vadd.f32 %v2577, %v2634
          %v2682 = vadd.f32 %v2578, %v2636
          %v2683 = vadd.f32 %v2579, %v2638
          %v2684 = vadd.f32 %v2580, %v2640
          %v2685 = vadd.f32 %v2581, %v2642
          %v2686 = vadd.f32 %v2582, %v2644
          %v2687 = vadd.f32 %v2583, %v2646
          %v2688 = vadd.f32 %v2584, %v2649
          %v2689 = vadd.f32 %v2585, %v2651
          %v2690 = vadd.f32 %v2586, %v2653
          %v2691 = vadd.f32 %v2587, %v2655
          %v2692 = vadd.f32 %v2588, %v2657
          %v2693 = vadd.f32 %v2589, %v2659
          %v2694 = vadd.f32 %v2590, %v2661
          %v2695 = vadd.f32 %v2591, %v2663
          %s2696 = sld [smem:[#allocation4 + $0x16]]
          %v2697 = vstv %s2696
          %v2698 = vmul.f32 %v2697, %v2344
          %v2699 = vmul.f32 %v2697, %v2345
          %v2700 = vmul.f32 %v2697, %v2346
          %v2701 = vmul.f32 %v2697, %v2347
          %v2702 = vmul.f32 %v2697, %v2348
          %v2703 = vmul.f32 %v2697, %v2349
          %v2704 = vmul.f32 %v2697, %v2350
          %v2705 = vmul.f32 %v2697, %v2351
          %v2706 = vmul.f32 %v2697, %v2352
          %v2707 = vmul.f32 %v2697, %v2353
          %v2708 = vmul.f32 %v2697, %v2354
          %v2709 = vmul.f32 %v2697, %v2355
          %v2710 = vmul.f32 %v2697, %v2356
          %v2711 = vmul.f32 %v2697, %v2357
          %v2712 = vmul.f32 %v2697, %v2358
          %v2713 = vmul.f32 %v2697, %v2359
          %v2714 = vmul.f32 %v2697, %v2360
          %v2715 = vmul.f32 %v2697, %v2361
          %v2734 = vrot.slane %v2698, 1
          %v2735 = vrot.slane %v2699, 1
          %v2736 = vsel %vm626, %v2734, %v2735
          %v2737 = vrot.slane %v2700, 1
          %v2738 = vsel %vm626, %v2735, %v2737
          %v2739 = vrot.slane %v2701, 1
          %v2740 = vsel %vm626, %v2737, %v2739
          %v2741 = vrot.slane %v2702, 1
          %v2742 = vsel %vm626, %v2739, %v2741
          %v2743 = vrot.slane %v2703, 1
          %v2744 = vsel %vm626, %v2741, %v2743
          %v2745 = vrot.slane %v2704, 1
          %v2746 = vsel %vm626, %v2743, %v2745
          %v2747 = vrot.slane %v2705, 1
          %v2748 = vsel %vm626, %v2745, %v2747
          %v2749 = vrot.slane %v2706, 1
          %v2750 = vsel %vm626, %v2747, %v2749
          %v2751 = vrot.slane %v2707, 1
          %v2752 = vrot.slane %v2708, 1
          %v2753 = vsel %vm626, %v2751, %v2752
          %v2754 = vrot.slane %v2709, 1
          %v2755 = vsel %vm626, %v2752, %v2754
          %v2756 = vrot.slane %v2710, 1
          %v2757 = vsel %vm626, %v2754, %v2756
          %v2758 = vrot.slane %v2711, 1
          %v2759 = vsel %vm626, %v2756, %v2758
          %v2760 = vrot.slane %v2712, 1
          %v2761 = vsel %vm626, %v2758, %v2760
          %v2762 = vrot.slane %v2713, 1
          %v2763 = vsel %vm626, %v2760, %v2762
          %v2764 = vrot.slane %v2714, 1
          %v2765 = vsel %vm626, %v2762, %v2764
          %v2766 = vrot.slane %v2715, 1
          %v2767 = vsel %vm626, %v2764, %v2766
          %2768 = vrot.lane.b32.xlu0 %v2736, 127
          %v2769 = vpop.permute.xlu0 %2768
          %2770 = vrot.lane.b32.xlu0 %v2738, 127
          %v2771 = vpop.permute.xlu0 %2770
          %2772 = vrot.lane.b32.xlu0 %v2740, 127
          %v2773 = vpop.permute.xlu0 %2772
          %2774 = vrot.lane.b32.xlu0 %v2742, 127
          %v2775 = vpop.permute.xlu0 %2774
          %2776 = vrot.lane.b32.xlu0 %v2744, 127
          %v2777 = vpop.permute.xlu0 %2776
          %2778 = vrot.lane.b32.xlu0 %v2746, 127
          %v2779 = vpop.permute.xlu0 %2778
          %2780 = vrot.lane.b32.xlu0 %v2748, 127
          %v2781 = vpop.permute.xlu0 %2780
          %2782 = vrot.lane.b32.xlu0 %v2750, 127
          %v2783 = vpop.permute.xlu0 %2782
          %2784 = vrot.lane.b32.xlu0 %v2753, 127
          %v2785 = vpop.permute.xlu0 %2784
          %2786 = vrot.lane.b32.xlu0 %v2755, 127
          %v2787 = vpop.permute.xlu0 %2786
          %2788 = vrot.lane.b32.xlu0 %v2757, 127
          %v2789 = vpop.permute.xlu0 %2788
          %2790 = vrot.lane.b32.xlu0 %v2759, 127
          %v2791 = vpop.permute.xlu0 %2790
          %2792 = vrot.lane.b32.xlu0 %v2761, 127
          %v2793 = vpop.permute.xlu0 %2792
          %2794 = vrot.lane.b32.xlu0 %v2763, 127
          %v2795 = vpop.permute.xlu0 %2794
          %2796 = vrot.lane.b32.xlu0 %v2765, 127
          %v2797 = vpop.permute.xlu0 %2796
          %2798 = vrot.lane.b32.xlu0 %v2767, 127
          %v2799 = vpop.permute.xlu0 %2798
          %v2816 = vadd.f32 %v2680, %v2769
          %v2817 = vadd.f32 %v2681, %v2771
          %v2818 = vadd.f32 %v2682, %v2773
          %v2819 = vadd.f32 %v2683, %v2775
          %v2820 = vadd.f32 %v2684, %v2777
          %v2821 = vadd.f32 %v2685, %v2779
          %v2822 = vadd.f32 %v2686, %v2781
          %v2823 = vadd.f32 %v2687, %v2783
          %v2824 = vadd.f32 %v2688, %v2785
          %v2825 = vadd.f32 %v2689, %v2787
          %v2826 = vadd.f32 %v2690, %v2789
          %v2827 = vadd.f32 %v2691, %v2791
          %v2828 = vadd.f32 %v2692, %v2793
          %v2829 = vadd.f32 %v2693, %v2795
          %v2830 = vadd.f32 %v2694, %v2797
          %v2831 = vadd.f32 %v2695, %v2799
          %s2832 = sld [smem:[#allocation4 + $0x17]]
          %v2833 = vstv %s2832
          %v2834 = vmul.f32 %v2833, %v2344
          %v2835 = vmul.f32 %v2833, %v2345
          %v2836 = vmul.f32 %v2833, %v2346
          %v2837 = vmul.f32 %v2833, %v2347
          %v2838 = vmul.f32 %v2833, %v2348
          %v2839 = vmul.f32 %v2833, %v2349
          %v2840 = vmul.f32 %v2833, %v2350
          %v2841 = vmul.f32 %v2833, %v2351
          %v2842 = vmul.f32 %v2833, %v2352
          %v2843 = vmul.f32 %v2833, %v2353
          %v2844 = vmul.f32 %v2833, %v2354
          %v2845 = vmul.f32 %v2833, %v2355
          %v2846 = vmul.f32 %v2833, %v2356
          %v2847 = vmul.f32 %v2833, %v2357
          %v2848 = vmul.f32 %v2833, %v2358
          %v2849 = vmul.f32 %v2833, %v2359
          %v2850 = vmul.f32 %v2833, %v2360
          %v2851 = vmul.f32 %v2833, %v2361
          %v2870 = vrot.slane %v2834, 1
          %v2871 = vrot.slane %v2835, 1
          %v2872 = vsel %vm626, %v2870, %v2871
          %v2873 = vrot.slane %v2836, 1
          %v2874 = vsel %vm626, %v2871, %v2873
          %v2875 = vrot.slane %v2837, 1
          %v2876 = vsel %vm626, %v2873, %v2875
          %v2877 = vrot.slane %v2838, 1
          %v2878 = vsel %vm626, %v2875, %v2877
          %v2879 = vrot.slane %v2839, 1
          %v2880 = vsel %vm626, %v2877, %v2879
          %v2881 = vrot.slane %v2840, 1
          %v2882 = vsel %vm626, %v2879, %v2881
          %v2883 = vrot.slane %v2841, 1
          %v2884 = vsel %vm626, %v2881, %v2883
          %v2885 = vrot.slane %v2842, 1
          %v2886 = vsel %vm626, %v2883, %v2885
          %v2887 = vrot.slane %v2843, 1
          %v2888 = vrot.slane %v2844, 1
          %v2889 = vsel %vm626, %v2887, %v2888
          %v2890 = vrot.slane %v2845, 1
          %v2891 = vsel %vm626, %v2888, %v2890
          %v2892 = vrot.slane %v2846, 1
          %v2893 = vsel %vm626, %v2890, %v2892
          %v2894 = vrot.slane %v2847, 1
          %v2895 = vsel %vm626, %v2892, %v2894
          %v2896 = vrot.slane %v2848, 1
          %v2897 = vsel %vm626, %v2894, %v2896
          %v2898 = vrot.slane %v2849, 1
          %v2899 = vsel %vm626, %v2896, %v2898
          %v2900 = vrot.slane %v2850, 1
          %v2901 = vsel %vm626, %v2898, %v2900
          %v2902 = vrot.slane %v2851, 1
          %v2903 = vsel %vm626, %v2900, %v2902
          %2904 = vrot.lane.b32.xlu0 %v2872, 126
          %v2905 = vpop.permute.xlu0 %2904
          %2906 = vrot.lane.b32.xlu0 %v2874, 126
          %v2907 = vpop.permute.xlu0 %2906
          %2908 = vrot.lane.b32.xlu0 %v2876, 126
          %v2909 = vpop.permute.xlu0 %2908
          %2910 = vrot.lane.b32.xlu0 %v2878, 126
          %v2911 = vpop.permute.xlu0 %2910
          %2912 = vrot.lane.b32.xlu0 %v2880, 126
          %v2913 = vpop.permute.xlu0 %2912
          %2914 = vrot.lane.b32.xlu0 %v2882, 126
          %v2915 = vpop.permute.xlu0 %2914
          %2916 = vrot.lane.b32.xlu0 %v2884, 126
          %v2917 = vpop.permute.xlu0 %2916
          %2918 = vrot.lane.b32.xlu0 %v2886, 126
          %v2919 = vpop.permute.xlu0 %2918
          %2920 = vrot.lane.b32.xlu0 %v2889, 126
          %v2921 = vpop.permute.xlu0 %2920
          %2922 = vrot.lane.b32.xlu0 %v2891, 126
          %v2923 = vpop.permute.xlu0 %2922
          %2924 = vrot.lane.b32.xlu0 %v2893, 126
          %v2925 = vpop.permute.xlu0 %2924
          %2926 = vrot.lane.b32.xlu0 %v2895, 126
          %v2927 = vpop.permute.xlu0 %2926
          %2928 = vrot.lane.b32.xlu0 %v2897, 126
          %v2929 = vpop.permute.xlu0 %2928
          %2930 = vrot.lane.b32.xlu0 %v2899, 126
          %v2931 = vpop.permute.xlu0 %2930
          %2932 = vrot.lane.b32.xlu0 %v2901, 126
          %v2933 = vpop.permute.xlu0 %2932
          %2934 = vrot.lane.b32.xlu0 %v2903, 126
          %v2935 = vpop.permute.xlu0 %2934
          %v2952 = vadd.f32 %v2816, %v2905
          %v2953 = vadd.f32 %v2817, %v2907
          %v2954 = vadd.f32 %v2818, %v2909
          %v2955 = vadd.f32 %v2819, %v2911
          %v2956 = vadd.f32 %v2820, %v2913
          %v2957 = vadd.f32 %v2821, %v2915
          %v2958 = vadd.f32 %v2822, %v2917
          %v2959 = vadd.f32 %v2823, %v2919
          %v2960 = vadd.f32 %v2824, %v2921
          %v2961 = vadd.f32 %v2825, %v2923
          %v2962 = vadd.f32 %v2826, %v2925
          %v2963 = vadd.f32 %v2827, %v2927
          %v2964 = vadd.f32 %v2828, %v2929
          %v2965 = vadd.f32 %v2829, %v2931
          %v2966 = vadd.f32 %v2830, %v2933
          %v2967 = vadd.f32 %v2831, %v2935
          %s2968 = sld [smem:[#allocation4 + $0x18]]
          %v2969 = vstv %s2968
          %v2970 = vmul.f32 %v2969, %v2344
          %v2971 = vmul.f32 %v2969, %v2345
          %v2972 = vmul.f32 %v2969, %v2346
          %v2973 = vmul.f32 %v2969, %v2347
          %v2974 = vmul.f32 %v2969, %v2348
          %v2975 = vmul.f32 %v2969, %v2349
          %v2976 = vmul.f32 %v2969, %v2350
          %v2977 = vmul.f32 %v2969, %v2351
          %v2978 = vmul.f32 %v2969, %v2352
          %v2979 = vmul.f32 %v2969, %v2353
          %v2980 = vmul.f32 %v2969, %v2354
          %v2981 = vmul.f32 %v2969, %v2355
          %v2982 = vmul.f32 %v2969, %v2356
          %v2983 = vmul.f32 %v2969, %v2357
          %v2984 = vmul.f32 %v2969, %v2358
          %v2985 = vmul.f32 %v2969, %v2359
          %v2986 = vmul.f32 %v2969, %v2360
          %v2987 = vmul.f32 %v2969, %v2361
          %v3006 = vrot.slane %v2970, 2
          %v3007 = vrot.slane %v2971, 2
          %v3008 = vsel %vm1003, %v3006, %v3007
          %v3009 = vrot.slane %v2972, 2
          %v3010 = vsel %vm1003, %v3007, %v3009
          %v3011 = vrot.slane %v2973, 2
          %v3012 = vsel %vm1003, %v3009, %v3011
          %v3013 = vrot.slane %v2974, 2
          %v3014 = vsel %vm1003, %v3011, %v3013
          %v3015 = vrot.slane %v2975, 2
          %v3016 = vsel %vm1003, %v3013, %v3015
          %v3017 = vrot.slane %v2976, 2
          %v3018 = vsel %vm1003, %v3015, %v3017
          %v3019 = vrot.slane %v2977, 2
          %v3020 = vsel %vm1003, %v3017, %v3019
          %v3021 = vrot.slane %v2978, 2
          %v3022 = vsel %vm1003, %v3019, %v3021
          %v3023 = vrot.slane %v2979, 2
          %v3024 = vrot.slane %v2980, 2
          %v3025 = vsel %vm1003, %v3023, %v3024
          %v3026 = vrot.slane %v2981, 2
          %v3027 = vsel %vm1003, %v3024, %v3026
          %v3028 = vrot.slane %v2982, 2
          %v3029 = vsel %vm1003, %v3026, %v3028
          %v3030 = vrot.slane %v2983, 2
          %v3031 = vsel %vm1003, %v3028, %v3030
          %v3032 = vrot.slane %v2984, 2
          %v3033 = vsel %vm1003, %v3030, %v3032
          %v3034 = vrot.slane %v2985, 2
          %v3035 = vsel %vm1003, %v3032, %v3034
          %v3036 = vrot.slane %v2986, 2
          %v3037 = vsel %vm1003, %v3034, %v3036
          %v3038 = vrot.slane %v2987, 2
          %v3039 = vsel %vm1003, %v3036, %v3038
          %v3056 = vadd.f32 %v2952, %v3008
          %v3057 = vadd.f32 %v2953, %v3010
          %v3058 = vadd.f32 %v2954, %v3012
          %v3059 = vadd.f32 %v2955, %v3014
          %v3060 = vadd.f32 %v2956, %v3016
          %v3061 = vadd.f32 %v2957, %v3018
          %v3062 = vadd.f32 %v2958, %v3020
          %v3063 = vadd.f32 %v2959, %v3022
          %v3064 = vadd.f32 %v2960, %v3025
          %v3065 = vadd.f32 %v2961, %v3027
          %v3066 = vadd.f32 %v2962, %v3029
          %v3067 = vadd.f32 %v2963, %v3031
          %v3068 = vadd.f32 %v2964, %v3033
          %v3069 = vadd.f32 %v2965, %v3035
          %v3070 = vadd.f32 %v2966, %v3037
          %v3071 = vadd.f32 %v2967, %v3039
          %s3072 = sld [smem:[#allocation4 + $0x19]]
          %v3073 = vstv %s3072
          %v3074 = vmul.f32 %v3073, %v2344
          %v3075 = vmul.f32 %v3073, %v2345
          %v3076 = vmul.f32 %v3073, %v2346
          %v3077 = vmul.f32 %v3073, %v2347
          %v3078 = vmul.f32 %v3073, %v2348
          %v3079 = vmul.f32 %v3073, %v2349
          %v3080 = vmul.f32 %v3073, %v2350
          %v3081 = vmul.f32 %v3073, %v2351
          %v3082 = vmul.f32 %v3073, %v2352
          %v3083 = vmul.f32 %v3073, %v2353
          %v3084 = vmul.f32 %v3073, %v2354
          %v3085 = vmul.f32 %v3073, %v2355
          %v3086 = vmul.f32 %v3073, %v2356
          %v3087 = vmul.f32 %v3073, %v2357
          %v3088 = vmul.f32 %v3073, %v2358
          %v3089 = vmul.f32 %v3073, %v2359
          %v3090 = vmul.f32 %v3073, %v2360
          %v3091 = vmul.f32 %v3073, %v2361
          %v3110 = vrot.slane %v3074, 2
          %v3111 = vrot.slane %v3075, 2
          %v3112 = vsel %vm1003, %v3110, %v3111
          %v3113 = vrot.slane %v3076, 2
          %v3114 = vsel %vm1003, %v3111, %v3113
          %v3115 = vrot.slane %v3077, 2
          %v3116 = vsel %vm1003, %v3113, %v3115
          %v3117 = vrot.slane %v3078, 2
          %v3118 = vsel %vm1003, %v3115, %v3117
          %v3119 = vrot.slane %v3079, 2
          %v3120 = vsel %vm1003, %v3117, %v3119
          %v3121 = vrot.slane %v3080, 2
          %v3122 = vsel %vm1003, %v3119, %v3121
          %v3123 = vrot.slane %v3081, 2
          %v3124 = vsel %vm1003, %v3121, %v3123
          %v3125 = vrot.slane %v3082, 2
          %v3126 = vsel %vm1003, %v3123, %v3125
          %v3127 = vrot.slane %v3083, 2
          %v3128 = vrot.slane %v3084, 2
          %v3129 = vsel %vm1003, %v3127, %v3128
          %v3130 = vrot.slane %v3085, 2
          %v3131 = vsel %vm1003, %v3128, %v3130
          %v3132 = vrot.slane %v3086, 2
          %v3133 = vsel %vm1003, %v3130, %v3132
          %v3134 = vrot.slane %v3087, 2
          %v3135 = vsel %vm1003, %v3132, %v3134
          %v3136 = vrot.slane %v3088, 2
          %v3137 = vsel %vm1003, %v3134, %v3136
          %v3138 = vrot.slane %v3089, 2
          %v3139 = vsel %vm1003, %v3136, %v3138
          %v3140 = vrot.slane %v3090, 2
          %v3141 = vsel %vm1003, %v3138, %v3140
          %v3142 = vrot.slane %v3091, 2
          %v3143 = vsel %vm1003, %v3140, %v3142
          %3144 = vrot.lane.b32.xlu0 %v3112, 127
          %v3145 = vpop.permute.xlu0 %3144
          %3146 = vrot.lane.b32.xlu0 %v3114, 127
          %v3147 = vpop.permute.xlu0 %3146
          %3148 = vrot.lane.b32.xlu0 %v3116, 127
          %v3149 = vpop.permute.xlu0 %3148
          %3150 = vrot.lane.b32.xlu0 %v3118, 127
          %v3151 = vpop.permute.xlu0 %3150
          %3152 = vrot.lane.b32.xlu0 %v3120, 127
          %v3153 = vpop.permute.xlu0 %3152
          %3154 = vrot.lane.b32.xlu0 %v3122, 127
          %v3155 = vpop.permute.xlu0 %3154
          %3156 = vrot.lane.b32.xlu0 %v3124, 127
          %v3157 = vpop.permute.xlu0 %3156
          %3158 = vrot.lane.b32.xlu0 %v3126, 127
          %v3159 = vpop.permute.xlu0 %3158
          %3160 = vrot.lane.b32.xlu0 %v3129, 127
          %v3161 = vpop.permute.xlu0 %3160
          %3162 = vrot.lane.b32.xlu0 %v3131, 127
          %v3163 = vpop.permute.xlu0 %3162
          %3164 = vrot.lane.b32.xlu0 %v3133, 127
          %v3165 = vpop.permute.xlu0 %3164
          %3166 = vrot.lane.b32.xlu0 %v3135, 127
          %v3167 = vpop.permute.xlu0 %3166
          %3168 = vrot.lane.b32.xlu0 %v3137, 127
          %v3169 = vpop.permute.xlu0 %3168
          %3170 = vrot.lane.b32.xlu0 %v3139, 127
          %v3171 = vpop.permute.xlu0 %3170
          %3172 = vrot.lane.b32.xlu0 %v3141, 127
          %v3173 = vpop.permute.xlu0 %3172
          %3174 = vrot.lane.b32.xlu0 %v3143, 127
          %v3175 = vpop.permute.xlu0 %3174
          %v3192 = vadd.f32 %v3056, %v3145
          %v3193 = vadd.f32 %v3057, %v3147
          %v3194 = vadd.f32 %v3058, %v3149
          %v3195 = vadd.f32 %v3059, %v3151
          %v3196 = vadd.f32 %v3060, %v3153
          %v3197 = vadd.f32 %v3061, %v3155
          %v3198 = vadd.f32 %v3062, %v3157
          %v3199 = vadd.f32 %v3063, %v3159
          %v3200 = vadd.f32 %v3064, %v3161
          %v3201 = vadd.f32 %v3065, %v3163
          %v3202 = vadd.f32 %v3066, %v3165
          %v3203 = vadd.f32 %v3067, %v3167
          %v3204 = vadd.f32 %v3068, %v3169
          %v3205 = vadd.f32 %v3069, %v3171
          %v3206 = vadd.f32 %v3070, %v3173
          %v3207 = vadd.f32 %v3071, %v3175
          %s3208 = sld [smem:[#allocation4 + $0x1a]]
          %v3209 = vstv %s3208
          %v3210 = vmul.f32 %v3209, %v2344
          %v3211 = vmul.f32 %v3209, %v2345
          %v3212 = vmul.f32 %v3209, %v2346
          %v3213 = vmul.f32 %v3209, %v2347
          %v3214 = vmul.f32 %v3209, %v2348
          %v3215 = vmul.f32 %v3209, %v2349
          %v3216 = vmul.f32 %v3209, %v2350
          %v3217 = vmul.f32 %v3209, %v2351
          %v3218 = vmul.f32 %v3209, %v2352
          %v3219 = vmul.f32 %v3209, %v2353
          %v3220 = vmul.f32 %v3209, %v2354
          %v3221 = vmul.f32 %v3209, %v2355
          %v3222 = vmul.f32 %v3209, %v2356
          %v3223 = vmul.f32 %v3209, %v2357
          %v3224 = vmul.f32 %v3209, %v2358
          %v3225 = vmul.f32 %v3209, %v2359
          %v3226 = vmul.f32 %v3209, %v2360
          %v3227 = vmul.f32 %v3209, %v2361
          %v3246 = vrot.slane %v3210, 2
          %v3247 = vrot.slane %v3211, 2
          %v3248 = vsel %vm1003, %v3246, %v3247
          %v3249 = vrot.slane %v3212, 2
          %v3250 = vsel %vm1003, %v3247, %v3249
          %v3251 = vrot.slane %v3213, 2
          %v3252 = vsel %vm1003, %v3249, %v3251
          %v3253 = vrot.slane %v3214, 2
          %v3254 = vsel %vm1003, %v3251, %v3253
          %v3255 = vrot.slane %v3215, 2
          %v3256 = vsel %vm1003, %v3253, %v3255
          %v3257 = vrot.slane %v3216, 2
          %v3258 = vsel %vm1003, %v3255, %v3257
          %v3259 = vrot.slane %v3217, 2
          %v3260 = vsel %vm1003, %v3257, %v3259
          %v3261 = vrot.slane %v3218, 2
          %v3262 = vsel %vm1003, %v3259, %v3261
          %v3263 = vrot.slane %v3219, 2
          %v3264 = vrot.slane %v3220, 2
          %v3265 = vsel %vm1003, %v3263, %v3264
          %v3266 = vrot.slane %v3221, 2
          %v3267 = vsel %vm1003, %v3264, %v3266
          %v3268 = vrot.slane %v3222, 2
          %v3269 = vsel %vm1003, %v3266, %v3268
          %v3270 = vrot.slane %v3223, 2
          %v3271 = vsel %vm1003, %v3268, %v3270
          %v3272 = vrot.slane %v3224, 2
          %v3273 = vsel %vm1003, %v3270, %v3272
          %v3274 = vrot.slane %v3225, 2
          %v3275 = vsel %vm1003, %v3272, %v3274
          %v3276 = vrot.slane %v3226, 2
          %v3277 = vsel %vm1003, %v3274, %v3276
          %v3278 = vrot.slane %v3227, 2
          %v3279 = vsel %vm1003, %v3276, %v3278
          %3280 = vrot.lane.b32.xlu0 %v3248, 126
          %v3281 = vpop.permute.xlu0 %3280
          %3282 = vrot.lane.b32.xlu0 %v3250, 126
          %v3283 = vpop.permute.xlu0 %3282
          %3284 = vrot.lane.b32.xlu0 %v3252, 126
          %v3285 = vpop.permute.xlu0 %3284
          %3286 = vrot.lane.b32.xlu0 %v3254, 126
          %v3287 = vpop.permute.xlu0 %3286
          %3288 = vrot.lane.b32.xlu0 %v3256, 126
          %v3289 = vpop.permute.xlu0 %3288
          %3290 = vrot.lane.b32.xlu0 %v3258, 126
          %v3291 = vpop.permute.xlu0 %3290
          %3292 = vrot.lane.b32.xlu0 %v3260, 126
          %v3293 = vpop.permute.xlu0 %3292
          %3294 = vrot.lane.b32.xlu0 %v3262, 126
          %v3295 = vpop.permute.xlu0 %3294
          %3296 = vrot.lane.b32.xlu0 %v3265, 126
          %v3297 = vpop.permute.xlu0 %3296
          %3298 = vrot.lane.b32.xlu0 %v3267, 126
          %v3299 = vpop.permute.xlu0 %3298
          %3300 = vrot.lane.b32.xlu0 %v3269, 126
          %v3301 = vpop.permute.xlu0 %3300
          %3302 = vrot.lane.b32.xlu0 %v3271, 126
          %v3303 = vpop.permute.xlu0 %3302
          %3304 = vrot.lane.b32.xlu0 %v3273, 126
          %v3305 = vpop.permute.xlu0 %3304
          %3306 = vrot.lane.b32.xlu0 %v3275, 126
          %v3307 = vpop.permute.xlu0 %3306
          %3308 = vrot.lane.b32.xlu0 %v3277, 126
          %v3309 = vpop.permute.xlu0 %3308
          %3310 = vrot.lane.b32.xlu0 %v3279, 126
          %v3311 = vpop.permute.xlu0 %3310
          %v3328 = vadd.f32 %v3192, %v3281
          %v3329 = vadd.f32 %v3193, %v3283
          %v3330 = vadd.f32 %v3194, %v3285
          %v3331 = vadd.f32 %v3195, %v3287
          %v3332 = vadd.f32 %v3196, %v3289
          %v3333 = vadd.f32 %v3197, %v3291
          %v3334 = vadd.f32 %v3198, %v3293
          %v3335 = vadd.f32 %v3199, %v3295
          %v3336 = vadd.f32 %v3200, %v3297
          %v3337 = vadd.f32 %v3201, %v3299
          %v3338 = vadd.f32 %v3202, %v3301
          %v3339 = vadd.f32 %v3203, %v3303
          %v3340 = vadd.f32 %v3204, %v3305
          %v3341 = vadd.f32 %v3205, %v3307
          %v3342 = vadd.f32 %v3206, %v3309
          %v3343 = vadd.f32 %v3207, %v3311
          %s3344 = sld [smem:[#allocation8]]
          %v3345 = vstv %s3344
          %v3346 = vadd.f32 %v3328, %v3345
          %v3347 = vadd.f32 %v3329, %v3345
          %v3348 = vadd.f32 %v3330, %v3345
          %v3349 = vadd.f32 %v3331, %v3345
          %v3350 = vadd.f32 %v3332, %v3345
          %v3351 = vadd.f32 %v3333, %v3345
          %v3352 = vadd.f32 %v3334, %v3345
          %v3353 = vadd.f32 %v3335, %v3345
          %v3354 = vadd.f32 %v3336, %v3345
          %v3355 = vadd.f32 %v3337, %v3345
          %v3356 = vadd.f32 %v3338, %v3345
          %v3357 = vadd.f32 %v3339, %v3345
          %v3358 = vadd.f32 %v3340, %v3345
          %v3359 = vadd.f32 %v3341, %v3345
          %v3360 = vadd.f32 %v3342, %v3345
          %v3361 = vadd.f32 %v3343, %v3345
          %v3362 = vmax.f32 %v3346, 0.0
          %v3363 = vmax.f32 %v3347, 0.0
          %v3364 = vmax.f32 %v3348, 0.0
          %v3365 = vmax.f32 %v3349, 0.0
          %v3366 = vmax.f32 %v3350, 0.0
          %v3367 = vmax.f32 %v3351, 0.0
          %v3368 = vmax.f32 %v3352, 0.0
          %v3369 = vmax.f32 %v3353, 0.0
          %v3370 = vmax.f32 %v3354, 0.0
          %v3371 = vmax.f32 %v3355, 0.0
          %v3372 = vmax.f32 %v3356, 0.0
          %v3373 = vmax.f32 %v3357, 0.0
          %v3374 = vmax.f32 %v3358, 0.0
          %v3375 = vmax.f32 %v3359, 0.0
          %v3376 = vmax.f32 %v3360, 0.0
          %v3377 = vmax.f32 %v3361, 0.0
          %vm3378 = vcmask 523264
          %3379 = vst.msk [vmem:[#allocation2] sm:$0xff] %vm3378, %v3362
          %3380 = vst.msk [vmem:[#allocation2 + $0x8] sm:$0xff] %vm3378, %v3363
          %3381 = vst.msk [vmem:[#allocation2 + $0x10] sm:$0xff] %vm3378, %v3364
          %3382 = vst.msk [vmem:[#allocation2 + $0x18] sm:$0xff] %vm3378, %v3365
          %3383 = vst.msk [vmem:[#allocation2 + $0x20] sm:$0xff] %vm3378, %v3366
          %3384 = vst.msk [vmem:[#allocation2 + $0x28] sm:$0xff] %vm3378, %v3367
          %3385 = vst.msk [vmem:[#allocation2 + $0x30] sm:$0xff] %vm3378, %v3368
          %3386 = vst.msk [vmem:[#allocation2 + $0x38] sm:$0xff] %vm3378, %v3369
          %3387 = vst.msk [vmem:[#allocation2 + $0x80] sm:$0xff] %vm3378, %v3370
          %3388 = vst.msk [vmem:[#allocation2 + $0x88] sm:$0xff] %vm3378, %v3371
          %3389 = vst.msk [vmem:[#allocation2 + $0x90] sm:$0xff] %vm3378, %v3372
          %3390 = vst.msk [vmem:[#allocation2 + $0x98] sm:$0xff] %vm3378, %v3373
          %3391 = vst.msk [vmem:[#allocation2 + $0xa0] sm:$0xff] %vm3378, %v3374
          %3392 = vst.msk [vmem:[#allocation2 + $0xa8] sm:$0xff] %vm3378, %v3375
          %3393 = vst.msk [vmem:[#allocation2 + $0xb0] sm:$0xff] %vm3378, %v3376
          %3394 = vst.msk [vmem:[#allocation2 + $0xb8] sm:$0xff] %vm3378, %v3377
          %v3395 = vld [vmem:[%s2] sm:$0xff]
          %v3396 = vld [vmem:[%s2 + $0x8] sm:$0xff]
          %v3397 = vld [vmem:[%s2 + $0x10] sm:$0xff]
          %v3398 = vld [vmem:[%s2 + $0x18] sm:$0xff]
          %v3399 = vld [vmem:[%s2 + $0x20] sm:$0xff]
          %v3400 = vld [vmem:[%s2 + $0x28] sm:$0xff]
          %v3401 = vld [vmem:[%s2 + $0x30] sm:$0xff]
          %v3402 = vld [vmem:[%s2 + $0x38] sm:$0xff]
          %v3403 = vld [vmem:[%s2 + $0x40] sm:$0x3]
          %v3404 = vld [vmem:[%s2 + $0x48] sm:$0xff]
          %v3405 = vld [vmem:[%s2 + $0x50] sm:$0xff]
          %v3406 = vld [vmem:[%s2 + $0x58] sm:$0xff]
          %v3407 = vld [vmem:[%s2 + $0x60] sm:$0xff]
          %v3408 = vld [vmem:[%s2 + $0x68] sm:$0xff]
          %v3409 = vld [vmem:[%s2 + $0x70] sm:$0xff]
          %v3410 = vld [vmem:[%s2 + $0x78] sm:$0xff]
          %v3411 = vld [vmem:[%s2 + $0x80] sm:$0xff]
          %v3412 = vld [vmem:[%s2 + $0x88] sm:$0x3]
          %s3413 = sld [smem:[#allocation4 + $0x1b]]
          %v3414 = vstv %s3413
          %v3415 = vmul.f32 %v3414, %v3395
          %v3416 = vmul.f32 %v3414, %v3396
          %v3417 = vmul.f32 %v3414, %v3397
          %v3418 = vmul.f32 %v3414, %v3398
          %v3419 = vmul.f32 %v3414, %v3399
          %v3420 = vmul.f32 %v3414, %v3400
          %v3421 = vmul.f32 %v3414, %v3401
          %v3422 = vmul.f32 %v3414, %v3402
          %v3423 = vmul.f32 %v3414, %v3404
          %v3424 = vmul.f32 %v3414, %v3405
          %v3425 = vmul.f32 %v3414, %v3406
          %v3426 = vmul.f32 %v3414, %v3407
          %v3427 = vmul.f32 %v3414, %v3408
          %v3428 = vmul.f32 %v3414, %v3409
          %v3429 = vmul.f32 %v3414, %v3410
          %v3430 = vmul.f32 %v3414, %v3411
          %v3431 = vadd.f32 %v3415, 0.0
          %v3432 = vadd.f32 %v3416, 0.0
          %v3433 = vadd.f32 %v3417, 0.0
          %v3434 = vadd.f32 %v3418, 0.0
          %v3435 = vadd.f32 %v3419, 0.0
          %v3436 = vadd.f32 %v3420, 0.0
          %v3437 = vadd.f32 %v3421, 0.0
          %v3438 = vadd.f32 %v3422, 0.0
          %v3439 = vadd.f32 %v3423, 0.0
          %v3440 = vadd.f32 %v3424, 0.0
          %v3441 = vadd.f32 %v3425, 0.0
          %v3442 = vadd.f32 %v3426, 0.0
          %v3443 = vadd.f32 %v3427, 0.0
          %v3444 = vadd.f32 %v3428, 0.0
          %v3445 = vadd.f32 %v3429, 0.0
          %v3446 = vadd.f32 %v3430, 0.0
          %s3447 = sld [smem:[#allocation4 + $0x1c]]
          %v3448 = vstv %s3447
          %v3449 = vmul.f32 %v3448, %v3395
          %v3450 = vmul.f32 %v3448, %v3396
          %v3451 = vmul.f32 %v3448, %v3397
          %v3452 = vmul.f32 %v3448, %v3398
          %v3453 = vmul.f32 %v3448, %v3399
          %v3454 = vmul.f32 %v3448, %v3400
          %v3455 = vmul.f32 %v3448, %v3401
          %v3456 = vmul.f32 %v3448, %v3402
          %v3457 = vmul.f32 %v3448, %v3404
          %v3458 = vmul.f32 %v3448, %v3405
          %v3459 = vmul.f32 %v3448, %v3406
          %v3460 = vmul.f32 %v3448, %v3407
          %v3461 = vmul.f32 %v3448, %v3408
          %v3462 = vmul.f32 %v3448, %v3409
          %v3463 = vmul.f32 %v3448, %v3410
          %v3464 = vmul.f32 %v3448, %v3411
          %3481 = vrot.lane.b32.xlu0 %v3449, 127
          %v3482 = vpop.permute.xlu0 %3481
          %3483 = vrot.lane.b32.xlu0 %v3450, 127
          %v3484 = vpop.permute.xlu0 %3483
          %3485 = vrot.lane.b32.xlu0 %v3451, 127
          %v3486 = vpop.permute.xlu0 %3485
          %3487 = vrot.lane.b32.xlu0 %v3452, 127
          %v3488 = vpop.permute.xlu0 %3487
          %3489 = vrot.lane.b32.xlu0 %v3453, 127
          %v3490 = vpop.permute.xlu0 %3489
          %3491 = vrot.lane.b32.xlu0 %v3454, 127
          %v3492 = vpop.permute.xlu0 %3491
          %3493 = vrot.lane.b32.xlu0 %v3455, 127
          %v3494 = vpop.permute.xlu0 %3493
          %3495 = vrot.lane.b32.xlu0 %v3456, 127
          %v3496 = vpop.permute.xlu0 %3495
          %3497 = vrot.lane.b32.xlu0 %v3457, 127
          %v3498 = vpop.permute.xlu0 %3497
          %3499 = vrot.lane.b32.xlu0 %v3458, 127
          %v3500 = vpop.permute.xlu0 %3499
          %3501 = vrot.lane.b32.xlu0 %v3459, 127
          %v3502 = vpop.permute.xlu0 %3501
          %3503 = vrot.lane.b32.xlu0 %v3460, 127
          %v3504 = vpop.permute.xlu0 %3503
          %3505 = vrot.lane.b32.xlu0 %v3461, 127
          %v3506 = vpop.permute.xlu0 %3505
          %3507 = vrot.lane.b32.xlu0 %v3462, 127
          %v3508 = vpop.permute.xlu0 %3507
          %3509 = vrot.lane.b32.xlu0 %v3463, 127
          %v3510 = vpop.permute.xlu0 %3509
          %3511 = vrot.lane.b32.xlu0 %v3464, 127
          %v3512 = vpop.permute.xlu0 %3511
          %v3529 = vadd.f32 %v3431, %v3482
          %v3530 = vadd.f32 %v3432, %v3484
          %v3531 = vadd.f32 %v3433, %v3486
          %v3532 = vadd.f32 %v3434, %v3488
          %v3533 = vadd.f32 %v3435, %v3490
          %v3534 = vadd.f32 %v3436, %v3492
          %v3535 = vadd.f32 %v3437, %v3494
          %v3536 = vadd.f32 %v3438, %v3496
          %v3537 = vadd.f32 %v3439, %v3498
          %v3538 = vadd.f32 %v3440, %v3500
          %v3539 = vadd.f32 %v3441, %v3502
          %v3540 = vadd.f32 %v3442, %v3504
          %v3541 = vadd.f32 %v3443, %v3506
          %v3542 = vadd.f32 %v3444, %v3508
          %v3543 = vadd.f32 %v3445, %v3510
          %v3544 = vadd.f32 %v3446, %v3512
          %s3545 = sld [smem:[#allocation4 + $0x1d]]
          %v3546 = vstv %s3545
          %v3547 = vmul.f32 %v3546, %v3395
          %v3548 = vmul.f32 %v3546, %v3396
          %v3549 = vmul.f32 %v3546, %v3397
          %v3550 = vmul.f32 %v3546, %v3398
          %v3551 = vmul.f32 %v3546, %v3399
          %v3552 = vmul.f32 %v3546, %v3400
          %v3553 = vmul.f32 %v3546, %v3401
          %v3554 = vmul.f32 %v3546, %v3402
          %v3555 = vmul.f32 %v3546, %v3404
          %v3556 = vmul.f32 %v3546, %v3405
          %v3557 = vmul.f32 %v3546, %v3406
          %v3558 = vmul.f32 %v3546, %v3407
          %v3559 = vmul.f32 %v3546, %v3408
          %v3560 = vmul.f32 %v3546, %v3409
          %v3561 = vmul.f32 %v3546, %v3410
          %v3562 = vmul.f32 %v3546, %v3411
          %3579 = vrot.lane.b32.xlu0 %v3547, 126
          %v3580 = vpop.permute.xlu0 %3579
          %3581 = vrot.lane.b32.xlu0 %v3548, 126
          %v3582 = vpop.permute.xlu0 %3581
          %3583 = vrot.lane.b32.xlu0 %v3549, 126
          %v3584 = vpop.permute.xlu0 %3583
          %3585 = vrot.lane.b32.xlu0 %v3550, 126
          %v3586 = vpop.permute.xlu0 %3585
          %3587 = vrot.lane.b32.xlu0 %v3551, 126
          %v3588 = vpop.permute.xlu0 %3587
          %3589 = vrot.lane.b32.xlu0 %v3552, 126
          %v3590 = vpop.permute.xlu0 %3589
          %3591 = vrot.lane.b32.xlu0 %v3553, 126
          %v3592 = vpop.permute.xlu0 %3591
          %3593 = vrot.lane.b32.xlu0 %v3554, 126
          %v3594 = vpop.permute.xlu0 %3593
          %3595 = vrot.lane.b32.xlu0 %v3555, 126
          %v3596 = vpop.permute.xlu0 %3595
          %3597 = vrot.lane.b32.xlu0 %v3556, 126
          %v3598 = vpop.permute.xlu0 %3597
          %3599 = vrot.lane.b32.xlu0 %v3557, 126
          %v3600 = vpop.permute.xlu0 %3599
          %3601 = vrot.lane.b32.xlu0 %v3558, 126
          %v3602 = vpop.permute.xlu0 %3601
          %3603 = vrot.lane.b32.xlu0 %v3559, 126
          %v3604 = vpop.permute.xlu0 %3603
          %3605 = vrot.lane.b32.xlu0 %v3560, 126
          %v3606 = vpop.permute.xlu0 %3605
          %3607 = vrot.lane.b32.xlu0 %v3561, 126
          %v3608 = vpop.permute.xlu0 %3607
          %3609 = vrot.lane.b32.xlu0 %v3562, 126
          %v3610 = vpop.permute.xlu0 %3609
          %v3627 = vadd.f32 %v3529, %v3580
          %v3628 = vadd.f32 %v3530, %v3582
          %v3629 = vadd.f32 %v3531, %v3584
          %v3630 = vadd.f32 %v3532, %v3586
          %v3631 = vadd.f32 %v3533, %v3588
          %v3632 = vadd.f32 %v3534, %v3590
          %v3633 = vadd.f32 %v3535, %v3592
          %v3634 = vadd.f32 %v3536, %v3594
          %v3635 = vadd.f32 %v3537, %v3596
          %v3636 = vadd.f32 %v3538, %v3598
          %v3637 = vadd.f32 %v3539, %v3600
          %v3638 = vadd.f32 %v3540, %v3602
          %v3639 = vadd.f32 %v3541, %v3604
          %v3640 = vadd.f32 %v3542, %v3606
          %v3641 = vadd.f32 %v3543, %v3608
          %v3642 = vadd.f32 %v3544, %v3610
          %s3643 = sld [smem:[#allocation4 + $0x1e]]
          %v3644 = vstv %s3643
          %v3645 = vmul.f32 %v3644, %v3395
          %v3646 = vmul.f32 %v3644, %v3396
          %v3647 = vmul.f32 %v3644, %v3397
          %v3648 = vmul.f32 %v3644, %v3398
          %v3649 = vmul.f32 %v3644, %v3399
          %v3650 = vmul.f32 %v3644, %v3400
          %v3651 = vmul.f32 %v3644, %v3401
          %v3652 = vmul.f32 %v3644, %v3402
          %v3653 = vmul.f32 %v3644, %v3403
          %v3654 = vmul.f32 %v3644, %v3404
          %v3655 = vmul.f32 %v3644, %v3405
          %v3656 = vmul.f32 %v3644, %v3406
          %v3657 = vmul.f32 %v3644, %v3407
          %v3658 = vmul.f32 %v3644, %v3408
          %v3659 = vmul.f32 %v3644, %v3409
          %v3660 = vmul.f32 %v3644, %v3410
          %v3661 = vmul.f32 %v3644, %v3411
          %v3662 = vmul.f32 %v3644, %v3412
          %v3681 = vrot.slane %v3645, 1
          %v3682 = vrot.slane %v3646, 1
          %v3683 = vsel %vm626, %v3681, %v3682
          %v3684 = vrot.slane %v3647, 1
          %v3685 = vsel %vm626, %v3682, %v3684
          %v3686 = vrot.slane %v3648, 1
          %v3687 = vsel %vm626, %v3684, %v3686
          %v3688 = vrot.slane %v3649, 1
          %v3689 = vsel %vm626, %v3686, %v3688
          %v3690 = vrot.slane %v3650, 1
          %v3691 = vsel %vm626, %v3688, %v3690
          %v3692 = vrot.slane %v3651, 1
          %v3693 = vsel %vm626, %v3690, %v3692
          %v3694 = vrot.slane %v3652, 1
          %v3695 = vsel %vm626, %v3692, %v3694
          %v3696 = vrot.slane %v3653, 1
          %v3697 = vsel %vm626, %v3694, %v3696
          %v3698 = vrot.slane %v3654, 1
          %v3699 = vrot.slane %v3655, 1
          %v3700 = vsel %vm626, %v3698, %v3699
          %v3701 = vrot.slane %v3656, 1
          %v3702 = vsel %vm626, %v3699, %v3701
          %v3703 = vrot.slane %v3657, 1
          %v3704 = vsel %vm626, %v3701, %v3703
          %v3705 = vrot.slane %v3658, 1
          %v3706 = vsel %vm626, %v3703, %v3705
          %v3707 = vrot.slane %v3659, 1
          %v3708 = vsel %vm626, %v3705, %v3707
          %v3709 = vrot.slane %v3660, 1
          %v3710 = vsel %vm626, %v3707, %v3709
          %v3711 = vrot.slane %v3661, 1
          %v3712 = vsel %vm626, %v3709, %v3711
          %v3713 = vrot.slane %v3662, 1
          %v3714 = vsel %vm626, %v3711, %v3713
          %v3731 = vadd.f32 %v3627, %v3683
          %v3732 = vadd.f32 %v3628, %v3685
          %v3733 = vadd.f32 %v3629, %v3687
          %v3734 = vadd.f32 %v3630, %v3689
          %v3735 = vadd.f32 %v3631, %v3691
          %v3736 = vadd.f32 %v3632, %v3693
          %v3737 = vadd.f32 %v3633, %v3695
          %v3738 = vadd.f32 %v3634, %v3697
          %v3739 = vadd.f32 %v3635, %v3700
          %v3740 = vadd.f32 %v3636, %v3702
          %v3741 = vadd.f32 %v3637, %v3704
          %v3742 = vadd.f32 %v3638, %v3706
          %v3743 = vadd.f32 %v3639, %v3708
          %v3744 = vadd.f32 %v3640, %v3710
          %v3745 = vadd.f32 %v3641, %v3712
          %v3746 = vadd.f32 %v3642, %v3714
          %s3747 = sld [smem:[#allocation4 + $0x1f]]
          %v3748 = vstv %s3747
          %v3749 = vmul.f32 %v3748, %v3395
          %v3750 = vmul.f32 %v3748, %v3396
          %v3751 = vmul.f32 %v3748, %v3397
          %v3752 = vmul.f32 %v3748, %v3398
          %v3753 = vmul.f32 %v3748, %v3399
          %v3754 = vmul.f32 %v3748, %v3400
          %v3755 = vmul.f32 %v3748, %v3401
          %v3756 = vmul.f32 %v3748, %v3402
          %v3757 = vmul.f32 %v3748, %v3403
          %v3758 = vmul.f32 %v3748, %v3404
          %v3759 = vmul.f32 %v3748, %v3405
          %v3760 = vmul.f32 %v3748, %v3406
          %v3761 = vmul.f32 %v3748, %v3407
          %v3762 = vmul.f32 %v3748, %v3408
          %v3763 = vmul.f32 %v3748, %v3409
          %v3764 = vmul.f32 %v3748, %v3410
          %v3765 = vmul.f32 %v3748, %v3411
          %v3766 = vmul.f32 %v3748, %v3412
          %v3785 = vrot.slane %v3749, 1
          %v3786 = vrot.slane %v3750, 1
          %v3787 = vsel %vm626, %v3785, %v3786
          %v3788 = vrot.slane %v3751, 1
          %v3789 = vsel %vm626, %v3786, %v3788
          %v3790 = vrot.slane %v3752, 1
          %v3791 = vsel %vm626, %v3788, %v3790
          %v3792 = vrot.slane %v3753, 1
          %v3793 = vsel %vm626, %v3790, %v3792
          %v3794 = vrot.slane %v3754, 1
          %v3795 = vsel %vm626, %v3792, %v3794
          %v3796 = vrot.slane %v3755, 1
          %v3797 = vsel %vm626, %v3794, %v3796
          %v3798 = vrot.slane %v3756, 1
          %v3799 = vsel %vm626, %v3796, %v3798
          %v3800 = vrot.slane %v3757, 1
          %v3801 = vsel %vm626, %v3798, %v3800
          %v3802 = vrot.slane %v3758, 1
          %v3803 = vrot.slane %v3759, 1
          %v3804 = vsel %vm626, %v3802, %v3803
          %v3805 = vrot.slane %v3760, 1
          %v3806 = vsel %vm626, %v3803, %v3805
          %v3807 = vrot.slane %v3761, 1
          %v3808 = vsel %vm626, %v3805, %v3807
          %v3809 = vrot.slane %v3762, 1
          %v3810 = vsel %vm626, %v3807, %v3809
          %v3811 = vrot.slane %v3763, 1
          %v3812 = vsel %vm626, %v3809, %v3811
          %v3813 = vrot.slane %v3764, 1
          %v3814 = vsel %vm626, %v3811, %v3813
          %v3815 = vrot.slane %v3765, 1
          %v3816 = vsel %vm626, %v3813, %v3815
          %v3817 = vrot.slane %v3766, 1
          %v3818 = vsel %vm626, %v3815, %v3817
          %3819 = vrot.lane.b32.xlu0 %v3787, 127
          %v3820 = vpop.permute.xlu0 %3819
          %3821 = vrot.lane.b32.xlu0 %v3789, 127
          %v3822 = vpop.permute.xlu0 %3821
          %3823 = vrot.lane.b32.xlu0 %v3791, 127
          %v3824 = vpop.permute.xlu0 %3823
          %3825 = vrot.lane.b32.xlu0 %v3793, 127
          %v3826 = vpop.permute.xlu0 %3825
          %3827 = vrot.lane.b32.xlu0 %v3795, 127
          %v3828 = vpop.permute.xlu0 %3827
          %3829 = vrot.lane.b32.xlu0 %v3797, 127
          %v3830 = vpop.permute.xlu0 %3829
          %3831 = vrot.lane.b32.xlu0 %v3799, 127
          %v3832 = vpop.permute.xlu0 %3831
          %3833 = vrot.lane.b32.xlu0 %v3801, 127
          %v3834 = vpop.permute.xlu0 %3833
          %3835 = vrot.lane.b32.xlu0 %v3804, 127
          %v3836 = vpop.permute.xlu0 %3835
          %3837 = vrot.lane.b32.xlu0 %v3806, 127
          %v3838 = vpop.permute.xlu0 %3837
          %3839 = vrot.lane.b32.xlu0 %v3808, 127
          %v3840 = vpop.permute.xlu0 %3839
          %3841 = vrot.lane.b32.xlu0 %v3810, 127
          %v3842 = vpop.permute.xlu0 %3841
          %3843 = vrot.lane.b32.xlu0 %v3812, 127
          %v3844 = vpop.permute.xlu0 %3843
          %3845 = vrot.lane.b32.xlu0 %v3814, 127
          %v3846 = vpop.permute.xlu0 %3845
          %3847 = vrot.lane.b32.xlu0 %v3816, 127
          %v3848 = vpop.permute.xlu0 %3847
          %3849 = vrot.lane.b32.xlu0 %v3818, 127
          %v3850 = vpop.permute.xlu0 %3849
          %v3867 = vadd.f32 %v3731, %v3820
          %v3868 = vadd.f32 %v3732, %v3822
          %v3869 = vadd.f32 %v3733, %v3824
          %v3870 = vadd.f32 %v3734, %v3826
          %v3871 = vadd.f32 %v3735, %v3828
          %v3872 = vadd.f32 %v3736, %v3830
          %v3873 = vadd.f32 %v3737, %v3832
          %v3874 = vadd.f32 %v3738, %v3834
          %v3875 = vadd.f32 %v3739, %v3836
          %v3876 = vadd.f32 %v3740, %v3838
          %v3877 = vadd.f32 %v3741, %v3840
          %v3878 = vadd.f32 %v3742, %v3842
          %v3879 = vadd.f32 %v3743, %v3844
          %v3880 = vadd.f32 %v3744, %v3846
          %v3881 = vadd.f32 %v3745, %v3848
          %v3882 = vadd.f32 %v3746, %v3850
          %s3883 = sld [smem:[#allocation4 + $0x20]]
          %v3884 = vstv %s3883
          %v3885 = vmul.f32 %v3884, %v3395
          %v3886 = vmul.f32 %v3884, %v3396
          %v3887 = vmul.f32 %v3884, %v3397
          %v3888 = vmul.f32 %v3884, %v3398
          %v3889 = vmul.f32 %v3884, %v3399
          %v3890 = vmul.f32 %v3884, %v3400
          %v3891 = vmul.f32 %v3884, %v3401
          %v3892 = vmul.f32 %v3884, %v3402
          %v3893 = vmul.f32 %v3884, %v3403
          %v3894 = vmul.f32 %v3884, %v3404
          %v3895 = vmul.f32 %v3884, %v3405
          %v3896 = vmul.f32 %v3884, %v3406
          %v3897 = vmul.f32 %v3884, %v3407
          %v3898 = vmul.f32 %v3884, %v3408
          %v3899 = vmul.f32 %v3884, %v3409
          %v3900 = vmul.f32 %v3884, %v3410
          %v3901 = vmul.f32 %v3884, %v3411
          %v3902 = vmul.f32 %v3884, %v3412
          %v3921 = vrot.slane %v3885, 1
          %v3922 = vrot.slane %v3886, 1
          %v3923 = vsel %vm626, %v3921, %v3922
          %v3924 = vrot.slane %v3887, 1
          %v3925 = vsel %vm626, %v3922, %v3924
          %v3926 = vrot.slane %v3888, 1
          %v3927 = vsel %vm626, %v3924, %v3926
          %v3928 = vrot.slane %v3889, 1
          %v3929 = vsel %vm626, %v3926, %v3928
          %v3930 = vrot.slane %v3890, 1
          %v3931 = vsel %vm626, %v3928, %v3930
          %v3932 = vrot.slane %v3891, 1
          %v3933 = vsel %vm626, %v3930, %v3932
          %v3934 = vrot.slane %v3892, 1
          %v3935 = vsel %vm626, %v3932, %v3934
          %v3936 = vrot.slane %v3893, 1
          %v3937 = vsel %vm626, %v3934, %v3936
          %v3938 = vrot.slane %v3894, 1
          %v3939 = vrot.slane %v3895, 1
          %v3940 = vsel %vm626, %v3938, %v3939
          %v3941 = vrot.slane %v3896, 1
          %v3942 = vsel %vm626, %v3939, %v3941
          %v3943 = vrot.slane %v3897, 1
          %v3944 = vsel %vm626, %v3941, %v3943
          %v3945 = vrot.slane %v3898, 1
          %v3946 = vsel %vm626, %v3943, %v3945
          %v3947 = vrot.slane %v3899, 1
          %v3948 = vsel %vm626, %v3945, %v3947
          %v3949 = vrot.slane %v3900, 1
          %v3950 = vsel %vm626, %v3947, %v3949
          %v3951 = vrot.slane %v3901, 1
          %v3952 = vsel %vm626, %v3949, %v3951
          %v3953 = vrot.slane %v3902, 1
          %v3954 = vsel %vm626, %v3951, %v3953
          %3955 = vrot.lane.b32.xlu0 %v3923, 126
          %v3956 = vpop.permute.xlu0 %3955
          %3957 = vrot.lane.b32.xlu0 %v3925, 126
          %v3958 = vpop.permute.xlu0 %3957
          %3959 = vrot.lane.b32.xlu0 %v3927, 126
          %v3960 = vpop.permute.xlu0 %3959
          %3961 = vrot.lane.b32.xlu0 %v3929, 126
          %v3962 = vpop.permute.xlu0 %3961
          %3963 = vrot.lane.b32.xlu0 %v3931, 126
          %v3964 = vpop.permute.xlu0 %3963
          %3965 = vrot.lane.b32.xlu0 %v3933, 126
          %v3966 = vpop.permute.xlu0 %3965
          %3967 = vrot.lane.b32.xlu0 %v3935, 126
          %v3968 = vpop.permute.xlu0 %3967
          %3969 = vrot.lane.b32.xlu0 %v3937, 126
          %v3970 = vpop.permute.xlu0 %3969
          %3971 = vrot.lane.b32.xlu0 %v3940, 126
          %v3972 = vpop.permute.xlu0 %3971
          %3973 = vrot.lane.b32.xlu0 %v3942, 126
          %v3974 = vpop.permute.xlu0 %3973
          %3975 = vrot.lane.b32.xlu0 %v3944, 126
          %v3976 = vpop.permute.xlu0 %3975
          %3977 = vrot.lane.b32.xlu0 %v3946, 126
          %v3978 = vpop.permute.xlu0 %3977
          %3979 = vrot.lane.b32.xlu0 %v3948, 126
          %v3980 = vpop.permute.xlu0 %3979
          %3981 = vrot.lane.b32.xlu0 %v3950, 126
          %v3982 = vpop.permute.xlu0 %3981
          %3983 = vrot.lane.b32.xlu0 %v3952, 126
          %v3984 = vpop.permute.xlu0 %3983
          %3985 = vrot.lane.b32.xlu0 %v3954, 126
          %v3986 = vpop.permute.xlu0 %3985
          %v4003 = vadd.f32 %v3867, %v3956
          %v4004 = vadd.f32 %v3868, %v3958
          %v4005 = vadd.f32 %v3869, %v3960
          %v4006 = vadd.f32 %v3870, %v3962
          %v4007 = vadd.f32 %v3871, %v3964
          %v4008 = vadd.f32 %v3872, %v3966
          %v4009 = vadd.f32 %v3873, %v3968
          %v4010 = vadd.f32 %v3874, %v3970
          %v4011 = vadd.f32 %v3875, %v3972
          %v4012 = vadd.f32 %v3876, %v3974
          %v4013 = vadd.f32 %v3877, %v3976
          %v4014 = vadd.f32 %v3878, %v3978
          %v4015 = vadd.f32 %v3879, %v3980
          %v4016 = vadd.f32 %v3880, %v3982
          %v4017 = vadd.f32 %v3881, %v3984
          %v4018 = vadd.f32 %v3882, %v3986
          %s4019 = sld [smem:[#allocation4 + $0x21]]
          %v4020 = vstv %s4019
          %v4021 = vmul.f32 %v4020, %v3395
          %v4022 = vmul.f32 %v4020, %v3396
          %v4023 = vmul.f32 %v4020, %v3397
          %v4024 = vmul.f32 %v4020, %v3398
          %v4025 = vmul.f32 %v4020, %v3399
          %v4026 = vmul.f32 %v4020, %v3400
          %v4027 = vmul.f32 %v4020, %v3401
          %v4028 = vmul.f32 %v4020, %v3402
          %v4029 = vmul.f32 %v4020, %v3403
          %v4030 = vmul.f32 %v4020, %v3404
          %v4031 = vmul.f32 %v4020, %v3405
          %v4032 = vmul.f32 %v4020, %v3406
          %v4033 = vmul.f32 %v4020, %v3407
          %v4034 = vmul.f32 %v4020, %v3408
          %v4035 = vmul.f32 %v4020, %v3409
          %v4036 = vmul.f32 %v4020, %v3410
          %v4037 = vmul.f32 %v4020, %v3411
          %v4038 = vmul.f32 %v4020, %v3412
          %v4057 = vrot.slane %v4021, 2
          %v4058 = vrot.slane %v4022, 2
          %v4059 = vsel %vm1003, %v4057, %v4058
          %v4060 = vrot.slane %v4023, 2
          %v4061 = vsel %vm1003, %v4058, %v4060
          %v4062 = vrot.slane %v4024, 2
          %v4063 = vsel %vm1003, %v4060, %v4062
          %v4064 = vrot.slane %v4025, 2
          %v4065 = vsel %vm1003, %v4062, %v4064
          %v4066 = vrot.slane %v4026, 2
          %v4067 = vsel %vm1003, %v4064, %v4066
          %v4068 = vrot.slane %v4027, 2
          %v4069 = vsel %vm1003, %v4066, %v4068
          %v4070 = vrot.slane %v4028, 2
          %v4071 = vsel %vm1003, %v4068, %v4070
          %v4072 = vrot.slane %v4029, 2
          %v4073 = vsel %vm1003, %v4070, %v4072
          %v4074 = vrot.slane %v4030, 2
          %v4075 = vrot.slane %v4031, 2
          %v4076 = vsel %vm1003, %v4074, %v4075
          %v4077 = vrot.slane %v4032, 2
          %v4078 = vsel %vm1003, %v4075, %v4077
          %v4079 = vrot.slane %v4033, 2
          %v4080 = vsel %vm1003, %v4077, %v4079
          %v4081 = vrot.slane %v4034, 2
          %v4082 = vsel %vm1003, %v4079, %v4081
          %v4083 = vrot.slane %v4035, 2
          %v4084 = vsel %vm1003, %v4081, %v4083
          %v4085 = vrot.slane %v4036, 2
          %v4086 = vsel %vm1003, %v4083, %v4085
          %v4087 = vrot.slane %v4037, 2
          %v4088 = vsel %vm1003, %v4085, %v4087
          %v4089 = vrot.slane %v4038, 2
          %v4090 = vsel %vm1003, %v4087, %v4089
          %v4107 = vadd.f32 %v4003, %v4059
          %v4108 = vadd.f32 %v4004, %v4061
          %v4109 = vadd.f32 %v4005, %v4063
          %v4110 = vadd.f32 %v4006, %v4065
          %v4111 = vadd.f32 %v4007, %v4067
          %v4112 = vadd.f32 %v4008, %v4069
          %v4113 = vadd.f32 %v4009, %v4071
          %v4114 = vadd.f32 %v4010, %v4073
          %v4115 = vadd.f32 %v4011, %v4076
          %v4116 = vadd.f32 %v4012, %v4078
          %v4117 = vadd.f32 %v4013, %v4080
          %v4118 = vadd.f32 %v4014, %v4082
          %v4119 = vadd.f32 %v4015, %v4084
          %v4120 = vadd.f32 %v4016, %v4086
          %v4121 = vadd.f32 %v4017, %v4088
          %v4122 = vadd.f32 %v4018, %v4090
          %s4123 = sld [smem:[#allocation4 + $0x22]]
          %v4124 = vstv %s4123
          %v4125 = vmul.f32 %v4124, %v3395
          %v4126 = vmul.f32 %v4124, %v3396
          %v4127 = vmul.f32 %v4124, %v3397
          %v4128 = vmul.f32 %v4124, %v3398
          %v4129 = vmul.f32 %v4124, %v3399
          %v4130 = vmul.f32 %v4124, %v3400
          %v4131 = vmul.f32 %v4124, %v3401
          %v4132 = vmul.f32 %v4124, %v3402
          %v4133 = vmul.f32 %v4124, %v3403
          %v4134 = vmul.f32 %v4124, %v3404
          %v4135 = vmul.f32 %v4124, %v3405
          %v4136 = vmul.f32 %v4124, %v3406
          %v4137 = vmul.f32 %v4124, %v3407
          %v4138 = vmul.f32 %v4124, %v3408
          %v4139 = vmul.f32 %v4124, %v3409
          %v4140 = vmul.f32 %v4124, %v3410
          %v4141 = vmul.f32 %v4124, %v3411
          %v4142 = vmul.f32 %v4124, %v3412
          %v4161 = vrot.slane %v4125, 2
          %v4162 = vrot.slane %v4126, 2
          %v4163 = vsel %vm1003, %v4161, %v4162
          %v4164 = vrot.slane %v4127, 2
          %v4165 = vsel %vm1003, %v4162, %v4164
          %v4166 = vrot.slane %v4128, 2
          %v4167 = vsel %vm1003, %v4164, %v4166
          %v4168 = vrot.slane %v4129, 2
          %v4169 = vsel %vm1003, %v4166, %v4168
          %v4170 = vrot.slane %v4130, 2
          %v4171 = vsel %vm1003, %v4168, %v4170
          %v4172 = vrot.slane %v4131, 2
          %v4173 = vsel %vm1003, %v4170, %v4172
          %v4174 = vrot.slane %v4132, 2
          %v4175 = vsel %vm1003, %v4172, %v4174
          %v4176 = vrot.slane %v4133, 2
          %v4177 = vsel %vm1003, %v4174, %v4176
          %v4178 = vrot.slane %v4134, 2
          %v4179 = vrot.slane %v4135, 2
          %v4180 = vsel %vm1003, %v4178, %v4179
          %v4181 = vrot.slane %v4136, 2
          %v4182 = vsel %vm1003, %v4179, %v4181
          %v4183 = vrot.slane %v4137, 2
          %v4184 = vsel %vm1003, %v4181, %v4183
          %v4185 = vrot.slane %v4138, 2
          %v4186 = vsel %vm1003, %v4183, %v4185
          %v4187 = vrot.slane %v4139, 2
          %v4188 = vsel %vm1003, %v4185, %v4187
          %v4189 = vrot.slane %v4140, 2
          %v4190 = vsel %vm1003, %v4187, %v4189
          %v4191 = vrot.slane %v4141, 2
          %v4192 = vsel %vm1003, %v4189, %v4191
          %v4193 = vrot.slane %v4142, 2
          %v4194 = vsel %vm1003, %v4191, %v4193
          %4195 = vrot.lane.b32.xlu0 %v4163, 127
          %v4196 = vpop.permute.xlu0 %4195
          %4197 = vrot.lane.b32.xlu0 %v4165, 127
          %v4198 = vpop.permute.xlu0 %4197
          %4199 = vrot.lane.b32.xlu0 %v4167, 127
          %v4200 = vpop.permute.xlu0 %4199
          %4201 = vrot.lane.b32.xlu0 %v4169, 127
          %v4202 = vpop.permute.xlu0 %4201
          %4203 = vrot.lane.b32.xlu0 %v4171, 127
          %v4204 = vpop.permute.xlu0 %4203
          %4205 = vrot.lane.b32.xlu0 %v4173, 127
          %v4206 = vpop.permute.xlu0 %4205
          %4207 = vrot.lane.b32.xlu0 %v4175, 127
          %v4208 = vpop.permute.xlu0 %4207
          %4209 = vrot.lane.b32.xlu0 %v4177, 127
          %v4210 = vpop.permute.xlu0 %4209
          %4211 = vrot.lane.b32.xlu0 %v4180, 127
          %v4212 = vpop.permute.xlu0 %4211
          %4213 = vrot.lane.b32.xlu0 %v4182, 127
          %v4214 = vpop.permute.xlu0 %4213
          %4215 = vrot.lane.b32.xlu0 %v4184, 127
          %v4216 = vpop.permute.xlu0 %4215
          %4217 = vrot.lane.b32.xlu0 %v4186, 127
          %v4218 = vpop.permute.xlu0 %4217
          %4219 = vrot.lane.b32.xlu0 %v4188, 127
          %v4220 = vpop.permute.xlu0 %4219
          %4221 = vrot.lane.b32.xlu0 %v4190, 127
          %v4222 = vpop.permute.xlu0 %4221
          %4223 = vrot.lane.b32.xlu0 %v4192, 127
          %v4224 = vpop.permute.xlu0 %4223
          %4225 = vrot.lane.b32.xlu0 %v4194, 127
          %v4226 = vpop.permute.xlu0 %4225
          %v4243 = vadd.f32 %v4107, %v4196
          %v4244 = vadd.f32 %v4108, %v4198
          %v4245 = vadd.f32 %v4109, %v4200
          %v4246 = vadd.f32 %v4110, %v4202
          %v4247 = vadd.f32 %v4111, %v4204
          %v4248 = vadd.f32 %v4112, %v4206
          %v4249 = vadd.f32 %v4113, %v4208
          %v4250 = vadd.f32 %v4114, %v4210
          %v4251 = vadd.f32 %v4115, %v4212
          %v4252 = vadd.f32 %v4116, %v4214
          %v4253 = vadd.f32 %v4117, %v4216
          %v4254 = vadd.f32 %v4118, %v4218
          %v4255 = vadd.f32 %v4119, %v4220
          %v4256 = vadd.f32 %v4120, %v4222
          %v4257 = vadd.f32 %v4121, %v4224
          %v4258 = vadd.f32 %v4122, %v4226
          %s4259 = sld [smem:[#allocation4 + $0x23]]
          %v4260 = vstv %s4259
          %v4261 = vmul.f32 %v4260, %v3395
          %v4262 = vmul.f32 %v4260, %v3396
          %v4263 = vmul.f32 %v4260, %v3397
          %v4264 = vmul.f32 %v4260, %v3398
          %v4265 = vmul.f32 %v4260, %v3399
          %v4266 = vmul.f32 %v4260, %v3400
          %v4267 = vmul.f32 %v4260, %v3401
          %v4268 = vmul.f32 %v4260, %v3402
          %v4269 = vmul.f32 %v4260, %v3403
          %v4270 = vmul.f32 %v4260, %v3404
          %v4271 = vmul.f32 %v4260, %v3405
          %v4272 = vmul.f32 %v4260, %v3406
          %v4273 = vmul.f32 %v4260, %v3407
          %v4274 = vmul.f32 %v4260, %v3408
          %v4275 = vmul.f32 %v4260, %v3409
          %v4276 = vmul.f32 %v4260, %v3410
          %v4277 = vmul.f32 %v4260, %v3411
          %v4278 = vmul.f32 %v4260, %v3412
          %v4297 = vrot.slane %v4261, 2
          %v4298 = vrot.slane %v4262, 2
          %v4299 = vsel %vm1003, %v4297, %v4298
          %v4300 = vrot.slane %v4263, 2
          %v4301 = vsel %vm1003, %v4298, %v4300
          %v4302 = vrot.slane %v4264, 2
          %v4303 = vsel %vm1003, %v4300, %v4302
          %v4304 = vrot.slane %v4265, 2
          %v4305 = vsel %vm1003, %v4302, %v4304
          %v4306 = vrot.slane %v4266, 2
          %v4307 = vsel %vm1003, %v4304, %v4306
          %v4308 = vrot.slane %v4267, 2
          %v4309 = vsel %vm1003, %v4306, %v4308
          %v4310 = vrot.slane %v4268, 2
          %v4311 = vsel %vm1003, %v4308, %v4310
          %v4312 = vrot.slane %v4269, 2
          %v4313 = vsel %vm1003, %v4310, %v4312
          %v4314 = vrot.slane %v4270, 2
          %v4315 = vrot.slane %v4271, 2
          %v4316 = vsel %vm1003, %v4314, %v4315
          %v4317 = vrot.slane %v4272, 2
          %v4318 = vsel %vm1003, %v4315, %v4317
          %v4319 = vrot.slane %v4273, 2
          %v4320 = vsel %vm1003, %v4317, %v4319
          %v4321 = vrot.slane %v4274, 2
          %v4322 = vsel %vm1003, %v4319, %v4321
          %v4323 = vrot.slane %v4275, 2
          %v4324 = vsel %vm1003, %v4321, %v4323
          %v4325 = vrot.slane %v4276, 2
          %v4326 = vsel %vm1003, %v4323, %v4325
          %v4327 = vrot.slane %v4277, 2
          %v4328 = vsel %vm1003, %v4325, %v4327
          %v4329 = vrot.slane %v4278, 2
          %v4330 = vsel %vm1003, %v4327, %v4329
          %4331 = vrot.lane.b32.xlu0 %v4299, 126
          %v4332 = vpop.permute.xlu0 %4331
          %4333 = vrot.lane.b32.xlu0 %v4301, 126
          %v4334 = vpop.permute.xlu0 %4333
          %4335 = vrot.lane.b32.xlu0 %v4303, 126
          %v4336 = vpop.permute.xlu0 %4335
          %4337 = vrot.lane.b32.xlu0 %v4305, 126
          %v4338 = vpop.permute.xlu0 %4337
          %4339 = vrot.lane.b32.xlu0 %v4307, 126
          %v4340 = vpop.permute.xlu0 %4339
          %4341 = vrot.lane.b32.xlu0 %v4309, 126
          %v4342 = vpop.permute.xlu0 %4341
          %4343 = vrot.lane.b32.xlu0 %v4311, 126
          %v4344 = vpop.permute.xlu0 %4343
          %4345 = vrot.lane.b32.xlu0 %v4313, 126
          %v4346 = vpop.permute.xlu0 %4345
          %4347 = vrot.lane.b32.xlu0 %v4316, 126
          %v4348 = vpop.permute.xlu0 %4347
          %4349 = vrot.lane.b32.xlu0 %v4318, 126
          %v4350 = vpop.permute.xlu0 %4349
          %4351 = vrot.lane.b32.xlu0 %v4320, 126
          %v4352 = vpop.permute.xlu0 %4351
          %4353 = vrot.lane.b32.xlu0 %v4322, 126
          %v4354 = vpop.permute.xlu0 %4353
          %4355 = vrot.lane.b32.xlu0 %v4324, 126
          %v4356 = vpop.permute.xlu0 %4355
          %4357 = vrot.lane.b32.xlu0 %v4326, 126
          %v4358 = vpop.permute.xlu0 %4357
          %4359 = vrot.lane.b32.xlu0 %v4328, 126
          %v4360 = vpop.permute.xlu0 %4359
          %4361 = vrot.lane.b32.xlu0 %v4330, 126
          %v4362 = vpop.permute.xlu0 %4361
          %v4379 = vadd.f32 %v4243, %v4332
          %v4380 = vadd.f32 %v4244, %v4334
          %v4381 = vadd.f32 %v4245, %v4336
          %v4382 = vadd.f32 %v4246, %v4338
          %v4383 = vadd.f32 %v4247, %v4340
          %v4384 = vadd.f32 %v4248, %v4342
          %v4385 = vadd.f32 %v4249, %v4344
          %v4386 = vadd.f32 %v4250, %v4346
          %v4387 = vadd.f32 %v4251, %v4348
          %v4388 = vadd.f32 %v4252, %v4350
          %v4389 = vadd.f32 %v4253, %v4352
          %v4390 = vadd.f32 %v4254, %v4354
          %v4391 = vadd.f32 %v4255, %v4356
          %v4392 = vadd.f32 %v4256, %v4358
          %v4393 = vadd.f32 %v4257, %v4360
          %v4394 = vadd.f32 %v4258, %v4362
          %v4395 = vld [vmem:[%s1342] sm:$0xff]
          %v4396 = vld [vmem:[%s1342 + $0x8] sm:$0xff]
          %v4397 = vld [vmem:[%s1342 + $0x10] sm:$0xff]
          %v4398 = vld [vmem:[%s1342 + $0x18] sm:$0xff]
          %v4399 = vld [vmem:[%s1342 + $0x20] sm:$0xff]
          %v4400 = vld [vmem:[%s1342 + $0x28] sm:$0xff]
          %v4401 = vld [vmem:[%s1342 + $0x30] sm:$0xff]
          %v4402 = vld [vmem:[%s1342 + $0x38] sm:$0xff]
          %v4403 = vld [vmem:[%s1342 + $0x40] sm:$0x3]
          %v4404 = vld [vmem:[%s1342 + $0x48] sm:$0xff]
          %v4405 = vld [vmem:[%s1342 + $0x50] sm:$0xff]
          %v4406 = vld [vmem:[%s1342 + $0x58] sm:$0xff]
          %v4407 = vld [vmem:[%s1342 + $0x60] sm:$0xff]
          %v4408 = vld [vmem:[%s1342 + $0x68] sm:$0xff]
          %v4409 = vld [vmem:[%s1342 + $0x70] sm:$0xff]
          %v4410 = vld [vmem:[%s1342 + $0x78] sm:$0xff]
          %v4411 = vld [vmem:[%s1342 + $0x80] sm:$0xff]
          %v4412 = vld [vmem:[%s1342 + $0x88] sm:$0x3]
          %s4413 = sld [smem:[#allocation4 + $0x24]]
          %v4414 = vstv %s4413
          %v4415 = vmul.f32 %v4414, %v4395
          %v4416 = vmul.f32 %v4414, %v4396
          %v4417 = vmul.f32 %v4414, %v4397
          %v4418 = vmul.f32 %v4414, %v4398
          %v4419 = vmul.f32 %v4414, %v4399
          %v4420 = vmul.f32 %v4414, %v4400
          %v4421 = vmul.f32 %v4414, %v4401
          %v4422 = vmul.f32 %v4414, %v4402
          %v4423 = vmul.f32 %v4414, %v4404
          %v4424 = vmul.f32 %v4414, %v4405
          %v4425 = vmul.f32 %v4414, %v4406
          %v4426 = vmul.f32 %v4414, %v4407
          %v4427 = vmul.f32 %v4414, %v4408
          %v4428 = vmul.f32 %v4414, %v4409
          %v4429 = vmul.f32 %v4414, %v4410
          %v4430 = vmul.f32 %v4414, %v4411
          %v4431 = vadd.f32 %v4379, %v4415
          %v4432 = vadd.f32 %v4380, %v4416
          %v4433 = vadd.f32 %v4381, %v4417
          %v4434 = vadd.f32 %v4382, %v4418
          %v4435 = vadd.f32 %v4383, %v4419
          %v4436 = vadd.f32 %v4384, %v4420
          %v4437 = vadd.f32 %v4385, %v4421
          %v4438 = vadd.f32 %v4386, %v4422
          %v4439 = vadd.f32 %v4387, %v4423
          %v4440 = vadd.f32 %v4388, %v4424
          %v4441 = vadd.f32 %v4389, %v4425
          %v4442 = vadd.f32 %v4390, %v4426
          %v4443 = vadd.f32 %v4391, %v4427
          %v4444 = vadd.f32 %v4392, %v4428
          %v4445 = vadd.f32 %v4393, %v4429
          %v4446 = vadd.f32 %v4394, %v4430
          %s4447 = sld [smem:[#allocation4 + $0x25]]
          %v4448 = vstv %s4447
          %v4449 = vmul.f32 %v4448, %v4395
          %v4450 = vmul.f32 %v4448, %v4396
          %v4451 = vmul.f32 %v4448, %v4397
          %v4452 = vmul.f32 %v4448, %v4398
          %v4453 = vmul.f32 %v4448, %v4399
          %v4454 = vmul.f32 %v4448, %v4400
          %v4455 = vmul.f32 %v4448, %v4401
          %v4456 = vmul.f32 %v4448, %v4402
          %v4457 = vmul.f32 %v4448, %v4404
          %v4458 = vmul.f32 %v4448, %v4405
          %v4459 = vmul.f32 %v4448, %v4406
          %v4460 = vmul.f32 %v4448, %v4407
          %v4461 = vmul.f32 %v4448, %v4408
          %v4462 = vmul.f32 %v4448, %v4409
          %v4463 = vmul.f32 %v4448, %v4410
          %v4464 = vmul.f32 %v4448, %v4411
          %4481 = vrot.lane.b32.xlu0 %v4449, 127
          %v4482 = vpop.permute.xlu0 %4481
          %4483 = vrot.lane.b32.xlu0 %v4450, 127
          %v4484 = vpop.permute.xlu0 %4483
          %4485 = vrot.lane.b32.xlu0 %v4451, 127
          %v4486 = vpop.permute.xlu0 %4485
          %4487 = vrot.lane.b32.xlu0 %v4452, 127
          %v4488 = vpop.permute.xlu0 %4487
          %4489 = vrot.lane.b32.xlu0 %v4453, 127
          %v4490 = vpop.permute.xlu0 %4489
          %4491 = vrot.lane.b32.xlu0 %v4454, 127
          %v4492 = vpop.permute.xlu0 %4491
          %4493 = vrot.lane.b32.xlu0 %v4455, 127
          %v4494 = vpop.permute.xlu0 %4493
          %4495 = vrot.lane.b32.xlu0 %v4456, 127
          %v4496 = vpop.permute.xlu0 %4495
          %4497 = vrot.lane.b32.xlu0 %v4457, 127
          %v4498 = vpop.permute.xlu0 %4497
          %4499 = vrot.lane.b32.xlu0 %v4458, 127
          %v4500 = vpop.permute.xlu0 %4499
          %4501 = vrot.lane.b32.xlu0 %v4459, 127
          %v4502 = vpop.permute.xlu0 %4501
          %4503 = vrot.lane.b32.xlu0 %v4460, 127
          %v4504 = vpop.permute.xlu0 %4503
          %4505 = vrot.lane.b32.xlu0 %v4461, 127
          %v4506 = vpop.permute.xlu0 %4505
          %4507 = vrot.lane.b32.xlu0 %v4462, 127
          %v4508 = vpop.permute.xlu0 %4507
          %4509 = vrot.lane.b32.xlu0 %v4463, 127
          %v4510 = vpop.permute.xlu0 %4509
          %4511 = vrot.lane.b32.xlu0 %v4464, 127
          %v4512 = vpop.permute.xlu0 %4511
          %v4529 = vadd.f32 %v4431, %v4482
          %v4530 = vadd.f32 %v4432, %v4484
          %v4531 = vadd.f32 %v4433, %v4486
          %v4532 = vadd.f32 %v4434, %v4488
          %v4533 = vadd.f32 %v4435, %v4490
          %v4534 = vadd.f32 %v4436, %v4492
          %v4535 = vadd.f32 %v4437, %v4494
          %v4536 = vadd.f32 %v4438, %v4496
          %v4537 = vadd.f32 %v4439, %v4498
          %v4538 = vadd.f32 %v4440, %v4500
          %v4539 = vadd.f32 %v4441, %v4502
          %v4540 = vadd.f32 %v4442, %v4504
          %v4541 = vadd.f32 %v4443, %v4506
          %v4542 = vadd.f32 %v4444, %v4508
          %v4543 = vadd.f32 %v4445, %v4510
          %v4544 = vadd.f32 %v4446, %v4512
          %s4545 = sld [smem:[#allocation4 + $0x26]]
          %v4546 = vstv %s4545
          %v4547 = vmul.f32 %v4546, %v4395
          %v4548 = vmul.f32 %v4546, %v4396
          %v4549 = vmul.f32 %v4546, %v4397
          %v4550 = vmul.f32 %v4546, %v4398
          %v4551 = vmul.f32 %v4546, %v4399
          %v4552 = vmul.f32 %v4546, %v4400
          %v4553 = vmul.f32 %v4546, %v4401
          %v4554 = vmul.f32 %v4546, %v4402
          %v4555 = vmul.f32 %v4546, %v4404
          %v4556 = vmul.f32 %v4546, %v4405
          %v4557 = vmul.f32 %v4546, %v4406
          %v4558 = vmul.f32 %v4546, %v4407
          %v4559 = vmul.f32 %v4546, %v4408
          %v4560 = vmul.f32 %v4546, %v4409
          %v4561 = vmul.f32 %v4546, %v4410
          %v4562 = vmul.f32 %v4546, %v4411
          %4579 = vrot.lane.b32.xlu0 %v4547, 126
          %v4580 = vpop.permute.xlu0 %4579
          %4581 = vrot.lane.b32.xlu0 %v4548, 126
          %v4582 = vpop.permute.xlu0 %4581
          %4583 = vrot.lane.b32.xlu0 %v4549, 126
          %v4584 = vpop.permute.xlu0 %4583
          %4585 = vrot.lane.b32.xlu0 %v4550, 126
          %v4586 = vpop.permute.xlu0 %4585
          %4587 = vrot.lane.b32.xlu0 %v4551, 126
          %v4588 = vpop.permute.xlu0 %4587
          %4589 = vrot.lane.b32.xlu0 %v4552, 126
          %v4590 = vpop.permute.xlu0 %4589
          %4591 = vrot.lane.b32.xlu0 %v4553, 126
          %v4592 = vpop.permute.xlu0 %4591
          %4593 = vrot.lane.b32.xlu0 %v4554, 126
          %v4594 = vpop.permute.xlu0 %4593
          %4595 = vrot.lane.b32.xlu0 %v4555, 126
          %v4596 = vpop.permute.xlu0 %4595
          %4597 = vrot.lane.b32.xlu0 %v4556, 126
          %v4598 = vpop.permute.xlu0 %4597
          %4599 = vrot.lane.b32.xlu0 %v4557, 126
          %v4600 = vpop.permute.xlu0 %4599
          %4601 = vrot.lane.b32.xlu0 %v4558, 126
          %v4602 = vpop.permute.xlu0 %4601
          %4603 = vrot.lane.b32.xlu0 %v4559, 126
          %v4604 = vpop.permute.xlu0 %4603
          %4605 = vrot.lane.b32.xlu0 %v4560, 126
          %v4606 = vpop.permute.xlu0 %4605
          %4607 = vrot.lane.b32.xlu0 %v4561, 126
          %v4608 = vpop.permute.xlu0 %4607
          %4609 = vrot.lane.b32.xlu0 %v4562, 126
          %v4610 = vpop.permute.xlu0 %4609
          %v4627 = vadd.f32 %v4529, %v4580
          %v4628 = vadd.f32 %v4530, %v4582
          %v4629 = vadd.f32 %v4531, %v4584
          %v4630 = vadd.f32 %v4532, %v4586
          %v4631 = vadd.f32 %v4533, %v4588
          %v4632 = vadd.f32 %v4534, %v4590
          %v4633 = vadd.f32 %v4535, %v4592
          %v4634 = vadd.f32 %v4536, %v4594
          %v4635 = vadd.f32 %v4537, %v4596
          %v4636 = vadd.f32 %v4538, %v4598
          %v4637 = vadd.f32 %v4539, %v4600
          %v4638 = vadd.f32 %v4540, %v4602
          %v4639 = vadd.f32 %v4541, %v4604
          %v4640 = vadd.f32 %v4542, %v4606
          %v4641 = vadd.f32 %v4543, %v4608
          %v4642 = vadd.f32 %v4544, %v4610
          %s4643 = sld [smem:[#allocation4 + $0x27]]
          %v4644 = vstv %s4643
          %v4645 = vmul.f32 %v4644, %v4395
          %v4646 = vmul.f32 %v4644, %v4396
          %v4647 = vmul.f32 %v4644, %v4397
          %v4648 = vmul.f32 %v4644, %v4398
          %v4649 = vmul.f32 %v4644, %v4399
          %v4650 = vmul.f32 %v4644, %v4400
          %v4651 = vmul.f32 %v4644, %v4401
          %v4652 = vmul.f32 %v4644, %v4402
          %v4653 = vmul.f32 %v4644, %v4403
          %v4654 = vmul.f32 %v4644, %v4404
          %v4655 = vmul.f32 %v4644, %v4405
          %v4656 = vmul.f32 %v4644, %v4406
          %v4657 = vmul.f32 %v4644, %v4407
          %v4658 = vmul.f32 %v4644, %v4408
          %v4659 = vmul.f32 %v4644, %v4409
          %v4660 = vmul.f32 %v4644, %v4410
          %v4661 = vmul.f32 %v4644, %v4411
          %v4662 = vmul.f32 %v4644, %v4412
          %v4681 = vrot.slane %v4645, 1
          %v4682 = vrot.slane %v4646, 1
          %v4683 = vsel %vm626, %v4681, %v4682
          %v4684 = vrot.slane %v4647, 1
          %v4685 = vsel %vm626, %v4682, %v4684
          %v4686 = vrot.slane %v4648, 1
          %v4687 = vsel %vm626, %v4684, %v4686
          %v4688 = vrot.slane %v4649, 1
          %v4689 = vsel %vm626, %v4686, %v4688
          %v4690 = vrot.slane %v4650, 1
          %v4691 = vsel %vm626, %v4688, %v4690
          %v4692 = vrot.slane %v4651, 1
          %v4693 = vsel %vm626, %v4690, %v4692
          %v4694 = vrot.slane %v4652, 1
          %v4695 = vsel %vm626, %v4692, %v4694
          %v4696 = vrot.slane %v4653, 1
          %v4697 = vsel %vm626, %v4694, %v4696
          %v4698 = vrot.slane %v4654, 1
          %v4699 = vrot.slane %v4655, 1
          %v4700 = vsel %vm626, %v4698, %v4699
          %v4701 = vrot.slane %v4656, 1
          %v4702 = vsel %vm626, %v4699, %v4701
          %v4703 = vrot.slane %v4657, 1
          %v4704 = vsel %vm626, %v4701, %v4703
          %v4705 = vrot.slane %v4658, 1
          %v4706 = vsel %vm626, %v4703, %v4705
          %v4707 = vrot.slane %v4659, 1
          %v4708 = vsel %vm626, %v4705, %v4707
          %v4709 = vrot.slane %v4660, 1
          %v4710 = vsel %vm626, %v4707, %v4709
          %v4711 = vrot.slane %v4661, 1
          %v4712 = vsel %vm626, %v4709, %v4711
          %v4713 = vrot.slane %v4662, 1
          %v4714 = vsel %vm626, %v4711, %v4713
          %v4731 = vadd.f32 %v4627, %v4683
          %v4732 = vadd.f32 %v4628, %v4685
          %v4733 = vadd.f32 %v4629, %v4687
          %v4734 = vadd.f32 %v4630, %v4689
          %v4735 = vadd.f32 %v4631, %v4691
          %v4736 = vadd.f32 %v4632, %v4693
          %v4737 = vadd.f32 %v4633, %v4695
          %v4738 = vadd.f32 %v4634, %v4697
          %v4739 = vadd.f32 %v4635, %v4700
          %v4740 = vadd.f32 %v4636, %v4702
          %v4741 = vadd.f32 %v4637, %v4704
          %v4742 = vadd.f32 %v4638, %v4706
          %v4743 = vadd.f32 %v4639, %v4708
          %v4744 = vadd.f32 %v4640, %v4710
          %v4745 = vadd.f32 %v4641, %v4712
          %v4746 = vadd.f32 %v4642, %v4714
          %s4747 = sld [smem:[#allocation4 + $0x28]]
          %v4748 = vstv %s4747
          %v4749 = vmul.f32 %v4748, %v4395
          %v4750 = vmul.f32 %v4748, %v4396
          %v4751 = vmul.f32 %v4748, %v4397
          %v4752 = vmul.f32 %v4748, %v4398
          %v4753 = vmul.f32 %v4748, %v4399
          %v4754 = vmul.f32 %v4748, %v4400
          %v4755 = vmul.f32 %v4748, %v4401
          %v4756 = vmul.f32 %v4748, %v4402
          %v4757 = vmul.f32 %v4748, %v4403
          %v4758 = vmul.f32 %v4748, %v4404
          %v4759 = vmul.f32 %v4748, %v4405
          %v4760 = vmul.f32 %v4748, %v4406
          %v4761 = vmul.f32 %v4748, %v4407
          %v4762 = vmul.f32 %v4748, %v4408
          %v4763 = vmul.f32 %v4748, %v4409
          %v4764 = vmul.f32 %v4748, %v4410
          %v4765 = vmul.f32 %v4748, %v4411
          %v4766 = vmul.f32 %v4748, %v4412
          %v4785 = vrot.slane %v4749, 1
          %v4786 = vrot.slane %v4750, 1
          %v4787 = vsel %vm626, %v4785, %v4786
          %v4788 = vrot.slane %v4751, 1
          %v4789 = vsel %vm626, %v4786, %v4788
          %v4790 = vrot.slane %v4752, 1
          %v4791 = vsel %vm626, %v4788, %v4790
          %v4792 = vrot.slane %v4753, 1
          %v4793 = vsel %vm626, %v4790, %v4792
          %v4794 = vrot.slane %v4754, 1
          %v4795 = vsel %vm626, %v4792, %v4794
          %v4796 = vrot.slane %v4755, 1
          %v4797 = vsel %vm626, %v4794, %v4796
          %v4798 = vrot.slane %v4756, 1
          %v4799 = vsel %vm626, %v4796, %v4798
          %v4800 = vrot.slane %v4757, 1
          %v4801 = vsel %vm626, %v4798, %v4800
          %v4802 = vrot.slane %v4758, 1
          %v4803 = vrot.slane %v4759, 1
          %v4804 = vsel %vm626, %v4802, %v4803
          %v4805 = vrot.slane %v4760, 1
          %v4806 = vsel %vm626, %v4803, %v4805
          %v4807 = vrot.slane %v4761, 1
          %v4808 = vsel %vm626, %v4805, %v4807
          %v4809 = vrot.slane %v4762, 1
          %v4810 = vsel %vm626, %v4807, %v4809
          %v4811 = vrot.slane %v4763, 1
          %v4812 = vsel %vm626, %v4809, %v4811
          %v4813 = vrot.slane %v4764, 1
          %v4814 = vsel %vm626, %v4811, %v4813
          %v4815 = vrot.slane %v4765, 1
          %v4816 = vsel %vm626, %v4813, %v4815
          %v4817 = vrot.slane %v4766, 1
          %v4818 = vsel %vm626, %v4815, %v4817
          %4819 = vrot.lane.b32.xlu0 %v4787, 127
          %v4820 = vpop.permute.xlu0 %4819
          %4821 = vrot.lane.b32.xlu0 %v4789, 127
          %v4822 = vpop.permute.xlu0 %4821
          %4823 = vrot.lane.b32.xlu0 %v4791, 127
          %v4824 = vpop.permute.xlu0 %4823
          %4825 = vrot.lane.b32.xlu0 %v4793, 127
          %v4826 = vpop.permute.xlu0 %4825
          %4827 = vrot.lane.b32.xlu0 %v4795, 127
          %v4828 = vpop.permute.xlu0 %4827
          %4829 = vrot.lane.b32.xlu0 %v4797, 127
          %v4830 = vpop.permute.xlu0 %4829
          %4831 = vrot.lane.b32.xlu0 %v4799, 127
          %v4832 = vpop.permute.xlu0 %4831
          %4833 = vrot.lane.b32.xlu0 %v4801, 127
          %v4834 = vpop.permute.xlu0 %4833
          %4835 = vrot.lane.b32.xlu0 %v4804, 127
          %v4836 = vpop.permute.xlu0 %4835
          %4837 = vrot.lane.b32.xlu0 %v4806, 127
          %v4838 = vpop.permute.xlu0 %4837
          %4839 = vrot.lane.b32.xlu0 %v4808, 127
          %v4840 = vpop.permute.xlu0 %4839
          %4841 = vrot.lane.b32.xlu0 %v4810, 127
          %v4842 = vpop.permute.xlu0 %4841
          %4843 = vrot.lane.b32.xlu0 %v4812, 127
          %v4844 = vpop.permute.xlu0 %4843
          %4845 = vrot.lane.b32.xlu0 %v4814, 127
          %v4846 = vpop.permute.xlu0 %4845
          %4847 = vrot.lane.b32.xlu0 %v4816, 127
          %v4848 = vpop.permute.xlu0 %4847
          %4849 = vrot.lane.b32.xlu0 %v4818, 127
          %v4850 = vpop.permute.xlu0 %4849
          %v4867 = vadd.f32 %v4731, %v4820
          %v4868 = vadd.f32 %v4732, %v4822
          %v4869 = vadd.f32 %v4733, %v4824
          %v4870 = vadd.f32 %v4734, %v4826
          %v4871 = vadd.f32 %v4735, %v4828
          %v4872 = vadd.f32 %v4736, %v4830
          %v4873 = vadd.f32 %v4737, %v4832
          %v4874 = vadd.f32 %v4738, %v4834
          %v4875 = vadd.f32 %v4739, %v4836
          %v4876 = vadd.f32 %v4740, %v4838
          %v4877 = vadd.f32 %v4741, %v4840
          %v4878 = vadd.f32 %v4742, %v4842
          %v4879 = vadd.f32 %v4743, %v4844
          %v4880 = vadd.f32 %v4744, %v4846
          %v4881 = vadd.f32 %v4745, %v4848
          %v4882 = vadd.f32 %v4746, %v4850
          %s4883 = sld [smem:[#allocation4 + $0x29]]
          %v4884 = vstv %s4883
          %v4885 = vmul.f32 %v4884, %v4395
          %v4886 = vmul.f32 %v4884, %v4396
          %v4887 = vmul.f32 %v4884, %v4397
          %v4888 = vmul.f32 %v4884, %v4398
          %v4889 = vmul.f32 %v4884, %v4399
          %v4890 = vmul.f32 %v4884, %v4400
          %v4891 = vmul.f32 %v4884, %v4401
          %v4892 = vmul.f32 %v4884, %v4402
          %v4893 = vmul.f32 %v4884, %v4403
          %v4894 = vmul.f32 %v4884, %v4404
          %v4895 = vmul.f32 %v4884, %v4405
          %v4896 = vmul.f32 %v4884, %v4406
          %v4897 = vmul.f32 %v4884, %v4407
          %v4898 = vmul.f32 %v4884, %v4408
          %v4899 = vmul.f32 %v4884, %v4409
          %v4900 = vmul.f32 %v4884, %v4410
          %v4901 = vmul.f32 %v4884, %v4411
          %v4902 = vmul.f32 %v4884, %v4412
          %v4921 = vrot.slane %v4885, 1
          %v4922 = vrot.slane %v4886, 1
          %v4923 = vsel %vm626, %v4921, %v4922
          %v4924 = vrot.slane %v4887, 1
          %v4925 = vsel %vm626, %v4922, %v4924
          %v4926 = vrot.slane %v4888, 1
          %v4927 = vsel %vm626, %v4924, %v4926
          %v4928 = vrot.slane %v4889, 1
          %v4929 = vsel %vm626, %v4926, %v4928
          %v4930 = vrot.slane %v4890, 1
          %v4931 = vsel %vm626, %v4928, %v4930
          %v4932 = vrot.slane %v4891, 1
          %v4933 = vsel %vm626, %v4930, %v4932
          %v4934 = vrot.slane %v4892, 1
          %v4935 = vsel %vm626, %v4932, %v4934
          %v4936 = vrot.slane %v4893, 1
          %v4937 = vsel %vm626, %v4934, %v4936
          %v4938 = vrot.slane %v4894, 1
          %v4939 = vrot.slane %v4895, 1
          %v4940 = vsel %vm626, %v4938, %v4939
          %v4941 = vrot.slane %v4896, 1
          %v4942 = vsel %vm626, %v4939, %v4941
          %v4943 = vrot.slane %v4897, 1
          %v4944 = vsel %vm626, %v4941, %v4943
          %v4945 = vrot.slane %v4898, 1
          %v4946 = vsel %vm626, %v4943, %v4945
          %v4947 = vrot.slane %v4899, 1
          %v4948 = vsel %vm626, %v4945, %v4947
          %v4949 = vrot.slane %v4900, 1
          %v4950 = vsel %vm626, %v4947, %v4949
          %v4951 = vrot.slane %v4901, 1
          %v4952 = vsel %vm626, %v4949, %v4951
          %v4953 = vrot.slane %v4902, 1
          %v4954 = vsel %vm626, %v4951, %v4953
          %4955 = vrot.lane.b32.xlu0 %v4923, 126
          %v4956 = vpop.permute.xlu0 %4955
          %4957 = vrot.lane.b32.xlu0 %v4925, 126
          %v4958 = vpop.permute.xlu0 %4957
          %4959 = vrot.lane.b32.xlu0 %v4927, 126
          %v4960 = vpop.permute.xlu0 %4959
          %4961 = vrot.lane.b32.xlu0 %v4929, 126
          %v4962 = vpop.permute.xlu0 %4961
          %4963 = vrot.lane.b32.xlu0 %v4931, 126
          %v4964 = vpop.permute.xlu0 %4963
          %4965 = vrot.lane.b32.xlu0 %v4933, 126
          %v4966 = vpop.permute.xlu0 %4965
          %4967 = vrot.lane.b32.xlu0 %v4935, 126
          %v4968 = vpop.permute.xlu0 %4967
          %4969 = vrot.lane.b32.xlu0 %v4937, 126
          %v4970 = vpop.permute.xlu0 %4969
          %4971 = vrot.lane.b32.xlu0 %v4940, 126
          %v4972 = vpop.permute.xlu0 %4971
          %4973 = vrot.lane.b32.xlu0 %v4942, 126
          %v4974 = vpop.permute.xlu0 %4973
          %4975 = vrot.lane.b32.xlu0 %v4944, 126
          %v4976 = vpop.permute.xlu0 %4975
          %4977 = vrot.lane.b32.xlu0 %v4946, 126
          %v4978 = vpop.permute.xlu0 %4977
          %4979 = vrot.lane.b32.xlu0 %v4948, 126
          %v4980 = vpop.permute.xlu0 %4979
          %4981 = vrot.lane.b32.xlu0 %v4950, 126
          %v4982 = vpop.permute.xlu0 %4981
          %4983 = vrot.lane.b32.xlu0 %v4952, 126
          %v4984 = vpop.permute.xlu0 %4983
          %4985 = vrot.lane.b32.xlu0 %v4954, 126
          %v4986 = vpop.permute.xlu0 %4985
          %v5003 = vadd.f32 %v4867, %v4956
          %v5004 = vadd.f32 %v4868, %v4958
          %v5005 = vadd.f32 %v4869, %v4960
          %v5006 = vadd.f32 %v4870, %v4962
          %v5007 = vadd.f32 %v4871, %v4964
          %v5008 = vadd.f32 %v4872, %v4966
          %v5009 = vadd.f32 %v4873, %v4968
          %v5010 = vadd.f32 %v4874, %v4970
          %v5011 = vadd.f32 %v4875, %v4972
          %v5012 = vadd.f32 %v4876, %v4974
          %v5013 = vadd.f32 %v4877, %v4976
          %v5014 = vadd.f32 %v4878, %v4978
          %v5015 = vadd.f32 %v4879, %v4980
          %v5016 = vadd.f32 %v4880, %v4982
          %v5017 = vadd.f32 %v4881, %v4984
          %v5018 = vadd.f32 %v4882, %v4986
          %s5019 = sld [smem:[#allocation4 + $0x2a]]
          %v5020 = vstv %s5019
          %v5021 = vmul.f32 %v5020, %v4395
          %v5022 = vmul.f32 %v5020, %v4396
          %v5023 = vmul.f32 %v5020, %v4397
          %v5024 = vmul.f32 %v5020, %v4398
          %v5025 = vmul.f32 %v5020, %v4399
          %v5026 = vmul.f32 %v5020, %v4400
          %v5027 = vmul.f32 %v5020, %v4401
          %v5028 = vmul.f32 %v5020, %v4402
          %v5029 = vmul.f32 %v5020, %v4403
          %v5030 = vmul.f32 %v5020, %v4404
          %v5031 = vmul.f32 %v5020, %v4405
          %v5032 = vmul.f32 %v5020, %v4406
          %v5033 = vmul.f32 %v5020, %v4407
          %v5034 = vmul.f32 %v5020, %v4408
          %v5035 = vmul.f32 %v5020, %v4409
          %v5036 = vmul.f32 %v5020, %v4410
          %v5037 = vmul.f32 %v5020, %v4411
          %v5038 = vmul.f32 %v5020, %v4412
          %v5057 = vrot.slane %v5021, 2
          %v5058 = vrot.slane %v5022, 2
          %v5059 = vsel %vm1003, %v5057, %v5058
          %v5060 = vrot.slane %v5023, 2
          %v5061 = vsel %vm1003, %v5058, %v5060
          %v5062 = vrot.slane %v5024, 2
          %v5063 = vsel %vm1003, %v5060, %v5062
          %v5064 = vrot.slane %v5025, 2
          %v5065 = vsel %vm1003, %v5062, %v5064
          %v5066 = vrot.slane %v5026, 2
          %v5067 = vsel %vm1003, %v5064, %v5066
          %v5068 = vrot.slane %v5027, 2
          %v5069 = vsel %vm1003, %v5066, %v5068
          %v5070 = vrot.slane %v5028, 2
          %v5071 = vsel %vm1003, %v5068, %v5070
          %v5072 = vrot.slane %v5029, 2
          %v5073 = vsel %vm1003, %v5070, %v5072
          %v5074 = vrot.slane %v5030, 2
          %v5075 = vrot.slane %v5031, 2
          %v5076 = vsel %vm1003, %v5074, %v5075
          %v5077 = vrot.slane %v5032, 2
          %v5078 = vsel %vm1003, %v5075, %v5077
          %v5079 = vrot.slane %v5033, 2
          %v5080 = vsel %vm1003, %v5077, %v5079
          %v5081 = vrot.slane %v5034, 2
          %v5082 = vsel %vm1003, %v5079, %v5081
          %v5083 = vrot.slane %v5035, 2
          %v5084 = vsel %vm1003, %v5081, %v5083
          %v5085 = vrot.slane %v5036, 2
          %v5086 = vsel %vm1003, %v5083, %v5085
          %v5087 = vrot.slane %v5037, 2
          %v5088 = vsel %vm1003, %v5085, %v5087
          %v5089 = vrot.slane %v5038, 2
          %v5090 = vsel %vm1003, %v5087, %v5089
          %v5107 = vadd.f32 %v5003, %v5059
          %v5108 = vadd.f32 %v5004, %v5061
          %v5109 = vadd.f32 %v5005, %v5063
          %v5110 = vadd.f32 %v5006, %v5065
          %v5111 = vadd.f32 %v5007, %v5067
          %v5112 = vadd.f32 %v5008, %v5069
          %v5113 = vadd.f32 %v5009, %v5071
          %v5114 = vadd.f32 %v5010, %v5073
          %v5115 = vadd.f32 %v5011, %v5076
          %v5116 = vadd.f32 %v5012, %v5078
          %v5117 = vadd.f32 %v5013, %v5080
          %v5118 = vadd.f32 %v5014, %v5082
          %v5119 = vadd.f32 %v5015, %v5084
          %v5120 = vadd.f32 %v5016, %v5086
          %v5121 = vadd.f32 %v5017, %v5088
          %v5122 = vadd.f32 %v5018, %v5090
          %s5123 = sld [smem:[#allocation4 + $0x2b]]
          %v5124 = vstv %s5123
          %v5125 = vmul.f32 %v5124, %v4395
          %v5126 = vmul.f32 %v5124, %v4396
          %v5127 = vmul.f32 %v5124, %v4397
          %v5128 = vmul.f32 %v5124, %v4398
          %v5129 = vmul.f32 %v5124, %v4399
          %v5130 = vmul.f32 %v5124, %v4400
          %v5131 = vmul.f32 %v5124, %v4401
          %v5132 = vmul.f32 %v5124, %v4402
          %v5133 = vmul.f32 %v5124, %v4403
          %v5134 = vmul.f32 %v5124, %v4404
          %v5135 = vmul.f32 %v5124, %v4405
          %v5136 = vmul.f32 %v5124, %v4406
          %v5137 = vmul.f32 %v5124, %v4407
          %v5138 = vmul.f32 %v5124, %v4408
          %v5139 = vmul.f32 %v5124, %v4409
          %v5140 = vmul.f32 %v5124, %v4410
          %v5141 = vmul.f32 %v5124, %v4411
          %v5142 = vmul.f32 %v5124, %v4412
          %v5161 = vrot.slane %v5125, 2
          %v5162 = vrot.slane %v5126, 2
          %v5163 = vsel %vm1003, %v5161, %v5162
          %v5164 = vrot.slane %v5127, 2
          %v5165 = vsel %vm1003, %v5162, %v5164
          %v5166 = vrot.slane %v5128, 2
          %v5167 = vsel %vm1003, %v5164, %v5166
          %v5168 = vrot.slane %v5129, 2
          %v5169 = vsel %vm1003, %v5166, %v5168
          %v5170 = vrot.slane %v5130, 2
          %v5171 = vsel %vm1003, %v5168, %v5170
          %v5172 = vrot.slane %v5131, 2
          %v5173 = vsel %vm1003, %v5170, %v5172
          %v5174 = vrot.slane %v5132, 2
          %v5175 = vsel %vm1003, %v5172, %v5174
          %v5176 = vrot.slane %v5133, 2
          %v5177 = vsel %vm1003, %v5174, %v5176
          %v5178 = vrot.slane %v5134, 2
          %v5179 = vrot.slane %v5135, 2
          %v5180 = vsel %vm1003, %v5178, %v5179
          %v5181 = vrot.slane %v5136, 2
          %v5182 = vsel %vm1003, %v5179, %v5181
          %v5183 = vrot.slane %v5137, 2
          %v5184 = vsel %vm1003, %v5181, %v5183
          %v5185 = vrot.slane %v5138, 2
          %v5186 = vsel %vm1003, %v5183, %v5185
          %v5187 = vrot.slane %v5139, 2
          %v5188 = vsel %vm1003, %v5185, %v5187
          %v5189 = vrot.slane %v5140, 2
          %v5190 = vsel %vm1003, %v5187, %v5189
          %v5191 = vrot.slane %v5141, 2
          %v5192 = vsel %vm1003, %v5189, %v5191
          %v5193 = vrot.slane %v5142, 2
          %v5194 = vsel %vm1003, %v5191, %v5193
          %5195 = vrot.lane.b32.xlu0 %v5163, 127
          %v5196 = vpop.permute.xlu0 %5195
          %5197 = vrot.lane.b32.xlu0 %v5165, 127
          %v5198 = vpop.permute.xlu0 %5197
          %5199 = vrot.lane.b32.xlu0 %v5167, 127
          %v5200 = vpop.permute.xlu0 %5199
          %5201 = vrot.lane.b32.xlu0 %v5169, 127
          %v5202 = vpop.permute.xlu0 %5201
          %5203 = vrot.lane.b32.xlu0 %v5171, 127
          %v5204 = vpop.permute.xlu0 %5203
          %5205 = vrot.lane.b32.xlu0 %v5173, 127
          %v5206 = vpop.permute.xlu0 %5205
          %5207 = vrot.lane.b32.xlu0 %v5175, 127
          %v5208 = vpop.permute.xlu0 %5207
          %5209 = vrot.lane.b32.xlu0 %v5177, 127
          %v5210 = vpop.permute.xlu0 %5209
          %5211 = vrot.lane.b32.xlu0 %v5180, 127
          %v5212 = vpop.permute.xlu0 %5211
          %5213 = vrot.lane.b32.xlu0 %v5182, 127
          %v5214 = vpop.permute.xlu0 %5213
          %5215 = vrot.lane.b32.xlu0 %v5184, 127
          %v5216 = vpop.permute.xlu0 %5215
          %5217 = vrot.lane.b32.xlu0 %v5186, 127
          %v5218 = vpop.permute.xlu0 %5217
          %5219 = vrot.lane.b32.xlu0 %v5188, 127
          %v5220 = vpop.permute.xlu0 %5219
          %5221 = vrot.lane.b32.xlu0 %v5190, 127
          %v5222 = vpop.permute.xlu0 %5221
          %5223 = vrot.lane.b32.xlu0 %v5192, 127
          %v5224 = vpop.permute.xlu0 %5223
          %5225 = vrot.lane.b32.xlu0 %v5194, 127
          %v5226 = vpop.permute.xlu0 %5225
          %v5243 = vadd.f32 %v5107, %v5196
          %v5244 = vadd.f32 %v5108, %v5198
          %v5245 = vadd.f32 %v5109, %v5200
          %v5246 = vadd.f32 %v5110, %v5202
          %v5247 = vadd.f32 %v5111, %v5204
          %v5248 = vadd.f32 %v5112, %v5206
          %v5249 = vadd.f32 %v5113, %v5208
          %v5250 = vadd.f32 %v5114, %v5210
          %v5251 = vadd.f32 %v5115, %v5212
          %v5252 = vadd.f32 %v5116, %v5214
          %v5253 = vadd.f32 %v5117, %v5216
          %v5254 = vadd.f32 %v5118, %v5218
          %v5255 = vadd.f32 %v5119, %v5220
          %v5256 = vadd.f32 %v5120, %v5222
          %v5257 = vadd.f32 %v5121, %v5224
          %v5258 = vadd.f32 %v5122, %v5226
          %s5259 = sld [smem:[#allocation4 + $0x2c]]
          %v5260 = vstv %s5259
          %v5261 = vmul.f32 %v5260, %v4395
          %v5262 = vmul.f32 %v5260, %v4396
          %v5263 = vmul.f32 %v5260, %v4397
          %v5264 = vmul.f32 %v5260, %v4398
          %v5265 = vmul.f32 %v5260, %v4399
          %v5266 = vmul.f32 %v5260, %v4400
          %v5267 = vmul.f32 %v5260, %v4401
          %v5268 = vmul.f32 %v5260, %v4402
          %v5269 = vmul.f32 %v5260, %v4403
          %v5270 = vmul.f32 %v5260, %v4404
          %v5271 = vmul.f32 %v5260, %v4405
          %v5272 = vmul.f32 %v5260, %v4406
          %v5273 = vmul.f32 %v5260, %v4407
          %v5274 = vmul.f32 %v5260, %v4408
          %v5275 = vmul.f32 %v5260, %v4409
          %v5276 = vmul.f32 %v5260, %v4410
          %v5277 = vmul.f32 %v5260, %v4411
          %v5278 = vmul.f32 %v5260, %v4412
          %v5297 = vrot.slane %v5261, 2
          %v5298 = vrot.slane %v5262, 2
          %v5299 = vsel %vm1003, %v5297, %v5298
          %v5300 = vrot.slane %v5263, 2
          %v5301 = vsel %vm1003, %v5298, %v5300
          %v5302 = vrot.slane %v5264, 2
          %v5303 = vsel %vm1003, %v5300, %v5302
          %v5304 = vrot.slane %v5265, 2
          %v5305 = vsel %vm1003, %v5302, %v5304
          %v5306 = vrot.slane %v5266, 2
          %v5307 = vsel %vm1003, %v5304, %v5306
          %v5308 = vrot.slane %v5267, 2
          %v5309 = vsel %vm1003, %v5306, %v5308
          %v5310 = vrot.slane %v5268, 2
          %v5311 = vsel %vm1003, %v5308, %v5310
          %v5312 = vrot.slane %v5269, 2
          %v5313 = vsel %vm1003, %v5310, %v5312
          %v5314 = vrot.slane %v5270, 2
          %v5315 = vrot.slane %v5271, 2
          %v5316 = vsel %vm1003, %v5314, %v5315
          %v5317 = vrot.slane %v5272, 2
          %v5318 = vsel %vm1003, %v5315, %v5317
          %v5319 = vrot.slane %v5273, 2
          %v5320 = vsel %vm1003, %v5317, %v5319
          %v5321 = vrot.slane %v5274, 2
          %v5322 = vsel %vm1003, %v5319, %v5321
          %v5323 = vrot.slane %v5275, 2
          %v5324 = vsel %vm1003, %v5321, %v5323
          %v5325 = vrot.slane %v5276, 2
          %v5326 = vsel %vm1003, %v5323, %v5325
          %v5327 = vrot.slane %v5277, 2
          %v5328 = vsel %vm1003, %v5325, %v5327
          %v5329 = vrot.slane %v5278, 2
          %v5330 = vsel %vm1003, %v5327, %v5329
          %5331 = vrot.lane.b32.xlu0 %v5299, 126
          %v5332 = vpop.permute.xlu0 %5331
          %5333 = vrot.lane.b32.xlu0 %v5301, 126
          %v5334 = vpop.permute.xlu0 %5333
          %5335 = vrot.lane.b32.xlu0 %v5303, 126
          %v5336 = vpop.permute.xlu0 %5335
          %5337 = vrot.lane.b32.xlu0 %v5305, 126
          %v5338 = vpop.permute.xlu0 %5337
          %5339 = vrot.lane.b32.xlu0 %v5307, 126
          %v5340 = vpop.permute.xlu0 %5339
          %5341 = vrot.lane.b32.xlu0 %v5309, 126
          %v5342 = vpop.permute.xlu0 %5341
          %5343 = vrot.lane.b32.xlu0 %v5311, 126
          %v5344 = vpop.permute.xlu0 %5343
          %5345 = vrot.lane.b32.xlu0 %v5313, 126
          %v5346 = vpop.permute.xlu0 %5345
          %5347 = vrot.lane.b32.xlu0 %v5316, 126
          %v5348 = vpop.permute.xlu0 %5347
          %5349 = vrot.lane.b32.xlu0 %v5318, 126
          %v5350 = vpop.permute.xlu0 %5349
          %5351 = vrot.lane.b32.xlu0 %v5320, 126
          %v5352 = vpop.permute.xlu0 %5351
          %5353 = vrot.lane.b32.xlu0 %v5322, 126
          %v5354 = vpop.permute.xlu0 %5353
          %5355 = vrot.lane.b32.xlu0 %v5324, 126
          %v5356 = vpop.permute.xlu0 %5355
          %5357 = vrot.lane.b32.xlu0 %v5326, 126
          %v5358 = vpop.permute.xlu0 %5357
          %5359 = vrot.lane.b32.xlu0 %v5328, 126
          %v5360 = vpop.permute.xlu0 %5359
          %5361 = vrot.lane.b32.xlu0 %v5330, 126
          %v5362 = vpop.permute.xlu0 %5361
          %v5379 = vadd.f32 %v5243, %v5332
          %v5380 = vadd.f32 %v5244, %v5334
          %v5381 = vadd.f32 %v5245, %v5336
          %v5382 = vadd.f32 %v5246, %v5338
          %v5383 = vadd.f32 %v5247, %v5340
          %v5384 = vadd.f32 %v5248, %v5342
          %v5385 = vadd.f32 %v5249, %v5344
          %v5386 = vadd.f32 %v5250, %v5346
          %v5387 = vadd.f32 %v5251, %v5348
          %v5388 = vadd.f32 %v5252, %v5350
          %v5389 = vadd.f32 %v5253, %v5352
          %v5390 = vadd.f32 %v5254, %v5354
          %v5391 = vadd.f32 %v5255, %v5356
          %v5392 = vadd.f32 %v5256, %v5358
          %v5393 = vadd.f32 %v5257, %v5360
          %v5394 = vadd.f32 %v5258, %v5362
          %v5395 = vld [vmem:[%s2343] sm:$0xff]
          %v5396 = vld [vmem:[%s2343 + $0x8] sm:$0xff]
          %v5397 = vld [vmem:[%s2343 + $0x10] sm:$0xff]
          %v5398 = vld [vmem:[%s2343 + $0x18] sm:$0xff]
          %v5399 = vld [vmem:[%s2343 + $0x20] sm:$0xff]
          %v5400 = vld [vmem:[%s2343 + $0x28] sm:$0xff]
          %v5401 = vld [vmem:[%s2343 + $0x30] sm:$0xff]
          %v5402 = vld [vmem:[%s2343 + $0x38] sm:$0xff]
          %v5403 = vld [vmem:[%s2343 + $0x40] sm:$0x3]
          %v5404 = vld [vmem:[%s2343 + $0x48] sm:$0xff]
          %v5405 = vld [vmem:[%s2343 + $0x50] sm:$0xff]
          %v5406 = vld [vmem:[%s2343 + $0x58] sm:$0xff]
          %v5407 = vld [vmem:[%s2343 + $0x60] sm:$0xff]
          %v5408 = vld [vmem:[%s2343 + $0x68] sm:$0xff]
          %v5409 = vld [vmem:[%s2343 + $0x70] sm:$0xff]
          %v5410 = vld [vmem:[%s2343 + $0x78] sm:$0xff]
          %v5411 = vld [vmem:[%s2343 + $0x80] sm:$0xff]
          %v5412 = vld [vmem:[%s2343 + $0x88] sm:$0x3]
          %s5413 = sld [smem:[#allocation4 + $0x2d]]
          %v5414 = vstv %s5413
          %v5415 = vmul.f32 %v5414, %v5395
          %v5416 = vmul.f32 %v5414, %v5396
          %v5417 = vmul.f32 %v5414, %v5397
          %v5418 = vmul.f32 %v5414, %v5398
          %v5419 = vmul.f32 %v5414, %v5399
          %v5420 = vmul.f32 %v5414, %v5400
          %v5421 = vmul.f32 %v5414, %v5401
          %v5422 = vmul.f32 %v5414, %v5402
          %v5423 = vmul.f32 %v5414, %v5404
          %v5424 = vmul.f32 %v5414, %v5405
          %v5425 = vmul.f32 %v5414, %v5406
          %v5426 = vmul.f32 %v5414, %v5407
          %v5427 = vmul.f32 %v5414, %v5408
          %v5428 = vmul.f32 %v5414, %v5409
          %v5429 = vmul.f32 %v5414, %v5410
          %v5430 = vmul.f32 %v5414, %v5411
          %v5431 = vadd.f32 %v5379, %v5415
          %v5432 = vadd.f32 %v5380, %v5416
          %v5433 = vadd.f32 %v5381, %v5417
          %v5434 = vadd.f32 %v5382, %v5418
          %v5435 = vadd.f32 %v5383, %v5419
          %v5436 = vadd.f32 %v5384, %v5420
          %v5437 = vadd.f32 %v5385, %v5421
          %v5438 = vadd.f32 %v5386, %v5422
          %v5439 = vadd.f32 %v5387, %v5423
          %v5440 = vadd.f32 %v5388, %v5424
          %v5441 = vadd.f32 %v5389, %v5425
          %v5442 = vadd.f32 %v5390, %v5426
          %v5443 = vadd.f32 %v5391, %v5427
          %v5444 = vadd.f32 %v5392, %v5428
          %v5445 = vadd.f32 %v5393, %v5429
          %v5446 = vadd.f32 %v5394, %v5430
          %s5447 = sld [smem:[#allocation4 + $0x2e]]
          %v5448 = vstv %s5447
          %v5449 = vmul.f32 %v5448, %v5395
          %v5450 = vmul.f32 %v5448, %v5396
          %v5451 = vmul.f32 %v5448, %v5397
          %v5452 = vmul.f32 %v5448, %v5398
          %v5453 = vmul.f32 %v5448, %v5399
          %v5454 = vmul.f32 %v5448, %v5400
          %v5455 = vmul.f32 %v5448, %v5401
          %v5456 = vmul.f32 %v5448, %v5402
          %v5457 = vmul.f32 %v5448, %v5404
          %v5458 = vmul.f32 %v5448, %v5405
          %v5459 = vmul.f32 %v5448, %v5406
          %v5460 = vmul.f32 %v5448, %v5407
          %v5461 = vmul.f32 %v5448, %v5408
          %v5462 = vmul.f32 %v5448, %v5409
          %v5463 = vmul.f32 %v5448, %v5410
          %v5464 = vmul.f32 %v5448, %v5411
          %5481 = vrot.lane.b32.xlu0 %v5449, 127
          %v5482 = vpop.permute.xlu0 %5481
          %5483 = vrot.lane.b32.xlu0 %v5450, 127
          %v5484 = vpop.permute.xlu0 %5483
          %5485 = vrot.lane.b32.xlu0 %v5451, 127
          %v5486 = vpop.permute.xlu0 %5485
          %5487 = vrot.lane.b32.xlu0 %v5452, 127
          %v5488 = vpop.permute.xlu0 %5487
          %5489 = vrot.lane.b32.xlu0 %v5453, 127
          %v5490 = vpop.permute.xlu0 %5489
          %5491 = vrot.lane.b32.xlu0 %v5454, 127
          %v5492 = vpop.permute.xlu0 %5491
          %5493 = vrot.lane.b32.xlu0 %v5455, 127
          %v5494 = vpop.permute.xlu0 %5493
          %5495 = vrot.lane.b32.xlu0 %v5456, 127
          %v5496 = vpop.permute.xlu0 %5495
          %5497 = vrot.lane.b32.xlu0 %v5457, 127
          %v5498 = vpop.permute.xlu0 %5497
          %5499 = vrot.lane.b32.xlu0 %v5458, 127
          %v5500 = vpop.permute.xlu0 %5499
          %5501 = vrot.lane.b32.xlu0 %v5459, 127
          %v5502 = vpop.permute.xlu0 %5501
          %5503 = vrot.lane.b32.xlu0 %v5460, 127
          %v5504 = vpop.permute.xlu0 %5503
          %5505 = vrot.lane.b32.xlu0 %v5461, 127
          %v5506 = vpop.permute.xlu0 %5505
          %5507 = vrot.lane.b32.xlu0 %v5462, 127
          %v5508 = vpop.permute.xlu0 %5507
          %5509 = vrot.lane.b32.xlu0 %v5463, 127
          %v5510 = vpop.permute.xlu0 %5509
          %5511 = vrot.lane.b32.xlu0 %v5464, 127
          %v5512 = vpop.permute.xlu0 %5511
          %v5529 = vadd.f32 %v5431, %v5482
          %v5530 = vadd.f32 %v5432, %v5484
          %v5531 = vadd.f32 %v5433, %v5486
          %v5532 = vadd.f32 %v5434, %v5488
          %v5533 = vadd.f32 %v5435, %v5490
          %v5534 = vadd.f32 %v5436, %v5492
          %v5535 = vadd.f32 %v5437, %v5494
          %v5536 = vadd.f32 %v5438, %v5496
          %v5537 = vadd.f32 %v5439, %v5498
          %v5538 = vadd.f32 %v5440, %v5500
          %v5539 = vadd.f32 %v5441, %v5502
          %v5540 = vadd.f32 %v5442, %v5504
          %v5541 = vadd.f32 %v5443, %v5506
          %v5542 = vadd.f32 %v5444, %v5508
          %v5543 = vadd.f32 %v5445, %v5510
          %v5544 = vadd.f32 %v5446, %v5512
          %s5545 = sld [smem:[#allocation4 + $0x2f]]
          %v5546 = vstv %s5545
          %v5547 = vmul.f32 %v5546, %v5395
          %v5548 = vmul.f32 %v5546, %v5396
          %v5549 = vmul.f32 %v5546, %v5397
          %v5550 = vmul.f32 %v5546, %v5398
          %v5551 = vmul.f32 %v5546, %v5399
          %v5552 = vmul.f32 %v5546, %v5400
          %v5553 = vmul.f32 %v5546, %v5401
          %v5554 = vmul.f32 %v5546, %v5402
          %v5555 = vmul.f32 %v5546, %v5404
          %v5556 = vmul.f32 %v5546, %v5405
          %v5557 = vmul.f32 %v5546, %v5406
          %v5558 = vmul.f32 %v5546, %v5407
          %v5559 = vmul.f32 %v5546, %v5408
          %v5560 = vmul.f32 %v5546, %v5409
          %v5561 = vmul.f32 %v5546, %v5410
          %v5562 = vmul.f32 %v5546, %v5411
          %5579 = vrot.lane.b32.xlu0 %v5547, 126
          %v5580 = vpop.permute.xlu0 %5579
          %5581 = vrot.lane.b32.xlu0 %v5548, 126
          %v5582 = vpop.permute.xlu0 %5581
          %5583 = vrot.lane.b32.xlu0 %v5549, 126
          %v5584 = vpop.permute.xlu0 %5583
          %5585 = vrot.lane.b32.xlu0 %v5550, 126
          %v5586 = vpop.permute.xlu0 %5585
          %5587 = vrot.lane.b32.xlu0 %v5551, 126
          %v5588 = vpop.permute.xlu0 %5587
          %5589 = vrot.lane.b32.xlu0 %v5552, 126
          %v5590 = vpop.permute.xlu0 %5589
          %5591 = vrot.lane.b32.xlu0 %v5553, 126
          %v5592 = vpop.permute.xlu0 %5591
          %5593 = vrot.lane.b32.xlu0 %v5554, 126
          %v5594 = vpop.permute.xlu0 %5593
          %5595 = vrot.lane.b32.xlu0 %v5555, 126
          %v5596 = vpop.permute.xlu0 %5595
          %5597 = vrot.lane.b32.xlu0 %v5556, 126
          %v5598 = vpop.permute.xlu0 %5597
          %5599 = vrot.lane.b32.xlu0 %v5557, 126
          %v5600 = vpop.permute.xlu0 %5599
          %5601 = vrot.lane.b32.xlu0 %v5558, 126
          %v5602 = vpop.permute.xlu0 %5601
          %5603 = vrot.lane.b32.xlu0 %v5559, 126
          %v5604 = vpop.permute.xlu0 %5603
          %5605 = vrot.lane.b32.xlu0 %v5560, 126
          %v5606 = vpop.permute.xlu0 %5605
          %5607 = vrot.lane.b32.xlu0 %v5561, 126
          %v5608 = vpop.permute.xlu0 %5607
          %5609 = vrot.lane.b32.xlu0 %v5562, 126
          %v5610 = vpop.permute.xlu0 %5609
          %v5627 = vadd.f32 %v5529, %v5580
          %v5628 = vadd.f32 %v5530, %v5582
          %v5629 = vadd.f32 %v5531, %v5584
          %v5630 = vadd.f32 %v5532, %v5586
          %v5631 = vadd.f32 %v5533, %v5588
          %v5632 = vadd.f32 %v5534, %v5590
          %v5633 = vadd.f32 %v5535, %v5592
          %v5634 = vadd.f32 %v5536, %v5594
          %v5635 = vadd.f32 %v5537, %v5596
          %v5636 = vadd.f32 %v5538, %v5598
          %v5637 = vadd.f32 %v5539, %v5600
          %v5638 = vadd.f32 %v5540, %v5602
          %v5639 = vadd.f32 %v5541, %v5604
          %v5640 = vadd.f32 %v5542, %v5606
          %v5641 = vadd.f32 %v5543, %v5608
          %v5642 = vadd.f32 %v5544, %v5610
          %s5643 = sld [smem:[#allocation4 + $0x30]]
          %v5644 = vstv %s5643
          %v5645 = vmul.f32 %v5644, %v5395
          %v5646 = vmul.f32 %v5644, %v5396
          %v5647 = vmul.f32 %v5644, %v5397
          %v5648 = vmul.f32 %v5644, %v5398
          %v5649 = vmul.f32 %v5644, %v5399
          %v5650 = vmul.f32 %v5644, %v5400
          %v5651 = vmul.f32 %v5644, %v5401
          %v5652 = vmul.f32 %v5644, %v5402
          %v5653 = vmul.f32 %v5644, %v5403
          %v5654 = vmul.f32 %v5644, %v5404
          %v5655 = vmul.f32 %v5644, %v5405
          %v5656 = vmul.f32 %v5644, %v5406
          %v5657 = vmul.f32 %v5644, %v5407
          %v5658 = vmul.f32 %v5644, %v5408
          %v5659 = vmul.f32 %v5644, %v5409
          %v5660 = vmul.f32 %v5644, %v5410
          %v5661 = vmul.f32 %v5644, %v5411
          %v5662 = vmul.f32 %v5644, %v5412
          %v5681 = vrot.slane %v5645, 1
          %v5682 = vrot.slane %v5646, 1
          %v5683 = vsel %vm626, %v5681, %v5682
          %v5684 = vrot.slane %v5647, 1
          %v5685 = vsel %vm626, %v5682, %v5684
          %v5686 = vrot.slane %v5648, 1
          %v5687 = vsel %vm626, %v5684, %v5686
          %v5688 = vrot.slane %v5649, 1
          %v5689 = vsel %vm626, %v5686, %v5688
          %v5690 = vrot.slane %v5650, 1
          %v5691 = vsel %vm626, %v5688, %v5690
          %v5692 = vrot.slane %v5651, 1
          %v5693 = vsel %vm626, %v5690, %v5692
          %v5694 = vrot.slane %v5652, 1
          %v5695 = vsel %vm626, %v5692, %v5694
          %v5696 = vrot.slane %v5653, 1
          %v5697 = vsel %vm626, %v5694, %v5696
          %v5698 = vrot.slane %v5654, 1
          %v5699 = vrot.slane %v5655, 1
          %v5700 = vsel %vm626, %v5698, %v5699
          %v5701 = vrot.slane %v5656, 1
          %v5702 = vsel %vm626, %v5699, %v5701
          %v5703 = vrot.slane %v5657, 1
          %v5704 = vsel %vm626, %v5701, %v5703
          %v5705 = vrot.slane %v5658, 1
          %v5706 = vsel %vm626, %v5703, %v5705
          %v5707 = vrot.slane %v5659, 1
          %v5708 = vsel %vm626, %v5705, %v5707
          %v5709 = vrot.slane %v5660, 1
          %v5710 = vsel %vm626, %v5707, %v5709
          %v5711 = vrot.slane %v5661, 1
          %v5712 = vsel %vm626, %v5709, %v5711
          %v5713 = vrot.slane %v5662, 1
          %v5714 = vsel %vm626, %v5711, %v5713
          %v5731 = vadd.f32 %v5627, %v5683
          %v5732 = vadd.f32 %v5628, %v5685
          %v5733 = vadd.f32 %v5629, %v5687
          %v5734 = vadd.f32 %v5630, %v5689
          %v5735 = vadd.f32 %v5631, %v5691
          %v5736 = vadd.f32 %v5632, %v5693
          %v5737 = vadd.f32 %v5633, %v5695
          %v5738 = vadd.f32 %v5634, %v5697
          %v5739 = vadd.f32 %v5635, %v5700
          %v5740 = vadd.f32 %v5636, %v5702
          %v5741 = vadd.f32 %v5637, %v5704
          %v5742 = vadd.f32 %v5638, %v5706
          %v5743 = vadd.f32 %v5639, %v5708
          %v5744 = vadd.f32 %v5640, %v5710
          %v5745 = vadd.f32 %v5641, %v5712
          %v5746 = vadd.f32 %v5642, %v5714
          %s5747 = sld [smem:[#allocation4 + $0x31]]
          %v5748 = vstv %s5747
          %v5749 = vmul.f32 %v5748, %v5395
          %v5750 = vmul.f32 %v5748, %v5396
          %v5751 = vmul.f32 %v5748, %v5397
          %v5752 = vmul.f32 %v5748, %v5398
          %v5753 = vmul.f32 %v5748, %v5399
          %v5754 = vmul.f32 %v5748, %v5400
          %v5755 = vmul.f32 %v5748, %v5401
          %v5756 = vmul.f32 %v5748, %v5402
          %v5757 = vmul.f32 %v5748, %v5403
          %v5758 = vmul.f32 %v5748, %v5404
          %v5759 = vmul.f32 %v5748, %v5405
          %v5760 = vmul.f32 %v5748, %v5406
          %v5761 = vmul.f32 %v5748, %v5407
          %v5762 = vmul.f32 %v5748, %v5408
          %v5763 = vmul.f32 %v5748, %v5409
          %v5764 = vmul.f32 %v5748, %v5410
          %v5765 = vmul.f32 %v5748, %v5411
          %v5766 = vmul.f32 %v5748, %v5412
          %v5785 = vrot.slane %v5749, 1
          %v5786 = vrot.slane %v5750, 1
          %v5787 = vsel %vm626, %v5785, %v5786
          %v5788 = vrot.slane %v5751, 1
          %v5789 = vsel %vm626, %v5786, %v5788
          %v5790 = vrot.slane %v5752, 1
          %v5791 = vsel %vm626, %v5788, %v5790
          %v5792 = vrot.slane %v5753, 1
          %v5793 = vsel %vm626, %v5790, %v5792
          %v5794 = vrot.slane %v5754, 1
          %v5795 = vsel %vm626, %v5792, %v5794
          %v5796 = vrot.slane %v5755, 1
          %v5797 = vsel %vm626, %v5794, %v5796
          %v5798 = vrot.slane %v5756, 1
          %v5799 = vsel %vm626, %v5796, %v5798
          %v5800 = vrot.slane %v5757, 1
          %v5801 = vsel %vm626, %v5798, %v5800
          %v5802 = vrot.slane %v5758, 1
          %v5803 = vrot.slane %v5759, 1
          %v5804 = vsel %vm626, %v5802, %v5803
          %v5805 = vrot.slane %v5760, 1
          %v5806 = vsel %vm626, %v5803, %v5805
          %v5807 = vrot.slane %v5761, 1
          %v5808 = vsel %vm626, %v5805, %v5807
          %v5809 = vrot.slane %v5762, 1
          %v5810 = vsel %vm626, %v5807, %v5809
          %v5811 = vrot.slane %v5763, 1
          %v5812 = vsel %vm626, %v5809, %v5811
          %v5813 = vrot.slane %v5764, 1
          %v5814 = vsel %vm626, %v5811, %v5813
          %v5815 = vrot.slane %v5765, 1
          %v5816 = vsel %vm626, %v5813, %v5815
          %v5817 = vrot.slane %v5766, 1
          %v5818 = vsel %vm626, %v5815, %v5817
          %5819 = vrot.lane.b32.xlu0 %v5787, 127
          %v5820 = vpop.permute.xlu0 %5819
          %5821 = vrot.lane.b32.xlu0 %v5789, 127
          %v5822 = vpop.permute.xlu0 %5821
          %5823 = vrot.lane.b32.xlu0 %v5791, 127
          %v5824 = vpop.permute.xlu0 %5823
          %5825 = vrot.lane.b32.xlu0 %v5793, 127
          %v5826 = vpop.permute.xlu0 %5825
          %5827 = vrot.lane.b32.xlu0 %v5795, 127
          %v5828 = vpop.permute.xlu0 %5827
          %5829 = vrot.lane.b32.xlu0 %v5797, 127
          %v5830 = vpop.permute.xlu0 %5829
          %5831 = vrot.lane.b32.xlu0 %v5799, 127
          %v5832 = vpop.permute.xlu0 %5831
          %5833 = vrot.lane.b32.xlu0 %v5801, 127
          %v5834 = vpop.permute.xlu0 %5833
          %5835 = vrot.lane.b32.xlu0 %v5804, 127
          %v5836 = vpop.permute.xlu0 %5835
          %5837 = vrot.lane.b32.xlu0 %v5806, 127
          %v5838 = vpop.permute.xlu0 %5837
          %5839 = vrot.lane.b32.xlu0 %v5808, 127
          %v5840 = vpop.permute.xlu0 %5839
          %5841 = vrot.lane.b32.xlu0 %v5810, 127
          %v5842 = vpop.permute.xlu0 %5841
          %5843 = vrot.lane.b32.xlu0 %v5812, 127
          %v5844 = vpop.permute.xlu0 %5843
          %5845 = vrot.lane.b32.xlu0 %v5814, 127
          %v5846 = vpop.permute.xlu0 %5845
          %5847 = vrot.lane.b32.xlu0 %v5816, 127
          %v5848 = vpop.permute.xlu0 %5847
          %5849 = vrot.lane.b32.xlu0 %v5818, 127
          %v5850 = vpop.permute.xlu0 %5849
          %v5867 = vadd.f32 %v5731, %v5820
          %v5868 = vadd.f32 %v5732, %v5822
          %v5869 = vadd.f32 %v5733, %v5824
          %v5870 = vadd.f32 %v5734, %v5826
          %v5871 = vadd.f32 %v5735, %v5828
          %v5872 = vadd.f32 %v5736, %v5830
          %v5873 = vadd.f32 %v5737, %v5832
          %v5874 = vadd.f32 %v5738, %v5834
          %v5875 = vadd.f32 %v5739, %v5836
          %v5876 = vadd.f32 %v5740, %v5838
          %v5877 = vadd.f32 %v5741, %v5840
          %v5878 = vadd.f32 %v5742, %v5842
          %v5879 = vadd.f32 %v5743, %v5844
          %v5880 = vadd.f32 %v5744, %v5846
          %v5881 = vadd.f32 %v5745, %v5848
          %v5882 = vadd.f32 %v5746, %v5850
          %s5883 = sld [smem:[#allocation4 + $0x32]]
          %v5884 = vstv %s5883
          %v5885 = vmul.f32 %v5884, %v5395
          %v5886 = vmul.f32 %v5884, %v5396
          %v5887 = vmul.f32 %v5884, %v5397
          %v5888 = vmul.f32 %v5884, %v5398
          %v5889 = vmul.f32 %v5884, %v5399
          %v5890 = vmul.f32 %v5884, %v5400
          %v5891 = vmul.f32 %v5884, %v5401
          %v5892 = vmul.f32 %v5884, %v5402
          %v5893 = vmul.f32 %v5884, %v5403
          %v5894 = vmul.f32 %v5884, %v5404
          %v5895 = vmul.f32 %v5884, %v5405
          %v5896 = vmul.f32 %v5884, %v5406
          %v5897 = vmul.f32 %v5884, %v5407
          %v5898 = vmul.f32 %v5884, %v5408
          %v5899 = vmul.f32 %v5884, %v5409
          %v5900 = vmul.f32 %v5884, %v5410
          %v5901 = vmul.f32 %v5884, %v5411
          %v5902 = vmul.f32 %v5884, %v5412
          %v5921 = vrot.slane %v5885, 1
          %v5922 = vrot.slane %v5886, 1
          %v5923 = vsel %vm626, %v5921, %v5922
          %v5924 = vrot.slane %v5887, 1
          %v5925 = vsel %vm626, %v5922, %v5924
          %v5926 = vrot.slane %v5888, 1
          %v5927 = vsel %vm626, %v5924, %v5926
          %v5928 = vrot.slane %v5889, 1
          %v5929 = vsel %vm626, %v5926, %v5928
          %v5930 = vrot.slane %v5890, 1
          %v5931 = vsel %vm626, %v5928, %v5930
          %v5932 = vrot.slane %v5891, 1
          %v5933 = vsel %vm626, %v5930, %v5932
          %v5934 = vrot.slane %v5892, 1
          %v5935 = vsel %vm626, %v5932, %v5934
          %v5936 = vrot.slane %v5893, 1
          %v5937 = vsel %vm626, %v5934, %v5936
          %v5938 = vrot.slane %v5894, 1
          %v5939 = vrot.slane %v5895, 1
          %v5940 = vsel %vm626, %v5938, %v5939
          %v5941 = vrot.slane %v5896, 1
          %v5942 = vsel %vm626, %v5939, %v5941
          %v5943 = vrot.slane %v5897, 1
          %v5944 = vsel %vm626, %v5941, %v5943
          %v5945 = vrot.slane %v5898, 1
          %v5946 = vsel %vm626, %v5943, %v5945
          %v5947 = vrot.slane %v5899, 1
          %v5948 = vsel %vm626, %v5945, %v5947
          %v5949 = vrot.slane %v5900, 1
          %v5950 = vsel %vm626, %v5947, %v5949
          %v5951 = vrot.slane %v5901, 1
          %v5952 = vsel %vm626, %v5949, %v5951
          %v5953 = vrot.slane %v5902, 1
          %v5954 = vsel %vm626, %v5951, %v5953
          %5955 = vrot.lane.b32.xlu0 %v5923, 126
          %v5956 = vpop.permute.xlu0 %5955
          %5957 = vrot.lane.b32.xlu0 %v5925, 126
          %v5958 = vpop.permute.xlu0 %5957
          %5959 = vrot.lane.b32.xlu0 %v5927, 126
          %v5960 = vpop.permute.xlu0 %5959
          %5961 = vrot.lane.b32.xlu0 %v5929, 126
          %v5962 = vpop.permute.xlu0 %5961
          %5963 = vrot.lane.b32.xlu0 %v5931, 126
          %v5964 = vpop.permute.xlu0 %5963
          %5965 = vrot.lane.b32.xlu0 %v5933, 126
          %v5966 = vpop.permute.xlu0 %5965
          %5967 = vrot.lane.b32.xlu0 %v5935, 126
          %v5968 = vpop.permute.xlu0 %5967
          %5969 = vrot.lane.b32.xlu0 %v5937, 126
          %v5970 = vpop.permute.xlu0 %5969
          %5971 = vrot.lane.b32.xlu0 %v5940, 126
          %v5972 = vpop.permute.xlu0 %5971
          %5973 = vrot.lane.b32.xlu0 %v5942, 126
          %v5974 = vpop.permute.xlu0 %5973
          %5975 = vrot.lane.b32.xlu0 %v5944, 126
          %v5976 = vpop.permute.xlu0 %5975
          %5977 = vrot.lane.b32.xlu0 %v5946, 126
          %v5978 = vpop.permute.xlu0 %5977
          %5979 = vrot.lane.b32.xlu0 %v5948, 126
          %v5980 = vpop.permute.xlu0 %5979
          %5981 = vrot.lane.b32.xlu0 %v5950, 126
          %v5982 = vpop.permute.xlu0 %5981
          %5983 = vrot.lane.b32.xlu0 %v5952, 126
          %v5984 = vpop.permute.xlu0 %5983
          %5985 = vrot.lane.b32.xlu0 %v5954, 126
          %v5986 = vpop.permute.xlu0 %5985
          %v6003 = vadd.f32 %v5867, %v5956
          %v6004 = vadd.f32 %v5868, %v5958
          %v6005 = vadd.f32 %v5869, %v5960
          %v6006 = vadd.f32 %v5870, %v5962
          %v6007 = vadd.f32 %v5871, %v5964
          %v6008 = vadd.f32 %v5872, %v5966
          %v6009 = vadd.f32 %v5873, %v5968
          %v6010 = vadd.f32 %v5874, %v5970
          %v6011 = vadd.f32 %v5875, %v5972
          %v6012 = vadd.f32 %v5876, %v5974
          %v6013 = vadd.f32 %v5877, %v5976
          %v6014 = vadd.f32 %v5878, %v5978
          %v6015 = vadd.f32 %v5879, %v5980
          %v6016 = vadd.f32 %v5880, %v5982
          %v6017 = vadd.f32 %v5881, %v5984
          %v6018 = vadd.f32 %v5882, %v5986
          %s6019 = sld [smem:[#allocation4 + $0x33]]
          %v6020 = vstv %s6019
          %v6021 = vmul.f32 %v6020, %v5395
          %v6022 = vmul.f32 %v6020, %v5396
          %v6023 = vmul.f32 %v6020, %v5397
          %v6024 = vmul.f32 %v6020, %v5398
          %v6025 = vmul.f32 %v6020, %v5399
          %v6026 = vmul.f32 %v6020, %v5400
          %v6027 = vmul.f32 %v6020, %v5401
          %v6028 = vmul.f32 %v6020, %v5402
          %v6029 = vmul.f32 %v6020, %v5403
          %v6030 = vmul.f32 %v6020, %v5404
          %v6031 = vmul.f32 %v6020, %v5405
          %v6032 = vmul.f32 %v6020, %v5406
          %v6033 = vmul.f32 %v6020, %v5407
          %v6034 = vmul.f32 %v6020, %v5408
          %v6035 = vmul.f32 %v6020, %v5409
          %v6036 = vmul.f32 %v6020, %v5410
          %v6037 = vmul.f32 %v6020, %v5411
          %v6038 = vmul.f32 %v6020, %v5412
          %v6057 = vrot.slane %v6021, 2
          %v6058 = vrot.slane %v6022, 2
          %v6059 = vsel %vm1003, %v6057, %v6058
          %v6060 = vrot.slane %v6023, 2
          %v6061 = vsel %vm1003, %v6058, %v6060
          %v6062 = vrot.slane %v6024, 2
          %v6063 = vsel %vm1003, %v6060, %v6062
          %v6064 = vrot.slane %v6025, 2
          %v6065 = vsel %vm1003, %v6062, %v6064
          %v6066 = vrot.slane %v6026, 2
          %v6067 = vsel %vm1003, %v6064, %v6066
          %v6068 = vrot.slane %v6027, 2
          %v6069 = vsel %vm1003, %v6066, %v6068
          %v6070 = vrot.slane %v6028, 2
          %v6071 = vsel %vm1003, %v6068, %v6070
          %v6072 = vrot.slane %v6029, 2
          %v6073 = vsel %vm1003, %v6070, %v6072
          %v6074 = vrot.slane %v6030, 2
          %v6075 = vrot.slane %v6031, 2
          %v6076 = vsel %vm1003, %v6074, %v6075
          %v6077 = vrot.slane %v6032, 2
          %v6078 = vsel %vm1003, %v6075, %v6077
          %v6079 = vrot.slane %v6033, 2
          %v6080 = vsel %vm1003, %v6077, %v6079
          %v6081 = vrot.slane %v6034, 2
          %v6082 = vsel %vm1003, %v6079, %v6081
          %v6083 = vrot.slane %v6035, 2
          %v6084 = vsel %vm1003, %v6081, %v6083
          %v6085 = vrot.slane %v6036, 2
          %v6086 = vsel %vm1003, %v6083, %v6085
          %v6087 = vrot.slane %v6037, 2
          %v6088 = vsel %vm1003, %v6085, %v6087
          %v6089 = vrot.slane %v6038, 2
          %v6090 = vsel %vm1003, %v6087, %v6089
          %v6107 = vadd.f32 %v6003, %v6059
          %v6108 = vadd.f32 %v6004, %v6061
          %v6109 = vadd.f32 %v6005, %v6063
          %v6110 = vadd.f32 %v6006, %v6065
          %v6111 = vadd.f32 %v6007, %v6067
          %v6112 = vadd.f32 %v6008, %v6069
          %v6113 = vadd.f32 %v6009, %v6071
          %v6114 = vadd.f32 %v6010, %v6073
          %v6115 = vadd.f32 %v6011, %v6076
          %v6116 = vadd.f32 %v6012, %v6078
          %v6117 = vadd.f32 %v6013, %v6080
          %v6118 = vadd.f32 %v6014, %v6082
          %v6119 = vadd.f32 %v6015, %v6084
          %v6120 = vadd.f32 %v6016, %v6086
          %v6121 = vadd.f32 %v6017, %v6088
          %v6122 = vadd.f32 %v6018, %v6090
          %s6123 = sld [smem:[#allocation4 + $0x34]]
          %v6124 = vstv %s6123
          %v6125 = vmul.f32 %v6124, %v5395
          %v6126 = vmul.f32 %v6124, %v5396
          %v6127 = vmul.f32 %v6124, %v5397
          %v6128 = vmul.f32 %v6124, %v5398
          %v6129 = vmul.f32 %v6124, %v5399
          %v6130 = vmul.f32 %v6124, %v5400
          %v6131 = vmul.f32 %v6124, %v5401
          %v6132 = vmul.f32 %v6124, %v5402
          %v6133 = vmul.f32 %v6124, %v5403
          %v6134 = vmul.f32 %v6124, %v5404
          %v6135 = vmul.f32 %v6124, %v5405
          %v6136 = vmul.f32 %v6124, %v5406
          %v6137 = vmul.f32 %v6124, %v5407
          %v6138 = vmul.f32 %v6124, %v5408
          %v6139 = vmul.f32 %v6124, %v5409
          %v6140 = vmul.f32 %v6124, %v5410
          %v6141 = vmul.f32 %v6124, %v5411
          %v6142 = vmul.f32 %v6124, %v5412
          %v6161 = vrot.slane %v6125, 2
          %v6162 = vrot.slane %v6126, 2
          %v6163 = vsel %vm1003, %v6161, %v6162
          %v6164 = vrot.slane %v6127, 2
          %v6165 = vsel %vm1003, %v6162, %v6164
          %v6166 = vrot.slane %v6128, 2
          %v6167 = vsel %vm1003, %v6164, %v6166
          %v6168 = vrot.slane %v6129, 2
          %v6169 = vsel %vm1003, %v6166, %v6168
          %v6170 = vrot.slane %v6130, 2
          %v6171 = vsel %vm1003, %v6168, %v6170
          %v6172 = vrot.slane %v6131, 2
          %v6173 = vsel %vm1003, %v6170, %v6172
          %v6174 = vrot.slane %v6132, 2
          %v6175 = vsel %vm1003, %v6172, %v6174
          %v6176 = vrot.slane %v6133, 2
          %v6177 = vsel %vm1003, %v6174, %v6176
          %v6178 = vrot.slane %v6134, 2
          %v6179 = vrot.slane %v6135, 2
          %v6180 = vsel %vm1003, %v6178, %v6179
          %v6181 = vrot.slane %v6136, 2
          %v6182 = vsel %vm1003, %v6179, %v6181
          %v6183 = vrot.slane %v6137, 2
          %v6184 = vsel %vm1003, %v6181, %v6183
          %v6185 = vrot.slane %v6138, 2
          %v6186 = vsel %vm1003, %v6183, %v6185
          %v6187 = vrot.slane %v6139, 2
          %v6188 = vsel %vm1003, %v6185, %v6187
          %v6189 = vrot.slane %v6140, 2
          %v6190 = vsel %vm1003, %v6187, %v6189
          %v6191 = vrot.slane %v6141, 2
          %v6192 = vsel %vm1003, %v6189, %v6191
          %v6193 = vrot.slane %v6142, 2
          %v6194 = vsel %vm1003, %v6191, %v6193
          %6195 = vrot.lane.b32.xlu0 %v6163, 127
          %v6196 = vpop.permute.xlu0 %6195
          %6197 = vrot.lane.b32.xlu0 %v6165, 127
          %v6198 = vpop.permute.xlu0 %6197
          %6199 = vrot.lane.b32.xlu0 %v6167, 127
          %v6200 = vpop.permute.xlu0 %6199
          %6201 = vrot.lane.b32.xlu0 %v6169, 127
          %v6202 = vpop.permute.xlu0 %6201
          %6203 = vrot.lane.b32.xlu0 %v6171, 127
          %v6204 = vpop.permute.xlu0 %6203
          %6205 = vrot.lane.b32.xlu0 %v6173, 127
          %v6206 = vpop.permute.xlu0 %6205
          %6207 = vrot.lane.b32.xlu0 %v6175, 127
          %v6208 = vpop.permute.xlu0 %6207
          %6209 = vrot.lane.b32.xlu0 %v6177, 127
          %v6210 = vpop.permute.xlu0 %6209
          %6211 = vrot.lane.b32.xlu0 %v6180, 127
          %v6212 = vpop.permute.xlu0 %6211
          %6213 = vrot.lane.b32.xlu0 %v6182, 127
          %v6214 = vpop.permute.xlu0 %6213
          %6215 = vrot.lane.b32.xlu0 %v6184, 127
          %v6216 = vpop.permute.xlu0 %6215
          %6217 = vrot.lane.b32.xlu0 %v6186, 127
          %v6218 = vpop.permute.xlu0 %6217
          %6219 = vrot.lane.b32.xlu0 %v6188, 127
          %v6220 = vpop.permute.xlu0 %6219
          %6221 = vrot.lane.b32.xlu0 %v6190, 127
          %v6222 = vpop.permute.xlu0 %6221
          %6223 = vrot.lane.b32.xlu0 %v6192, 127
          %v6224 = vpop.permute.xlu0 %6223
          %6225 = vrot.lane.b32.xlu0 %v6194, 127
          %v6226 = vpop.permute.xlu0 %6225
          %v6243 = vadd.f32 %v6107, %v6196
          %v6244 = vadd.f32 %v6108, %v6198
          %v6245 = vadd.f32 %v6109, %v6200
          %v6246 = vadd.f32 %v6110, %v6202
          %v6247 = vadd.f32 %v6111, %v6204
          %v6248 = vadd.f32 %v6112, %v6206
          %v6249 = vadd.f32 %v6113, %v6208
          %v6250 = vadd.f32 %v6114, %v6210
          %v6251 = vadd.f32 %v6115, %v6212
          %v6252 = vadd.f32 %v6116, %v6214
          %v6253 = vadd.f32 %v6117, %v6216
          %v6254 = vadd.f32 %v6118, %v6218
          %v6255 = vadd.f32 %v6119, %v6220
          %v6256 = vadd.f32 %v6120, %v6222
          %v6257 = vadd.f32 %v6121, %v6224
          %v6258 = vadd.f32 %v6122, %v6226
          %s6259 = sld [smem:[#allocation4 + $0x35]]
          %v6260 = vstv %s6259
          %v6261 = vmul.f32 %v6260, %v5395
          %v6262 = vmul.f32 %v6260, %v5396
          %v6263 = vmul.f32 %v6260, %v5397
          %v6264 = vmul.f32 %v6260, %v5398
          %v6265 = vmul.f32 %v6260, %v5399
          %v6266 = vmul.f32 %v6260, %v5400
          %v6267 = vmul.f32 %v6260, %v5401
          %v6268 = vmul.f32 %v6260, %v5402
          %v6269 = vmul.f32 %v6260, %v5403
          %v6270 = vmul.f32 %v6260, %v5404
          %v6271 = vmul.f32 %v6260, %v5405
          %v6272 = vmul.f32 %v6260, %v5406
          %v6273 = vmul.f32 %v6260, %v5407
          %v6274 = vmul.f32 %v6260, %v5408
          %v6275 = vmul.f32 %v6260, %v5409
          %v6276 = vmul.f32 %v6260, %v5410
          %v6277 = vmul.f32 %v6260, %v5411
          %v6278 = vmul.f32 %v6260, %v5412
          %v6297 = vrot.slane %v6261, 2
          %v6298 = vrot.slane %v6262, 2
          %v6299 = vsel %vm1003, %v6297, %v6298
          %v6300 = vrot.slane %v6263, 2
          %v6301 = vsel %vm1003, %v6298, %v6300
          %v6302 = vrot.slane %v6264, 2
          %v6303 = vsel %vm1003, %v6300, %v6302
          %v6304 = vrot.slane %v6265, 2
          %v6305 = vsel %vm1003, %v6302, %v6304
          %v6306 = vrot.slane %v6266, 2
          %v6307 = vsel %vm1003, %v6304, %v6306
          %v6308 = vrot.slane %v6267, 2
          %v6309 = vsel %vm1003, %v6306, %v6308
          %v6310 = vrot.slane %v6268, 2
          %v6311 = vsel %vm1003, %v6308, %v6310
          %v6312 = vrot.slane %v6269, 2
          %v6313 = vsel %vm1003, %v6310, %v6312
          %v6314 = vrot.slane %v6270, 2
          %v6315 = vrot.slane %v6271, 2
          %v6316 = vsel %vm1003, %v6314, %v6315
          %v6317 = vrot.slane %v6272, 2
          %v6318 = vsel %vm1003, %v6315, %v6317
          %v6319 = vrot.slane %v6273, 2
          %v6320 = vsel %vm1003, %v6317, %v6319
          %v6321 = vrot.slane %v6274, 2
          %v6322 = vsel %vm1003, %v6319, %v6321
          %v6323 = vrot.slane %v6275, 2
          %v6324 = vsel %vm1003, %v6321, %v6323
          %v6325 = vrot.slane %v6276, 2
          %v6326 = vsel %vm1003, %v6323, %v6325
          %v6327 = vrot.slane %v6277, 2
          %v6328 = vsel %vm1003, %v6325, %v6327
          %v6329 = vrot.slane %v6278, 2
          %v6330 = vsel %vm1003, %v6327, %v6329
          %6331 = vrot.lane.b32.xlu0 %v6299, 126
          %v6332 = vpop.permute.xlu0 %6331
          %6333 = vrot.lane.b32.xlu0 %v6301, 126
          %v6334 = vpop.permute.xlu0 %6333
          %6335 = vrot.lane.b32.xlu0 %v6303, 126
          %v6336 = vpop.permute.xlu0 %6335
          %6337 = vrot.lane.b32.xlu0 %v6305, 126
          %v6338 = vpop.permute.xlu0 %6337
          %6339 = vrot.lane.b32.xlu0 %v6307, 126
          %v6340 = vpop.permute.xlu0 %6339
          %6341 = vrot.lane.b32.xlu0 %v6309, 126
          %v6342 = vpop.permute.xlu0 %6341
          %6343 = vrot.lane.b32.xlu0 %v6311, 126
          %v6344 = vpop.permute.xlu0 %6343
          %6345 = vrot.lane.b32.xlu0 %v6313, 126
          %v6346 = vpop.permute.xlu0 %6345
          %6347 = vrot.lane.b32.xlu0 %v6316, 126
          %v6348 = vpop.permute.xlu0 %6347
          %6349 = vrot.lane.b32.xlu0 %v6318, 126
          %v6350 = vpop.permute.xlu0 %6349
          %6351 = vrot.lane.b32.xlu0 %v6320, 126
          %v6352 = vpop.permute.xlu0 %6351
          %6353 = vrot.lane.b32.xlu0 %v6322, 126
          %v6354 = vpop.permute.xlu0 %6353
          %6355 = vrot.lane.b32.xlu0 %v6324, 126
          %v6356 = vpop.permute.xlu0 %6355
          %6357 = vrot.lane.b32.xlu0 %v6326, 126
          %v6358 = vpop.permute.xlu0 %6357
          %6359 = vrot.lane.b32.xlu0 %v6328, 126
          %v6360 = vpop.permute.xlu0 %6359
          %6361 = vrot.lane.b32.xlu0 %v6330, 126
          %v6362 = vpop.permute.xlu0 %6361
          %v6379 = vadd.f32 %v6243, %v6332
          %v6380 = vadd.f32 %v6244, %v6334
          %v6381 = vadd.f32 %v6245, %v6336
          %v6382 = vadd.f32 %v6246, %v6338
          %v6383 = vadd.f32 %v6247, %v6340
          %v6384 = vadd.f32 %v6248, %v6342
          %v6385 = vadd.f32 %v6249, %v6344
          %v6386 = vadd.f32 %v6250, %v6346
          %v6387 = vadd.f32 %v6251, %v6348
          %v6388 = vadd.f32 %v6252, %v6350
          %v6389 = vadd.f32 %v6253, %v6352
          %v6390 = vadd.f32 %v6254, %v6354
          %v6391 = vadd.f32 %v6255, %v6356
          %v6392 = vadd.f32 %v6256, %v6358
          %v6393 = vadd.f32 %v6257, %v6360
          %v6394 = vadd.f32 %v6258, %v6362
          %s6395 = sld [smem:[#allocation8 + $0x1]]
          %v6396 = vstv %s6395
          %v6397 = vadd.f32 %v6379, %v6396
          %v6398 = vadd.f32 %v6380, %v6396
          %v6399 = vadd.f32 %v6381, %v6396
          %v6400 = vadd.f32 %v6382, %v6396
          %v6401 = vadd.f32 %v6383, %v6396
          %v6402 = vadd.f32 %v6384, %v6396
          %v6403 = vadd.f32 %v6385, %v6396
          %v6404 = vadd.f32 %v6386, %v6396
          %v6405 = vadd.f32 %v6387, %v6396
          %v6406 = vadd.f32 %v6388, %v6396
          %v6407 = vadd.f32 %v6389, %v6396
          %v6408 = vadd.f32 %v6390, %v6396
          %v6409 = vadd.f32 %v6391, %v6396
          %v6410 = vadd.f32 %v6392, %v6396
          %v6411 = vadd.f32 %v6393, %v6396
          %v6412 = vadd.f32 %v6394, %v6396
          %v6413 = vmax.f32 %v6397, 0.0
          %v6414 = vmax.f32 %v6398, 0.0
          %v6415 = vmax.f32 %v6399, 0.0
          %v6416 = vmax.f32 %v6400, 0.0
          %v6417 = vmax.f32 %v6401, 0.0
          %v6418 = vmax.f32 %v6402, 0.0
          %v6419 = vmax.f32 %v6403, 0.0
          %v6420 = vmax.f32 %v6404, 0.0
          %v6421 = vmax.f32 %v6405, 0.0
          %v6422 = vmax.f32 %v6406, 0.0
          %v6423 = vmax.f32 %v6407, 0.0
          %v6424 = vmax.f32 %v6408, 0.0
          %v6425 = vmax.f32 %v6409, 0.0
          %v6426 = vmax.f32 %v6410, 0.0
          %v6427 = vmax.f32 %v6411, 0.0
          %v6428 = vmax.f32 %v6412, 0.0
          %6429 = vst.msk [vmem:[#allocation2 + $0x40] sm:$0xff] %vm3378, %v6413
          %6430 = vst.msk [vmem:[#allocation2 + $0x48] sm:$0xff] %vm3378, %v6414
          %6431 = vst.msk [vmem:[#allocation2 + $0x50] sm:$0xff] %vm3378, %v6415
          %6432 = vst.msk [vmem:[#allocation2 + $0x58] sm:$0xff] %vm3378, %v6416
          %6433 = vst.msk [vmem:[#allocation2 + $0x60] sm:$0xff] %vm3378, %v6417
          %6434 = vst.msk [vmem:[#allocation2 + $0x68] sm:$0xff] %vm3378, %v6418
          %6435 = vst.msk [vmem:[#allocation2 + $0x70] sm:$0xff] %vm3378, %v6419
          %6436 = vst.msk [vmem:[#allocation2 + $0x78] sm:$0xff] %vm3378, %v6420
          %6437 = vst.msk [vmem:[#allocation2 + $0xc0] sm:$0xff] %vm3378, %v6421
          %6438 = vst.msk [vmem:[#allocation2 + $0xc8] sm:$0xff] %vm3378, %v6422
          %6439 = vst.msk [vmem:[#allocation2 + $0xd0] sm:$0xff] %vm3378, %v6423
          %6440 = vst.msk [vmem:[#allocation2 + $0xd8] sm:$0xff] %vm3378, %v6424
          %6441 = vst.msk [vmem:[#allocation2 + $0xe0] sm:$0xff] %vm3378, %v6425
          %6442 = vst.msk [vmem:[#allocation2 + $0xe8] sm:$0xff] %vm3378, %v6426
          %6443 = vst.msk [vmem:[#allocation2 + $0xf0] sm:$0xff] %vm3378, %v6427
          %6444 = vst.msk [vmem:[#allocation2 + $0xf8] sm:$0xff] %vm3378, %v6428
        $region72: #{cnn_two_forward.1} parent=47 // pred_fallthru
          _
        %s6445 = smul.u32 %s25, 32
        %s6446 = scalar_lea.vmem [#allocation2], %s6445
        %v6447 = vld [vmem:[%s6446] sm:$0xff]
        %v6448 = vld [vmem:[%s6446 + $0x8] sm:$0xff]
        %v6449 = vld [vmem:[%s6446 + $0x10] sm:$0xff]
        %v6450 = vld [vmem:[%s6446 + $0x18] sm:$0xff]
        %v6451 = vld [vmem:[%s6446 + $0x80] sm:$0xff]
        %v6452 = vld [vmem:[%s6446 + $0x88] sm:$0xff]
        %v6453 = vld [vmem:[%s6446 + $0x90] sm:$0xff]
        %v6454 = vld [vmem:[%s6446 + $0x98] sm:$0xff]
        %v6455 = vld [vmem:[#allocation3] sm:$0xf]
        %v6456 = vld [vmem:[%s299] sm:$0xff]
        %v6457 = vld [vmem:[%s299 + $0x8] sm:$0xff]
        %v6458 = vld [vmem:[%s299 + $0x10] sm:$0xff]
        %v6459 = vld [vmem:[%s299 + $0x18] sm:$0xff]
        %v6460 = vld [vmem:[%s299 + $0x20] sm:$0xff]
        %v6461 = vld [vmem:[%s299 + $0x28] sm:$0xff]
        %v6462 = vld [vmem:[%s299 + $0x30] sm:$0xff]
        %v6463 = vld [vmem:[%s299 + $0x38] sm:$0xff]
        %v6464 = vld [vmem:[%s299 + $0x40] sm:$0xff]
        %v6465 = vld [vmem:[%s299 + $0x48] sm:$0xff]
        %v6466 = vld [vmem:[%s299 + $0x50] sm:$0xff]
        %v6467 = vld [vmem:[%s299 + $0x58] sm:$0xff]
        %v6468 = vld [vmem:[%s299 + $0x60] sm:$0xff]
        %v6469 = vld [vmem:[%s299 + $0x68] sm:$0xff]
        %v6470 = vld [vmem:[%s299 + $0x70] sm:$0xff]
        %v6471 = vld [vmem:[%s299 + $0x78] sm:$0xff]
        %v6474 = vrot.slane %v6451, 7
        %vm6475 = vcmask 1041409
        %v6476 = vsel %vm6475, %v6474, %v6447
        %vm6477 = vcmask 523264
        %v6478 = vsel %vm6477, %v6476, 0
        %6480 = vmatprep.subr.mxu0 %v6457
        %6481 = vmatpush1.msra.mxu0 %v6456
        %6482 = vmatprep.subr.mxu0 %v6459
        %6483 = vmatpush1.msra.mxu0 %v6458
        %6484 = vmatprep.subr.mxu0 %v6461
        %6485 = vmatpush1.msra.mxu0 %v6460
        %6486 = vmatprep.subr.mxu0 %v6463
        %6487 = vmatpush1.msra.mxu0 %v6462
        %6488 = vmatprep.subr.mxu0 %v6465
        %6489 = vmatpush1.msra.mxu0 %v6464
        %6490 = vmatprep.subr.mxu0 %v6467
        %6491 = vmatpush1.msra.mxu0 %v6466
        %6492 = vmatprep.subr.mxu0 %v6469
        %6493 = vmatpush1.msra.mxu0 %v6468
        %6494 = vmatprep.subr.mxu0 %v6471
        %6495 = vmatpush1.msra.mxu0 %v6470
        %6496 = vmatprep.subr.mxu0 0.0
        %6497 = vmatpush1.msra.mxu0 0.0
        %6498 = vmatprep.subr.mxu0 0.0
        %6499 = vmatpush1.msra.mxu0 0.0
        %6500 = vmatprep.subr.mxu0 0.0
        %6501 = vmatpush1.msra.mxu0 0.0
        %6502 = vmatprep.subr.mxu0 0.0
        %6503 = vmatpush1.msra.mxu0 0.0
        %6504 = vmatprep.subr.mxu0 0.0
        %6505 = vmatpush1.msra.mxu0 0.0
        %6506 = vmatprep.subr.mxu0 0.0
        %6507 = vmatpush1.msra.mxu0 0.0
        %6508 = vmatprep.subr.mxu0 0.0
        %6509 = vmatpush1.msra.mxu0 0.0
        %6510 = vmatprep.subr.mxu0 0.0
        %6511 = vmatpush1.msra.mxu0 0.0
        %6512 = vmatprep.subr.mxu0 0.0
        %6513 = vmatpush1.msra.mxu0 0.0
        %6514 = vmatprep.subr.mxu0 0.0
        %6515 = vmatpush1.msra.mxu0 0.0
        %6516 = vmatprep.subr.mxu0 0.0
        %6517 = vmatpush1.msra.mxu0 0.0
        %6518 = vmatprep.subr.mxu0 0.0
        %6519 = vmatpush1.msra.mxu0 0.0
        %6520 = vmatprep.subr.mxu0 0.0
        %6521 = vmatpush1.msra.mxu0 0.0
        %6522 = vmatprep.subr.mxu0 0.0
        %6523 = vmatpush1.msra.mxu0 0.0
        %6524 = vmatprep.subr.mxu0 0.0
        %6525 = vmatpush1.msra.mxu0 0.0
        %6526 = vmatprep.subr.mxu0 0.0
        %6527 = vmatpush1.msra.mxu0 0.0
        %6528 = vmatprep.subr.mxu0 0.0
        %6529 = vmatpush1.msra.mxu0 0.0
        %6530 = vmatprep.subr.mxu0 0.0
        %6531 = vmatpush1.msra.mxu0 0.0
        %6532 = vmatprep.subr.mxu0 0.0
        %6533 = vmatpush1.msra.mxu0 0.0
        %6534 = vmatprep.subr.mxu0 0.0
        %6535 = vmatpush1.msra.mxu0 0.0
        %6536 = vmatprep.subr.mxu0 0.0
        %6537 = vmatpush1.msra.mxu0 0.0
        %6538 = vmatprep.subr.mxu0 0.0
        %6539 = vmatpush1.msra.mxu0 0.0
        %6540 = vmatprep.subr.mxu0 0.0
        %6541 = vmatpush1.msra.mxu0 0.0
        %6542 = vmatprep.subr.mxu0 0.0
        %6543 = vmatpush1.msra.mxu0 0.0
        %6544 = vmatprep.mubr.f32.mxu0 0.0
        %6545 = vmatmul.mubr.f32.gmra.mrb[0].mxu0 %v6478
        %v6546 = vpop.f32.mrb[0].mxu0
        %v6547 = vadd.f32 0.0, %v6546
        %v6548 = vpop.f32.mrb[0].mxu0
        %v6549 = vadd.f32 0.0, %v6548
        %6550 = vdwg.mxu0
        %v6553 = vcombine.low %v6547, %v6549
        %v6555 = vunpack.c.l.s4 1983009808
        %v6556 = vunpack.c.0.s8 %v6555
        %v6557 = vlaneseq
        %v6558 = vshrl.u32 %v6557, 7
        %v6559 = vsub.s32 %v6556, %v6558
        %v6560 = vrot.slane %v6553, %v6559
        %v6562 = vadd.f32 %v6455, %v6560
        %s6563 = scalar_lea.vmem %s299, 128 [#allocation10]
        %v6564 = vld [vmem:[%s6563] sm:$0xff]
        %v6565 = vld [vmem:[%s6563 + $0x8] sm:$0xff]
        %v6566 = vld [vmem:[%s6563 + $0x10] sm:$0xff]
        %v6567 = vld [vmem:[%s6563 + $0x18] sm:$0xff]
        %v6568 = vld [vmem:[%s6563 + $0x20] sm:$0xff]
        %v6569 = vld [vmem:[%s6563 + $0x28] sm:$0xff]
        %v6570 = vld [vmem:[%s6563 + $0x30] sm:$0xff]
        %v6571 = vld [vmem:[%s6563 + $0x38] sm:$0xff]
        %v6572 = vld [vmem:[%s6563 + $0x40] sm:$0xff]
        %v6573 = vld [vmem:[%s6563 + $0x48] sm:$0xff]
        %v6574 = vld [vmem:[%s6563 + $0x50] sm:$0xff]
        %v6575 = vld [vmem:[%s6563 + $0x58] sm:$0xff]
        %v6576 = vld [vmem:[%s6563 + $0x60] sm:$0xff]
        %v6577 = vld [vmem:[%s6563 + $0x68] sm:$0xff]
        %v6578 = vld [vmem:[%s6563 + $0x70] sm:$0xff]
        %v6579 = vld [vmem:[%s6563 + $0x78] sm:$0xff]
        %v6580 = vrot.slane %v6447, 1
        %v6581 = vsel %vm6475, %v6451, %v6580
        %v6582 = vsel %vm6477, %v6581, 0
        %6584 = vmatprep.subr.mxu0 %v6565
        %6585 = vmatpush1.msra.mxu0 %v6564
        %6586 = vmatprep.subr.mxu0 %v6567
        %6587 = vmatpush1.msra.mxu0 %v6566
        %6588 = vmatprep.subr.mxu0 %v6569
        %6589 = vmatpush1.msra.mxu0 %v6568
        %6590 = vmatprep.subr.mxu0 %v6571
        %6591 = vmatpush1.msra.mxu0 %v6570
        %6592 = vmatprep.subr.mxu0 %v6573
        %6593 = vmatpush1.msra.mxu0 %v6572
        %6594 = vmatprep.subr.mxu0 %v6575
        %6595 = vmatpush1.msra.mxu0 %v6574
        %6596 = vmatprep.subr.mxu0 %v6577
        %6597 = vmatpush1.msra.mxu0 %v6576
        %6598 = vmatprep.subr.mxu0 %v6579
        %6599 = vmatpush1.msra.mxu0 %v6578
        %6600 = vmatprep.subr.mxu0 0.0
        %6601 = vmatpush1.msra.mxu0 0.0
        %6602 = vmatprep.subr.mxu0 0.0
        %6603 = vmatpush1.msra.mxu0 0.0
        %6604 = vmatprep.subr.mxu0 0.0
        %6605 = vmatpush1.msra.mxu0 0.0
        %6606 = vmatprep.subr.mxu0 0.0
        %6607 = vmatpush1.msra.mxu0 0.0
        %6608 = vmatprep.subr.mxu0 0.0
        %6609 = vmatpush1.msra.mxu0 0.0
        %6610 = vmatprep.subr.mxu0 0.0
        %6611 = vmatpush1.msra.mxu0 0.0
        %6612 = vmatprep.subr.mxu0 0.0
        %6613 = vmatpush1.msra.mxu0 0.0
        %6614 = vmatprep.subr.mxu0 0.0
        %6615 = vmatpush1.msra.mxu0 0.0
        %6616 = vmatprep.subr.mxu0 0.0
        %6617 = vmatpush1.msra.mxu0 0.0
        %6618 = vmatprep.subr.mxu0 0.0
        %6619 = vmatpush1.msra.mxu0 0.0
        %6620 = vmatprep.subr.mxu0 0.0
        %6621 = vmatpush1.msra.mxu0 0.0
        %6622 = vmatprep.subr.mxu0 0.0
        %6623 = vmatpush1.msra.mxu0 0.0
        %6624 = vmatprep.subr.mxu0 0.0
        %6625 = vmatpush1.msra.mxu0 0.0
        %6626 = vmatprep.subr.mxu0 0.0
        %6627 = vmatpush1.msra.mxu0 0.0
        %6628 = vmatprep.subr.mxu0 0.0
        %6629 = vmatpush1.msra.mxu0 0.0
        %6630 = vmatprep.subr.mxu0 0.0
        %6631 = vmatpush1.msra.mxu0 0.0
        %6632 = vmatprep.subr.mxu0 0.0
        %6633 = vmatpush1.msra.mxu0 0.0
        %6634 = vmatprep.subr.mxu0 0.0
        %6635 = vmatpush1.msra.mxu0 0.0
        %6636 = vmatprep.subr.mxu0 0.0
        %6637 = vmatpush1.msra.mxu0 0.0
        %6638 = vmatprep.subr.mxu0 0.0
        %6639 = vmatpush1.msra.mxu0 0.0
        %6640 = vmatprep.subr.mxu0 0.0
        %6641 = vmatpush1.msra.mxu0 0.0
        %6642 = vmatprep.subr.mxu0 0.0
        %6643 = vmatpush1.msra.mxu0 0.0
        %6644 = vmatprep.subr.mxu0 0.0
        %6645 = vmatpush1.msra.mxu0 0.0
        %6646 = vmatprep.subr.mxu0 0.0
        %6647 = vmatpush1.msra.mxu0 0.0
        %6648 = vmatprep.mubr.f32.mxu0 0.0
        %6649 = vmatmul.mubr.f32.gmra.mrb[0].mxu0 %v6582
        %v6650 = vpop.f32.mrb[0].mxu0
        %v6651 = vadd.f32 0.0, %v6650
        %v6652 = vpop.f32.mrb[0].mxu0
        %v6653 = vadd.f32 0.0, %v6652
        %6654 = vdwg.mxu0
        %v6657 = vcombine.low %v6651, %v6653
        %v6659 = vunpack.c.l.s4 1983009808
        %v6660 = vunpack.c.0.s8 %v6659
        %v6661 = vlaneseq
        %v6662 = vshrl.u32 %v6661, 7
        %v6663 = vsub.s32 %v6660, %v6662
        %v6664 = vrot.slane %v6657, %v6663
        %v6666 = vadd.f32 %v6562, %v6664
        %s6667 = scalar_lea.vmem %s299, 256 [#allocation10]
        %v6668 = vld [vmem:[%s6667] sm:$0xff]
        %v6669 = vld [vmem:[%s6667 + $0x8] sm:$0xff]
        %v6670 = vld [vmem:[%s6667 + $0x10] sm:$0xff]
        %v6671 = vld [vmem:[%s6667 + $0x18] sm:$0xff]
        %v6672 = vld [vmem:[%s6667 + $0x20] sm:$0xff]
        %v6673 = vld [vmem:[%s6667 + $0x28] sm:$0xff]
        %v6674 = vld [vmem:[%s6667 + $0x30] sm:$0xff]
        %v6675 = vld [vmem:[%s6667 + $0x38] sm:$0xff]
        %v6676 = vld [vmem:[%s6667 + $0x40] sm:$0xff]
        %v6677 = vld [vmem:[%s6667 + $0x48] sm:$0xff]
        %v6678 = vld [vmem:[%s6667 + $0x50] sm:$0xff]
        %v6679 = vld [vmem:[%s6667 + $0x58] sm:$0xff]
        %v6680 = vld [vmem:[%s6667 + $0x60] sm:$0xff]
        %v6681 = vld [vmem:[%s6667 + $0x68] sm:$0xff]
        %v6682 = vld [vmem:[%s6667 + $0x70] sm:$0xff]
        %v6683 = vld [vmem:[%s6667 + $0x78] sm:$0xff]
        %v6684 = vrot.slane %v6447, 2
        %v6685 = vrot.slane %v6451, 1
        %v6686 = vsel %vm6475, %v6685, %v6684
        %v6687 = vsel %vm6477, %v6686, 0
        %6689 = vmatprep.subr.mxu0 %v6669
        %6690 = vmatpush1.msra.mxu0 %v6668
        %6691 = vmatprep.subr.mxu0 %v6671
        %6692 = vmatpush1.msra.mxu0 %v6670
        %6693 = vmatprep.subr.mxu0 %v6673
        %6694 = vmatpush1.msra.mxu0 %v6672
        %6695 = vmatprep.subr.mxu0 %v6675
        %6696 = vmatpush1.msra.mxu0 %v6674
        %6697 = vmatprep.subr.mxu0 %v6677
        %6698 = vmatpush1.msra.mxu0 %v6676
        %6699 = vmatprep.subr.mxu0 %v6679
        %6700 = vmatpush1.msra.mxu0 %v6678
        %6701 = vmatprep.subr.mxu0 %v6681
        %6702 = vmatpush1.msra.mxu0 %v6680
        %6703 = vmatprep.subr.mxu0 %v6683
        %6704 = vmatpush1.msra.mxu0 %v6682
        %6705 = vmatprep.subr.mxu0 0.0
        %6706 = vmatpush1.msra.mxu0 0.0
        %6707 = vmatprep.subr.mxu0 0.0
        %6708 = vmatpush1.msra.mxu0 0.0
        %6709 = vmatprep.subr.mxu0 0.0
        %6710 = vmatpush1.msra.mxu0 0.0
        %6711 = vmatprep.subr.mxu0 0.0
        %6712 = vmatpush1.msra.mxu0 0.0
        %6713 = vmatprep.subr.mxu0 0.0
        %6714 = vmatpush1.msra.mxu0 0.0
        %6715 = vmatprep.subr.mxu0 0.0
        %6716 = vmatpush1.msra.mxu0 0.0
        %6717 = vmatprep.subr.mxu0 0.0
        %6718 = vmatpush1.msra.mxu0 0.0
        %6719 = vmatprep.subr.mxu0 0.0
        %6720 = vmatpush1.msra.mxu0 0.0
        %6721 = vmatprep.subr.mxu0 0.0
        %6722 = vmatpush1.msra.mxu0 0.0
        %6723 = vmatprep.subr.mxu0 0.0
        %6724 = vmatpush1.msra.mxu0 0.0
        %6725 = vmatprep.subr.mxu0 0.0
        %6726 = vmatpush1.msra.mxu0 0.0
        %6727 = vmatprep.subr.mxu0 0.0
        %6728 = vmatpush1.msra.mxu0 0.0
        %6729 = vmatprep.subr.mxu0 0.0
        %6730 = vmatpush1.msra.mxu0 0.0
        %6731 = vmatprep.subr.mxu0 0.0
        %6732 = vmatpush1.msra.mxu0 0.0
        %6733 = vmatprep.subr.mxu0 0.0
        %6734 = vmatpush1.msra.mxu0 0.0
        %6735 = vmatprep.subr.mxu0 0.0
        %6736 = vmatpush1.msra.mxu0 0.0
        %6737 = vmatprep.subr.mxu0 0.0
        %6738 = vmatpush1.msra.mxu0 0.0
        %6739 = vmatprep.subr.mxu0 0.0
        %6740 = vmatpush1.msra.mxu0 0.0
        %6741 = vmatprep.subr.mxu0 0.0
        %6742 = vmatpush1.msra.mxu0 0.0
        %6743 = vmatprep.subr.mxu0 0.0
        %6744 = vmatpush1.msra.mxu0 0.0
        %6745 = vmatprep.subr.mxu0 0.0
        %6746 = vmatpush1.msra.mxu0 0.0
        %6747 = vmatprep.subr.mxu0 0.0
        %6748 = vmatpush1.msra.mxu0 0.0
        %6749 = vmatprep.subr.mxu0 0.0
        %6750 = vmatpush1.msra.mxu0 0.0
        %6751 = vmatprep.subr.mxu0 0.0
        %6752 = vmatpush1.msra.mxu0 0.0
        %6753 = vmatprep.mubr.f32.mxu0 0.0
        %6754 = vmatmul.mubr.f32.gmra.mrb[0].mxu0 %v6687
        %v6755 = vpop.f32.mrb[0].mxu0
        %v6756 = vadd.f32 0.0, %v6755
        %v6757 = vpop.f32.mrb[0].mxu0
        %v6758 = vadd.f32 0.0, %v6757
        %6759 = vdwg.mxu0
        %v6762 = vcombine.low %v6756, %v6758
        %v6764 = vunpack.c.l.s4 1983009808
        %v6765 = vunpack.c.0.s8 %v6764
        %v6766 = vlaneseq
        %v6767 = vshrl.u32 %v6766, 7
        %v6768 = vsub.s32 %v6765, %v6767
        %v6769 = vrot.slane %v6762, %v6768
        %v6771 = vadd.f32 %v6666, %v6769
        %s6772 = scalar_lea.vmem %s299, 384 [#allocation10]
        %v6773 = vld [vmem:[%s6772] sm:$0xff]
        %v6774 = vld [vmem:[%s6772 + $0x8] sm:$0xff]
        %v6775 = vld [vmem:[%s6772 + $0x10] sm:$0xff]
        %v6776 = vld [vmem:[%s6772 + $0x18] sm:$0xff]
        %v6777 = vld [vmem:[%s6772 + $0x20] sm:$0xff]
        %v6778 = vld [vmem:[%s6772 + $0x28] sm:$0xff]
        %v6779 = vld [vmem:[%s6772 + $0x30] sm:$0xff]
        %v6780 = vld [vmem:[%s6772 + $0x38] sm:$0xff]
        %v6781 = vld [vmem:[%s6772 + $0x40] sm:$0xff]
        %v6782 = vld [vmem:[%s6772 + $0x48] sm:$0xff]
        %v6783 = vld [vmem:[%s6772 + $0x50] sm:$0xff]
        %v6784 = vld [vmem:[%s6772 + $0x58] sm:$0xff]
        %v6785 = vld [vmem:[%s6772 + $0x60] sm:$0xff]
        %v6786 = vld [vmem:[%s6772 + $0x68] sm:$0xff]
        %v6787 = vld [vmem:[%s6772 + $0x70] sm:$0xff]
        %v6788 = vld [vmem:[%s6772 + $0x78] sm:$0xff]
        %v6789 = vrot.slane %v6447, 3
        %v6790 = vrot.slane %v6451, 2
        %v6791 = vsel %vm6475, %v6790, %v6789
        %v6792 = vsel %vm6477, %v6791, 0
        %6794 = vmatprep.subr.mxu0 %v6774
        %6795 = vmatpush1.msra.mxu0 %v6773
        %6796 = vmatprep.subr.mxu0 %v6776
        %6797 = vmatpush1.msra.mxu0 %v6775
        %6798 = vmatprep.subr.mxu0 %v6778
        %6799 = vmatpush1.msra.mxu0 %v6777
        %6800 = vmatprep.subr.mxu0 %v6780
        %6801 = vmatpush1.msra.mxu0 %v6779
        %6802 = vmatprep.subr.mxu0 %v6782
        %6803 = vmatpush1.msra.mxu0 %v6781
        %6804 = vmatprep.subr.mxu0 %v6784
        %6805 = vmatpush1.msra.mxu0 %v6783
        %6806 = vmatprep.subr.mxu0 %v6786
        %6807 = vmatpush1.msra.mxu0 %v6785
        %6808 = vmatprep.subr.mxu0 %v6788
        %6809 = vmatpush1.msra.mxu0 %v6787
        %6810 = vmatprep.subr.mxu0 0.0
        %6811 = vmatpush1.msra.mxu0 0.0
        %6812 = vmatprep.subr.mxu0 0.0
        %6813 = vmatpush1.msra.mxu0 0.0
        %6814 = vmatprep.subr.mxu0 0.0
        %6815 = vmatpush1.msra.mxu0 0.0
        %6816 = vmatprep.subr.mxu0 0.0
        %6817 = vmatpush1.msra.mxu0 0.0
        %6818 = vmatprep.subr.mxu0 0.0
        %6819 = vmatpush1.msra.mxu0 0.0
        %6820 = vmatprep.subr.mxu0 0.0
        %6821 = vmatpush1.msra.mxu0 0.0
        %6822 = vmatprep.subr.mxu0 0.0
        %6823 = vmatpush1.msra.mxu0 0.0
        %6824 = vmatprep.subr.mxu0 0.0
        %6825 = vmatpush1.msra.mxu0 0.0
        %6826 = vmatprep.subr.mxu0 0.0
        %6827 = vmatpush1.msra.mxu0 0.0
        %6828 = vmatprep.subr.mxu0 0.0
        %6829 = vmatpush1.msra.mxu0 0.0
        %6830 = vmatprep.subr.mxu0 0.0
        %6831 = vmatpush1.msra.mxu0 0.0
        %6832 = vmatprep.subr.mxu0 0.0
        %6833 = vmatpush1.msra.mxu0 0.0
        %6834 = vmatprep.subr.mxu0 0.0
        %6835 = vmatpush1.msra.mxu0 0.0
        %6836 = vmatprep.subr.mxu0 0.0
        %6837 = vmatpush1.msra.mxu0 0.0
        %6838 = vmatprep.subr.mxu0 0.0
        %6839 = vmatpush1.msra.mxu0 0.0
        %6840 = vmatprep.subr.mxu0 0.0
        %6841 = vmatpush1.msra.mxu0 0.0
        %6842 = vmatprep.subr.mxu0 0.0
        %6843 = vmatpush1.msra.mxu0 0.0
        %6844 = vmatprep.subr.mxu0 0.0
        %6845 = vmatpush1.msra.mxu0 0.0
        %6846 = vmatprep.subr.mxu0 0.0
        %6847 = vmatpush1.msra.mxu0 0.0
        %6848 = vmatprep.subr.mxu0 0.0
        %6849 = vmatpush1.msra.mxu0 0.0
        %6850 = vmatprep.subr.mxu0 0.0
        %6851 = vmatpush1.msra.mxu0 0.0
        %6852 = vmatprep.subr.mxu0 0.0
        %6853 = vmatpush1.msra.mxu0 0.0
        %6854 = vmatprep.subr.mxu0 0.0
        %6855 = vmatpush1.msra.mxu0 0.0
        %6856 = vmatprep.subr.mxu0 0.0
        %6857 = vmatpush1.msra.mxu0 0.0
        %6858 = vmatprep.mubr.f32.mxu0 0.0
        %6859 = vmatmul.mubr.f32.gmra.mrb[0].mxu0 %v6792
        %v6860 = vpop.f32.mrb[0].mxu0
        %v6861 = vadd.f32 0.0, %v6860
        %v6862 = vpop.f32.mrb[0].mxu0
        %v6863 = vadd.f32 0.0, %v6862
        %6864 = vdwg.mxu0
        %v6867 = vcombine.low %v6861, %v6863
        %v6869 = vunpack.c.l.s4 1983009808
        %v6870 = vunpack.c.0.s8 %v6869
        %v6871 = vlaneseq
        %v6872 = vshrl.u32 %v6871, 7
        %v6873 = vsub.s32 %v6870, %v6872
        %v6874 = vrot.slane %v6867, %v6873
        %v6876 = vadd.f32 %v6771, %v6874
        %s6877 = scalar_lea.vmem %s299, 512 [#allocation10]
        %v6878 = vld [vmem:[%s6877] sm:$0xff]
        %v6879 = vld [vmem:[%s6877 + $0x8] sm:$0xff]
        %v6880 = vld [vmem:[%s6877 + $0x10] sm:$0xff]
        %v6881 = vld [vmem:[%s6877 + $0x18] sm:$0xff]
        %v6882 = vld [vmem:[%s6877 + $0x20] sm:$0xff]
        %v6883 = vld [vmem:[%s6877 + $0x28] sm:$0xff]
        %v6884 = vld [vmem:[%s6877 + $0x30] sm:$0xff]
        %v6885 = vld [vmem:[%s6877 + $0x38] sm:$0xff]
        %v6886 = vld [vmem:[%s6877 + $0x40] sm:$0xff]
        %v6887 = vld [vmem:[%s6877 + $0x48] sm:$0xff]
        %v6888 = vld [vmem:[%s6877 + $0x50] sm:$0xff]
        %v6889 = vld [vmem:[%s6877 + $0x58] sm:$0xff]
        %v6890 = vld [vmem:[%s6877 + $0x60] sm:$0xff]
        %v6891 = vld [vmem:[%s6877 + $0x68] sm:$0xff]
        %v6892 = vld [vmem:[%s6877 + $0x70] sm:$0xff]
        %v6893 = vld [vmem:[%s6877 + $0x78] sm:$0xff]
        %v6894 = vrot.slane %v6447, 4
        %v6895 = vrot.slane %v6451, 3
        %v6896 = vsel %vm6475, %v6895, %v6894
        %v6897 = vsel %vm6477, %v6896, 0
        %6899 = vmatprep.subr.mxu0 %v6879
        %6900 = vmatpush1.msra.mxu0 %v6878
        %6901 = vmatprep.subr.mxu0 %v6881
        %6902 = vmatpush1.msra.mxu0 %v6880
        %6903 = vmatprep.subr.mxu0 %v6883
        %6904 = vmatpush1.msra.mxu0 %v6882
        %6905 = vmatprep.subr.mxu0 %v6885
        %6906 = vmatpush1.msra.mxu0 %v6884
        %6907 = vmatprep.subr.mxu0 %v6887
        %6908 = vmatpush1.msra.mxu0 %v6886
        %6909 = vmatprep.subr.mxu0 %v6889
        %6910 = vmatpush1.msra.mxu0 %v6888
        %6911 = vmatprep.subr.mxu0 %v6891
        %6912 = vmatpush1.msra.mxu0 %v6890
        %6913 = vmatprep.subr.mxu0 %v6893
        %6914 = vmatpush1.msra.mxu0 %v6892
        %6915 = vmatprep.subr.mxu0 0.0
        %6916 = vmatpush1.msra.mxu0 0.0
        %6917 = vmatprep.subr.mxu0 0.0
        %6918 = vmatpush1.msra.mxu0 0.0
        %6919 = vmatprep.subr.mxu0 0.0
        %6920 = vmatpush1.msra.mxu0 0.0
        %6921 = vmatprep.subr.mxu0 0.0
        %6922 = vmatpush1.msra.mxu0 0.0
        %6923 = vmatprep.subr.mxu0 0.0
        %6924 = vmatpush1.msra.mxu0 0.0
        %6925 = vmatprep.subr.mxu0 0.0
        %6926 = vmatpush1.msra.mxu0 0.0
        %6927 = vmatprep.subr.mxu0 0.0
        %6928 = vmatpush1.msra.mxu0 0.0
        %6929 = vmatprep.subr.mxu0 0.0
        %6930 = vmatpush1.msra.mxu0 0.0
        %6931 = vmatprep.subr.mxu0 0.0
        %6932 = vmatpush1.msra.mxu0 0.0
        %6933 = vmatprep.subr.mxu0 0.0
        %6934 = vmatpush1.msra.mxu0 0.0
        %6935 = vmatprep.subr.mxu0 0.0
        %6936 = vmatpush1.msra.mxu0 0.0
        %6937 = vmatprep.subr.mxu0 0.0
        %6938 = vmatpush1.msra.mxu0 0.0
        %6939 = vmatprep.subr.mxu0 0.0
        %6940 = vmatpush1.msra.mxu0 0.0
        %6941 = vmatprep.subr.mxu0 0.0
        %6942 = vmatpush1.msra.mxu0 0.0
        %6943 = vmatprep.subr.mxu0 0.0
        %6944 = vmatpush1.msra.mxu0 0.0
        %6945 = vmatprep.subr.mxu0 0.0
        %6946 = vmatpush1.msra.mxu0 0.0
        %6947 = vmatprep.subr.mxu0 0.0
        %6948 = vmatpush1.msra.mxu0 0.0
        %6949 = vmatprep.subr.mxu0 0.0
        %6950 = vmatpush1.msra.mxu0 0.0
        %6951 = vmatprep.subr.mxu0 0.0
        %6952 = vmatpush1.msra.mxu0 0.0
        %6953 = vmatprep.subr.mxu0 0.0
        %6954 = vmatpush1.msra.mxu0 0.0
        %6955 = vmatprep.subr.mxu0 0.0
        %6956 = vmatpush1.msra.mxu0 0.0
        %6957 = vmatprep.subr.mxu0 0.0
        %6958 = vmatpush1.msra.mxu0 0.0
        %6959 = vmatprep.subr.mxu0 0.0
        %6960 = vmatpush1.msra.mxu0 0.0
        %6961 = vmatprep.subr.mxu0 0.0
        %6962 = vmatpush1.msra.mxu0 0.0
        %6963 = vmatprep.mubr.f32.mxu0 0.0
        %6964 = vmatmul.mubr.f32.gmra.mrb[0].mxu0 %v6897
        %v6965 = vpop.f32.mrb[0].mxu0
        %v6966 = vadd.f32 0.0, %v6965
        %v6967 = vpop.f32.mrb[0].mxu0
        %v6968 = vadd.f32 0.0, %v6967
        %6969 = vdwg.mxu0
        %v6972 = vcombine.low %v6966, %v6968
        %v6974 = vunpack.c.l.s4 1983009808
        %v6975 = vunpack.c.0.s8 %v6974
        %v6976 = vlaneseq
        %v6977 = vshrl.u32 %v6976, 7
        %v6978 = vsub.s32 %v6975, %v6977
        %v6979 = vrot.slane %v6972, %v6978
        %v6981 = vadd.f32 %v6876, %v6979
        %s6982 = scalar_lea.vmem %s299, 640 [#allocation10]
        %v6983 = vld [vmem:[%s6982] sm:$0xff]
        %v6984 = vld [vmem:[%s6982 + $0x8] sm:$0xff]
        %v6985 = vld [vmem:[%s6982 + $0x10] sm:$0xff]
        %v6986 = vld [vmem:[%s6982 + $0x18] sm:$0xff]
        %v6987 = vld [vmem:[%s6982 + $0x20] sm:$0xff]
        %v6988 = vld [vmem:[%s6982 + $0x28] sm:$0xff]
        %v6989 = vld [vmem:[%s6982 + $0x30] sm:$0xff]
        %v6990 = vld [vmem:[%s6982 + $0x38] sm:$0xff]
        %v6991 = vld [vmem:[%s6982 + $0x40] sm:$0xff]
        %v6992 = vld [vmem:[%s6982 + $0x48] sm:$0xff]
        %v6993 = vld [vmem:[%s6982 + $0x50] sm:$0xff]
        %v6994 = vld [vmem:[%s6982 + $0x58] sm:$0xff]
        %v6995 = vld [vmem:[%s6982 + $0x60] sm:$0xff]
        %v6996 = vld [vmem:[%s6982 + $0x68] sm:$0xff]
        %v6997 = vld [vmem:[%s6982 + $0x70] sm:$0xff]
        %v6998 = vld [vmem:[%s6982 + $0x78] sm:$0xff]
        %v6999 = vrot.slane %v6447, 5
        %v7000 = vrot.slane %v6451, 4
        %v7001 = vsel %vm6475, %v7000, %v6999
        %v7002 = vsel %vm6477, %v7001, 0
        %7004 = vmatprep.subr.mxu0 %v6984
        %7005 = vmatpush1.msra.mxu0 %v6983
        %7006 = vmatprep.subr.mxu0 %v6986
        %7007 = vmatpush1.msra.mxu0 %v6985
        %7008 = vmatprep.subr.mxu0 %v6988
        %7009 = vmatpush1.msra.mxu0 %v6987
        %7010 = vmatprep.subr.mxu0 %v6990
        %7011 = vmatpush1.msra.mxu0 %v6989
        %7012 = vmatprep.subr.mxu0 %v6992
        %7013 = vmatpush1.msra.mxu0 %v6991
        %7014 = vmatprep.subr.mxu0 %v6994
        %7015 = vmatpush1.msra.mxu0 %v6993
        %7016 = vmatprep.subr.mxu0 %v6996
        %7017 = vmatpush1.msra.mxu0 %v6995
        %7018 = vmatprep.subr.mxu0 %v6998
        %7019 = vmatpush1.msra.mxu0 %v6997
        %7020 = vmatprep.subr.mxu0 0.0
        %7021 = vmatpush1.msra.mxu0 0.0
        %7022 = vmatprep.subr.mxu0 0.0
        %7023 = vmatpush1.msra.mxu0 0.0
        %7024 = vmatprep.subr.mxu0 0.0
        %7025 = vmatpush1.msra.mxu0 0.0
        %7026 = vmatprep.subr.mxu0 0.0
        %7027 = vmatpush1.msra.mxu0 0.0
        %7028 = vmatprep.subr.mxu0 0.0
        %7029 = vmatpush1.msra.mxu0 0.0
        %7030 = vmatprep.subr.mxu0 0.0
        %7031 = vmatpush1.msra.mxu0 0.0
        %7032 = vmatprep.subr.mxu0 0.0
        %7033 = vmatpush1.msra.mxu0 0.0
        %7034 = vmatprep.subr.mxu0 0.0
        %7035 = vmatpush1.msra.mxu0 0.0
        %7036 = vmatprep.subr.mxu0 0.0
        %7037 = vmatpush1.msra.mxu0 0.0
        %7038 = vmatprep.subr.mxu0 0.0
        %7039 = vmatpush1.msra.mxu0 0.0
        %7040 = vmatprep.subr.mxu0 0.0
        %7041 = vmatpush1.msra.mxu0 0.0
        %7042 = vmatprep.subr.mxu0 0.0
        %7043 = vmatpush1.msra.mxu0 0.0
        %7044 = vmatprep.subr.mxu0 0.0
        %7045 = vmatpush1.msra.mxu0 0.0
        %7046 = vmatprep.subr.mxu0 0.0
        %7047 = vmatpush1.msra.mxu0 0.0
        %7048 = vmatprep.subr.mxu0 0.0
        %7049 = vmatpush1.msra.mxu0 0.0
        %7050 = vmatprep.subr.mxu0 0.0
        %7051 = vmatpush1.msra.mxu0 0.0
        %7052 = vmatprep.subr.mxu0 0.0
        %7053 = vmatpush1.msra.mxu0 0.0
        %7054 = vmatprep.subr.mxu0 0.0
        %7055 = vmatpush1.msra.mxu0 0.0
        %7056 = vmatprep.subr.mxu0 0.0
        %7057 = vmatpush1.msra.mxu0 0.0
        %7058 = vmatprep.subr.mxu0 0.0
        %7059 = vmatpush1.msra.mxu0 0.0
        %7060 = vmatprep.subr.mxu0 0.0
        %7061 = vmatpush1.msra.mxu0 0.0
        %7062 = vmatprep.subr.mxu0 0.0
        %7063 = vmatpush1.msra.mxu0 0.0
        %7064 = vmatprep.subr.mxu0 0.0
        %7065 = vmatpush1.msra.mxu0 0.0
        %7066 = vmatprep.subr.mxu0 0.0
        %7067 = vmatpush1.msra.mxu0 0.0
        %7068 = vmatprep.mubr.f32.mxu0 0.0
        %7069 = vmatmul.mubr.f32.gmra.mrb[0].mxu0 %v7002
        %v7070 = vpop.f32.mrb[0].mxu0
        %v7071 = vadd.f32 0.0, %v7070
        %v7072 = vpop.f32.mrb[0].mxu0
        %v7073 = vadd.f32 0.0, %v7072
        %7074 = vdwg.mxu0
        %v7077 = vcombine.low %v7071, %v7073
        %v7079 = vunpack.c.l.s4 1983009808
        %v7080 = vunpack.c.0.s8 %v7079
        %v7081 = vlaneseq
        %v7082 = vshrl.u32 %v7081, 7
        %v7083 = vsub.s32 %v7080, %v7082
        %v7084 = vrot.slane %v7077, %v7083
        %v7086 = vadd.f32 %v6981, %v7084
        %s7087 = scalar_lea.vmem %s299, 768 [#allocation10]
        %v7088 = vld [vmem:[%s7087] sm:$0xff]
        %v7089 = vld [vmem:[%s7087 + $0x8] sm:$0xff]
        %v7090 = vld [vmem:[%s7087 + $0x10] sm:$0xff]
        %v7091 = vld [vmem:[%s7087 + $0x18] sm:$0xff]
        %v7092 = vld [vmem:[%s7087 + $0x20] sm:$0xff]
        %v7093 = vld [vmem:[%s7087 + $0x28] sm:$0xff]
        %v7094 = vld [vmem:[%s7087 + $0x30] sm:$0xff]
        %v7095 = vld [vmem:[%s7087 + $0x38] sm:$0xff]
        %v7096 = vld [vmem:[%s7087 + $0x40] sm:$0xff]
        %v7097 = vld [vmem:[%s7087 + $0x48] sm:$0xff]
        %v7098 = vld [vmem:[%s7087 + $0x50] sm:$0xff]
        %v7099 = vld [vmem:[%s7087 + $0x58] sm:$0xff]
        %v7100 = vld [vmem:[%s7087 + $0x60] sm:$0xff]
        %v7101 = vld [vmem:[%s7087 + $0x68] sm:$0xff]
        %v7102 = vld [vmem:[%s7087 + $0x70] sm:$0xff]
        %v7103 = vld [vmem:[%s7087 + $0x78] sm:$0xff]
        %v7104 = vrot.slane %v6447, 6
        %v7105 = vrot.slane %v6451, 5
        %v7106 = vsel %vm6475, %v7105, %v7104
        %v7107 = vsel %vm6477, %v7106, 0
        %7109 = vmatprep.subr.mxu0 %v7089
        %7110 = vmatpush1.msra.mxu0 %v7088
        %7111 = vmatprep.subr.mxu0 %v7091
        %7112 = vmatpush1.msra.mxu0 %v7090
        %7113 = vmatprep.subr.mxu0 %v7093
        %7114 = vmatpush1.msra.mxu0 %v7092
        %7115 = vmatprep.subr.mxu0 %v7095
        %7116 = vmatpush1.msra.mxu0 %v7094
        %7117 = vmatprep.subr.mxu0 %v7097
        %7118 = vmatpush1.msra.mxu0 %v7096
        %7119 = vmatprep.subr.mxu0 %v7099
        %7120 = vmatpush1.msra.mxu0 %v7098
        %7121 = vmatprep.subr.mxu0 %v7101
        %7122 = vmatpush1.msra.mxu0 %v7100
        %7123 = vmatprep.subr.mxu0 %v7103
        %7124 = vmatpush1.msra.mxu0 %v7102
        %7125 = vmatprep.subr.mxu0 0.0
        %7126 = vmatpush1.msra.mxu0 0.0
        %7127 = vmatprep.subr.mxu0 0.0
        %7128 = vmatpush1.msra.mxu0 0.0
        %7129 = vmatprep.subr.mxu0 0.0
        %7130 = vmatpush1.msra.mxu0 0.0
        %7131 = vmatprep.subr.mxu0 0.0
        %7132 = vmatpush1.msra.mxu0 0.0
        %7133 = vmatprep.subr.mxu0 0.0
        %7134 = vmatpush1.msra.mxu0 0.0
        %7135 = vmatprep.subr.mxu0 0.0
        %7136 = vmatpush1.msra.mxu0 0.0
        %7137 = vmatprep.subr.mxu0 0.0
        %7138 = vmatpush1.msra.mxu0 0.0
        %7139 = vmatprep.subr.mxu0 0.0
        %7140 = vmatpush1.msra.mxu0 0.0
        %7141 = vmatprep.subr.mxu0 0.0
        %7142 = vmatpush1.msra.mxu0 0.0
        %7143 = vmatprep.subr.mxu0 0.0
        %7144 = vmatpush1.msra.mxu0 0.0
        %7145 = vmatprep.subr.mxu0 0.0
        %7146 = vmatpush1.msra.mxu0 0.0
        %7147 = vmatprep.subr.mxu0 0.0
        %7148 = vmatpush1.msra.mxu0 0.0
        %7149 = vmatprep.subr.mxu0 0.0
        %7150 = vmatpush1.msra.mxu0 0.0
        %7151 = vmatprep.subr.mxu0 0.0
        %7152 = vmatpush1.msra.mxu0 0.0
        %7153 = vmatprep.subr.mxu0 0.0
        %7154 = vmatpush1.msra.mxu0 0.0
        %7155 = vmatprep.subr.mxu0 0.0
        %7156 = vmatpush1.msra.mxu0 0.0
        %7157 = vmatprep.subr.mxu0 0.0
        %7158 = vmatpush1.msra.mxu0 0.0
        %7159 = vmatprep.subr.mxu0 0.0
        %7160 = vmatpush1.msra.mxu0 0.0
        %7161 = vmatprep.subr.mxu0 0.0
        %7162 = vmatpush1.msra.mxu0 0.0
        %7163 = vmatprep.subr.mxu0 0.0
        %7164 = vmatpush1.msra.mxu0 0.0
        %7165 = vmatprep.subr.mxu0 0.0
        %7166 = vmatpush1.msra.mxu0 0.0
        %7167 = vmatprep.subr.mxu0 0.0
        %7168 = vmatpush1.msra.mxu0 0.0
        %7169 = vmatprep.subr.mxu0 0.0
        %7170 = vmatpush1.msra.mxu0 0.0
        %7171 = vmatprep.subr.mxu0 0.0
        %7172 = vmatpush1.msra.mxu0 0.0
        %7173 = vmatprep.mubr.f32.mxu0 0.0
        %7174 = vmatmul.mubr.f32.gmra.mrb[0].mxu0 %v7107
        %v7175 = vpop.f32.mrb[0].mxu0
        %v7176 = vadd.f32 0.0, %v7175
        %v7177 = vpop.f32.mrb[0].mxu0
        %v7178 = vadd.f32 0.0, %v7177
        %7179 = vdwg.mxu0
        %v7182 = vcombine.low %v7176, %v7178
        %v7184 = vunpack.c.l.s4 1983009808
        %v7185 = vunpack.c.0.s8 %v7184
        %v7186 = vlaneseq
        %v7187 = vshrl.u32 %v7186, 7
        %v7188 = vsub.s32 %v7185, %v7187
        %v7189 = vrot.slane %v7182, %v7188
        %v7191 = vadd.f32 %v7086, %v7189
        %s7192 = scalar_lea.vmem %s299, 896 [#allocation10]
        %v7193 = vld [vmem:[%s7192] sm:$0xff]
        %v7194 = vld [vmem:[%s7192 + $0x8] sm:$0xff]
        %v7195 = vld [vmem:[%s7192 + $0x10] sm:$0xff]
        %v7196 = vld [vmem:[%s7192 + $0x18] sm:$0xff]
        %v7197 = vld [vmem:[%s7192 + $0x20] sm:$0xff]
        %v7198 = vld [vmem:[%s7192 + $0x28] sm:$0xff]
        %v7199 = vld [vmem:[%s7192 + $0x30] sm:$0xff]
        %v7200 = vld [vmem:[%s7192 + $0x38] sm:$0xff]
        %v7201 = vld [vmem:[%s7192 + $0x40] sm:$0xff]
        %v7202 = vld [vmem:[%s7192 + $0x48] sm:$0xff]
        %v7203 = vld [vmem:[%s7192 + $0x50] sm:$0xff]
        %v7204 = vld [vmem:[%s7192 + $0x58] sm:$0xff]
        %v7205 = vld [vmem:[%s7192 + $0x60] sm:$0xff]
        %v7206 = vld [vmem:[%s7192 + $0x68] sm:$0xff]
        %v7207 = vld [vmem:[%s7192 + $0x70] sm:$0xff]
        %v7208 = vld [vmem:[%s7192 + $0x78] sm:$0xff]
        %v7209 = vrot.slane %v6447, 7
        %v7210 = vrot.slane %v6451, 6
        %v7211 = vsel %vm6475, %v7210, %v7209
        %v7212 = vsel %vm6477, %v7211, 0
        %7214 = vmatprep.subr.mxu0 %v7194
        %7215 = vmatpush1.msra.mxu0 %v7193
        %7216 = vmatprep.subr.mxu0 %v7196
        %7217 = vmatpush1.msra.mxu0 %v7195
        %7218 = vmatprep.subr.mxu0 %v7198
        %7219 = vmatpush1.msra.mxu0 %v7197
        %7220 = vmatprep.subr.mxu0 %v7200
        %7221 = vmatpush1.msra.mxu0 %v7199
        %7222 = vmatprep.subr.mxu0 %v7202
        %7223 = vmatpush1.msra.mxu0 %v7201
        %7224 = vmatprep.subr.mxu0 %v7204
        %7225 = vmatpush1.msra.mxu0 %v7203
        %7226 = vmatprep.subr.mxu0 %v7206
        %7227 = vmatpush1.msra.mxu0 %v7205
        %7228 = vmatprep.subr.mxu0 %v7208
        %7229 = vmatpush1.msra.mxu0 %v7207
        %7230 = vmatprep.subr.mxu0 0.0
        %7231 = vmatpush1.msra.mxu0 0.0
        %7232 = vmatprep.subr.mxu0 0.0
        %7233 = vmatpush1.msra.mxu0 0.0
        %7234 = vmatprep.subr.mxu0 0.0
        %7235 = vmatpush1.msra.mxu0 0.0
        %7236 = vmatprep.subr.mxu0 0.0
        %7237 = vmatpush1.msra.mxu0 0.0
        %7238 = vmatprep.subr.mxu0 0.0
        %7239 = vmatpush1.msra.mxu0 0.0
        %7240 = vmatprep.subr.mxu0 0.0
        %7241 = vmatpush1.msra.mxu0 0.0
        %7242 = vmatprep.subr.mxu0 0.0
        %7243 = vmatpush1.msra.mxu0 0.0
        %7244 = vmatprep.subr.mxu0 0.0
        %7245 = vmatpush1.msra.mxu0 0.0
        %7246 = vmatprep.subr.mxu0 0.0
        %7247 = vmatpush1.msra.mxu0 0.0
        %7248 = vmatprep.subr.mxu0 0.0
        %7249 = vmatpush1.msra.mxu0 0.0
        %7250 = vmatprep.subr.mxu0 0.0
        %7251 = vmatpush1.msra.mxu0 0.0
        %7252 = vmatprep.subr.mxu0 0.0
        %7253 = vmatpush1.msra.mxu0 0.0
        %7254 = vmatprep.subr.mxu0 0.0
        %7255 = vmatpush1.msra.mxu0 0.0
        %7256 = vmatprep.subr.mxu0 0.0
        %7257 = vmatpush1.msra.mxu0 0.0
        %7258 = vmatprep.subr.mxu0 0.0
        %7259 = vmatpush1.msra.mxu0 0.0
        %7260 = vmatprep.subr.mxu0 0.0
        %7261 = vmatpush1.msra.mxu0 0.0
        %7262 = vmatprep.subr.mxu0 0.0
        %7263 = vmatpush1.msra.mxu0 0.0
        %7264 = vmatprep.subr.mxu0 0.0
        %7265 = vmatpush1.msra.mxu0 0.0
        %7266 = vmatprep.subr.mxu0 0.0
        %7267 = vmatpush1.msra.mxu0 0.0
        %7268 = vmatprep.subr.mxu0 0.0
        %7269 = vmatpush1.msra.mxu0 0.0
        %7270 = vmatprep.subr.mxu0 0.0
        %7271 = vmatpush1.msra.mxu0 0.0
        %7272 = vmatprep.subr.mxu0 0.0
        %7273 = vmatpush1.msra.mxu0 0.0
        %7274 = vmatprep.subr.mxu0 0.0
        %7275 = vmatpush1.msra.mxu0 0.0
        %7276 = vmatprep.subr.mxu0 0.0
        %7277 = vmatpush1.msra.mxu0 0.0
        %7278 = vmatprep.mubr.f32.mxu0 0.0
        %7279 = vmatmul.mubr.f32.gmra.mrb[0].mxu0 %v7212
        %v7280 = vpop.f32.mrb[0].mxu0
        %v7281 = vadd.f32 0.0, %v7280
        %v7282 = vpop.f32.mrb[0].mxu0
        %v7283 = vadd.f32 0.0, %v7282
        %7284 = vdwg.mxu0
        %v7287 = vcombine.low %v7281, %v7283
        %v7289 = vunpack.c.l.s4 1983009808
        %v7290 = vunpack.c.0.s8 %v7289
        %v7291 = vlaneseq
        %v7292 = vshrl.u32 %v7291, 7
        %v7293 = vsub.s32 %v7290, %v7292
        %v7294 = vrot.slane %v7287, %v7293
        %v7296 = vadd.f32 %v7191, %v7294
        %s7297 = scalar_lea.vmem %s299, 1024 [#allocation10]
        %v7298 = vld [vmem:[%s7297] sm:$0xff]
        %v7299 = vld [vmem:[%s7297 + $0x8] sm:$0xff]
        %v7300 = vld [vmem:[%s7297 + $0x10] sm:$0xff]
        %v7301 = vld [vmem:[%s7297 + $0x18] sm:$0xff]
        %v7302 = vld [vmem:[%s7297 + $0x20] sm:$0xff]
        %v7303 = vld [vmem:[%s7297 + $0x28] sm:$0xff]
        %v7304 = vld [vmem:[%s7297 + $0x30] sm:$0xff]
        %v7305 = vld [vmem:[%s7297 + $0x38] sm:$0xff]
        %v7306 = vld [vmem:[%s7297 + $0x40] sm:$0xff]
        %v7307 = vld [vmem:[%s7297 + $0x48] sm:$0xff]
        %v7308 = vld [vmem:[%s7297 + $0x50] sm:$0xff]
        %v7309 = vld [vmem:[%s7297 + $0x58] sm:$0xff]
        %v7310 = vld [vmem:[%s7297 + $0x60] sm:$0xff]
        %v7311 = vld [vmem:[%s7297 + $0x68] sm:$0xff]
        %v7312 = vld [vmem:[%s7297 + $0x70] sm:$0xff]
        %v7313 = vld [vmem:[%s7297 + $0x78] sm:$0xff]
        %v7316 = vrot.slane %v6452, 7
        %v7317 = vsel %vm6475, %v7316, %v6448
        %v7318 = vsel %vm6477, %v7317, 0
        %7320 = vmatprep.subr.mxu0 %v7299
        %7321 = vmatpush1.msra.mxu0 %v7298
        %7322 = vmatprep.subr.mxu0 %v7301
        %7323 = vmatpush1.msra.mxu0 %v7300
        %7324 = vmatprep.subr.mxu0 %v7303
        %7325 = vmatpush1.msra.mxu0 %v7302
        %7326 = vmatprep.subr.mxu0 %v7305
        %7327 = vmatpush1.msra.mxu0 %v7304
        %7328 = vmatprep.subr.mxu0 %v7307
        %7329 = vmatpush1.msra.mxu0 %v7306
        %7330 = vmatprep.subr.mxu0 %v7309
        %7331 = vmatpush1.msra.mxu0 %v7308
        %7332 = vmatprep.subr.mxu0 %v7311
        %7333 = vmatpush1.msra.mxu0 %v7310
        %7334 = vmatprep.subr.mxu0 %v7313
        %7335 = vmatpush1.msra.mxu0 %v7312
        %7336 = vmatprep.subr.mxu0 0.0
        %7337 = vmatpush1.msra.mxu0 0.0
        %7338 = vmatprep.subr.mxu0 0.0
        %7339 = vmatpush1.msra.mxu0 0.0
        %7340 = vmatprep.subr.mxu0 0.0
        %7341 = vmatpush1.msra.mxu0 0.0
        %7342 = vmatprep.subr.mxu0 0.0
        %7343 = vmatpush1.msra.mxu0 0.0
        %7344 = vmatprep.subr.mxu0 0.0
        %7345 = vmatpush1.msra.mxu0 0.0
        %7346 = vmatprep.subr.mxu0 0.0
        %7347 = vmatpush1.msra.mxu0 0.0
        %7348 = vmatprep.subr.mxu0 0.0
        %7349 = vmatpush1.msra.mxu0 0.0
        %7350 = vmatprep.subr.mxu0 0.0
        %7351 = vmatpush1.msra.mxu0 0.0
        %7352 = vmatprep.subr.mxu0 0.0
        %7353 = vmatpush1.msra.mxu0 0.0
        %7354 = vmatprep.subr.mxu0 0.0
        %7355 = vmatpush1.msra.mxu0 0.0
        %7356 = vmatprep.subr.mxu0 0.0
        %7357 = vmatpush1.msra.mxu0 0.0
        %7358 = vmatprep.subr.mxu0 0.0
        %7359 = vmatpush1.msra.mxu0 0.0
        %7360 = vmatprep.subr.mxu0 0.0
        %7361 = vmatpush1.msra.mxu0 0.0
        %7362 = vmatprep.subr.mxu0 0.0
        %7363 = vmatpush1.msra.mxu0 0.0
        %7364 = vmatprep.subr.mxu0 0.0
        %7365 = vmatpush1.msra.mxu0 0.0
        %7366 = vmatprep.subr.mxu0 0.0
        %7367 = vmatpush1.msra.mxu0 0.0
        %7368 = vmatprep.subr.mxu0 0.0
        %7369 = vmatpush1.msra.mxu0 0.0
        %7370 = vmatprep.subr.mxu0 0.0
        %7371 = vmatpush1.msra.mxu0 0.0
        %7372 = vmatprep.subr.mxu0 0.0
        %7373 = vmatpush1.msra.mxu0 0.0
        %7374 = vmatprep.subr.mxu0 0.0
        %7375 = vmatpush1.msra.mxu0 0.0
        %7376 = vmatprep.subr.mxu0 0.0
        %7377 = vmatpush1.msra.mxu0 0.0
        %7378 = vmatprep.subr.mxu0 0.0
        %7379 = vmatpush1.msra.mxu0 0.0
        %7380 = vmatprep.subr.mxu0 0.0
        %7381 = vmatpush1.msra.mxu0 0.0
        %7382 = vmatprep.subr.mxu0 0.0
        %7383 = vmatpush1.msra.mxu0 0.0
        %7384 = vmatprep.mubr.f32.mxu0 0.0
        %7385 = vmatmul.mubr.f32.gmra.mrb[0].mxu0 %v7318
        %v7386 = vpop.f32.mrb[0].mxu0
        %v7387 = vadd.f32 0.0, %v7386
        %v7388 = vpop.f32.mrb[0].mxu0
        %v7389 = vadd.f32 0.0, %v7388
        %7390 = vdwg.mxu0
        %v7393 = vcombine.low %v7387, %v7389
        %v7395 = vunpack.c.l.s4 1983009808
        %v7396 = vunpack.c.0.s8 %v7395
        %v7397 = vlaneseq
        %v7398 = vshrl.u32 %v7397, 7
        %v7399 = vsub.s32 %v7396, %v7398
        %v7400 = vrot.slane %v7393, %v7399
        %v7402 = vadd.f32 %v7296, %v7400
        %s7403 = scalar_lea.vmem %s299, 1152 [#allocation10]
        %v7404 = vld [vmem:[%s7403] sm:$0xff]
        %v7405 = vld [vmem:[%s7403 + $0x8] sm:$0xff]
        %v7406 = vld [vmem:[%s7403 + $0x10] sm:$0xff]
        %v7407 = vld [vmem:[%s7403 + $0x18] sm:$0xff]
        %v7408 = vld [vmem:[%s7403 + $0x20] sm:$0xff]
        %v7409 = vld [vmem:[%s7403 + $0x28] sm:$0xff]
        %v7410 = vld [vmem:[%s7403 + $0x30] sm:$0xff]
        %v7411 = vld [vmem:[%s7403 + $0x38] sm:$0xff]
        %v7412 = vld [vmem:[%s7403 + $0x40] sm:$0xff]
        %v7413 = vld [vmem:[%s7403 + $0x48] sm:$0xff]
        %v7414 = vld [vmem:[%s7403 + $0x50] sm:$0xff]
        %v7415 = vld [vmem:[%s7403 + $0x58] sm:$0xff]
        %v7416 = vld [vmem:[%s7403 + $0x60] sm:$0xff]
        %v7417 = vld [vmem:[%s7403 + $0x68] sm:$0xff]
        %v7418 = vld [vmem:[%s7403 + $0x70] sm:$0xff]
        %v7419 = vld [vmem:[%s7403 + $0x78] sm:$0xff]
        %v7420 = vrot.slane %v6448, 1
        %v7421 = vsel %vm6475, %v6452, %v7420
        %v7422 = vsel %vm6477, %v7421, 0
        %7424 = vmatprep.subr.mxu0 %v7405
        %7425 = vmatpush1.msra.mxu0 %v7404
        %7426 = vmatprep.subr.mxu0 %v7407
        %7427 = vmatpush1.msra.mxu0 %v7406
        %7428 = vmatprep.subr.mxu0 %v7409
        %7429 = vmatpush1.msra.mxu0 %v7408
        %7430 = vmatprep.subr.mxu0 %v7411
        %7431 = vmatpush1.msra.mxu0 %v7410
        %7432 = vmatprep.subr.mxu0 %v7413
        %7433 = vmatpush1.msra.mxu0 %v7412
        %7434 = vmatprep.subr.mxu0 %v7415
        %7435 = vmatpush1.msra.mxu0 %v7414
        %7436 = vmatprep.subr.mxu0 %v7417
        %7437 = vmatpush1.msra.mxu0 %v7416
        %7438 = vmatprep.subr.mxu0 %v7419
        %7439 = vmatpush1.msra.mxu0 %v7418
        %7440 = vmatprep.subr.mxu0 0.0
        %7441 = vmatpush1.msra.mxu0 0.0
        %7442 = vmatprep.subr.mxu0 0.0
        %7443 = vmatpush1.msra.mxu0 0.0
        %7444 = vmatprep.subr.mxu0 0.0
        %7445 = vmatpush1.msra.mxu0 0.0
        %7446 = vmatprep.subr.mxu0 0.0
        %7447 = vmatpush1.msra.mxu0 0.0
        %7448 = vmatprep.subr.mxu0 0.0
        %7449 = vmatpush1.msra.mxu0 0.0
        %7450 = vmatprep.subr.mxu0 0.0
        %7451 = vmatpush1.msra.mxu0 0.0
        %7452 = vmatprep.subr.mxu0 0.0
        %7453 = vmatpush1.msra.mxu0 0.0
        %7454 = vmatprep.subr.mxu0 0.0
        %7455 = vmatpush1.msra.mxu0 0.0
        %7456 = vmatprep.subr.mxu0 0.0
        %7457 = vmatpush1.msra.mxu0 0.0
        %7458 = vmatprep.subr.mxu0 0.0
        %7459 = vmatpush1.msra.mxu0 0.0
        %7460 = vmatprep.subr.mxu0 0.0
        %7461 = vmatpush1.msra.mxu0 0.0
        %7462 = vmatprep.subr.mxu0 0.0
        %7463 = vmatpush1.msra.mxu0 0.0
        %7464 = vmatprep.subr.mxu0 0.0
        %7465 = vmatpush1.msra.mxu0 0.0
        %7466 = vmatprep.subr.mxu0 0.0
        %7467 = vmatpush1.msra.mxu0 0.0
        %7468 = vmatprep.subr.mxu0 0.0
        %7469 = vmatpush1.msra.mxu0 0.0
        %7470 = vmatprep.subr.mxu0 0.0
        %7471 = vmatpush1.msra.mxu0 0.0
        %7472 = vmatprep.subr.mxu0 0.0
        %7473 = vmatpush1.msra.mxu0 0.0
        %7474 = vmatprep.subr.mxu0 0.0
        %7475 = vmatpush1.msra.mxu0 0.0
        %7476 = vmatprep.subr.mxu0 0.0
        %7477 = vmatpush1.msra.mxu0 0.0
        %7478 = vmatprep.subr.mxu0 0.0
        %7479 = vmatpush1.msra.mxu0 0.0
        %7480 = vmatprep.subr.mxu0 0.0
        %7481 = vmatpush1.msra.mxu0 0.0
        %7482 = vmatprep.subr.mxu0 0.0
        %7483 = vmatpush1.msra.mxu0 0.0
        %7484 = vmatprep.subr.mxu0 0.0
        %7485 = vmatpush1.msra.mxu0 0.0
        %7486 = vmatprep.subr.mxu0 0.0
        %7487 = vmatpush1.msra.mxu0 0.0
        %7488 = vmatprep.mubr.f32.mxu0 0.0
        %7489 = vmatmul.mubr.f32.gmra.mrb[0].mxu0 %v7422
        %v7490 = vpop.f32.mrb[0].mxu0
        %v7491 = vadd.f32 0.0, %v7490
        %v7492 = vpop.f32.mrb[0].mxu0
        %v7493 = vadd.f32 0.0, %v7492
        %7494 = vdwg.mxu0
        %v7497 = vcombine.low %v7491, %v7493
        %v7499 = vunpack.c.l.s4 1983009808
        %v7500 = vunpack.c.0.s8 %v7499
        %v7501 = vlaneseq
        %v7502 = vshrl.u32 %v7501, 7
        %v7503 = vsub.s32 %v7500, %v7502
        %v7504 = vrot.slane %v7497, %v7503
        %v7506 = vadd.f32 %v7402, %v7504
        %s7507 = scalar_lea.vmem %s299, 1280 [#allocation10]
        %v7508 = vld [vmem:[%s7507] sm:$0xff]
        %v7509 = vld [vmem:[%s7507 + $0x8] sm:$0xff]
        %v7510 = vld [vmem:[%s7507 + $0x10] sm:$0xff]
        %v7511 = vld [vmem:[%s7507 + $0x18] sm:$0xff]
        %v7512 = vld [vmem:[%s7507 + $0x20] sm:$0xff]
        %v7513 = vld [vmem:[%s7507 + $0x28] sm:$0xff]
        %v7514 = vld [vmem:[%s7507 + $0x30] sm:$0xff]
        %v7515 = vld [vmem:[%s7507 + $0x38] sm:$0xff]
        %v7516 = vld [vmem:[%s7507 + $0x40] sm:$0xff]
        %v7517 = vld [vmem:[%s7507 + $0x48] sm:$0xff]
        %v7518 = vld [vmem:[%s7507 + $0x50] sm:$0xff]
        %v7519 = vld [vmem:[%s7507 + $0x58] sm:$0xff]
        %v7520 = vld [vmem:[%s7507 + $0x60] sm:$0xff]
        %v7521 = vld [vmem:[%s7507 + $0x68] sm:$0xff]
        %v7522 = vld [vmem:[%s7507 + $0x70] sm:$0xff]
        %v7523 = vld [vmem:[%s7507 + $0x78] sm:$0xff]
        %v7524 = vrot.slane %v6448, 2
        %v7525 = vrot.slane %v6452, 1
        %v7526 = vsel %vm6475, %v7525, %v7524
        %v7527 = vsel %vm6477, %v7526, 0
        %7529 = vmatprep.subr.mxu0 %v7509
        %7530 = vmatpush1.msra.mxu0 %v7508
        %7531 = vmatprep.subr.mxu0 %v7511
        %7532 = vmatpush1.msra.mxu0 %v7510
        %7533 = vmatprep.subr.mxu0 %v7513
        %7534 = vmatpush1.msra.mxu0 %v7512
        %7535 = vmatprep.subr.mxu0 %v7515
        %7536 = vmatpush1.msra.mxu0 %v7514
        %7537 = vmatprep.subr.mxu0 %v7517
        %7538 = vmatpush1.msra.mxu0 %v7516
        %7539 = vmatprep.subr.mxu0 %v7519
        %7540 = vmatpush1.msra.mxu0 %v7518
        %7541 = vmatprep.subr.mxu0 %v7521
        %7542 = vmatpush1.msra.mxu0 %v7520
        %7543 = vmatprep.subr.mxu0 %v7523
        %7544 = vmatpush1.msra.mxu0 %v7522
        %7545 = vmatprep.subr.mxu0 0.0
        %7546 = vmatpush1.msra.mxu0 0.0
        %7547 = vmatprep.subr.mxu0 0.0
        %7548 = vmatpush1.msra.mxu0 0.0
        %7549 = vmatprep.subr.mxu0 0.0
        %7550 = vmatpush1.msra.mxu0 0.0
        %7551 = vmatprep.subr.mxu0 0.0
        %7552 = vmatpush1.msra.mxu0 0.0
        %7553 = vmatprep.subr.mxu0 0.0
        %7554 = vmatpush1.msra.mxu0 0.0
        %7555 = vmatprep.subr.mxu0 0.0
        %7556 = vmatpush1.msra.mxu0 0.0
        %7557 = vmatprep.subr.mxu0 0.0
        %7558 = vmatpush1.msra.mxu0 0.0
        %7559 = vmatprep.subr.mxu0 0.0
        %7560 = vmatpush1.msra.mxu0 0.0
        %7561 = vmatprep.subr.mxu0 0.0
        %7562 = vmatpush1.msra.mxu0 0.0
        %7563 = vmatprep.subr.mxu0 0.0
        %7564 = vmatpush1.msra.mxu0 0.0
        %7565 = vmatprep.subr.mxu0 0.0
        %7566 = vmatpush1.msra.mxu0 0.0
        %7567 = vmatprep.subr.mxu0 0.0
        %7568 = vmatpush1.msra.mxu0 0.0
        %7569 = vmatprep.subr.mxu0 0.0
        %7570 = vmatpush1.msra.mxu0 0.0
        %7571 = vmatprep.subr.mxu0 0.0
        %7572 = vmatpush1.msra.mxu0 0.0
        %7573 = vmatprep.subr.mxu0 0.0
        %7574 = vmatpush1.msra.mxu0 0.0
        %7575 = vmatprep.subr.mxu0 0.0
        %7576 = vmatpush1.msra.mxu0 0.0
        %7577 = vmatprep.subr.mxu0 0.0
        %7578 = vmatpush1.msra.mxu0 0.0
        %7579 = vmatprep.subr.mxu0 0.0
        %7580 = vmatpush1.msra.mxu0 0.0
        %7581 = vmatprep.subr.mxu0 0.0
        %7582 = vmatpush1.msra.mxu0 0.0
        %7583 = vmatprep.subr.mxu0 0.0
        %7584 = vmatpush1.msra.mxu0 0.0
        %7585 = vmatprep.subr.mxu0 0.0
        %7586 = vmatpush1.msra.mxu0 0.0
        %7587 = vmatprep.subr.mxu0 0.0
        %7588 = vmatpush1.msra.mxu0 0.0
        %7589 = vmatprep.subr.mxu0 0.0
        %7590 = vmatpush1.msra.mxu0 0.0
        %7591 = vmatprep.subr.mxu0 0.0
        %7592 = vmatpush1.msra.mxu0 0.0
        %7593 = vmatprep.mubr.f32.mxu0 0.0
        %7594 = vmatmul.mubr.f32.gmra.mrb[0].mxu0 %v7527
        %v7595 = vpop.f32.mrb[0].mxu0
        %v7596 = vadd.f32 0.0, %v7595
        %v7597 = vpop.f32.mrb[0].mxu0
        %v7598 = vadd.f32 0.0, %v7597
        %7599 = vdwg.mxu0
        %v7602 = vcombine.low %v7596, %v7598
        %v7604 = vunpack.c.l.s4 1983009808
        %v7605 = vunpack.c.0.s8 %v7604
        %v7606 = vlaneseq
        %v7607 = vshrl.u32 %v7606, 7
        %v7608 = vsub.s32 %v7605, %v7607
        %v7609 = vrot.slane %v7602, %v7608
        %v7611 = vadd.f32 %v7506, %v7609
        %s7612 = scalar_lea.vmem %s299, 1408 [#allocation10]
        %v7613 = vld [vmem:[%s7612] sm:$0xff]
        %v7614 = vld [vmem:[%s7612 + $0x8] sm:$0xff]
        %v7615 = vld [vmem:[%s7612 + $0x10] sm:$0xff]
        %v7616 = vld [vmem:[%s7612 + $0x18] sm:$0xff]
        %v7617 = vld [vmem:[%s7612 + $0x20] sm:$0xff]
        %v7618 = vld [vmem:[%s7612 + $0x28] sm:$0xff]
        %v7619 = vld [vmem:[%s7612 + $0x30] sm:$0xff]
        %v7620 = vld [vmem:[%s7612 + $0x38] sm:$0xff]
        %v7621 = vld [vmem:[%s7612 + $0x40] sm:$0xff]
        %v7622 = vld [vmem:[%s7612 + $0x48] sm:$0xff]
        %v7623 = vld [vmem:[%s7612 + $0x50] sm:$0xff]
        %v7624 = vld [vmem:[%s7612 + $0x58] sm:$0xff]
        %v7625 = vld [vmem:[%s7612 + $0x60] sm:$0xff]
        %v7626 = vld [vmem:[%s7612 + $0x68] sm:$0xff]
        %v7627 = vld [vmem:[%s7612 + $0x70] sm:$0xff]
        %v7628 = vld [vmem:[%s7612 + $0x78] sm:$0xff]
        %v7629 = vrot.slane %v6448, 3
        %v7630 = vrot.slane %v6452, 2
        %v7631 = vsel %vm6475, %v7630, %v7629
        %v7632 = vsel %vm6477, %v7631, 0
        %7634 = vmatprep.subr.mxu0 %v7614
        %7635 = vmatpush1.msra.mxu0 %v7613
        %7636 = vmatprep.subr.mxu0 %v7616
        %7637 = vmatpush1.msra.mxu0 %v7615
        %7638 = vmatprep.subr.mxu0 %v7618
        %7639 = vmatpush1.msra.mxu0 %v7617
        %7640 = vmatprep.subr.mxu0 %v7620
        %7641 = vmatpush1.msra.mxu0 %v7619
        %7642 = vmatprep.subr.mxu0 %v7622
        %7643 = vmatpush1.msra.mxu0 %v7621
        %7644 = vmatprep.subr.mxu0 %v7624
        %7645 = vmatpush1.msra.mxu0 %v7623
        %7646 = vmatprep.subr.mxu0 %v7626
        %7647 = vmatpush1.msra.mxu0 %v7625
        %7648 = vmatprep.subr.mxu0 %v7628
        %7649 = vmatpush1.msra.mxu0 %v7627
        %7650 = vmatprep.subr.mxu0 0.0
        %7651 = vmatpush1.msra.mxu0 0.0
        %7652 = vmatprep.subr.mxu0 0.0
        %7653 = vmatpush1.msra.mxu0 0.0
        %7654 = vmatprep.subr.mxu0 0.0
        %7655 = vmatpush1.msra.mxu0 0.0
        %7656 = vmatprep.subr.mxu0 0.0
        %7657 = vmatpush1.msra.mxu0 0.0
        %7658 = vmatprep.subr.mxu0 0.0
        %7659 = vmatpush1.msra.mxu0 0.0
        %7660 = vmatprep.subr.mxu0 0.0
        %7661 = vmatpush1.msra.mxu0 0.0
        %7662 = vmatprep.subr.mxu0 0.0
        %7663 = vmatpush1.msra.mxu0 0.0
        %7664 = vmatprep.subr.mxu0 0.0
        %7665 = vmatpush1.msra.mxu0 0.0
        %7666 = vmatprep.subr.mxu0 0.0
        %7667 = vmatpush1.msra.mxu0 0.0
        %7668 = vmatprep.subr.mxu0 0.0
        %7669 = vmatpush1.msra.mxu0 0.0
        %7670 = vmatprep.subr.mxu0 0.0
        %7671 = vmatpush1.msra.mxu0 0.0
        %7672 = vmatprep.subr.mxu0 0.0
        %7673 = vmatpush1.msra.mxu0 0.0
        %7674 = vmatprep.subr.mxu0 0.0
        %7675 = vmatpush1.msra.mxu0 0.0
        %7676 = vmatprep.subr.mxu0 0.0
        %7677 = vmatpush1.msra.mxu0 0.0
        %7678 = vmatprep.subr.mxu0 0.0
        %7679 = vmatpush1.msra.mxu0 0.0
        %7680 = vmatprep.subr.mxu0 0.0
        %7681 = vmatpush1.msra.mxu0 0.0
        %7682 = vmatprep.subr.mxu0 0.0
        %7683 = vmatpush1.msra.mxu0 0.0
        %7684 = vmatprep.subr.mxu0 0.0
        %7685 = vmatpush1.msra.mxu0 0.0
        %7686 = vmatprep.subr.mxu0 0.0
        %7687 = vmatpush1.msra.mxu0 0.0
        %7688 = vmatprep.subr.mxu0 0.0
        %7689 = vmatpush1.msra.mxu0 0.0
        %7690 = vmatprep.subr.mxu0 0.0
        %7691 = vmatpush1.msra.mxu0 0.0
        %7692 = vmatprep.subr.mxu0 0.0
        %7693 = vmatpush1.msra.mxu0 0.0
        %7694 = vmatprep.subr.mxu0 0.0
        %7695 = vmatpush1.msra.mxu0 0.0
        %7696 = vmatprep.subr.mxu0 0.0
        %7697 = vmatpush1.msra.mxu0 0.0
        %7698 = vmatprep.mubr.f32.mxu0 0.0
        %7699 = vmatmul.mubr.f32.gmra.mrb[0].mxu0 %v7632
        %v7700 = vpop.f32.mrb[0].mxu0
        %v7701 = vadd.f32 0.0, %v7700
        %v7702 = vpop.f32.mrb[0].mxu0
        %v7703 = vadd.f32 0.0, %v7702
        %7704 = vdwg.mxu0
        %v7707 = vcombine.low %v7701, %v7703
        %v7709 = vunpack.c.l.s4 1983009808
        %v7710 = vunpack.c.0.s8 %v7709
        %v7711 = vlaneseq
        %v7712 = vshrl.u32 %v7711, 7
        %v7713 = vsub.s32 %v7710, %v7712
        %v7714 = vrot.slane %v7707, %v7713
        %v7716 = vadd.f32 %v7611, %v7714
        %s7717 = scalar_lea.vmem %s299, 1536 [#allocation10]
        %v7718 = vld [vmem:[%s7717] sm:$0xff]
        %v7719 = vld [vmem:[%s7717 + $0x8] sm:$0xff]
        %v7720 = vld [vmem:[%s7717 + $0x10] sm:$0xff]
        %v7721 = vld [vmem:[%s7717 + $0x18] sm:$0xff]
        %v7722 = vld [vmem:[%s7717 + $0x20] sm:$0xff]
        %v7723 = vld [vmem:[%s7717 + $0x28] sm:$0xff]
        %v7724 = vld [vmem:[%s7717 + $0x30] sm:$0xff]
        %v7725 = vld [vmem:[%s7717 + $0x38] sm:$0xff]
        %v7726 = vld [vmem:[%s7717 + $0x40] sm:$0xff]
        %v7727 = vld [vmem:[%s7717 + $0x48] sm:$0xff]
        %v7728 = vld [vmem:[%s7717 + $0x50] sm:$0xff]
        %v7729 = vld [vmem:[%s7717 + $0x58] sm:$0xff]
        %v7730 = vld [vmem:[%s7717 + $0x60] sm:$0xff]
        %v7731 = vld [vmem:[%s7717 + $0x68] sm:$0xff]
        %v7732 = vld [vmem:[%s7717 + $0x70] sm:$0xff]
        %v7733 = vld [vmem:[%s7717 + $0x78] sm:$0xff]
        %v7734 = vrot.slane %v6448, 4
        %v7735 = vrot.slane %v6452, 3
        %v7736 = vsel %vm6475, %v7735, %v7734
        %v7737 = vsel %vm6477, %v7736, 0
        %7739 = vmatprep.subr.mxu0 %v7719
        %7740 = vmatpush1.msra.mxu0 %v7718
        %7741 = vmatprep.subr.mxu0 %v7721
        %7742 = vmatpush1.msra.mxu0 %v7720
        %7743 = vmatprep.subr.mxu0 %v7723
        %7744 = vmatpush1.msra.mxu0 %v7722
        %7745 = vmatprep.subr.mxu0 %v7725
        %7746 = vmatpush1.msra.mxu0 %v7724
        %7747 = vmatprep.subr.mxu0 %v7727
        %7748 = vmatpush1.msra.mxu0 %v7726
        %7749 = vmatprep.subr.mxu0 %v7729
        %7750 = vmatpush1.msra.mxu0 %v7728
        %7751 = vmatprep.subr.mxu0 %v7731
        %7752 = vmatpush1.msra.mxu0 %v7730
        %7753 = vmatprep.subr.mxu0 %v7733
        %7754 = vmatpush1.msra.mxu0 %v7732
        %7755 = vmatprep.subr.mxu0 0.0
        %7756 = vmatpush1.msra.mxu0 0.0
        %7757 = vmatprep.subr.mxu0 0.0
        %7758 = vmatpush1.msra.mxu0 0.0
        %7759 = vmatprep.subr.mxu0 0.0
        %7760 = vmatpush1.msra.mxu0 0.0
        %7761 = vmatprep.subr.mxu0 0.0
        %7762 = vmatpush1.msra.mxu0 0.0
        %7763 = vmatprep.subr.mxu0 0.0
        %7764 = vmatpush1.msra.mxu0 0.0
        %7765 = vmatprep.subr.mxu0 0.0
        %7766 = vmatpush1.msra.mxu0 0.0
        %7767 = vmatprep.subr.mxu0 0.0
        %7768 = vmatpush1.msra.mxu0 0.0
        %7769 = vmatprep.subr.mxu0 0.0
        %7770 = vmatpush1.msra.mxu0 0.0
        %7771 = vmatprep.subr.mxu0 0.0
        %7772 = vmatpush1.msra.mxu0 0.0
        %7773 = vmatprep.subr.mxu0 0.0
        %7774 = vmatpush1.msra.mxu0 0.0
        %7775 = vmatprep.subr.mxu0 0.0
        %7776 = vmatpush1.msra.mxu0 0.0
        %7777 = vmatprep.subr.mxu0 0.0
        %7778 = vmatpush1.msra.mxu0 0.0
        %7779 = vmatprep.subr.mxu0 0.0
        %7780 = vmatpush1.msra.mxu0 0.0
        %7781 = vmatprep.subr.mxu0 0.0
        %7782 = vmatpush1.msra.mxu0 0.0
        %7783 = vmatprep.subr.mxu0 0.0
        %7784 = vmatpush1.msra.mxu0 0.0
        %7785 = vmatprep.subr.mxu0 0.0
        %7786 = vmatpush1.msra.mxu0 0.0
        %7787 = vmatprep.subr.mxu0 0.0
        %7788 = vmatpush1.msra.mxu0 0.0
        %7789 = vmatprep.subr.mxu0 0.0
        %7790 = vmatpush1.msra.mxu0 0.0
        %7791 = vmatprep.subr.mxu0 0.0
        %7792 = vmatpush1.msra.mxu0 0.0
        %7793 = vmatprep.subr.mxu0 0.0
        %7794 = vmatpush1.msra.mxu0 0.0
        %7795 = vmatprep.subr.mxu0 0.0
        %7796 = vmatpush1.msra.mxu0 0.0
        %7797 = vmatprep.subr.mxu0 0.0
        %7798 = vmatpush1.msra.mxu0 0.0
        %7799 = vmatprep.subr.mxu0 0.0
        %7800 = vmatpush1.msra.mxu0 0.0
        %7801 = vmatprep.subr.mxu0 0.0
        %7802 = vmatpush1.msra.mxu0 0.0
        %7803 = vmatprep.mubr.f32.mxu0 0.0
        %7804 = vmatmul.mubr.f32.gmra.mrb[0].mxu0 %v7737
        %v7805 = vpop.f32.mrb[0].mxu0
        %v7806 = vadd.f32 0.0, %v7805
        %v7807 = vpop.f32.mrb[0].mxu0
        %v7808 = vadd.f32 0.0, %v7807
        %7809 = vdwg.mxu0
        %v7812 = vcombine.low %v7806, %v7808
        %v7814 = vunpack.c.l.s4 1983009808
        %v7815 = vunpack.c.0.s8 %v7814
        %v7816 = vlaneseq
        %v7817 = vshrl.u32 %v7816, 7
        %v7818 = vsub.s32 %v7815, %v7817
        %v7819 = vrot.slane %v7812, %v7818
        %v7821 = vadd.f32 %v7716, %v7819
        %s7822 = scalar_lea.vmem %s299, 1664 [#allocation10]
        %v7823 = vld [vmem:[%s7822] sm:$0xff]
        %v7824 = vld [vmem:[%s7822 + $0x8] sm:$0xff]
        %v7825 = vld [vmem:[%s7822 + $0x10] sm:$0xff]
        %v7826 = vld [vmem:[%s7822 + $0x18] sm:$0xff]
        %v7827 = vld [vmem:[%s7822 + $0x20] sm:$0xff]
        %v7828 = vld [vmem:[%s7822 + $0x28] sm:$0xff]
        %v7829 = vld [vmem:[%s7822 + $0x30] sm:$0xff]
        %v7830 = vld [vmem:[%s7822 + $0x38] sm:$0xff]
        %v7831 = vld [vmem:[%s7822 + $0x40] sm:$0xff]
        %v7832 = vld [vmem:[%s7822 + $0x48] sm:$0xff]
        %v7833 = vld [vmem:[%s7822 + $0x50] sm:$0xff]
        %v7834 = vld [vmem:[%s7822 + $0x58] sm:$0xff]
        %v7835 = vld [vmem:[%s7822 + $0x60] sm:$0xff]
        %v7836 = vld [vmem:[%s7822 + $0x68] sm:$0xff]
        %v7837 = vld [vmem:[%s7822 + $0x70] sm:$0xff]
        %v7838 = vld [vmem:[%s7822 + $0x78] sm:$0xff]
        %v7839 = vrot.slane %v6448, 5
        %v7840 = vrot.slane %v6452, 4
        %v7841 = vsel %vm6475, %v7840, %v7839
        %v7842 = vsel %vm6477, %v7841, 0
        %7844 = vmatprep.subr.mxu0 %v7824
        %7845 = vmatpush1.msra.mxu0 %v7823
        %7846 = vmatprep.subr.mxu0 %v7826
        %7847 = vmatpush1.msra.mxu0 %v7825
        %7848 = vmatprep.subr.mxu0 %v7828
        %7849 = vmatpush1.msra.mxu0 %v7827
        %7850 = vmatprep.subr.mxu0 %v7830
        %7851 = vmatpush1.msra.mxu0 %v7829
        %7852 = vmatprep.subr.mxu0 %v7832
        %7853 = vmatpush1.msra.mxu0 %v7831
        %7854 = vmatprep.subr.mxu0 %v7834
        %7855 = vmatpush1.msra.mxu0 %v7833
        %7856 = vmatprep.subr.mxu0 %v7836
        %7857 = vmatpush1.msra.mxu0 %v7835
        %7858 = vmatprep.subr.mxu0 %v7838
        %7859 = vmatpush1.msra.mxu0 %v7837
        %7860 = vmatprep.subr.mxu0 0.0
        %7861 = vmatpush1.msra.mxu0 0.0
        %7862 = vmatprep.subr.mxu0 0.0
        %7863 = vmatpush1.msra.mxu0 0.0
        %7864 = vmatprep.subr.mxu0 0.0
        %7865 = vmatpush1.msra.mxu0 0.0
        %7866 = vmatprep.subr.mxu0 0.0
        %7867 = vmatpush1.msra.mxu0 0.0
        %7868 = vmatprep.subr.mxu0 0.0
        %7869 = vmatpush1.msra.mxu0 0.0
        %7870 = vmatprep.subr.mxu0 0.0
        %7871 = vmatpush1.msra.mxu0 0.0
        %7872 = vmatprep.subr.mxu0 0.0
        %7873 = vmatpush1.msra.mxu0 0.0
        %7874 = vmatprep.subr.mxu0 0.0
        %7875 = vmatpush1.msra.mxu0 0.0
        %7876 = vmatprep.subr.mxu0 0.0
        %7877 = vmatpush1.msra.mxu0 0.0
        %7878 = vmatprep.subr.mxu0 0.0
        %7879 = vmatpush1.msra.mxu0 0.0
        %7880 = vmatprep.subr.mxu0 0.0
        %7881 = vmatpush1.msra.mxu0 0.0
        %7882 = vmatprep.subr.mxu0 0.0
        %7883 = vmatpush1.msra.mxu0 0.0
        %7884 = vmatprep.subr.mxu0 0.0
        %7885 = vmatpush1.msra.mxu0 0.0
        %7886 = vmatprep.subr.mxu0 0.0
        %7887 = vmatpush1.msra.mxu0 0.0
        %7888 = vmatprep.subr.mxu0 0.0
        %7889 = vmatpush1.msra.mxu0 0.0
        %7890 = vmatprep.subr.mxu0 0.0
        %7891 = vmatpush1.msra.mxu0 0.0
        %7892 = vmatprep.subr.mxu0 0.0
        %7893 = vmatpush1.msra.mxu0 0.0
        %7894 = vmatprep.subr.mxu0 0.0
        %7895 = vmatpush1.msra.mxu0 0.0
        %7896 = vmatprep.subr.mxu0 0.0
        %7897 = vmatpush1.msra.mxu0 0.0
        %7898 = vmatprep.subr.mxu0 0.0
        %7899 = vmatpush1.msra.mxu0 0.0
        %7900 = vmatprep.subr.mxu0 0.0
        %7901 = vmatpush1.msra.mxu0 0.0
        %7902 = vmatprep.subr.mxu0 0.0
        %7903 = vmatpush1.msra.mxu0 0.0
        %7904 = vmatprep.subr.mxu0 0.0
        %7905 = vmatpush1.msra.mxu0 0.0
        %7906 = vmatprep.subr.mxu0 0.0
        %7907 = vmatpush1.msra.mxu0 0.0
        %7908 = vmatprep.mubr.f32.mxu0 0.0
        %7909 = vmatmul.mubr.f32.gmra.mrb[0].mxu0 %v7842
        %v7910 = vpop.f32.mrb[0].mxu0
        %v7911 = vadd.f32 0.0, %v7910
        %v7912 = vpop.f32.mrb[0].mxu0
        %v7913 = vadd.f32 0.0, %v7912
        %7914 = vdwg.mxu0
        %v7917 = vcombine.low %v7911, %v7913
        %v7919 = vunpack.c.l.s4 1983009808
        %v7920 = vunpack.c.0.s8 %v7919
        %v7921 = vlaneseq
        %v7922 = vshrl.u32 %v7921, 7
        %v7923 = vsub.s32 %v7920, %v7922
        %v7924 = vrot.slane %v7917, %v7923
        %v7926 = vadd.f32 %v7821, %v7924
        %s7927 = scalar_lea.vmem %s299, 1792 [#allocation10]
        %v7928 = vld [vmem:[%s7927] sm:$0xff]
        %v7929 = vld [vmem:[%s7927 + $0x8] sm:$0xff]
        %v7930 = vld [vmem:[%s7927 + $0x10] sm:$0xff]
        %v7931 = vld [vmem:[%s7927 + $0x18] sm:$0xff]
        %v7932 = vld [vmem:[%s7927 + $0x20] sm:$0xff]
        %v7933 = vld [vmem:[%s7927 + $0x28] sm:$0xff]
        %v7934 = vld [vmem:[%s7927 + $0x30] sm:$0xff]
        %v7935 = vld [vmem:[%s7927 + $0x38] sm:$0xff]
        %v7936 = vld [vmem:[%s7927 + $0x40] sm:$0xff]
        %v7937 = vld [vmem:[%s7927 + $0x48] sm:$0xff]
        %v7938 = vld [vmem:[%s7927 + $0x50] sm:$0xff]
        %v7939 = vld [vmem:[%s7927 + $0x58] sm:$0xff]
        %v7940 = vld [vmem:[%s7927 + $0x60] sm:$0xff]
        %v7941 = vld [vmem:[%s7927 + $0x68] sm:$0xff]
        %v7942 = vld [vmem:[%s7927 + $0x70] sm:$0xff]
        %v7943 = vld [vmem:[%s7927 + $0x78] sm:$0xff]
        %v7944 = vrot.slane %v6448, 6
        %v7945 = vrot.slane %v6452, 5
        %v7946 = vsel %vm6475, %v7945, %v7944
        %v7947 = vsel %vm6477, %v7946, 0
        %7949 = vmatprep.subr.mxu0 %v7929
        %7950 = vmatpush1.msra.mxu0 %v7928
        %7951 = vmatprep.subr.mxu0 %v7931
        %7952 = vmatpush1.msra.mxu0 %v7930
        %7953 = vmatprep.subr.mxu0 %v7933
        %7954 = vmatpush1.msra.mxu0 %v7932
        %7955 = vmatprep.subr.mxu0 %v7935
        %7956 = vmatpush1.msra.mxu0 %v7934
        %7957 = vmatprep.subr.mxu0 %v7937
        %7958 = vmatpush1.msra.mxu0 %v7936
        %7959 = vmatprep.subr.mxu0 %v7939
        %7960 = vmatpush1.msra.mxu0 %v7938
        %7961 = vmatprep.subr.mxu0 %v7941
        %7962 = vmatpush1.msra.mxu0 %v7940
        %7963 = vmatprep.subr.mxu0 %v7943
        %7964 = vmatpush1.msra.mxu0 %v7942
        %7965 = vmatprep.subr.mxu0 0.0
        %7966 = vmatpush1.msra.mxu0 0.0
        %7967 = vmatprep.subr.mxu0 0.0
        %7968 = vmatpush1.msra.mxu0 0.0
        %7969 = vmatprep.subr.mxu0 0.0
        %7970 = vmatpush1.msra.mxu0 0.0
        %7971 = vmatprep.subr.mxu0 0.0
        %7972 = vmatpush1.msra.mxu0 0.0
        %7973 = vmatprep.subr.mxu0 0.0
        %7974 = vmatpush1.msra.mxu0 0.0
        %7975 = vmatprep.subr.mxu0 0.0
        %7976 = vmatpush1.msra.mxu0 0.0
        %7977 = vmatprep.subr.mxu0 0.0
        %7978 = vmatpush1.msra.mxu0 0.0
        %7979 = vmatprep.subr.mxu0 0.0
        %7980 = vmatpush1.msra.mxu0 0.0
        %7981 = vmatprep.subr.mxu0 0.0
        %7982 = vmatpush1.msra.mxu0 0.0
        %7983 = vmatprep.subr.mxu0 0.0
        %7984 = vmatpush1.msra.mxu0 0.0
        %7985 = vmatprep.subr.mxu0 0.0
        %7986 = vmatpush1.msra.mxu0 0.0
        %7987 = vmatprep.subr.mxu0 0.0
        %7988 = vmatpush1.msra.mxu0 0.0
        %7989 = vmatprep.subr.mxu0 0.0
        %7990 = vmatpush1.msra.mxu0 0.0
        %7991 = vmatprep.subr.mxu0 0.0
        %7992 = vmatpush1.msra.mxu0 0.0
        %7993 = vmatprep.subr.mxu0 0.0
        %7994 = vmatpush1.msra.mxu0 0.0
        %7995 = vmatprep.subr.mxu0 0.0
        %7996 = vmatpush1.msra.mxu0 0.0
        %7997 = vmatprep.subr.mxu0 0.0
        %7998 = vmatpush1.msra.mxu0 0.0
        %7999 = vmatprep.subr.mxu0 0.0
        %8000 = vmatpush1.msra.mxu0 0.0
        %8001 = vmatprep.subr.mxu0 0.0
        %8002 = vmatpush1.msra.mxu0 0.0
        %8003 = vmatprep.subr.mxu0 0.0
        %8004 = vmatpush1.msra.mxu0 0.0
        %8005 = vmatprep.subr.mxu0 0.0
        %8006 = vmatpush1.msra.mxu0 0.0
        %8007 = vmatprep.subr.mxu0 0.0
        %8008 = vmatpush1.msra.mxu0 0.0
        %8009 = vmatprep.subr.mxu0 0.0
        %8010 = vmatpush1.msra.mxu0 0.0
        %8011 = vmatprep.subr.mxu0 0.0
        %8012 = vmatpush1.msra.mxu0 0.0
        %8013 = vmatprep.mubr.f32.mxu0 0.0
        %8014 = vmatmul.mubr.f32.gmra.mrb[0].mxu0 %v7947
        %v8015 = vpop.f32.mrb[0].mxu0
        %v8016 = vadd.f32 0.0, %v8015
        %v8017 = vpop.f32.mrb[0].mxu0
        %v8018 = vadd.f32 0.0, %v8017
        %8019 = vdwg.mxu0
        %v8022 = vcombine.low %v8016, %v8018
        %v8024 = vunpack.c.l.s4 1983009808
        %v8025 = vunpack.c.0.s8 %v8024
        %v8026 = vlaneseq
        %v8027 = vshrl.u32 %v8026, 7
        %v8028 = vsub.s32 %v8025, %v8027
        %v8029 = vrot.slane %v8022, %v8028
        %v8031 = vadd.f32 %v7926, %v8029
        %s8032 = scalar_lea.vmem %s299, 1920 [#allocation10]
        %v8033 = vld [vmem:[%s8032] sm:$0xff]
        %v8034 = vld [vmem:[%s8032 + $0x8] sm:$0xff]
        %v8035 = vld [vmem:[%s8032 + $0x10] sm:$0xff]
        %v8036 = vld [vmem:[%s8032 + $0x18] sm:$0xff]
        %v8037 = vld [vmem:[%s8032 + $0x20] sm:$0xff]
        %v8038 = vld [vmem:[%s8032 + $0x28] sm:$0xff]
        %v8039 = vld [vmem:[%s8032 + $0x30] sm:$0xff]
        %v8040 = vld [vmem:[%s8032 + $0x38] sm:$0xff]
        %v8041 = vld [vmem:[%s8032 + $0x40] sm:$0xff]
        %v8042 = vld [vmem:[%s8032 + $0x48] sm:$0xff]
        %v8043 = vld [vmem:[%s8032 + $0x50] sm:$0xff]
        %v8044 = vld [vmem:[%s8032 + $0x58] sm:$0xff]
        %v8045 = vld [vmem:[%s8032 + $0x60] sm:$0xff]
        %v8046 = vld [vmem:[%s8032 + $0x68] sm:$0xff]
        %v8047 = vld [vmem:[%s8032 + $0x70] sm:$0xff]
        %v8048 = vld [vmem:[%s8032 + $0x78] sm:$0xff]
        %v8049 = vrot.slane %v6448, 7
        %v8050 = vrot.slane %v6452, 6
        %v8051 = vsel %vm6475, %v8050, %v8049
        %v8052 = vsel %vm6477, %v8051, 0
        %8054 = vmatprep.subr.mxu0 %v8034
        %8055 = vmatpush1.msra.mxu0 %v8033
        %8056 = vmatprep.subr.mxu0 %v8036
        %8057 = vmatpush1.msra.mxu0 %v8035
        %8058 = vmatprep.subr.mxu0 %v8038
        %8059 = vmatpush1.msra.mxu0 %v8037
        %8060 = vmatprep.subr.mxu0 %v8040
        %8061 = vmatpush1.msra.mxu0 %v8039
        %8062 = vmatprep.subr.mxu0 %v8042
        %8063 = vmatpush1.msra.mxu0 %v8041
        %8064 = vmatprep.subr.mxu0 %v8044
        %8065 = vmatpush1.msra.mxu0 %v8043
        %8066 = vmatprep.subr.mxu0 %v8046
        %8067 = vmatpush1.msra.mxu0 %v8045
        %8068 = vmatprep.subr.mxu0 %v8048
        %8069 = vmatpush1.msra.mxu0 %v8047
        %8070 = vmatprep.subr.mxu0 0.0
        %8071 = vmatpush1.msra.mxu0 0.0
        %8072 = vmatprep.subr.mxu0 0.0
        %8073 = vmatpush1.msra.mxu0 0.0
        %8074 = vmatprep.subr.mxu0 0.0
        %8075 = vmatpush1.msra.mxu0 0.0
        %8076 = vmatprep.subr.mxu0 0.0
        %8077 = vmatpush1.msra.mxu0 0.0
        %8078 = vmatprep.subr.mxu0 0.0
        %8079 = vmatpush1.msra.mxu0 0.0
        %8080 = vmatprep.subr.mxu0 0.0
        %8081 = vmatpush1.msra.mxu0 0.0
        %8082 = vmatprep.subr.mxu0 0.0
        %8083 = vmatpush1.msra.mxu0 0.0
        %8084 = vmatprep.subr.mxu0 0.0
        %8085 = vmatpush1.msra.mxu0 0.0
        %8086 = vmatprep.subr.mxu0 0.0
        %8087 = vmatpush1.msra.mxu0 0.0
        %8088 = vmatprep.subr.mxu0 0.0
        %8089 = vmatpush1.msra.mxu0 0.0
        %8090 = vmatprep.subr.mxu0 0.0
        %8091 = vmatpush1.msra.mxu0 0.0
        %8092 = vmatprep.subr.mxu0 0.0
        %8093 = vmatpush1.msra.mxu0 0.0
        %8094 = vmatprep.subr.mxu0 0.0
        %8095 = vmatpush1.msra.mxu0 0.0
        %8096 = vmatprep.subr.mxu0 0.0
        %8097 = vmatpush1.msra.mxu0 0.0
        %8098 = vmatprep.subr.mxu0 0.0
        %8099 = vmatpush1.msra.mxu0 0.0
        %8100 = vmatprep.subr.mxu0 0.0
        %8101 = vmatpush1.msra.mxu0 0.0
        %8102 = vmatprep.subr.mxu0 0.0
        %8103 = vmatpush1.msra.mxu0 0.0
        %8104 = vmatprep.subr.mxu0 0.0
        %8105 = vmatpush1.msra.mxu0 0.0
        %8106 = vmatprep.subr.mxu0 0.0
        %8107 = vmatpush1.msra.mxu0 0.0
        %8108 = vmatprep.subr.mxu0 0.0
        %8109 = vmatpush1.msra.mxu0 0.0
        %8110 = vmatprep.subr.mxu0 0.0
        %8111 = vmatpush1.msra.mxu0 0.0
        %8112 = vmatprep.subr.mxu0 0.0
        %8113 = vmatpush1.msra.mxu0 0.0
        %8114 = vmatprep.subr.mxu0 0.0
        %8115 = vmatpush1.msra.mxu0 0.0
        %8116 = vmatprep.subr.mxu0 0.0
        %8117 = vmatpush1.msra.mxu0 0.0
        %8118 = vmatprep.mubr.f32.mxu0 0.0
        %8119 = vmatmul.mubr.f32.gmra.mrb[0].mxu0 %v8052
        %v8120 = vpop.f32.mrb[0].mxu0
        %v8121 = vadd.f32 0.0, %v8120
        %v8122 = vpop.f32.mrb[0].mxu0
        %v8123 = vadd.f32 0.0, %v8122
        %8124 = vdwg.mxu0
        %v8127 = vcombine.low %v8121, %v8123
        %v8129 = vunpack.c.l.s4 1983009808
        %v8130 = vunpack.c.0.s8 %v8129
        %v8131 = vlaneseq
        %v8132 = vshrl.u32 %v8131, 7
        %v8133 = vsub.s32 %v8130, %v8132
        %v8134 = vrot.slane %v8127, %v8133
        %v8136 = vadd.f32 %v8031, %v8134
        %s8137 = scalar_lea.vmem %s299, 2048 [#allocation10]
        %v8138 = vld [vmem:[%s8137] sm:$0xff]
        %v8139 = vld [vmem:[%s8137 + $0x8] sm:$0xff]
        %v8140 = vld [vmem:[%s8137 + $0x10] sm:$0xff]
        %v8141 = vld [vmem:[%s8137 + $0x18] sm:$0xff]
        %v8142 = vld [vmem:[%s8137 + $0x20] sm:$0xff]
        %v8143 = vld [vmem:[%s8137 + $0x28] sm:$0xff]
        %v8144 = vld [vmem:[%s8137 + $0x30] sm:$0xff]
        %v8145 = vld [vmem:[%s8137 + $0x38] sm:$0xff]
        %v8146 = vld [vmem:[%s8137 + $0x40] sm:$0xff]
        %v8147 = vld [vmem:[%s8137 + $0x48] sm:$0xff]
        %v8148 = vld [vmem:[%s8137 + $0x50] sm:$0xff]
        %v8149 = vld [vmem:[%s8137 + $0x58] sm:$0xff]
        %v8150 = vld [vmem:[%s8137 + $0x60] sm:$0xff]
        %v8151 = vld [vmem:[%s8137 + $0x68] sm:$0xff]
        %v8152 = vld [vmem:[%s8137 + $0x70] sm:$0xff]
        %v8153 = vld [vmem:[%s8137 + $0x78] sm:$0xff]
        %v8156 = vrot.slane %v6453, 7
        %v8157 = vsel %vm6475, %v8156, %v6449
        %v8158 = vsel %vm6477, %v8157, 0
        %8160 = vmatprep.subr.mxu0 %v8139
        %8161 = vmatpush1.msra.mxu0 %v8138
        %8162 = vmatprep.subr.mxu0 %v8141
        %8163 = vmatpush1.msra.mxu0 %v8140
        %8164 = vmatprep.subr.mxu0 %v8143
        %8165 = vmatpush1.msra.mxu0 %v8142
        %8166 = vmatprep.subr.mxu0 %v8145
        %8167 = vmatpush1.msra.mxu0 %v8144
        %8168 = vmatprep.subr.mxu0 %v8147
        %8169 = vmatpush1.msra.mxu0 %v8146
        %8170 = vmatprep.subr.mxu0 %v8149
        %8171 = vmatpush1.msra.mxu0 %v8148
        %8172 = vmatprep.subr.mxu0 %v8151
        %8173 = vmatpush1.msra.mxu0 %v8150
        %8174 = vmatprep.subr.mxu0 %v8153
        %8175 = vmatpush1.msra.mxu0 %v8152
        %8176 = vmatprep.subr.mxu0 0.0
        %8177 = vmatpush1.msra.mxu0 0.0
        %8178 = vmatprep.subr.mxu0 0.0
        %8179 = vmatpush1.msra.mxu0 0.0
        %8180 = vmatprep.subr.mxu0 0.0
        %8181 = vmatpush1.msra.mxu0 0.0
        %8182 = vmatprep.subr.mxu0 0.0
        %8183 = vmatpush1.msra.mxu0 0.0
        %8184 = vmatprep.subr.mxu0 0.0
        %8185 = vmatpush1.msra.mxu0 0.0
        %8186 = vmatprep.subr.mxu0 0.0
        %8187 = vmatpush1.msra.mxu0 0.0
        %8188 = vmatprep.subr.mxu0 0.0
        %8189 = vmatpush1.msra.mxu0 0.0
        %8190 = vmatprep.subr.mxu0 0.0
        %8191 = vmatpush1.msra.mxu0 0.0
        %8192 = vmatprep.subr.mxu0 0.0
        %8193 = vmatpush1.msra.mxu0 0.0
        %8194 = vmatprep.subr.mxu0 0.0
        %8195 = vmatpush1.msra.mxu0 0.0
        %8196 = vmatprep.subr.mxu0 0.0
        %8197 = vmatpush1.msra.mxu0 0.0
        %8198 = vmatprep.subr.mxu0 0.0
        %8199 = vmatpush1.msra.mxu0 0.0
        %8200 = vmatprep.subr.mxu0 0.0
        %8201 = vmatpush1.msra.mxu0 0.0
        %8202 = vmatprep.subr.mxu0 0.0
        %8203 = vmatpush1.msra.mxu0 0.0
        %8204 = vmatprep.subr.mxu0 0.0
        %8205 = vmatpush1.msra.mxu0 0.0
        %8206 = vmatprep.subr.mxu0 0.0
        %8207 = vmatpush1.msra.mxu0 0.0
        %8208 = vmatprep.subr.mxu0 0.0
        %8209 = vmatpush1.msra.mxu0 0.0
        %8210 = vmatprep.subr.mxu0 0.0
        %8211 = vmatpush1.msra.mxu0 0.0
        %8212 = vmatprep.subr.mxu0 0.0
        %8213 = vmatpush1.msra.mxu0 0.0
        %8214 = vmatprep.subr.mxu0 0.0
        %8215 = vmatpush1.msra.mxu0 0.0
        %8216 = vmatprep.subr.mxu0 0.0
        %8217 = vmatpush1.msra.mxu0 0.0
        %8218 = vmatprep.subr.mxu0 0.0
        %8219 = vmatpush1.msra.mxu0 0.0
        %8220 = vmatprep.subr.mxu0 0.0
        %8221 = vmatpush1.msra.mxu0 0.0
        %8222 = vmatprep.subr.mxu0 0.0
        %8223 = vmatpush1.msra.mxu0 0.0
        %8224 = vmatprep.mubr.f32.mxu0 0.0
        %8225 = vmatmul.mubr.f32.gmra.mrb[0].mxu0 %v8158
        %v8226 = vpop.f32.mrb[0].mxu0
        %v8227 = vadd.f32 0.0, %v8226
        %v8228 = vpop.f32.mrb[0].mxu0
        %v8229 = vadd.f32 0.0, %v8228
        %8230 = vdwg.mxu0
        %v8233 = vcombine.low %v8227, %v8229
        %v8235 = vunpack.c.l.s4 1983009808
        %v8236 = vunpack.c.0.s8 %v8235
        %v8237 = vlaneseq
        %v8238 = vshrl.u32 %v8237, 7
        %v8239 = vsub.s32 %v8236, %v8238
        %v8240 = vrot.slane %v8233, %v8239
        %v8242 = vadd.f32 %v8136, %v8240
        %s8243 = scalar_lea.vmem %s299, 2176 [#allocation10]
        %v8244 = vld [vmem:[%s8243] sm:$0xff]
        %v8245 = vld [vmem:[%s8243 + $0x8] sm:$0xff]
        %v8246 = vld [vmem:[%s8243 + $0x10] sm:$0xff]
        %v8247 = vld [vmem:[%s8243 + $0x18] sm:$0xff]
        %v8248 = vld [vmem:[%s8243 + $0x20] sm:$0xff]
        %v8249 = vld [vmem:[%s8243 + $0x28] sm:$0xff]
        %v8250 = vld [vmem:[%s8243 + $0x30] sm:$0xff]
        %v8251 = vld [vmem:[%s8243 + $0x38] sm:$0xff]
        %v8252 = vld [vmem:[%s8243 + $0x40] sm:$0xff]
        %v8253 = vld [vmem:[%s8243 + $0x48] sm:$0xff]
        %v8254 = vld [vmem:[%s8243 + $0x50] sm:$0xff]
        %v8255 = vld [vmem:[%s8243 + $0x58] sm:$0xff]
        %v8256 = vld [vmem:[%s8243 + $0x60] sm:$0xff]
        %v8257 = vld [vmem:[%s8243 + $0x68] sm:$0xff]
        %v8258 = vld [vmem:[%s8243 + $0x70] sm:$0xff]
        %v8259 = vld [vmem:[%s8243 + $0x78] sm:$0xff]
        %v8260 = vrot.slane %v6449, 1
        %v8261 = vsel %vm6475, %v6453, %v8260
        %v8262 = vsel %vm6477, %v8261, 0
        %8264 = vmatprep.subr.mxu0 %v8245
        %8265 = vmatpush1.msra.mxu0 %v8244
        %8266 = vmatprep.subr.mxu0 %v8247
        %8267 = vmatpush1.msra.mxu0 %v8246
        %8268 = vmatprep.subr.mxu0 %v8249
        %8269 = vmatpush1.msra.mxu0 %v8248
        %8270 = vmatprep.subr.mxu0 %v8251
        %8271 = vmatpush1.msra.mxu0 %v8250
        %8272 = vmatprep.subr.mxu0 %v8253
        %8273 = vmatpush1.msra.mxu0 %v8252
        %8274 = vmatprep.subr.mxu0 %v8255
        %8275 = vmatpush1.msra.mxu0 %v8254
        %8276 = vmatprep.subr.mxu0 %v8257
        %8277 = vmatpush1.msra.mxu0 %v8256
        %8278 = vmatprep.subr.mxu0 %v8259
        %8279 = vmatpush1.msra.mxu0 %v8258
        %8280 = vmatprep.subr.mxu0 0.0
        %8281 = vmatpush1.msra.mxu0 0.0
        %8282 = vmatprep.subr.mxu0 0.0
        %8283 = vmatpush1.msra.mxu0 0.0
        %8284 = vmatprep.subr.mxu0 0.0
        %8285 = vmatpush1.msra.mxu0 0.0
        %8286 = vmatprep.subr.mxu0 0.0
        %8287 = vmatpush1.msra.mxu0 0.0
        %8288 = vmatprep.subr.mxu0 0.0
        %8289 = vmatpush1.msra.mxu0 0.0
        %8290 = vmatprep.subr.mxu0 0.0
        %8291 = vmatpush1.msra.mxu0 0.0
        %8292 = vmatprep.subr.mxu0 0.0
        %8293 = vmatpush1.msra.mxu0 0.0
        %8294 = vmatprep.subr.mxu0 0.0
        %8295 = vmatpush1.msra.mxu0 0.0
        %8296 = vmatprep.subr.mxu0 0.0
        %8297 = vmatpush1.msra.mxu0 0.0
        %8298 = vmatprep.subr.mxu0 0.0
        %8299 = vmatpush1.msra.mxu0 0.0
        %8300 = vmatprep.subr.mxu0 0.0
        %8301 = vmatpush1.msra.mxu0 0.0
        %8302 = vmatprep.subr.mxu0 0.0
        %8303 = vmatpush1.msra.mxu0 0.0
        %8304 = vmatprep.subr.mxu0 0.0
        %8305 = vmatpush1.msra.mxu0 0.0
        %8306 = vmatprep.subr.mxu0 0.0
        %8307 = vmatpush1.msra.mxu0 0.0
        %8308 = vmatprep.subr.mxu0 0.0
        %8309 = vmatpush1.msra.mxu0 0.0
        %8310 = vmatprep.subr.mxu0 0.0
        %8311 = vmatpush1.msra.mxu0 0.0
        %8312 = vmatprep.subr.mxu0 0.0
        %8313 = vmatpush1.msra.mxu0 0.0
        %8314 = vmatprep.subr.mxu0 0.0
        %8315 = vmatpush1.msra.mxu0 0.0
        %8316 = vmatprep.subr.mxu0 0.0
        %8317 = vmatpush1.msra.mxu0 0.0
        %8318 = vmatprep.subr.mxu0 0.0
        %8319 = vmatpush1.msra.mxu0 0.0
        %8320 = vmatprep.subr.mxu0 0.0
        %8321 = vmatpush1.msra.mxu0 0.0
        %8322 = vmatprep.subr.mxu0 0.0
        %8323 = vmatpush1.msra.mxu0 0.0
        %8324 = vmatprep.subr.mxu0 0.0
        %8325 = vmatpush1.msra.mxu0 0.0
        %8326 = vmatprep.subr.mxu0 0.0
        %8327 = vmatpush1.msra.mxu0 0.0
        %8328 = vmatprep.mubr.f32.mxu0 0.0
        %8329 = vmatmul.mubr.f32.gmra.mrb[0].mxu0 %v8262
        %v8330 = vpop.f32.mrb[0].mxu0
        %v8331 = vadd.f32 0.0, %v8330
        %v8332 = vpop.f32.mrb[0].mxu0
        %v8333 = vadd.f32 0.0, %v8332
        %8334 = vdwg.mxu0
        %v8337 = vcombine.low %v8331, %v8333
        %v8339 = vunpack.c.l.s4 1983009808
        %v8340 = vunpack.c.0.s8 %v8339
        %v8341 = vlaneseq
        %v8342 = vshrl.u32 %v8341, 7
        %v8343 = vsub.s32 %v8340, %v8342
        %v8344 = vrot.slane %v8337, %v8343
        %v8346 = vadd.f32 %v8242, %v8344
        %s8347 = scalar_lea.vmem %s299, 2304 [#allocation10]
        %v8348 = vld [vmem:[%s8347] sm:$0xff]
        %v8349 = vld [vmem:[%s8347 + $0x8] sm:$0xff]
        %v8350 = vld [vmem:[%s8347 + $0x10] sm:$0xff]
        %v8351 = vld [vmem:[%s8347 + $0x18] sm:$0xff]
        %v8352 = vld [vmem:[%s8347 + $0x20] sm:$0xff]
        %v8353 = vld [vmem:[%s8347 + $0x28] sm:$0xff]
        %v8354 = vld [vmem:[%s8347 + $0x30] sm:$0xff]
        %v8355 = vld [vmem:[%s8347 + $0x38] sm:$0xff]
        %v8356 = vld [vmem:[%s8347 + $0x40] sm:$0xff]
        %v8357 = vld [vmem:[%s8347 + $0x48] sm:$0xff]
        %v8358 = vld [vmem:[%s8347 + $0x50] sm:$0xff]
        %v8359 = vld [vmem:[%s8347 + $0x58] sm:$0xff]
        %v8360 = vld [vmem:[%s8347 + $0x60] sm:$0xff]
        %v8361 = vld [vmem:[%s8347 + $0x68] sm:$0xff]
        %v8362 = vld [vmem:[%s8347 + $0x70] sm:$0xff]
        %v8363 = vld [vmem:[%s8347 + $0x78] sm:$0xff]
        %v8364 = vrot.slane %v6449, 2
        %v8365 = vrot.slane %v6453, 1
        %v8366 = vsel %vm6475, %v8365, %v8364
        %v8367 = vsel %vm6477, %v8366, 0
        %8369 = vmatprep.subr.mxu0 %v8349
        %8370 = vmatpush1.msra.mxu0 %v8348
        %8371 = vmatprep.subr.mxu0 %v8351
        %8372 = vmatpush1.msra.mxu0 %v8350
        %8373 = vmatprep.subr.mxu0 %v8353
        %8374 = vmatpush1.msra.mxu0 %v8352
        %8375 = vmatprep.subr.mxu0 %v8355
        %8376 = vmatpush1.msra.mxu0 %v8354
        %8377 = vmatprep.subr.mxu0 %v8357
        %8378 = vmatpush1.msra.mxu0 %v8356
        %8379 = vmatprep.subr.mxu0 %v8359
        %8380 = vmatpush1.msra.mxu0 %v8358
        %8381 = vmatprep.subr.mxu0 %v8361
        %8382 = vmatpush1.msra.mxu0 %v8360
        %8383 = vmatprep.subr.mxu0 %v8363
        %8384 = vmatpush1.msra.mxu0 %v8362
        %8385 = vmatprep.subr.mxu0 0.0
        %8386 = vmatpush1.msra.mxu0 0.0
        %8387 = vmatprep.subr.mxu0 0.0
        %8388 = vmatpush1.msra.mxu0 0.0
        %8389 = vmatprep.subr.mxu0 0.0
        %8390 = vmatpush1.msra.mxu0 0.0
        %8391 = vmatprep.subr.mxu0 0.0
        %8392 = vmatpush1.msra.mxu0 0.0
        %8393 = vmatprep.subr.mxu0 0.0
        %8394 = vmatpush1.msra.mxu0 0.0
        %8395 = vmatprep.subr.mxu0 0.0
        %8396 = vmatpush1.msra.mxu0 0.0
        %8397 = vmatprep.subr.mxu0 0.0
        %8398 = vmatpush1.msra.mxu0 0.0
        %8399 = vmatprep.subr.mxu0 0.0
        %8400 = vmatpush1.msra.mxu0 0.0
        %8401 = vmatprep.subr.mxu0 0.0
        %8402 = vmatpush1.msra.mxu0 0.0
        %8403 = vmatprep.subr.mxu0 0.0
        %8404 = vmatpush1.msra.mxu0 0.0
        %8405 = vmatprep.subr.mxu0 0.0
        %8406 = vmatpush1.msra.mxu0 0.0
        %8407 = vmatprep.subr.mxu0 0.0
        %8408 = vmatpush1.msra.mxu0 0.0
        %8409 = vmatprep.subr.mxu0 0.0
        %8410 = vmatpush1.msra.mxu0 0.0
        %8411 = vmatprep.subr.mxu0 0.0
        %8412 = vmatpush1.msra.mxu0 0.0
        %8413 = vmatprep.subr.mxu0 0.0
        %8414 = vmatpush1.msra.mxu0 0.0
        %8415 = vmatprep.subr.mxu0 0.0
        %8416 = vmatpush1.msra.mxu0 0.0
        %8417 = vmatprep.subr.mxu0 0.0
        %8418 = vmatpush1.msra.mxu0 0.0
        %8419 = vmatprep.subr.mxu0 0.0
        %8420 = vmatpush1.msra.mxu0 0.0
        %8421 = vmatprep.subr.mxu0 0.0
        %8422 = vmatpush1.msra.mxu0 0.0
        %8423 = vmatprep.subr.mxu0 0.0
        %8424 = vmatpush1.msra.mxu0 0.0
        %8425 = vmatprep.subr.mxu0 0.0
        %8426 = vmatpush1.msra.mxu0 0.0
        %8427 = vmatprep.subr.mxu0 0.0
        %8428 = vmatpush1.msra.mxu0 0.0
        %8429 = vmatprep.subr.mxu0 0.0
        %8430 = vmatpush1.msra.mxu0 0.0
        %8431 = vmatprep.subr.mxu0 0.0
        %8432 = vmatpush1.msra.mxu0 0.0
        %8433 = vmatprep.mubr.f32.mxu0 0.0
        %8434 = vmatmul.mubr.f32.gmra.mrb[0].mxu0 %v8367
        %v8435 = vpop.f32.mrb[0].mxu0
        %v8436 = vadd.f32 0.0, %v8435
        %v8437 = vpop.f32.mrb[0].mxu0
        %v8438 = vadd.f32 0.0, %v8437
        %8439 = vdwg.mxu0
        %v8442 = vcombine.low %v8436, %v8438
        %v8444 = vunpack.c.l.s4 1983009808
        %v8445 = vunpack.c.0.s8 %v8444
        %v8446 = vlaneseq
        %v8447 = vshrl.u32 %v8446, 7
        %v8448 = vsub.s32 %v8445, %v8447
        %v8449 = vrot.slane %v8442, %v8448
        %v8451 = vadd.f32 %v8346, %v8449
        %s8452 = scalar_lea.vmem %s299, 2432 [#allocation10]
        %v8453 = vld [vmem:[%s8452] sm:$0xff]
        %v8454 = vld [vmem:[%s8452 + $0x8] sm:$0xff]
        %v8455 = vld [vmem:[%s8452 + $0x10] sm:$0xff]
        %v8456 = vld [vmem:[%s8452 + $0x18] sm:$0xff]
        %v8457 = vld [vmem:[%s8452 + $0x20] sm:$0xff]
        %v8458 = vld [vmem:[%s8452 + $0x28] sm:$0xff]
        %v8459 = vld [vmem:[%s8452 + $0x30] sm:$0xff]
        %v8460 = vld [vmem:[%s8452 + $0x38] sm:$0xff]
        %v8461 = vld [vmem:[%s8452 + $0x40] sm:$0xff]
        %v8462 = vld [vmem:[%s8452 + $0x48] sm:$0xff]
        %v8463 = vld [vmem:[%s8452 + $0x50] sm:$0xff]
        %v8464 = vld [vmem:[%s8452 + $0x58] sm:$0xff]
        %v8465 = vld [vmem:[%s8452 + $0x60] sm:$0xff]
        %v8466 = vld [vmem:[%s8452 + $0x68] sm:$0xff]
        %v8467 = vld [vmem:[%s8452 + $0x70] sm:$0xff]
        %v8468 = vld [vmem:[%s8452 + $0x78] sm:$0xff]
        %v8469 = vrot.slane %v6449, 3
        %v8470 = vrot.slane %v6453, 2
        %v8471 = vsel %vm6475, %v8470, %v8469
        %v8472 = vsel %vm6477, %v8471, 0
        %8474 = vmatprep.subr.mxu0 %v8454
        %8475 = vmatpush1.msra.mxu0 %v8453
        %8476 = vmatprep.subr.mxu0 %v8456
        %8477 = vmatpush1.msra.mxu0 %v8455
        %8478 = vmatprep.subr.mxu0 %v8458
        %8479 = vmatpush1.msra.mxu0 %v8457
        %8480 = vmatprep.subr.mxu0 %v8460
        %8481 = vmatpush1.msra.mxu0 %v8459
        %8482 = vmatprep.subr.mxu0 %v8462
        %8483 = vmatpush1.msra.mxu0 %v8461
        %8484 = vmatprep.subr.mxu0 %v8464
        %8485 = vmatpush1.msra.mxu0 %v8463
        %8486 = vmatprep.subr.mxu0 %v8466
        %8487 = vmatpush1.msra.mxu0 %v8465
        %8488 = vmatprep.subr.mxu0 %v8468
        %8489 = vmatpush1.msra.mxu0 %v8467
        %8490 = vmatprep.subr.mxu0 0.0
        %8491 = vmatpush1.msra.mxu0 0.0
        %8492 = vmatprep.subr.mxu0 0.0
        %8493 = vmatpush1.msra.mxu0 0.0
        %8494 = vmatprep.subr.mxu0 0.0
        %8495 = vmatpush1.msra.mxu0 0.0
        %8496 = vmatprep.subr.mxu0 0.0
        %8497 = vmatpush1.msra.mxu0 0.0
        %8498 = vmatprep.subr.mxu0 0.0
        %8499 = vmatpush1.msra.mxu0 0.0
        %8500 = vmatprep.subr.mxu0 0.0
        %8501 = vmatpush1.msra.mxu0 0.0
        %8502 = vmatprep.subr.mxu0 0.0
        %8503 = vmatpush1.msra.mxu0 0.0
        %8504 = vmatprep.subr.mxu0 0.0
        %8505 = vmatpush1.msra.mxu0 0.0
        %8506 = vmatprep.subr.mxu0 0.0
        %8507 = vmatpush1.msra.mxu0 0.0
        %8508 = vmatprep.subr.mxu0 0.0
        %8509 = vmatpush1.msra.mxu0 0.0
        %8510 = vmatprep.subr.mxu0 0.0
        %8511 = vmatpush1.msra.mxu0 0.0
        %8512 = vmatprep.subr.mxu0 0.0
        %8513 = vmatpush1.msra.mxu0 0.0
        %8514 = vmatprep.subr.mxu0 0.0
        %8515 = vmatpush1.msra.mxu0 0.0
        %8516 = vmatprep.subr.mxu0 0.0
        %8517 = vmatpush1.msra.mxu0 0.0
        %8518 = vmatprep.subr.mxu0 0.0
        %8519 = vmatpush1.msra.mxu0 0.0
        %8520 = vmatprep.subr.mxu0 0.0
        %8521 = vmatpush1.msra.mxu0 0.0
        %8522 = vmatprep.subr.mxu0 0.0
        %8523 = vmatpush1.msra.mxu0 0.0
        %8524 = vmatprep.subr.mxu0 0.0
        %8525 = vmatpush1.msra.mxu0 0.0
        %8526 = vmatprep.subr.mxu0 0.0
        %8527 = vmatpush1.msra.mxu0 0.0
        %8528 = vmatprep.subr.mxu0 0.0
        %8529 = vmatpush1.msra.mxu0 0.0
        %8530 = vmatprep.subr.mxu0 0.0
        %8531 = vmatpush1.msra.mxu0 0.0
        %8532 = vmatprep.subr.mxu0 0.0
        %8533 = vmatpush1.msra.mxu0 0.0
        %8534 = vmatprep.subr.mxu0 0.0
        %8535 = vmatpush1.msra.mxu0 0.0
        %8536 = vmatprep.subr.mxu0 0.0
        %8537 = vmatpush1.msra.mxu0 0.0
        %8538 = vmatprep.mubr.f32.mxu0 0.0
        %8539 = vmatmul.mubr.f32.gmra.mrb[0].mxu0 %v8472
        %v8540 = vpop.f32.mrb[0].mxu0
        %v8541 = vadd.f32 0.0, %v8540
        %v8542 = vpop.f32.mrb[0].mxu0
        %v8543 = vadd.f32 0.0, %v8542
        %8544 = vdwg.mxu0
        %v8547 = vcombine.low %v8541, %v8543
        %v8549 = vunpack.c.l.s4 1983009808
        %v8550 = vunpack.c.0.s8 %v8549
        %v8551 = vlaneseq
        %v8552 = vshrl.u32 %v8551, 7
        %v8553 = vsub.s32 %v8550, %v8552
        %v8554 = vrot.slane %v8547, %v8553
        %v8556 = vadd.f32 %v8451, %v8554
        %s8557 = scalar_lea.vmem %s299, 2560 [#allocation10]
        %v8558 = vld [vmem:[%s8557] sm:$0xff]
        %v8559 = vld [vmem:[%s8557 + $0x8] sm:$0xff]
        %v8560 = vld [vmem:[%s8557 + $0x10] sm:$0xff]
        %v8561 = vld [vmem:[%s8557 + $0x18] sm:$0xff]
        %v8562 = vld [vmem:[%s8557 + $0x20] sm:$0xff]
        %v8563 = vld [vmem:[%s8557 + $0x28] sm:$0xff]
        %v8564 = vld [vmem:[%s8557 + $0x30] sm:$0xff]
        %v8565 = vld [vmem:[%s8557 + $0x38] sm:$0xff]
        %v8566 = vld [vmem:[%s8557 + $0x40] sm:$0xff]
        %v8567 = vld [vmem:[%s8557 + $0x48] sm:$0xff]
        %v8568 = vld [vmem:[%s8557 + $0x50] sm:$0xff]
        %v8569 = vld [vmem:[%s8557 + $0x58] sm:$0xff]
        %v8570 = vld [vmem:[%s8557 + $0x60] sm:$0xff]
        %v8571 = vld [vmem:[%s8557 + $0x68] sm:$0xff]
        %v8572 = vld [vmem:[%s8557 + $0x70] sm:$0xff]
        %v8573 = vld [vmem:[%s8557 + $0x78] sm:$0xff]
        %v8574 = vrot.slane %v6449, 4
        %v8575 = vrot.slane %v6453, 3
        %v8576 = vsel %vm6475, %v8575, %v8574
        %v8577 = vsel %vm6477, %v8576, 0
        %8579 = vmatprep.subr.mxu0 %v8559
        %8580 = vmatpush1.msra.mxu0 %v8558
        %8581 = vmatprep.subr.mxu0 %v8561
        %8582 = vmatpush1.msra.mxu0 %v8560
        %8583 = vmatprep.subr.mxu0 %v8563
        %8584 = vmatpush1.msra.mxu0 %v8562
        %8585 = vmatprep.subr.mxu0 %v8565
        %8586 = vmatpush1.msra.mxu0 %v8564
        %8587 = vmatprep.subr.mxu0 %v8567
        %8588 = vmatpush1.msra.mxu0 %v8566
        %8589 = vmatprep.subr.mxu0 %v8569
        %8590 = vmatpush1.msra.mxu0 %v8568
        %8591 = vmatprep.subr.mxu0 %v8571
        %8592 = vmatpush1.msra.mxu0 %v8570
        %8593 = vmatprep.subr.mxu0 %v8573
        %8594 = vmatpush1.msra.mxu0 %v8572
        %8595 = vmatprep.subr.mxu0 0.0
        %8596 = vmatpush1.msra.mxu0 0.0
        %8597 = vmatprep.subr.mxu0 0.0
        %8598 = vmatpush1.msra.mxu0 0.0
        %8599 = vmatprep.subr.mxu0 0.0
        %8600 = vmatpush1.msra.mxu0 0.0
        %8601 = vmatprep.subr.mxu0 0.0
        %8602 = vmatpush1.msra.mxu0 0.0
        %8603 = vmatprep.subr.mxu0 0.0
        %8604 = vmatpush1.msra.mxu0 0.0
        %8605 = vmatprep.subr.mxu0 0.0
        %8606 = vmatpush1.msra.mxu0 0.0
        %8607 = vmatprep.subr.mxu0 0.0
        %8608 = vmatpush1.msra.mxu0 0.0
        %8609 = vmatprep.subr.mxu0 0.0
        %8610 = vmatpush1.msra.mxu0 0.0
        %8611 = vmatprep.subr.mxu0 0.0
        %8612 = vmatpush1.msra.mxu0 0.0
        %8613 = vmatprep.subr.mxu0 0.0
        %8614 = vmatpush1.msra.mxu0 0.0
        %8615 = vmatprep.subr.mxu0 0.0
        %8616 = vmatpush1.msra.mxu0 0.0
        %8617 = vmatprep.subr.mxu0 0.0
        %8618 = vmatpush1.msra.mxu0 0.0
        %8619 = vmatprep.subr.mxu0 0.0
        %8620 = vmatpush1.msra.mxu0 0.0
        %8621 = vmatprep.subr.mxu0 0.0
        %8622 = vmatpush1.msra.mxu0 0.0
        %8623 = vmatprep.subr.mxu0 0.0
        %8624 = vmatpush1.msra.mxu0 0.0
        %8625 = vmatprep.subr.mxu0 0.0
        %8626 = vmatpush1.msra.mxu0 0.0
        %8627 = vmatprep.subr.mxu0 0.0
        %8628 = vmatpush1.msra.mxu0 0.0
        %8629 = vmatprep.subr.mxu0 0.0
        %8630 = vmatpush1.msra.mxu0 0.0
        %8631 = vmatprep.subr.mxu0 0.0
        %8632 = vmatpush1.msra.mxu0 0.0
        %8633 = vmatprep.subr.mxu0 0.0
        %8634 = vmatpush1.msra.mxu0 0.0
        %8635 = vmatprep.subr.mxu0 0.0
        %8636 = vmatpush1.msra.mxu0 0.0
        %8637 = vmatprep.subr.mxu0 0.0
        %8638 = vmatpush1.msra.mxu0 0.0
        %8639 = vmatprep.subr.mxu0 0.0
        %8640 = vmatpush1.msra.mxu0 0.0
        %8641 = vmatprep.subr.mxu0 0.0
        %8642 = vmatpush1.msra.mxu0 0.0
        %8643 = vmatprep.mubr.f32.mxu0 0.0
        %8644 = vmatmul.mubr.f32.gmra.mrb[0].mxu0 %v8577
        %v8645 = vpop.f32.mrb[0].mxu0
        %v8646 = vadd.f32 0.0, %v8645
        %v8647 = vpop.f32.mrb[0].mxu0
        %v8648 = vadd.f32 0.0, %v8647
        %8649 = vdwg.mxu0
        %v8652 = vcombine.low %v8646, %v8648
        %v8654 = vunpack.c.l.s4 1983009808
        %v8655 = vunpack.c.0.s8 %v8654
        %v8656 = vlaneseq
        %v8657 = vshrl.u32 %v8656, 7
        %v8658 = vsub.s32 %v8655, %v8657
        %v8659 = vrot.slane %v8652, %v8658
        %v8661 = vadd.f32 %v8556, %v8659
        %s8662 = scalar_lea.vmem %s299, 2688 [#allocation10]
        %v8663 = vld [vmem:[%s8662] sm:$0xff]
        %v8664 = vld [vmem:[%s8662 + $0x8] sm:$0xff]
        %v8665 = vld [vmem:[%s8662 + $0x10] sm:$0xff]
        %v8666 = vld [vmem:[%s8662 + $0x18] sm:$0xff]
        %v8667 = vld [vmem:[%s8662 + $0x20] sm:$0xff]
        %v8668 = vld [vmem:[%s8662 + $0x28] sm:$0xff]
        %v8669 = vld [vmem:[%s8662 + $0x30] sm:$0xff]
        %v8670 = vld [vmem:[%s8662 + $0x38] sm:$0xff]
        %v8671 = vld [vmem:[%s8662 + $0x40] sm:$0xff]
        %v8672 = vld [vmem:[%s8662 + $0x48] sm:$0xff]
        %v8673 = vld [vmem:[%s8662 + $0x50] sm:$0xff]
        %v8674 = vld [vmem:[%s8662 + $0x58] sm:$0xff]
        %v8675 = vld [vmem:[%s8662 + $0x60] sm:$0xff]
        %v8676 = vld [vmem:[%s8662 + $0x68] sm:$0xff]
        %v8677 = vld [vmem:[%s8662 + $0x70] sm:$0xff]
        %v8678 = vld [vmem:[%s8662 + $0x78] sm:$0xff]
        %v8679 = vrot.slane %v6449, 5
        %v8680 = vrot.slane %v6453, 4
        %v8681 = vsel %vm6475, %v8680, %v8679
        %v8682 = vsel %vm6477, %v8681, 0
        %8684 = vmatprep.subr.mxu0 %v8664
        %8685 = vmatpush1.msra.mxu0 %v8663
        %8686 = vmatprep.subr.mxu0 %v8666
        %8687 = vmatpush1.msra.mxu0 %v8665
        %8688 = vmatprep.subr.mxu0 %v8668
        %8689 = vmatpush1.msra.mxu0 %v8667
        %8690 = vmatprep.subr.mxu0 %v8670
        %8691 = vmatpush1.msra.mxu0 %v8669
        %8692 = vmatprep.subr.mxu0 %v8672
        %8693 = vmatpush1.msra.mxu0 %v8671
        %8694 = vmatprep.subr.mxu0 %v8674
        %8695 = vmatpush1.msra.mxu0 %v8673
        %8696 = vmatprep.subr.mxu0 %v8676
        %8697 = vmatpush1.msra.mxu0 %v8675
        %8698 = vmatprep.subr.mxu0 %v8678
        %8699 = vmatpush1.msra.mxu0 %v8677
        %8700 = vmatprep.subr.mxu0 0.0
        %8701 = vmatpush1.msra.mxu0 0.0
        %8702 = vmatprep.subr.mxu0 0.0
        %8703 = vmatpush1.msra.mxu0 0.0
        %8704 = vmatprep.subr.mxu0 0.0
        %8705 = vmatpush1.msra.mxu0 0.0
        %8706 = vmatprep.subr.mxu0 0.0
        %8707 = vmatpush1.msra.mxu0 0.0
        %8708 = vmatprep.subr.mxu0 0.0
        %8709 = vmatpush1.msra.mxu0 0.0
        %8710 = vmatprep.subr.mxu0 0.0
        %8711 = vmatpush1.msra.mxu0 0.0
        %8712 = vmatprep.subr.mxu0 0.0
        %8713 = vmatpush1.msra.mxu0 0.0
        %8714 = vmatprep.subr.mxu0 0.0
        %8715 = vmatpush1.msra.mxu0 0.0
        %8716 = vmatprep.subr.mxu0 0.0
        %8717 = vmatpush1.msra.mxu0 0.0
        %8718 = vmatprep.subr.mxu0 0.0
        %8719 = vmatpush1.msra.mxu0 0.0
        %8720 = vmatprep.subr.mxu0 0.0
        %8721 = vmatpush1.msra.mxu0 0.0
        %8722 = vmatprep.subr.mxu0 0.0
        %8723 = vmatpush1.msra.mxu0 0.0
        %8724 = vmatprep.subr.mxu0 0.0
        %8725 = vmatpush1.msra.mxu0 0.0
        %8726 = vmatprep.subr.mxu0 0.0
        %8727 = vmatpush1.msra.mxu0 0.0
        %8728 = vmatprep.subr.mxu0 0.0
        %8729 = vmatpush1.msra.mxu0 0.0
        %8730 = vmatprep.subr.mxu0 0.0
        %8731 = vmatpush1.msra.mxu0 0.0
        %8732 = vmatprep.subr.mxu0 0.0
        %8733 = vmatpush1.msra.mxu0 0.0
        %8734 = vmatprep.subr.mxu0 0.0
        %8735 = vmatpush1.msra.mxu0 0.0
        %8736 = vmatprep.subr.mxu0 0.0
        %8737 = vmatpush1.msra.mxu0 0.0
        %8738 = vmatprep.subr.mxu0 0.0
        %8739 = vmatpush1.msra.mxu0 0.0
        %8740 = vmatprep.subr.mxu0 0.0
        %8741 = vmatpush1.msra.mxu0 0.0
        %8742 = vmatprep.subr.mxu0 0.0
        %8743 = vmatpush1.msra.mxu0 0.0
        %8744 = vmatprep.subr.mxu0 0.0
        %8745 = vmatpush1.msra.mxu0 0.0
        %8746 = vmatprep.subr.mxu0 0.0
        %8747 = vmatpush1.msra.mxu0 0.0
        %8748 = vmatprep.mubr.f32.mxu0 0.0
        %8749 = vmatmul.mubr.f32.gmra.mrb[0].mxu0 %v8682
        %v8750 = vpop.f32.mrb[0].mxu0
        %v8751 = vadd.f32 0.0, %v8750
        %v8752 = vpop.f32.mrb[0].mxu0
        %v8753 = vadd.f32 0.0, %v8752
        %8754 = vdwg.mxu0
        %v8757 = vcombine.low %v8751, %v8753
        %v8759 = vunpack.c.l.s4 1983009808
        %v8760 = vunpack.c.0.s8 %v8759
        %v8761 = vlaneseq
        %v8762 = vshrl.u32 %v8761, 7
        %v8763 = vsub.s32 %v8760, %v8762
        %v8764 = vrot.slane %v8757, %v8763
        %v8766 = vadd.f32 %v8661, %v8764
        %s8767 = scalar_lea.vmem %s299, 2816 [#allocation10]
        %v8768 = vld [vmem:[%s8767] sm:$0xff]
        %v8769 = vld [vmem:[%s8767 + $0x8] sm:$0xff]
        %v8770 = vld [vmem:[%s8767 + $0x10] sm:$0xff]
        %v8771 = vld [vmem:[%s8767 + $0x18] sm:$0xff]
        %v8772 = vld [vmem:[%s8767 + $0x20] sm:$0xff]
        %v8773 = vld [vmem:[%s8767 + $0x28] sm:$0xff]
        %v8774 = vld [vmem:[%s8767 + $0x30] sm:$0xff]
        %v8775 = vld [vmem:[%s8767 + $0x38] sm:$0xff]
        %v8776 = vld [vmem:[%s8767 + $0x40] sm:$0xff]
        %v8777 = vld [vmem:[%s8767 + $0x48] sm:$0xff]
        %v8778 = vld [vmem:[%s8767 + $0x50] sm:$0xff]
        %v8779 = vld [vmem:[%s8767 + $0x58] sm:$0xff]
        %v8780 = vld [vmem:[%s8767 + $0x60] sm:$0xff]
        %v8781 = vld [vmem:[%s8767 + $0x68] sm:$0xff]
        %v8782 = vld [vmem:[%s8767 + $0x70] sm:$0xff]
        %v8783 = vld [vmem:[%s8767 + $0x78] sm:$0xff]
        %v8784 = vrot.slane %v6449, 6
        %v8785 = vrot.slane %v6453, 5
        %v8786 = vsel %vm6475, %v8785, %v8784
        %v8787 = vsel %vm6477, %v8786, 0
        %8789 = vmatprep.subr.mxu0 %v8769
        %8790 = vmatpush1.msra.mxu0 %v8768
        %8791 = vmatprep.subr.mxu0 %v8771
        %8792 = vmatpush1.msra.mxu0 %v8770
        %8793 = vmatprep.subr.mxu0 %v8773
        %8794 = vmatpush1.msra.mxu0 %v8772
        %8795 = vmatprep.subr.mxu0 %v8775
        %8796 = vmatpush1.msra.mxu0 %v8774
        %8797 = vmatprep.subr.mxu0 %v8777
        %8798 = vmatpush1.msra.mxu0 %v8776
        %8799 = vmatprep.subr.mxu0 %v8779
        %8800 = vmatpush1.msra.mxu0 %v8778
        %8801 = vmatprep.subr.mxu0 %v8781
        %8802 = vmatpush1.msra.mxu0 %v8780
        %8803 = vmatprep.subr.mxu0 %v8783
        %8804 = vmatpush1.msra.mxu0 %v8782
        %8805 = vmatprep.subr.mxu0 0.0
        %8806 = vmatpush1.msra.mxu0 0.0
        %8807 = vmatprep.subr.mxu0 0.0
        %8808 = vmatpush1.msra.mxu0 0.0
        %8809 = vmatprep.subr.mxu0 0.0
        %8810 = vmatpush1.msra.mxu0 0.0
        %8811 = vmatprep.subr.mxu0 0.0
        %8812 = vmatpush1.msra.mxu0 0.0
        %8813 = vmatprep.subr.mxu0 0.0
        %8814 = vmatpush1.msra.mxu0 0.0
        %8815 = vmatprep.subr.mxu0 0.0
        %8816 = vmatpush1.msra.mxu0 0.0
        %8817 = vmatprep.subr.mxu0 0.0
        %8818 = vmatpush1.msra.mxu0 0.0
        %8819 = vmatprep.subr.mxu0 0.0
        %8820 = vmatpush1.msra.mxu0 0.0
        %8821 = vmatprep.subr.mxu0 0.0
        %8822 = vmatpush1.msra.mxu0 0.0
        %8823 = vmatprep.subr.mxu0 0.0
        %8824 = vmatpush1.msra.mxu0 0.0
        %8825 = vmatprep.subr.mxu0 0.0
        %8826 = vmatpush1.msra.mxu0 0.0
        %8827 = vmatprep.subr.mxu0 0.0
        %8828 = vmatpush1.msra.mxu0 0.0
        %8829 = vmatprep.subr.mxu0 0.0
        %8830 = vmatpush1.msra.mxu0 0.0
        %8831 = vmatprep.subr.mxu0 0.0
        %8832 = vmatpush1.msra.mxu0 0.0
        %8833 = vmatprep.subr.mxu0 0.0
        %8834 = vmatpush1.msra.mxu0 0.0
        %8835 = vmatprep.subr.mxu0 0.0
        %8836 = vmatpush1.msra.mxu0 0.0
        %8837 = vmatprep.subr.mxu0 0.0
        %8838 = vmatpush1.msra.mxu0 0.0
        %8839 = vmatprep.subr.mxu0 0.0
        %8840 = vmatpush1.msra.mxu0 0.0
        %8841 = vmatprep.subr.mxu0 0.0
        %8842 = vmatpush1.msra.mxu0 0.0
        %8843 = vmatprep.subr.mxu0 0.0
        %8844 = vmatpush1.msra.mxu0 0.0
        %8845 = vmatprep.subr.mxu0 0.0
        %8846 = vmatpush1.msra.mxu0 0.0
        %8847 = vmatprep.subr.mxu0 0.0
        %8848 = vmatpush1.msra.mxu0 0.0
        %8849 = vmatprep.subr.mxu0 0.0
        %8850 = vmatpush1.msra.mxu0 0.0
        %8851 = vmatprep.subr.mxu0 0.0
        %8852 = vmatpush1.msra.mxu0 0.0
        %8853 = vmatprep.mubr.f32.mxu0 0.0
        %8854 = vmatmul.mubr.f32.gmra.mrb[0].mxu0 %v8787
        %v8855 = vpop.f32.mrb[0].mxu0
        %v8856 = vadd.f32 0.0, %v8855
        %v8857 = vpop.f32.mrb[0].mxu0
        %v8858 = vadd.f32 0.0, %v8857
        %8859 = vdwg.mxu0
        %v8862 = vcombine.low %v8856, %v8858
        %v8864 = vunpack.c.l.s4 1983009808
        %v8865 = vunpack.c.0.s8 %v8864
        %v8866 = vlaneseq
        %v8867 = vshrl.u32 %v8866, 7
        %v8868 = vsub.s32 %v8865, %v8867
        %v8869 = vrot.slane %v8862, %v8868
        %v8871 = vadd.f32 %v8766, %v8869
        %s8872 = scalar_lea.vmem %s299, 2944 [#allocation10]
        %v8873 = vld [vmem:[%s8872] sm:$0xff]
        %v8874 = vld [vmem:[%s8872 + $0x8] sm:$0xff]
        %v8875 = vld [vmem:[%s8872 + $0x10] sm:$0xff]
        %v8876 = vld [vmem:[%s8872 + $0x18] sm:$0xff]
        %v8877 = vld [vmem:[%s8872 + $0x20] sm:$0xff]
        %v8878 = vld [vmem:[%s8872 + $0x28] sm:$0xff]
        %v8879 = vld [vmem:[%s8872 + $0x30] sm:$0xff]
        %v8880 = vld [vmem:[%s8872 + $0x38] sm:$0xff]
        %v8881 = vld [vmem:[%s8872 + $0x40] sm:$0xff]
        %v8882 = vld [vmem:[%s8872 + $0x48] sm:$0xff]
        %v8883 = vld [vmem:[%s8872 + $0x50] sm:$0xff]
        %v8884 = vld [vmem:[%s8872 + $0x58] sm:$0xff]
        %v8885 = vld [vmem:[%s8872 + $0x60] sm:$0xff]
        %v8886 = vld [vmem:[%s8872 + $0x68] sm:$0xff]
        %v8887 = vld [vmem:[%s8872 + $0x70] sm:$0xff]
        %v8888 = vld [vmem:[%s8872 + $0x78] sm:$0xff]
        %v8889 = vrot.slane %v6449, 7
        %v8890 = vrot.slane %v6453, 6
        %v8891 = vsel %vm6475, %v8890, %v8889
        %v8892 = vsel %vm6477, %v8891, 0
        %8894 = vmatprep.subr.mxu0 %v8874
        %8895 = vmatpush1.msra.mxu0 %v8873
        %8896 = vmatprep.subr.mxu0 %v8876
        %8897 = vmatpush1.msra.mxu0 %v8875
        %8898 = vmatprep.subr.mxu0 %v8878
        %8899 = vmatpush1.msra.mxu0 %v8877
        %8900 = vmatprep.subr.mxu0 %v8880
        %8901 = vmatpush1.msra.mxu0 %v8879
        %8902 = vmatprep.subr.mxu0 %v8882
        %8903 = vmatpush1.msra.mxu0 %v8881
        %8904 = vmatprep.subr.mxu0 %v8884
        %8905 = vmatpush1.msra.mxu0 %v8883
        %8906 = vmatprep.subr.mxu0 %v8886
        %8907 = vmatpush1.msra.mxu0 %v8885
        %8908 = vmatprep.subr.mxu0 %v8888
        %8909 = vmatpush1.msra.mxu0 %v8887
        %8910 = vmatprep.subr.mxu0 0.0
        %8911 = vmatpush1.msra.mxu0 0.0
        %8912 = vmatprep.subr.mxu0 0.0
        %8913 = vmatpush1.msra.mxu0 0.0
        %8914 = vmatprep.subr.mxu0 0.0
        %8915 = vmatpush1.msra.mxu0 0.0
        %8916 = vmatprep.subr.mxu0 0.0
        %8917 = vmatpush1.msra.mxu0 0.0
        %8918 = vmatprep.subr.mxu0 0.0
        %8919 = vmatpush1.msra.mxu0 0.0
        %8920 = vmatprep.subr.mxu0 0.0
        %8921 = vmatpush1.msra.mxu0 0.0
        %8922 = vmatprep.subr.mxu0 0.0
        %8923 = vmatpush1.msra.mxu0 0.0
        %8924 = vmatprep.subr.mxu0 0.0
        %8925 = vmatpush1.msra.mxu0 0.0
        %8926 = vmatprep.subr.mxu0 0.0
        %8927 = vmatpush1.msra.mxu0 0.0
        %8928 = vmatprep.subr.mxu0 0.0
        %8929 = vmatpush1.msra.mxu0 0.0
        %8930 = vmatprep.subr.mxu0 0.0
        %8931 = vmatpush1.msra.mxu0 0.0
        %8932 = vmatprep.subr.mxu0 0.0
        %8933 = vmatpush1.msra.mxu0 0.0
        %8934 = vmatprep.subr.mxu0 0.0
        %8935 = vmatpush1.msra.mxu0 0.0
        %8936 = vmatprep.subr.mxu0 0.0
        %8937 = vmatpush1.msra.mxu0 0.0
        %8938 = vmatprep.subr.mxu0 0.0
        %8939 = vmatpush1.msra.mxu0 0.0
        %8940 = vmatprep.subr.mxu0 0.0
        %8941 = vmatpush1.msra.mxu0 0.0
        %8942 = vmatprep.subr.mxu0 0.0
        %8943 = vmatpush1.msra.mxu0 0.0
        %8944 = vmatprep.subr.mxu0 0.0
        %8945 = vmatpush1.msra.mxu0 0.0
        %8946 = vmatprep.subr.mxu0 0.0
        %8947 = vmatpush1.msra.mxu0 0.0
        %8948 = vmatprep.subr.mxu0 0.0
        %8949 = vmatpush1.msra.mxu0 0.0
        %8950 = vmatprep.subr.mxu0 0.0
        %8951 = vmatpush1.msra.mxu0 0.0
        %8952 = vmatprep.subr.mxu0 0.0
        %8953 = vmatpush1.msra.mxu0 0.0
        %8954 = vmatprep.subr.mxu0 0.0
        %8955 = vmatpush1.msra.mxu0 0.0
        %8956 = vmatprep.subr.mxu0 0.0
        %8957 = vmatpush1.msra.mxu0 0.0
        %8958 = vmatprep.mubr.f32.mxu0 0.0
        %8959 = vmatmul.mubr.f32.gmra.mrb[0].mxu0 %v8892
        %v8960 = vpop.f32.mrb[0].mxu0
        %v8961 = vadd.f32 0.0, %v8960
        %v8962 = vpop.f32.mrb[0].mxu0
        %v8963 = vadd.f32 0.0, %v8962
        %8964 = vdwg.mxu0
        %v8967 = vcombine.low %v8961, %v8963
        %v8969 = vunpack.c.l.s4 1983009808
        %v8970 = vunpack.c.0.s8 %v8969
        %v8971 = vlaneseq
        %v8972 = vshrl.u32 %v8971, 7
        %v8973 = vsub.s32 %v8970, %v8972
        %v8974 = vrot.slane %v8967, %v8973
        %v8976 = vadd.f32 %v8871, %v8974
        %s8977 = scalar_lea.vmem %s299, 3072 [#allocation10]
        %v8978 = vld [vmem:[%s8977] sm:$0xff]
        %v8979 = vld [vmem:[%s8977 + $0x8] sm:$0xff]
        %v8980 = vld [vmem:[%s8977 + $0x10] sm:$0xff]
        %v8981 = vld [vmem:[%s8977 + $0x18] sm:$0xff]
        %v8982 = vld [vmem:[%s8977 + $0x20] sm:$0xff]
        %v8983 = vld [vmem:[%s8977 + $0x28] sm:$0xff]
        %v8984 = vld [vmem:[%s8977 + $0x30] sm:$0xff]
        %v8985 = vld [vmem:[%s8977 + $0x38] sm:$0xff]
        %v8986 = vld [vmem:[%s8977 + $0x40] sm:$0xff]
        %v8987 = vld [vmem:[%s8977 + $0x48] sm:$0xff]
        %v8988 = vld [vmem:[%s8977 + $0x50] sm:$0xff]
        %v8989 = vld [vmem:[%s8977 + $0x58] sm:$0xff]
        %v8990 = vld [vmem:[%s8977 + $0x60] sm:$0xff]
        %v8991 = vld [vmem:[%s8977 + $0x68] sm:$0xff]
        %v8992 = vld [vmem:[%s8977 + $0x70] sm:$0xff]
        %v8993 = vld [vmem:[%s8977 + $0x78] sm:$0xff]
        %v8996 = vrot.slane %v6454, 7
        %v8997 = vsel %vm6475, %v8996, %v6450
        %v8998 = vsel %vm6477, %v8997, 0
        %9000 = vmatprep.subr.mxu0 %v8979
        %9001 = vmatpush1.msra.mxu0 %v8978
        %9002 = vmatprep.subr.mxu0 %v8981
        %9003 = vmatpush1.msra.mxu0 %v8980
        %9004 = vmatprep.subr.mxu0 %v8983
        %9005 = vmatpush1.msra.mxu0 %v8982
        %9006 = vmatprep.subr.mxu0 %v8985
        %9007 = vmatpush1.msra.mxu0 %v8984
        %9008 = vmatprep.subr.mxu0 %v8987
        %9009 = vmatpush1.msra.mxu0 %v8986
        %9010 = vmatprep.subr.mxu0 %v8989
        %9011 = vmatpush1.msra.mxu0 %v8988
        %9012 = vmatprep.subr.mxu0 %v8991
        %9013 = vmatpush1.msra.mxu0 %v8990
        %9014 = vmatprep.subr.mxu0 %v8993
        %9015 = vmatpush1.msra.mxu0 %v8992
        %9016 = vmatprep.subr.mxu0 0.0
        %9017 = vmatpush1.msra.mxu0 0.0
        %9018 = vmatprep.subr.mxu0 0.0
        %9019 = vmatpush1.msra.mxu0 0.0
        %9020 = vmatprep.subr.mxu0 0.0
        %9021 = vmatpush1.msra.mxu0 0.0
        %9022 = vmatprep.subr.mxu0 0.0
        %9023 = vmatpush1.msra.mxu0 0.0
        %9024 = vmatprep.subr.mxu0 0.0
        %9025 = vmatpush1.msra.mxu0 0.0
        %9026 = vmatprep.subr.mxu0 0.0
        %9027 = vmatpush1.msra.mxu0 0.0
        %9028 = vmatprep.subr.mxu0 0.0
        %9029 = vmatpush1.msra.mxu0 0.0
        %9030 = vmatprep.subr.mxu0 0.0
        %9031 = vmatpush1.msra.mxu0 0.0
        %9032 = vmatprep.subr.mxu0 0.0
        %9033 = vmatpush1.msra.mxu0 0.0
        %9034 = vmatprep.subr.mxu0 0.0
        %9035 = vmatpush1.msra.mxu0 0.0
        %9036 = vmatprep.subr.mxu0 0.0
        %9037 = vmatpush1.msra.mxu0 0.0
        %9038 = vmatprep.subr.mxu0 0.0
        %9039 = vmatpush1.msra.mxu0 0.0
        %9040 = vmatprep.subr.mxu0 0.0
        %9041 = vmatpush1.msra.mxu0 0.0
        %9042 = vmatprep.subr.mxu0 0.0
        %9043 = vmatpush1.msra.mxu0 0.0
        %9044 = vmatprep.subr.mxu0 0.0
        %9045 = vmatpush1.msra.mxu0 0.0
        %9046 = vmatprep.subr.mxu0 0.0
        %9047 = vmatpush1.msra.mxu0 0.0
        %9048 = vmatprep.subr.mxu0 0.0
        %9049 = vmatpush1.msra.mxu0 0.0
        %9050 = vmatprep.subr.mxu0 0.0
        %9051 = vmatpush1.msra.mxu0 0.0
        %9052 = vmatprep.subr.mxu0 0.0
        %9053 = vmatpush1.msra.mxu0 0.0
        %9054 = vmatprep.subr.mxu0 0.0
        %9055 = vmatpush1.msra.mxu0 0.0
        %9056 = vmatprep.subr.mxu0 0.0
        %9057 = vmatpush1.msra.mxu0 0.0
        %9058 = vmatprep.subr.mxu0 0.0
        %9059 = vmatpush1.msra.mxu0 0.0
        %9060 = vmatprep.subr.mxu0 0.0
        %9061 = vmatpush1.msra.mxu0 0.0
        %9062 = vmatprep.subr.mxu0 0.0
        %9063 = vmatpush1.msra.mxu0 0.0
        %9064 = vmatprep.mubr.f32.mxu0 0.0
        %9065 = vmatmul.mubr.f32.gmra.mrb[0].mxu0 %v8998
        %v9066 = vpop.f32.mrb[0].mxu0
        %v9067 = vadd.f32 0.0, %v9066
        %v9068 = vpop.f32.mrb[0].mxu0
        %v9069 = vadd.f32 0.0, %v9068
        %9070 = vdwg.mxu0
        %v9073 = vcombine.low %v9067, %v9069
        %v9075 = vunpack.c.l.s4 1983009808
        %v9076 = vunpack.c.0.s8 %v9075
        %v9077 = vlaneseq
        %v9078 = vshrl.u32 %v9077, 7
        %v9079 = vsub.s32 %v9076, %v9078
        %v9080 = vrot.slane %v9073, %v9079
        %v9082 = vadd.f32 %v8976, %v9080
        %s9083 = scalar_lea.vmem %s299, 3200 [#allocation10]
        %v9084 = vld [vmem:[%s9083] sm:$0xff]
        %v9085 = vld [vmem:[%s9083 + $0x8] sm:$0xff]
        %v9086 = vld [vmem:[%s9083 + $0x10] sm:$0xff]
        %v9087 = vld [vmem:[%s9083 + $0x18] sm:$0xff]
        %v9088 = vld [vmem:[%s9083 + $0x20] sm:$0xff]
        %v9089 = vld [vmem:[%s9083 + $0x28] sm:$0xff]
        %v9090 = vld [vmem:[%s9083 + $0x30] sm:$0xff]
        %v9091 = vld [vmem:[%s9083 + $0x38] sm:$0xff]
        %v9092 = vld [vmem:[%s9083 + $0x40] sm:$0xff]
        %v9093 = vld [vmem:[%s9083 + $0x48] sm:$0xff]
        %v9094 = vld [vmem:[%s9083 + $0x50] sm:$0xff]
        %v9095 = vld [vmem:[%s9083 + $0x58] sm:$0xff]
        %v9096 = vld [vmem:[%s9083 + $0x60] sm:$0xff]
        %v9097 = vld [vmem:[%s9083 + $0x68] sm:$0xff]
        %v9098 = vld [vmem:[%s9083 + $0x70] sm:$0xff]
        %v9099 = vld [vmem:[%s9083 + $0x78] sm:$0xff]
        %v9100 = vrot.slane %v6450, 1
        %v9101 = vsel %vm6475, %v6454, %v9100
        %v9102 = vsel %vm6477, %v9101, 0
        %9104 = vmatprep.subr.mxu0 %v9085
        %9105 = vmatpush1.msra.mxu0 %v9084
        %9106 = vmatprep.subr.mxu0 %v9087
        %9107 = vmatpush1.msra.mxu0 %v9086
        %9108 = vmatprep.subr.mxu0 %v9089
        %9109 = vmatpush1.msra.mxu0 %v9088
        %9110 = vmatprep.subr.mxu0 %v9091
        %9111 = vmatpush1.msra.mxu0 %v9090
        %9112 = vmatprep.subr.mxu0 %v9093
        %9113 = vmatpush1.msra.mxu0 %v9092
        %9114 = vmatprep.subr.mxu0 %v9095
        %9115 = vmatpush1.msra.mxu0 %v9094
        %9116 = vmatprep.subr.mxu0 %v9097
        %9117 = vmatpush1.msra.mxu0 %v9096
        %9118 = vmatprep.subr.mxu0 %v9099
        %9119 = vmatpush1.msra.mxu0 %v9098
        %9120 = vmatprep.subr.mxu0 0.0
        %9121 = vmatpush1.msra.mxu0 0.0
        %9122 = vmatprep.subr.mxu0 0.0
        %9123 = vmatpush1.msra.mxu0 0.0
        %9124 = vmatprep.subr.mxu0 0.0
        %9125 = vmatpush1.msra.mxu0 0.0
        %9126 = vmatprep.subr.mxu0 0.0
        %9127 = vmatpush1.msra.mxu0 0.0
        %9128 = vmatprep.subr.mxu0 0.0
        %9129 = vmatpush1.msra.mxu0 0.0
        %9130 = vmatprep.subr.mxu0 0.0
        %9131 = vmatpush1.msra.mxu0 0.0
        %9132 = vmatprep.subr.mxu0 0.0
        %9133 = vmatpush1.msra.mxu0 0.0
        %9134 = vmatprep.subr.mxu0 0.0
        %9135 = vmatpush1.msra.mxu0 0.0
        %9136 = vmatprep.subr.mxu0 0.0
        %9137 = vmatpush1.msra.mxu0 0.0
        %9138 = vmatprep.subr.mxu0 0.0
        %9139 = vmatpush1.msra.mxu0 0.0
        %9140 = vmatprep.subr.mxu0 0.0
        %9141 = vmatpush1.msra.mxu0 0.0
        %9142 = vmatprep.subr.mxu0 0.0
        %9143 = vmatpush1.msra.mxu0 0.0
        %9144 = vmatprep.subr.mxu0 0.0
        %9145 = vmatpush1.msra.mxu0 0.0
        %9146 = vmatprep.subr.mxu0 0.0
        %9147 = vmatpush1.msra.mxu0 0.0
        %9148 = vmatprep.subr.mxu0 0.0
        %9149 = vmatpush1.msra.mxu0 0.0
        %9150 = vmatprep.subr.mxu0 0.0
        %9151 = vmatpush1.msra.mxu0 0.0
        %9152 = vmatprep.subr.mxu0 0.0
        %9153 = vmatpush1.msra.mxu0 0.0
        %9154 = vmatprep.subr.mxu0 0.0
        %9155 = vmatpush1.msra.mxu0 0.0
        %9156 = vmatprep.subr.mxu0 0.0
        %9157 = vmatpush1.msra.mxu0 0.0
        %9158 = vmatprep.subr.mxu0 0.0
        %9159 = vmatpush1.msra.mxu0 0.0
        %9160 = vmatprep.subr.mxu0 0.0
        %9161 = vmatpush1.msra.mxu0 0.0
        %9162 = vmatprep.subr.mxu0 0.0
        %9163 = vmatpush1.msra.mxu0 0.0
        %9164 = vmatprep.subr.mxu0 0.0
        %9165 = vmatpush1.msra.mxu0 0.0
        %9166 = vmatprep.subr.mxu0 0.0
        %9167 = vmatpush1.msra.mxu0 0.0
        %9168 = vmatprep.mubr.f32.mxu0 0.0
        %9169 = vmatmul.mubr.f32.gmra.mrb[0].mxu0 %v9102
        %v9170 = vpop.f32.mrb[0].mxu0
        %v9171 = vadd.f32 0.0, %v9170
        %v9172 = vpop.f32.mrb[0].mxu0
        %v9173 = vadd.f32 0.0, %v9172
        %9174 = vdwg.mxu0
        %v9177 = vcombine.low %v9171, %v9173
        %v9179 = vunpack.c.l.s4 1983009808
        %v9180 = vunpack.c.0.s8 %v9179
        %v9181 = vlaneseq
        %v9182 = vshrl.u32 %v9181, 7
        %v9183 = vsub.s32 %v9180, %v9182
        %v9184 = vrot.slane %v9177, %v9183
        %v9186 = vadd.f32 %v9082, %v9184
        %s9187 = scalar_lea.vmem %s299, 3328 [#allocation10]
        %v9188 = vld [vmem:[%s9187] sm:$0xff]
        %v9189 = vld [vmem:[%s9187 + $0x8] sm:$0xff]
        %v9190 = vld [vmem:[%s9187 + $0x10] sm:$0xff]
        %v9191 = vld [vmem:[%s9187 + $0x18] sm:$0xff]
        %v9192 = vld [vmem:[%s9187 + $0x20] sm:$0xff]
        %v9193 = vld [vmem:[%s9187 + $0x28] sm:$0xff]
        %v9194 = vld [vmem:[%s9187 + $0x30] sm:$0xff]
        %v9195 = vld [vmem:[%s9187 + $0x38] sm:$0xff]
        %v9196 = vld [vmem:[%s9187 + $0x40] sm:$0xff]
        %v9197 = vld [vmem:[%s9187 + $0x48] sm:$0xff]
        %v9198 = vld [vmem:[%s9187 + $0x50] sm:$0xff]
        %v9199 = vld [vmem:[%s9187 + $0x58] sm:$0xff]
        %v9200 = vld [vmem:[%s9187 + $0x60] sm:$0xff]
        %v9201 = vld [vmem:[%s9187 + $0x68] sm:$0xff]
        %v9202 = vld [vmem:[%s9187 + $0x70] sm:$0xff]
        %v9203 = vld [vmem:[%s9187 + $0x78] sm:$0xff]
        %v9204 = vrot.slane %v6450, 2
        %v9205 = vrot.slane %v6454, 1
        %v9206 = vsel %vm6475, %v9205, %v9204
        %v9207 = vsel %vm6477, %v9206, 0
        %9209 = vmatprep.subr.mxu0 %v9189
        %9210 = vmatpush1.msra.mxu0 %v9188
        %9211 = vmatprep.subr.mxu0 %v9191
        %9212 = vmatpush1.msra.mxu0 %v9190
        %9213 = vmatprep.subr.mxu0 %v9193
        %9214 = vmatpush1.msra.mxu0 %v9192
        %9215 = vmatprep.subr.mxu0 %v9195
        %9216 = vmatpush1.msra.mxu0 %v9194
        %9217 = vmatprep.subr.mxu0 %v9197
        %9218 = vmatpush1.msra.mxu0 %v9196
        %9219 = vmatprep.subr.mxu0 %v9199
        %9220 = vmatpush1.msra.mxu0 %v9198
        %9221 = vmatprep.subr.mxu0 %v9201
        %9222 = vmatpush1.msra.mxu0 %v9200
        %9223 = vmatprep.subr.mxu0 %v9203
        %9224 = vmatpush1.msra.mxu0 %v9202
        %9225 = vmatprep.subr.mxu0 0.0
        %9226 = vmatpush1.msra.mxu0 0.0
        %9227 = vmatprep.subr.mxu0 0.0
        %9228 = vmatpush1.msra.mxu0 0.0
        %9229 = vmatprep.subr.mxu0 0.0
        %9230 = vmatpush1.msra.mxu0 0.0
        %9231 = vmatprep.subr.mxu0 0.0
        %9232 = vmatpush1.msra.mxu0 0.0
        %9233 = vmatprep.subr.mxu0 0.0
        %9234 = vmatpush1.msra.mxu0 0.0
        %9235 = vmatprep.subr.mxu0 0.0
        %9236 = vmatpush1.msra.mxu0 0.0
        %9237 = vmatprep.subr.mxu0 0.0
        %9238 = vmatpush1.msra.mxu0 0.0
        %9239 = vmatprep.subr.mxu0 0.0
        %9240 = vmatpush1.msra.mxu0 0.0
        %9241 = vmatprep.subr.mxu0 0.0
        %9242 = vmatpush1.msra.mxu0 0.0
        %9243 = vmatprep.subr.mxu0 0.0
        %9244 = vmatpush1.msra.mxu0 0.0
        %9245 = vmatprep.subr.mxu0 0.0
        %9246 = vmatpush1.msra.mxu0 0.0
        %9247 = vmatprep.subr.mxu0 0.0
        %9248 = vmatpush1.msra.mxu0 0.0
        %9249 = vmatprep.subr.mxu0 0.0
        %9250 = vmatpush1.msra.mxu0 0.0
        %9251 = vmatprep.subr.mxu0 0.0
        %9252 = vmatpush1.msra.mxu0 0.0
        %9253 = vmatprep.subr.mxu0 0.0
        %9254 = vmatpush1.msra.mxu0 0.0
        %9255 = vmatprep.subr.mxu0 0.0
        %9256 = vmatpush1.msra.mxu0 0.0
        %9257 = vmatprep.subr.mxu0 0.0
        %9258 = vmatpush1.msra.mxu0 0.0
        %9259 = vmatprep.subr.mxu0 0.0
        %9260 = vmatpush1.msra.mxu0 0.0
        %9261 = vmatprep.subr.mxu0 0.0
        %9262 = vmatpush1.msra.mxu0 0.0
        %9263 = vmatprep.subr.mxu0 0.0
        %9264 = vmatpush1.msra.mxu0 0.0
        %9265 = vmatprep.subr.mxu0 0.0
        %9266 = vmatpush1.msra.mxu0 0.0
        %9267 = vmatprep.subr.mxu0 0.0
        %9268 = vmatpush1.msra.mxu0 0.0
        %9269 = vmatprep.subr.mxu0 0.0
        %9270 = vmatpush1.msra.mxu0 0.0
        %9271 = vmatprep.subr.mxu0 0.0
        %9272 = vmatpush1.msra.mxu0 0.0
        %9273 = vmatprep.mubr.f32.mxu0 0.0
        %9274 = vmatmul.mubr.f32.gmra.mrb[0].mxu0 %v9207
        %v9275 = vpop.f32.mrb[0].mxu0
        %v9276 = vadd.f32 0.0, %v9275
        %v9277 = vpop.f32.mrb[0].mxu0
        %v9278 = vadd.f32 0.0, %v9277
        %9279 = vdwg.mxu0
        %v9282 = vcombine.low %v9276, %v9278
        %v9284 = vunpack.c.l.s4 1983009808
        %v9285 = vunpack.c.0.s8 %v9284
        %v9286 = vlaneseq
        %v9287 = vshrl.u32 %v9286, 7
        %v9288 = vsub.s32 %v9285, %v9287
        %v9289 = vrot.slane %v9282, %v9288
        %v9291 = vadd.f32 %v9186, %v9289
        %s9292 = scalar_lea.vmem %s299, 3456 [#allocation10]
        %v9293 = vld [vmem:[%s9292] sm:$0xff]
        %v9294 = vld [vmem:[%s9292 + $0x8] sm:$0xff]
        %v9295 = vld [vmem:[%s9292 + $0x10] sm:$0xff]
        %v9296 = vld [vmem:[%s9292 + $0x18] sm:$0xff]
        %v9297 = vld [vmem:[%s9292 + $0x20] sm:$0xff]
        %v9298 = vld [vmem:[%s9292 + $0x28] sm:$0xff]
        %v9299 = vld [vmem:[%s9292 + $0x30] sm:$0xff]
        %v9300 = vld [vmem:[%s9292 + $0x38] sm:$0xff]
        %v9301 = vld [vmem:[%s9292 + $0x40] sm:$0xff]
        %v9302 = vld [vmem:[%s9292 + $0x48] sm:$0xff]
        %v9303 = vld [vmem:[%s9292 + $0x50] sm:$0xff]
        %v9304 = vld [vmem:[%s9292 + $0x58] sm:$0xff]
        %v9305 = vld [vmem:[%s9292 + $0x60] sm:$0xff]
        %v9306 = vld [vmem:[%s9292 + $0x68] sm:$0xff]
        %v9307 = vld [vmem:[%s9292 + $0x70] sm:$0xff]
        %v9308 = vld [vmem:[%s9292 + $0x78] sm:$0xff]
        %v9309 = vrot.slane %v6450, 3
        %v9310 = vrot.slane %v6454, 2
        %v9311 = vsel %vm6475, %v9310, %v9309
        %v9312 = vsel %vm6477, %v9311, 0
        %9314 = vmatprep.subr.mxu0 %v9294
        %9315 = vmatpush1.msra.mxu0 %v9293
        %9316 = vmatprep.subr.mxu0 %v9296
        %9317 = vmatpush1.msra.mxu0 %v9295
        %9318 = vmatprep.subr.mxu0 %v9298
        %9319 = vmatpush1.msra.mxu0 %v9297
        %9320 = vmatprep.subr.mxu0 %v9300
        %9321 = vmatpush1.msra.mxu0 %v9299
        %9322 = vmatprep.subr.mxu0 %v9302
        %9323 = vmatpush1.msra.mxu0 %v9301
        %9324 = vmatprep.subr.mxu0 %v9304
        %9325 = vmatpush1.msra.mxu0 %v9303
        %9326 = vmatprep.subr.mxu0 %v9306
        %9327 = vmatpush1.msra.mxu0 %v9305
        %9328 = vmatprep.subr.mxu0 %v9308
        %9329 = vmatpush1.msra.mxu0 %v9307
        %9330 = vmatprep.subr.mxu0 0.0
        %9331 = vmatpush1.msra.mxu0 0.0
        %9332 = vmatprep.subr.mxu0 0.0
        %9333 = vmatpush1.msra.mxu0 0.0
        %9334 = vmatprep.subr.mxu0 0.0
        %9335 = vmatpush1.msra.mxu0 0.0
        %9336 = vmatprep.subr.mxu0 0.0
        %9337 = vmatpush1.msra.mxu0 0.0
        %9338 = vmatprep.subr.mxu0 0.0
        %9339 = vmatpush1.msra.mxu0 0.0
        %9340 = vmatprep.subr.mxu0 0.0
        %9341 = vmatpush1.msra.mxu0 0.0
        %9342 = vmatprep.subr.mxu0 0.0
        %9343 = vmatpush1.msra.mxu0 0.0
        %9344 = vmatprep.subr.mxu0 0.0
        %9345 = vmatpush1.msra.mxu0 0.0
        %9346 = vmatprep.subr.mxu0 0.0
        %9347 = vmatpush1.msra.mxu0 0.0
        %9348 = vmatprep.subr.mxu0 0.0
        %9349 = vmatpush1.msra.mxu0 0.0
        %9350 = vmatprep.subr.mxu0 0.0
        %9351 = vmatpush1.msra.mxu0 0.0
        %9352 = vmatprep.subr.mxu0 0.0
        %9353 = vmatpush1.msra.mxu0 0.0
        %9354 = vmatprep.subr.mxu0 0.0
        %9355 = vmatpush1.msra.mxu0 0.0
        %9356 = vmatprep.subr.mxu0 0.0
        %9357 = vmatpush1.msra.mxu0 0.0
        %9358 = vmatprep.subr.mxu0 0.0
        %9359 = vmatpush1.msra.mxu0 0.0
        %9360 = vmatprep.subr.mxu0 0.0
        %9361 = vmatpush1.msra.mxu0 0.0
        %9362 = vmatprep.subr.mxu0 0.0
        %9363 = vmatpush1.msra.mxu0 0.0
        %9364 = vmatprep.subr.mxu0 0.0
        %9365 = vmatpush1.msra.mxu0 0.0
        %9366 = vmatprep.subr.mxu0 0.0
        %9367 = vmatpush1.msra.mxu0 0.0
        %9368 = vmatprep.subr.mxu0 0.0
        %9369 = vmatpush1.msra.mxu0 0.0
        %9370 = vmatprep.subr.mxu0 0.0
        %9371 = vmatpush1.msra.mxu0 0.0
        %9372 = vmatprep.subr.mxu0 0.0
        %9373 = vmatpush1.msra.mxu0 0.0
        %9374 = vmatprep.subr.mxu0 0.0
        %9375 = vmatpush1.msra.mxu0 0.0
        %9376 = vmatprep.subr.mxu0 0.0
        %9377 = vmatpush1.msra.mxu0 0.0
        %9378 = vmatprep.mubr.f32.mxu0 0.0
        %9379 = vmatmul.mubr.f32.gmra.mrb[0].mxu0 %v9312
        %v9380 = vpop.f32.mrb[0].mxu0
        %v9381 = vadd.f32 0.0, %v9380
        %v9382 = vpop.f32.mrb[0].mxu0
        %v9383 = vadd.f32 0.0, %v9382
        %9384 = vdwg.mxu0
        %v9387 = vcombine.low %v9381, %v9383
        %v9389 = vunpack.c.l.s4 1983009808
        %v9390 = vunpack.c.0.s8 %v9389
        %v9391 = vlaneseq
        %v9392 = vshrl.u32 %v9391, 7
        %v9393 = vsub.s32 %v9390, %v9392
        %v9394 = vrot.slane %v9387, %v9393
        %v9396 = vadd.f32 %v9291, %v9394
        %s9397 = scalar_lea.vmem %s299, 3584 [#allocation10]
        %v9398 = vld [vmem:[%s9397] sm:$0xff]
        %v9399 = vld [vmem:[%s9397 + $0x8] sm:$0xff]
        %v9400 = vld [vmem:[%s9397 + $0x10] sm:$0xff]
        %v9401 = vld [vmem:[%s9397 + $0x18] sm:$0xff]
        %v9402 = vld [vmem:[%s9397 + $0x20] sm:$0xff]
        %v9403 = vld [vmem:[%s9397 + $0x28] sm:$0xff]
        %v9404 = vld [vmem:[%s9397 + $0x30] sm:$0xff]
        %v9405 = vld [vmem:[%s9397 + $0x38] sm:$0xff]
        %v9406 = vld [vmem:[%s9397 + $0x40] sm:$0xff]
        %v9407 = vld [vmem:[%s9397 + $0x48] sm:$0xff]
        %v9408 = vld [vmem:[%s9397 + $0x50] sm:$0xff]
        %v9409 = vld [vmem:[%s9397 + $0x58] sm:$0xff]
        %v9410 = vld [vmem:[%s9397 + $0x60] sm:$0xff]
        %v9411 = vld [vmem:[%s9397 + $0x68] sm:$0xff]
        %v9412 = vld [vmem:[%s9397 + $0x70] sm:$0xff]
        %v9413 = vld [vmem:[%s9397 + $0x78] sm:$0xff]
        %v9414 = vrot.slane %v6450, 4
        %v9415 = vrot.slane %v6454, 3
        %v9416 = vsel %vm6475, %v9415, %v9414
        %v9417 = vsel %vm6477, %v9416, 0
        %9419 = vmatprep.subr.mxu0 %v9399
        %9420 = vmatpush1.msra.mxu0 %v9398
        %9421 = vmatprep.subr.mxu0 %v9401
        %9422 = vmatpush1.msra.mxu0 %v9400
        %9423 = vmatprep.subr.mxu0 %v9403
        %9424 = vmatpush1.msra.mxu0 %v9402
        %9425 = vmatprep.subr.mxu0 %v9405
        %9426 = vmatpush1.msra.mxu0 %v9404
        %9427 = vmatprep.subr.mxu0 %v9407
        %9428 = vmatpush1.msra.mxu0 %v9406
        %9429 = vmatprep.subr.mxu0 %v9409
        %9430 = vmatpush1.msra.mxu0 %v9408
        %9431 = vmatprep.subr.mxu0 %v9411
        %9432 = vmatpush1.msra.mxu0 %v9410
        %9433 = vmatprep.subr.mxu0 %v9413
        %9434 = vmatpush1.msra.mxu0 %v9412
        %9435 = vmatprep.subr.mxu0 0.0
        %9436 = vmatpush1.msra.mxu0 0.0
        %9437 = vmatprep.subr.mxu0 0.0
        %9438 = vmatpush1.msra.mxu0 0.0
        %9439 = vmatprep.subr.mxu0 0.0
        %9440 = vmatpush1.msra.mxu0 0.0
        %9441 = vmatprep.subr.mxu0 0.0
        %9442 = vmatpush1.msra.mxu0 0.0
        %9443 = vmatprep.subr.mxu0 0.0
        %9444 = vmatpush1.msra.mxu0 0.0
        %9445 = vmatprep.subr.mxu0 0.0
        %9446 = vmatpush1.msra.mxu0 0.0
        %9447 = vmatprep.subr.mxu0 0.0
        %9448 = vmatpush1.msra.mxu0 0.0
        %9449 = vmatprep.subr.mxu0 0.0
        %9450 = vmatpush1.msra.mxu0 0.0
        %9451 = vmatprep.subr.mxu0 0.0
        %9452 = vmatpush1.msra.mxu0 0.0
        %9453 = vmatprep.subr.mxu0 0.0
        %9454 = vmatpush1.msra.mxu0 0.0
        %9455 = vmatprep.subr.mxu0 0.0
        %9456 = vmatpush1.msra.mxu0 0.0
        %9457 = vmatprep.subr.mxu0 0.0
        %9458 = vmatpush1.msra.mxu0 0.0
        %9459 = vmatprep.subr.mxu0 0.0
        %9460 = vmatpush1.msra.mxu0 0.0
        %9461 = vmatprep.subr.mxu0 0.0
        %9462 = vmatpush1.msra.mxu0 0.0
        %9463 = vmatprep.subr.mxu0 0.0
        %9464 = vmatpush1.msra.mxu0 0.0
        %9465 = vmatprep.subr.mxu0 0.0
        %9466 = vmatpush1.msra.mxu0 0.0
        %9467 = vmatprep.subr.mxu0 0.0
        %9468 = vmatpush1.msra.mxu0 0.0
        %9469 = vmatprep.subr.mxu0 0.0
        %9470 = vmatpush1.msra.mxu0 0.0
        %9471 = vmatprep.subr.mxu0 0.0
        %9472 = vmatpush1.msra.mxu0 0.0
        %9473 = vmatprep.subr.mxu0 0.0
        %9474 = vmatpush1.msra.mxu0 0.0
        %9475 = vmatprep.subr.mxu0 0.0
        %9476 = vmatpush1.msra.mxu0 0.0
        %9477 = vmatprep.subr.mxu0 0.0
        %9478 = vmatpush1.msra.mxu0 0.0
        %9479 = vmatprep.subr.mxu0 0.0
        %9480 = vmatpush1.msra.mxu0 0.0
        %9481 = vmatprep.subr.mxu0 0.0
        %9482 = vmatpush1.msra.mxu0 0.0
        %9483 = vmatprep.mubr.f32.mxu0 0.0
        %9484 = vmatmul.mubr.f32.gmra.mrb[0].mxu0 %v9417
        %v9485 = vpop.f32.mrb[0].mxu0
        %v9486 = vadd.f32 0.0, %v9485
        %v9487 = vpop.f32.mrb[0].mxu0
        %v9488 = vadd.f32 0.0, %v9487
        %9489 = vdwg.mxu0
        %v9492 = vcombine.low %v9486, %v9488
        %v9494 = vunpack.c.l.s4 1983009808
        %v9495 = vunpack.c.0.s8 %v9494
        %v9496 = vlaneseq
        %v9497 = vshrl.u32 %v9496, 7
        %v9498 = vsub.s32 %v9495, %v9497
        %v9499 = vrot.slane %v9492, %v9498
        %v9501 = vadd.f32 %v9396, %v9499
        %s9502 = scalar_lea.vmem %s299, 3712 [#allocation10]
        %v9503 = vld [vmem:[%s9502] sm:$0xff]
        %v9504 = vld [vmem:[%s9502 + $0x8] sm:$0xff]
        %v9505 = vld [vmem:[%s9502 + $0x10] sm:$0xff]
        %v9506 = vld [vmem:[%s9502 + $0x18] sm:$0xff]
        %v9507 = vld [vmem:[%s9502 + $0x20] sm:$0xff]
        %v9508 = vld [vmem:[%s9502 + $0x28] sm:$0xff]
        %v9509 = vld [vmem:[%s9502 + $0x30] sm:$0xff]
        %v9510 = vld [vmem:[%s9502 + $0x38] sm:$0xff]
        %v9511 = vld [vmem:[%s9502 + $0x40] sm:$0xff]
        %v9512 = vld [vmem:[%s9502 + $0x48] sm:$0xff]
        %v9513 = vld [vmem:[%s9502 + $0x50] sm:$0xff]
        %v9514 = vld [vmem:[%s9502 + $0x58] sm:$0xff]
        %v9515 = vld [vmem:[%s9502 + $0x60] sm:$0xff]
        %v9516 = vld [vmem:[%s9502 + $0x68] sm:$0xff]
        %v9517 = vld [vmem:[%s9502 + $0x70] sm:$0xff]
        %v9518 = vld [vmem:[%s9502 + $0x78] sm:$0xff]
        %v9519 = vrot.slane %v6450, 5
        %v9520 = vrot.slane %v6454, 4
        %v9521 = vsel %vm6475, %v9520, %v9519
        %v9522 = vsel %vm6477, %v9521, 0
        %9524 = vmatprep.subr.mxu0 %v9504
        %9525 = vmatpush1.msra.mxu0 %v9503
        %9526 = vmatprep.subr.mxu0 %v9506
        %9527 = vmatpush1.msra.mxu0 %v9505
        %9528 = vmatprep.subr.mxu0 %v9508
        %9529 = vmatpush1.msra.mxu0 %v9507
        %9530 = vmatprep.subr.mxu0 %v9510
        %9531 = vmatpush1.msra.mxu0 %v9509
        %9532 = vmatprep.subr.mxu0 %v9512
        %9533 = vmatpush1.msra.mxu0 %v9511
        %9534 = vmatprep.subr.mxu0 %v9514
        %9535 = vmatpush1.msra.mxu0 %v9513
        %9536 = vmatprep.subr.mxu0 %v9516
        %9537 = vmatpush1.msra.mxu0 %v9515
        %9538 = vmatprep.subr.mxu0 %v9518
        %9539 = vmatpush1.msra.mxu0 %v9517
        %9540 = vmatprep.subr.mxu0 0.0
        %9541 = vmatpush1.msra.mxu0 0.0
        %9542 = vmatprep.subr.mxu0 0.0
        %9543 = vmatpush1.msra.mxu0 0.0
        %9544 = vmatprep.subr.mxu0 0.0
        %9545 = vmatpush1.msra.mxu0 0.0
        %9546 = vmatprep.subr.mxu0 0.0
        %9547 = vmatpush1.msra.mxu0 0.0
        %9548 = vmatprep.subr.mxu0 0.0
        %9549 = vmatpush1.msra.mxu0 0.0
        %9550 = vmatprep.subr.mxu0 0.0
        %9551 = vmatpush1.msra.mxu0 0.0
        %9552 = vmatprep.subr.mxu0 0.0
        %9553 = vmatpush1.msra.mxu0 0.0
        %9554 = vmatprep.subr.mxu0 0.0
        %9555 = vmatpush1.msra.mxu0 0.0
        %9556 = vmatprep.subr.mxu0 0.0
        %9557 = vmatpush1.msra.mxu0 0.0
        %9558 = vmatprep.subr.mxu0 0.0
        %9559 = vmatpush1.msra.mxu0 0.0
        %9560 = vmatprep.subr.mxu0 0.0
        %9561 = vmatpush1.msra.mxu0 0.0
        %9562 = vmatprep.subr.mxu0 0.0
        %9563 = vmatpush1.msra.mxu0 0.0
        %9564 = vmatprep.subr.mxu0 0.0
        %9565 = vmatpush1.msra.mxu0 0.0
        %9566 = vmatprep.subr.mxu0 0.0
        %9567 = vmatpush1.msra.mxu0 0.0
        %9568 = vmatprep.subr.mxu0 0.0
        %9569 = vmatpush1.msra.mxu0 0.0
        %9570 = vmatprep.subr.mxu0 0.0
        %9571 = vmatpush1.msra.mxu0 0.0
        %9572 = vmatprep.subr.mxu0 0.0
        %9573 = vmatpush1.msra.mxu0 0.0
        %9574 = vmatprep.subr.mxu0 0.0
        %9575 = vmatpush1.msra.mxu0 0.0
        %9576 = vmatprep.subr.mxu0 0.0
        %9577 = vmatpush1.msra.mxu0 0.0
        %9578 = vmatprep.subr.mxu0 0.0
        %9579 = vmatpush1.msra.mxu0 0.0
        %9580 = vmatprep.subr.mxu0 0.0
        %9581 = vmatpush1.msra.mxu0 0.0
        %9582 = vmatprep.subr.mxu0 0.0
        %9583 = vmatpush1.msra.mxu0 0.0
        %9584 = vmatprep.subr.mxu0 0.0
        %9585 = vmatpush1.msra.mxu0 0.0
        %9586 = vmatprep.subr.mxu0 0.0
        %9587 = vmatpush1.msra.mxu0 0.0
        %9588 = vmatprep.mubr.f32.mxu0 0.0
        %9589 = vmatmul.mubr.f32.gmra.mrb[0].mxu0 %v9522
        %v9590 = vpop.f32.mrb[0].mxu0
        %v9591 = vadd.f32 0.0, %v9590
        %v9592 = vpop.f32.mrb[0].mxu0
        %v9593 = vadd.f32 0.0, %v9592
        %9594 = vdwg.mxu0
        %v9597 = vcombine.low %v9591, %v9593
        %v9599 = vunpack.c.l.s4 1983009808
        %v9600 = vunpack.c.0.s8 %v9599
        %v9601 = vlaneseq
        %v9602 = vshrl.u32 %v9601, 7
        %v9603 = vsub.s32 %v9600, %v9602
        %v9604 = vrot.slane %v9597, %v9603
        %v9606 = vadd.f32 %v9501, %v9604
        %s9607 = scalar_lea.vmem %s299, 3840 [#allocation10]
        %v9608 = vld [vmem:[%s9607] sm:$0xff]
        %v9609 = vld [vmem:[%s9607 + $0x8] sm:$0xff]
        %v9610 = vld [vmem:[%s9607 + $0x10] sm:$0xff]
        %v9611 = vld [vmem:[%s9607 + $0x18] sm:$0xff]
        %v9612 = vld [vmem:[%s9607 + $0x20] sm:$0xff]
        %v9613 = vld [vmem:[%s9607 + $0x28] sm:$0xff]
        %v9614 = vld [vmem:[%s9607 + $0x30] sm:$0xff]
        %v9615 = vld [vmem:[%s9607 + $0x38] sm:$0xff]
        %v9616 = vld [vmem:[%s9607 + $0x40] sm:$0xff]
        %v9617 = vld [vmem:[%s9607 + $0x48] sm:$0xff]
        %v9618 = vld [vmem:[%s9607 + $0x50] sm:$0xff]
        %v9619 = vld [vmem:[%s9607 + $0x58] sm:$0xff]
        %v9620 = vld [vmem:[%s9607 + $0x60] sm:$0xff]
        %v9621 = vld [vmem:[%s9607 + $0x68] sm:$0xff]
        %v9622 = vld [vmem:[%s9607 + $0x70] sm:$0xff]
        %v9623 = vld [vmem:[%s9607 + $0x78] sm:$0xff]
        %v9624 = vrot.slane %v6450, 6
        %v9625 = vrot.slane %v6454, 5
        %v9626 = vsel %vm6475, %v9625, %v9624
        %v9627 = vsel %vm6477, %v9626, 0
        %9629 = vmatprep.subr.mxu0 %v9609
        %9630 = vmatpush1.msra.mxu0 %v9608
        %9631 = vmatprep.subr.mxu0 %v9611
        %9632 = vmatpush1.msra.mxu0 %v9610
        %9633 = vmatprep.subr.mxu0 %v9613
        %9634 = vmatpush1.msra.mxu0 %v9612
        %9635 = vmatprep.subr.mxu0 %v9615
        %9636 = vmatpush1.msra.mxu0 %v9614
        %9637 = vmatprep.subr.mxu0 %v9617
        %9638 = vmatpush1.msra.mxu0 %v9616
        %9639 = vmatprep.subr.mxu0 %v9619
        %9640 = vmatpush1.msra.mxu0 %v9618
        %9641 = vmatprep.subr.mxu0 %v9621
        %9642 = vmatpush1.msra.mxu0 %v9620
        %9643 = vmatprep.subr.mxu0 %v9623
        %9644 = vmatpush1.msra.mxu0 %v9622
        %9645 = vmatprep.subr.mxu0 0.0
        %9646 = vmatpush1.msra.mxu0 0.0
        %9647 = vmatprep.subr.mxu0 0.0
        %9648 = vmatpush1.msra.mxu0 0.0
        %9649 = vmatprep.subr.mxu0 0.0
        %9650 = vmatpush1.msra.mxu0 0.0
        %9651 = vmatprep.subr.mxu0 0.0
        %9652 = vmatpush1.msra.mxu0 0.0
        %9653 = vmatprep.subr.mxu0 0.0
        %9654 = vmatpush1.msra.mxu0 0.0
        %9655 = vmatprep.subr.mxu0 0.0
        %9656 = vmatpush1.msra.mxu0 0.0
        %9657 = vmatprep.subr.mxu0 0.0
        %9658 = vmatpush1.msra.mxu0 0.0
        %9659 = vmatprep.subr.mxu0 0.0
        %9660 = vmatpush1.msra.mxu0 0.0
        %9661 = vmatprep.subr.mxu0 0.0
        %9662 = vmatpush1.msra.mxu0 0.0
        %9663 = vmatprep.subr.mxu0 0.0
        %9664 = vmatpush1.msra.mxu0 0.0
        %9665 = vmatprep.subr.mxu0 0.0
        %9666 = vmatpush1.msra.mxu0 0.0
        %9667 = vmatprep.subr.mxu0 0.0
        %9668 = vmatpush1.msra.mxu0 0.0
        %9669 = vmatprep.subr.mxu0 0.0
        %9670 = vmatpush1.msra.mxu0 0.0
        %9671 = vmatprep.subr.mxu0 0.0
        %9672 = vmatpush1.msra.mxu0 0.0
        %9673 = vmatprep.subr.mxu0 0.0
        %9674 = vmatpush1.msra.mxu0 0.0
        %9675 = vmatprep.subr.mxu0 0.0
        %9676 = vmatpush1.msra.mxu0 0.0
        %9677 = vmatprep.subr.mxu0 0.0
        %9678 = vmatpush1.msra.mxu0 0.0
        %9679 = vmatprep.subr.mxu0 0.0
        %9680 = vmatpush1.msra.mxu0 0.0
        %9681 = vmatprep.subr.mxu0 0.0
        %9682 = vmatpush1.msra.mxu0 0.0
        %9683 = vmatprep.subr.mxu0 0.0
        %9684 = vmatpush1.msra.mxu0 0.0
        %9685 = vmatprep.subr.mxu0 0.0
        %9686 = vmatpush1.msra.mxu0 0.0
        %9687 = vmatprep.subr.mxu0 0.0
        %9688 = vmatpush1.msra.mxu0 0.0
        %9689 = vmatprep.subr.mxu0 0.0
        %9690 = vmatpush1.msra.mxu0 0.0
        %9691 = vmatprep.subr.mxu0 0.0
        %9692 = vmatpush1.msra.mxu0 0.0
        %9693 = vmatprep.mubr.f32.mxu0 0.0
        %9694 = vmatmul.mubr.f32.gmra.mrb[0].mxu0 %v9627
        %v9695 = vpop.f32.mrb[0].mxu0
        %v9696 = vadd.f32 0.0, %v9695
        %v9697 = vpop.f32.mrb[0].mxu0
        %v9698 = vadd.f32 0.0, %v9697
        %9699 = vdwg.mxu0
        %v9702 = vcombine.low %v9696, %v9698
        %v9704 = vunpack.c.l.s4 1983009808
        %v9705 = vunpack.c.0.s8 %v9704
        %v9706 = vlaneseq
        %v9707 = vshrl.u32 %v9706, 7
        %v9708 = vsub.s32 %v9705, %v9707
        %v9709 = vrot.slane %v9702, %v9708
        %v9711 = vadd.f32 %v9606, %v9709
        %s9712 = scalar_lea.vmem %s299, 3968 [#allocation10]
        %v9713 = vld [vmem:[%s9712] sm:$0xff]
        %v9714 = vld [vmem:[%s9712 + $0x8] sm:$0xff]
        %v9715 = vld [vmem:[%s9712 + $0x10] sm:$0xff]
        %v9716 = vld [vmem:[%s9712 + $0x18] sm:$0xff]
        %v9717 = vld [vmem:[%s9712 + $0x20] sm:$0xff]
        %v9718 = vld [vmem:[%s9712 + $0x28] sm:$0xff]
        %v9719 = vld [vmem:[%s9712 + $0x30] sm:$0xff]
        %v9720 = vld [vmem:[%s9712 + $0x38] sm:$0xff]
        %v9721 = vld [vmem:[%s9712 + $0x40] sm:$0xff]
        %v9722 = vld [vmem:[%s9712 + $0x48] sm:$0xff]
        %v9723 = vld [vmem:[%s9712 + $0x50] sm:$0xff]
        %v9724 = vld [vmem:[%s9712 + $0x58] sm:$0xff]
        %v9725 = vld [vmem:[%s9712 + $0x60] sm:$0xff]
        %v9726 = vld [vmem:[%s9712 + $0x68] sm:$0xff]
        %v9727 = vld [vmem:[%s9712 + $0x70] sm:$0xff]
        %v9728 = vld [vmem:[%s9712 + $0x78] sm:$0xff]
        %v9729 = vrot.slane %v6450, 7
        %v9730 = vrot.slane %v6454, 6
        %v9731 = vsel %vm6475, %v9730, %v9729
        %v9732 = vsel %vm6477, %v9731, 0
        %9734 = vmatprep.subr.mxu0 %v9714
        %9735 = vmatpush1.msra.mxu0 %v9713
        %9736 = vmatprep.subr.mxu0 %v9716
        %9737 = vmatpush1.msra.mxu0 %v9715
        %9738 = vmatprep.subr.mxu0 %v9718
        %9739 = vmatpush1.msra.mxu0 %v9717
        %9740 = vmatprep.subr.mxu0 %v9720
        %9741 = vmatpush1.msra.mxu0 %v9719
        %9742 = vmatprep.subr.mxu0 %v9722
        %9743 = vmatpush1.msra.mxu0 %v9721
        %9744 = vmatprep.subr.mxu0 %v9724
        %9745 = vmatpush1.msra.mxu0 %v9723
        %9746 = vmatprep.subr.mxu0 %v9726
        %9747 = vmatpush1.msra.mxu0 %v9725
        %9748 = vmatprep.subr.mxu0 %v9728
        %9749 = vmatpush1.msra.mxu0 %v9727
        %9750 = vmatprep.subr.mxu0 0.0
        %9751 = vmatpush1.msra.mxu0 0.0
        %9752 = vmatprep.subr.mxu0 0.0
        %9753 = vmatpush1.msra.mxu0 0.0
        %9754 = vmatprep.subr.mxu0 0.0
        %9755 = vmatpush1.msra.mxu0 0.0
        %9756 = vmatprep.subr.mxu0 0.0
        %9757 = vmatpush1.msra.mxu0 0.0
        %9758 = vmatprep.subr.mxu0 0.0
        %9759 = vmatpush1.msra.mxu0 0.0
        %9760 = vmatprep.subr.mxu0 0.0
        %9761 = vmatpush1.msra.mxu0 0.0
        %9762 = vmatprep.subr.mxu0 0.0
        %9763 = vmatpush1.msra.mxu0 0.0
        %9764 = vmatprep.subr.mxu0 0.0
        %9765 = vmatpush1.msra.mxu0 0.0
        %9766 = vmatprep.subr.mxu0 0.0
        %9767 = vmatpush1.msra.mxu0 0.0
        %9768 = vmatprep.subr.mxu0 0.0
        %9769 = vmatpush1.msra.mxu0 0.0
        %9770 = vmatprep.subr.mxu0 0.0
        %9771 = vmatpush1.msra.mxu0 0.0
        %9772 = vmatprep.subr.mxu0 0.0
        %9773 = vmatpush1.msra.mxu0 0.0
        %9774 = vmatprep.subr.mxu0 0.0
        %9775 = vmatpush1.msra.mxu0 0.0
        %9776 = vmatprep.subr.mxu0 0.0
        %9777 = vmatpush1.msra.mxu0 0.0
        %9778 = vmatprep.subr.mxu0 0.0
        %9779 = vmatpush1.msra.mxu0 0.0
        %9780 = vmatprep.subr.mxu0 0.0
        %9781 = vmatpush1.msra.mxu0 0.0
        %9782 = vmatprep.subr.mxu0 0.0
        %9783 = vmatpush1.msra.mxu0 0.0
        %9784 = vmatprep.subr.mxu0 0.0
        %9785 = vmatpush1.msra.mxu0 0.0
        %9786 = vmatprep.subr.mxu0 0.0
        %9787 = vmatpush1.msra.mxu0 0.0
        %9788 = vmatprep.subr.mxu0 0.0
        %9789 = vmatpush1.msra.mxu0 0.0
        %9790 = vmatprep.subr.mxu0 0.0
        %9791 = vmatpush1.msra.mxu0 0.0
        %9792 = vmatprep.subr.mxu0 0.0
        %9793 = vmatpush1.msra.mxu0 0.0
        %9794 = vmatprep.subr.mxu0 0.0
        %9795 = vmatpush1.msra.mxu0 0.0
        %9796 = vmatprep.subr.mxu0 0.0
        %9797 = vmatpush1.msra.mxu0 0.0
        %9798 = vmatprep.mubr.f32.mxu0 0.0
        %9799 = vmatmul.mubr.f32.gmra.mrb[0].mxu0 %v9732
        %v9800 = vpop.f32.mrb[0].mxu0
        %v9801 = vadd.f32 0.0, %v9800
        %v9802 = vpop.f32.mrb[0].mxu0
        %v9803 = vadd.f32 0.0, %v9802
        %9804 = vdwg.mxu0
        %v9807 = vcombine.low %v9801, %v9803
        %v9809 = vunpack.c.l.s4 1983009808
        %v9810 = vunpack.c.0.s8 %v9809
        %v9811 = vlaneseq
        %v9812 = vshrl.u32 %v9811, 7
        %v9813 = vsub.s32 %v9810, %v9812
        %v9814 = vrot.slane %v9807, %v9813
        %v9816 = vadd.f32 %v9711, %v9814
        %9817 = vst [vmem:[#allocation3] sm:$0xf] %v9816
        %p9818 = scmp.eq.s32.totalorder %s25, 3
        // Predicated region
        $region73: #{cnn_two_forward.1} parent=47 // pred_check
          %p9819 = pneg %p9818
        $region74: #{cnn_two_forward.1} parent=47 // pred_check_branch
          %9821 = sbr.rel (%p9819) target = $region76
        $region75: #{cnn_two_forward.1} parent=47 // pred_region
          %v9822 = vld [vmem:[#allocation3] sm:$0xf]
          %v9823 = vld [vmem:[#allocation11] sm:$0x3]
          %v9825 = vlaneseq
          %v9826 = vshrl.u32 %v9825, 7
          %v9827 = vsub.s32 0, %v9826
          %v9828 = vrot.slane %v9823, %v9827
          %v9829 = vlaneseq
          %v9830 = vshrl.u32 %v9829, 7
          %v9831 = vsub.s32 1, %v9830
          %v9832 = vrot.slane %v9823, %v9831
          %v9833 = vcombine.low %v9828, %v9832
          %v9835 = vunpack.c.l.s4 1983009808
          %v9836 = vunpack.c.0.s8 %v9835
          %v9837 = vlaneseq
          %v9838 = vshrl.u32 %v9837, 7
          %v9839 = vsub.s32 %v9836, %v9838
          %v9840 = vrot.slane %v9833, %v9839
          %v9842 = vadd.f32 %v9822, %v9840
          %v9843 = vmax.f32 %v9842, 0.0
          %v9844 = vld [vmem:[%s5] sm:$0xff]
          %v9845 = vld [vmem:[%s5 + $0x8] sm:$0xff]
          %v9846 = vld [vmem:[%s5 + $0x10] sm:$0xff]
          %v9847 = vld [vmem:[%s5 + $0x18] sm:$0xff]
          %v9848 = vld [vmem:[%s5 + $0x20] sm:$0xff]
          %v9849 = vld [vmem:[%s5 + $0x28] sm:$0xff]
          %v9850 = vld [vmem:[%s5 + $0x30] sm:$0xff]
          %v9851 = vld [vmem:[%s5 + $0x38] sm:$0xff]
          %v9852 = vld [vmem:[%s5 + $0x40] sm:$0xff]
          %v9853 = vld [vmem:[%s5 + $0x48] sm:$0xff]
          %v9854 = vld [vmem:[%s5 + $0x50] sm:$0xff]
          %v9855 = vld [vmem:[%s5 + $0x58] sm:$0xff]
          %v9856 = vld [vmem:[%s5 + $0x60] sm:$0xff]
          %v9857 = vld [vmem:[%s5 + $0x68] sm:$0xff]
          %v9858 = vld [vmem:[%s5 + $0x70] sm:$0xff]
          %v9859 = vld [vmem:[%s5 + $0x78] sm:$0xff]
          %v9860 = vld [vmem:[%s5 + $0x80] sm:$0xff]
          %v9861 = vld [vmem:[%s5 + $0x88] sm:$0xff]
          %v9862 = vld [vmem:[%s5 + $0x90] sm:$0xff]
          %v9863 = vld [vmem:[%s5 + $0x98] sm:$0xff]
          %v9864 = vld [vmem:[%s5 + $0xa0] sm:$0xff]
          %v9865 = vld [vmem:[%s5 + $0xa8] sm:$0xff]
          %v9866 = vld [vmem:[%s5 + $0xb0] sm:$0xff]
          %v9867 = vld [vmem:[%s5 + $0xb8] sm:$0xff]
          %v9868 = vld [vmem:[%s5 + $0xc0] sm:$0xff]
          %v9869 = vld [vmem:[%s5 + $0xc8] sm:$0xff]
          %v9870 = vld [vmem:[%s5 + $0xd0] sm:$0xff]
          %v9871 = vld [vmem:[%s5 + $0xd8] sm:$0xff]
          %v9872 = vld [vmem:[%s5 + $0xe0] sm:$0xff]
          %v9873 = vld [vmem:[%s5 + $0xe8] sm:$0xff]
          %v9874 = vld [vmem:[%s5 + $0xf0] sm:$0xff]
          %v9875 = vld [vmem:[%s5 + $0xf8] sm:$0xff]
          %v9876 = vld [vmem:[#allocation13] sm:$0x1]
          %v9878 = vlaneseq
          %v9879 = vshrl.u32 %v9878, 7
          %v9880 = vsub.s32 0, %v9879
          %v9881 = vrot.slane %v9876, %v9880
          %v9885 = vunpack.c.l.s4 1983009808
          %v9886 = vunpack.c.0.s8 %v9885
          %v9887 = vlaneseq
          %v9888 = vshrl.u32 %v9887, 7
          %v9889 = vsub.s32 %v9886, %v9888
          %v9890 = vrot.slane %v9843, %v9889
          %v9891 = vcombine.high %v9890, %v9890
          %9894 = vmatprep.subr.mxu0 0.0
          %9895 = vmatpush1.msra.mxu0 %v9844
          %9896 = vmatprep.subr.mxu0 0.0
          %9897 = vmatpush1.msra.mxu0 %v9845
          %9898 = vmatprep.subr.mxu0 0.0
          %9899 = vmatpush1.msra.mxu0 %v9846
          %9900 = vmatprep.subr.mxu0 0.0
          %9901 = vmatpush1.msra.mxu0 %v9847
          %9902 = vmatprep.subr.mxu0 0.0
          %9903 = vmatpush1.msra.mxu0 %v9848
          %9904 = vmatprep.subr.mxu0 0.0
          %9905 = vmatpush1.msra.mxu0 %v9849
          %9906 = vmatprep.subr.mxu0 0.0
          %9907 = vmatpush1.msra.mxu0 %v9850
          %9908 = vmatprep.subr.mxu0 0.0
          %9909 = vmatpush1.msra.mxu0 %v9851
          %9910 = vmatprep.subr.mxu0 0.0
          %9911 = vmatpush1.msra.mxu0 %v9852
          %9912 = vmatprep.subr.mxu0 0.0
          %9913 = vmatpush1.msra.mxu0 %v9853
          %9914 = vmatprep.subr.mxu0 0.0
          %9915 = vmatpush1.msra.mxu0 %v9854
          %9916 = vmatprep.subr.mxu0 0.0
          %9917 = vmatpush1.msra.mxu0 %v9855
          %9918 = vmatprep.subr.mxu0 0.0
          %9919 = vmatpush1.msra.mxu0 %v9856
          %9920 = vmatprep.subr.mxu0 0.0
          %9921 = vmatpush1.msra.mxu0 %v9857
          %9922 = vmatprep.subr.mxu0 0.0
          %9923 = vmatpush1.msra.mxu0 %v9858
          %9924 = vmatprep.subr.mxu0 0.0
          %9925 = vmatpush1.msra.mxu0 %v9859
          %9926 = vmatprep.subr.mxu0 0.0
          %9927 = vmatpush1.msra.mxu0 %v9860
          %9928 = vmatprep.subr.mxu0 0.0
          %9929 = vmatpush1.msra.mxu0 %v9861
          %9930 = vmatprep.subr.mxu0 0.0
          %9931 = vmatpush1.msra.mxu0 %v9862
          %9932 = vmatprep.subr.mxu0 0.0
          %9933 = vmatpush1.msra.mxu0 %v9863
          %9934 = vmatprep.subr.mxu0 0.0
          %9935 = vmatpush1.msra.mxu0 %v9864
          %9936 = vmatprep.subr.mxu0 0.0
          %9937 = vmatpush1.msra.mxu0 %v9865
          %9938 = vmatprep.subr.mxu0 0.0
          %9939 = vmatpush1.msra.mxu0 %v9866
          %9940 = vmatprep.subr.mxu0 0.0
          %9941 = vmatpush1.msra.mxu0 %v9867
          %9942 = vmatprep.subr.mxu0 0.0
          %9943 = vmatpush1.msra.mxu0 %v9868
          %9944 = vmatprep.subr.mxu0 0.0
          %9945 = vmatpush1.msra.mxu0 %v9869
          %9946 = vmatprep.subr.mxu0 0.0
          %9947 = vmatpush1.msra.mxu0 %v9870
          %9948 = vmatprep.subr.mxu0 0.0
          %9949 = vmatpush1.msra.mxu0 %v9871
          %9950 = vmatprep.subr.mxu0 0.0
          %9951 = vmatpush1.msra.mxu0 %v9872
          %9952 = vmatprep.subr.mxu0 0.0
          %9953 = vmatpush1.msra.mxu0 %v9873
          %9954 = vmatprep.subr.mxu0 0.0
          %9955 = vmatpush1.msra.mxu0 %v9874
          %9956 = vmatprep.subr.mxu0 0.0
          %9957 = vmatpush1.msra.mxu0 %v9875
          %9958 = vmatprep.mubr.f32.mxu0 %v9891
          %9959 = vmatmul.mubr.f32.gmra.mrb[0].mxu0 %v9890
          %v9960 = vpop.f32.mrb[0].mxu0
          %v9961 = vadd.f32 %v9881, %v9960
          %v9962 = vpop.f32.mrb[0].mxu0
          %9963 = vdwg.mxu0
          %vm9964 = vcmask 74752
          %9965 = vst.msk [vmem:[#allocation14] sm:$0x3] %vm9964, %v9961
        $region76: #{cnn_two_forward.1} parent=47 // pred_fallthru
          _
        // Predicated region
        $region77: #{cnn_two_forward.1} parent=47 // pred_check
          %p9966 = pneg %p190
        $region78: #{cnn_two_forward.1} parent=47 // pred_check_branch
          %9968 = sbr.rel (%p9966) target = $region80
        $region79: #{cnn_two_forward.1} parent=47 // pred_region
          %s9970 = ssub.s32 32, 32
          %9971 = vsyncadd [#allocation6], %s9970
          %s9973 = sshll.u32 [#allocation14], 4
          %s9974 = int_to_ptr.vmem [resolvable:$true] %s9973
          %9976 = dma.vmem_to_hbm [thread:$0]  %s9974, 32, %s7, [#allocation6]
        $region80: #{cnn_two_forward.1} parent=47 // pred_fallthru
          _
        // Predicated region
        $region81: #{cnn_two_forward.1} parent=47 // pred_check
          %p9977 = pneg %p190
        $region82: #{cnn_two_forward.1} parent=47 // pred_check_branch
          %9979 = sbr.rel (%p9977) target = $region84
        $region83: #{cnn_two_forward.1} parent=47 // pred_region
          %9980 = dma.done [#allocation6], 32
        $region84: #{cnn_two_forward.1} parent=47 // pred_fallthru
          _
      $region48: #{cnn_two_forward.1} parent=5 // pred_fallthru
        _
      %p9981 = scmp.le.s32.totalorder 2, %s20
      // Predicated region
      $region85: #{cnn_two_forward.1} parent=5 // pred_check
        %p9982 = pneg %p9981
      $region86: #{cnn_two_forward.1} parent=5 // pred_check_branch
        %9984 = sbr.rel (%p9982) target = $region88
      $region87: #{cnn_two_forward.1} parent=5 // pred_region
        %s9985 = ssub.s32 %s20, 2
      $region88: #{cnn_two_forward.1} parent=5 // pred_fallthru
        _
    $region6: #{cnn_two_forward.1} parent=1 // loop_footer
      %s24 = sadd.s32 1, %s20
    $region7: #{cnn_two_forward.1} parent=1 // loop_footer_branch
      %19 = sbr.rel target = $region3
    $region8: #{cnn_two_forward.1} parent=1 // loop_exit
      _
    %9986 = vsyncpa [#allocation5], 1
    %s9987 = scalar_lea.sflag [#allocation5], 1
    %9988 = vsyncpa %s9987, 1
    %9989 = vsyncpa [#allocation12], 1
    %9990 = vsyncpa [#allocation6], 1
    %s9991 = scalar_lea.sflag [#allocation6], 1
    %9992 = vsyncpa %s9991, 1
    %9993 = vsyncpa [#allocation7], 1
    %s9994 = scalar_lea.sflag [#allocation7], 1
    %9995 = vsyncpa %s9994, 1
    %9996 = vsyncpa [#allocation9], 1

</llo_original>
